<compile_context>
chip_gen: v7x
topology: tpu7x:2x2x1
jax: 0.10.0
libtpu: 0.0.40
codegen_flags: <defaults>
</compile_context>

<pallas_src>
import functools

import jax
import jax.numpy as jnp
import numpy as np
from jax import lax
from jax.experimental import pallas as pl
from jax.experimental.pallas import tpu as pltpu

EPS = 1e-5
LANE = 128


def _round_up(x, m):
    return -(-x // m) * m


def _stage_kernel(x_ref, scale_ref, shift_ref, w_ref, b_ref, *rest,
                  H, W, Cp, CoutP, add_residual):
    """One BN(affine)->ReLU->Conv3x3(+bias[+residual]) stage, one batch element."""
    if add_residual:
        res_ref, out_ref, pad_ref, col_ref = rest
    else:
        out_ref, pad_ref, col_ref = rest

    # ---- BN affine (scale/shift precomputed from batch stats in XLA) + ReLU --
    x = x_ref[...].reshape(H * W, Cp)                       # f32
    h = jnp.maximum(x * scale_ref[...] + shift_ref[...], 0.0)

    # ---- write activations into a zero-haloed bf16 scratch -------------------
    # Only the 1-pixel border needs zeros; it is re-zeroed every grid step so the
    # kernel has no persistent scratch state (correct when the batch axis is
    # split across TensorCores).
    zrow = jnp.zeros((1, W + 2, Cp), jnp.bfloat16)
    zcol = jnp.zeros((H + 2, 1, Cp), jnp.bfloat16)
    pad_ref[0:1, :, :] = zrow
    pad_ref[H + 1:H + 2, :, :] = zrow
    pad_ref[:, 0:1, :] = zcol
    pad_ref[:, W + 1:W + 2, :] = zcol
    pad_ref[1:H + 1, 1:W + 1, :] = h.reshape(H, W, Cp).astype(jnp.bfloat16)

    # ---- im2col: nine lane-aligned, Cp-wide column blocks --------------------
    for k in range(9):
        dh, dw = k // 3, k % 3
        col_ref[:, k * Cp:(k + 1) * Cp] = (
            pad_ref[dh:dh + H, dw:dw + W, :].reshape(H * W, Cp))

    # ---- single fused MXU matmul (K = 9*Cp), f32 accumulation -----------------
    acc = jnp.dot(col_ref[...], w_ref[...], preferred_element_type=jnp.float32)
    acc = acc + b_ref[...]                                   # conv bias folded in
    if add_residual:
        acc = acc + res_ref[...].reshape(H * W, CoutP)       # residual folded in
    out_ref[...] = acc.reshape(1, H, W, CoutP).astype(out_ref.dtype)


def _bn_relu_conv_stage(x_p, scale_p, shift_p, w_packed, bias_p, residual_p=None):
    """x_p: (N, H, W, Cp) f32, channel-padded.  Returns (N, H, W, CoutP) f32."""
    N, H, W, Cp = x_p.shape
    CoutP = w_packed.shape[-1]
    add_res = residual_p is not None

    kernel = functools.partial(_stage_kernel, H=H, W=W, Cp=Cp, CoutP=CoutP,
                               add_residual=add_res)

    def batch_spec(c):
        return pl.BlockSpec((1, H, W, c), lambda n: (n, 0, 0, 0))

    def whole_spec(shape):
        return pl.BlockSpec(shape, lambda n, s=shape: (0,) * len(s))

    in_specs = [batch_spec(Cp),
                whole_spec(scale_p.shape),
                whole_spec(shift_p.shape),
                whole_spec(w_packed.shape),
                whole_spec(bias_p.shape)]
    args = [x_p, scale_p, shift_p, w_packed, bias_p]
    if add_res:
        in_specs.append(batch_spec(CoutP))
        args.append(residual_p)

    return pl.pallas_call(
        kernel,
        out_shape=jax.ShapeDtypeStruct((N, H, W, CoutP), jnp.float32),
        grid=(N,),
        in_specs=in_specs,
        out_specs=batch_spec(CoutP),
        scratch_shapes=[
            pltpu.VMEM((H + 2, W + 2, Cp), jnp.bfloat16),    # zero-haloed activations
            pltpu.VMEM((H * W, 9 * Cp), jnp.bfloat16),       # im2col buffer
        ],
        compiler_params=pltpu.CompilerParams(
            dimension_semantics=("parallel",),               # v7x: 2 TCs share the batch
            vmem_limit_bytes=32 * 1024 * 1024,
        ),
    )(*args)


def _batch_stats(y_nhwc):
    """Training-mode BatchNorm2d batch statistics (biased variance)."""
    m = jnp.mean(y_nhwc, axis=(0, 1, 2))
    v = jnp.mean(jnp.square(y_nhwc - m), axis=(0, 1, 2))
    return m, v


def resnet_block(x_nchw, params):
    """PyTorch-layout forward.  x: (N, C, H, W) f32.
    params = (gamma1, beta1, w1[OIHW], conv1_bias, gamma2, beta2, w2[OIHW], conv2_bias)."""
    g1, b1, w1, c1b, g2, b2, w2, c2b = params
    N, C, H, W = x_nchw.shape
    Cout = w2.shape[0]
    assert Cout == C, "residual add requires out_planes == in_planes"

    Cp = _round_up(C, LANE)

    x = jnp.transpose(x_nchw, (0, 2, 3, 1)).astype(jnp.float32)       # NHWC
    x_p = jnp.pad(x, ((0, 0), (0, 0), (0, 0), (0, Cp - C)))

    def pack_w(w_oihw):
        w_hwio = jnp.transpose(w_oihw, (2, 3, 1, 0))                  # (3,3,Cin,Cout)
        w_pad = jnp.pad(w_hwio, ((0, 0), (0, 0), (0, Cp - C), (0, Cp - Cout)))
        return w_pad.reshape(9 * Cp, Cp).astype(jnp.bfloat16)

    def pack_c(v):
        return jnp.pad(v.reshape(-1), (0, Cp - v.size)).reshape(1, Cp)

    # ---- stage 1: BN1 stats (XLA, trivially cheap) -> fused BN/ReLU/conv1 ----
    m1, v1 = _batch_stats(x)
    s1 = g1 / jnp.sqrt(v1 + EPS)
    t1 = b1 - m1 * s1
    y1 = _bn_relu_conv_stage(x_p, pack_c(s1), pack_c(t1), pack_w(w1), pack_c(c1b))

    # ---- stage 2: BN2 stats (XLA) -> fused BN/ReLU/conv2 + residual ----------
    m2, v2 = _batch_stats(y1[..., :C])
    s2 = g2 / jnp.sqrt(v2 + EPS)
    t2 = b2 - m2 * s2
    out_p = _bn_relu_conv_stage(y1, pack_c(s2), pack_c(t2), pack_w(w2),
                                pack_c(c2b), residual_p=x_p)

    out = out_p[..., :Cout]                                           # drop channel pad
    return jnp.transpose(out, (0, 3, 1, 2))                           # back to NCHW


def ref_block(x_nchw, params, mxu_dtype=jnp.bfloat16):
    """Pure-JAX reference of the PyTorch module (training-mode BN).  Conv inputs
    are cast to `mxu_dtype` (f32 accumulation) to mirror the kernel's MXU
    precision; pass jnp.float32 for the exact f32 forward."""
    g1, b1, w1, c1b, g2, b2, w2, c2b = params

    def bn_relu(y, g, b):
        m = jnp.mean(y, axis=(0, 2, 3), keepdims=True)
        v = jnp.mean(jnp.square(y - m), axis=(0, 2, 3), keepdims=True)
        z = (y - m) * (g.reshape(1, -1, 1, 1) / jnp.sqrt(v + EPS)) + b.reshape(1, -1, 1, 1)
        return jnp.maximum(z, 0.0)

    def conv(y, w, bias):
        o = lax.conv_general_dilated(
            y.astype(mxu_dtype), w.astype(mxu_dtype),
            window_strides=(1, 1), padding=((1, 1), (1, 1)),
            dimension_numbers=("NCHW", "OIHW", "NCHW"),
            preferred_element_type=jnp.float32)
        return o + bias.reshape(1, -1, 1, 1)

    h = conv(bn_relu(x_nchw, g1, b1), w1, c1b)
    h = conv(bn_relu(h, g2, b2), w2, c2b)
    return h + x_nchw


if __name__ == "__main__":
    # Residual add requires in_planes == out_planes.
    N, C, H, W = 2, 4, 16, 16
    Cout = C

    key = jax.random.PRNGKey(0)
    kx, k1, k2, k3, k4, k5, k6, k7, k8 = jax.random.split(key, 9)

    x = jax.random.normal(kx, (N, C, H, W), jnp.float32)

    g1 = 1.0 + 0.1 * jax.random.normal(k1, (C,), jnp.float32)
    b1 = 0.1 * jax.random.normal(k2, (C,), jnp.float32)
    w1 = 0.1 * jax.random.normal(k3, (C, C, 3, 3), jnp.float32)       # OIHW
    c1b = 0.1 * jax.random.normal(k4, (C,), jnp.float32)
    g2 = 1.0 + 0.1 * jax.random.normal(k5, (C,), jnp.float32)
    b2 = 0.1 * jax.random.normal(k6, (C,), jnp.float32)
    w2 = 0.1 * jax.random.normal(k7, (Cout, C, 3, 3), jnp.float32)    # OIHW
    c2b = 0.1 * jax.random.normal(k8, (Cout,), jnp.float32)

    params = (g1, b1, w1, c1b, g2, b2, w2, c2b)

    out = jax.block_until_ready(jax.jit(resnet_block)(x, params))

    # Primary check: reference with matching bf16 MXU inputs (f32 accumulation).
    ref_bf16 = jax.block_until_ready(ref_block(x, params, jnp.bfloat16))
    np.testing.assert_allclose(np.asarray(out), np.asarray(ref_bf16),
                               rtol=2e-3, atol=2e-3)

    # Sanity check: exact f32 forward of the module (bounds the bf16 MXU error).
    ref_f32 = jax.block_until_ready(ref_block(x, params, jnp.float32))
    np.testing.assert_allclose(np.asarray(out), np.asarray(ref_f32),
                               rtol=5e-2, atol=5e-2)

    print("KERNEL_OK")
</pallas_src>

<mosaic_0001>
module attributes {stable_mosaic.version = 11 : i64} {
  func.func @_stage_kernel(%arg0: i32, %arg1: memref<1x16x16x128xf32, #tpu.memory_space<vmem>>, %arg2: memref<1x128xf32, #tpu.memory_space<vmem>>, %arg3: memref<1x128xf32, #tpu.memory_space<vmem>>, %arg4: memref<1152x128xbf16, #tpu.memory_space<vmem>>, %arg5: memref<1x128xf32, #tpu.memory_space<vmem>>, %arg6: memref<1x16x16x128xf32, #tpu.memory_space<vmem>>, %arg7: memref<18x18x128xbf16, #tpu.memory_space<vmem>>, %arg8: memref<256x1152xbf16, #tpu.memory_space<vmem>>) attributes {dimension_semantics = [#tpu.dimension_semantics<parallel>], iteration_bounds = array<i64: 2>, scalar_prefetch = 0 : i64, scratch_operands = 2 : i64, tpu.core_type = #tpu.core_type<tc>, window_params = [{transform_indices = @transform_0, window_bounds = array<i64: 1, 16, 16, 128>}, {pipeline_mode = #tpu.pipeline_mode<synchronous>, transform_indices = @transform_1, window_bounds = array<i64: 1, 128>}, {pipeline_mode = #tpu.pipeline_mode<synchronous>, transform_indices = @transform_2, window_bounds = array<i64: 1, 128>}, {pipeline_mode = #tpu.pipeline_mode<synchronous>, transform_indices = @transform_3, window_bounds = array<i64: 1152, 128>}, {pipeline_mode = #tpu.pipeline_mode<synchronous>, transform_indices = @transform_4, window_bounds = array<i64: 1, 128>}, {transform_indices = @transform_5, window_bounds = array<i64: 1, 16, 16, 128>}]} {
    %c0 = arith.constant 0 : index
    %c0_0 = arith.constant 0 : index
    %c0_1 = arith.constant 0 : index
    %c0_2 = arith.constant 0 : index
    %0 = vector.load %arg1[%c0, %c0_0, %c0_1, %c0_2] : memref<1x16x16x128xf32, #tpu.memory_space<vmem>>, vector<1x16x16x128xf32>
    %1 = vector.shape_cast %0 : vector<1x16x16x128xf32> to vector<256x128xf32>
    %c0_3 = arith.constant 0 : index
    %c0_4 = arith.constant 0 : index
    %2 = vector.load %arg2[%c0_3, %c0_4] : memref<1x128xf32, #tpu.memory_space<vmem>>, vector<1x128xf32>
    %3 = vector.broadcast %2 : vector<1x128xf32> to vector<256x128xf32>
    %4 = arith.mulf %1, %3 : vector<256x128xf32>
    %c0_5 = arith.constant 0 : index
    %c0_6 = arith.constant 0 : index
    %5 = vector.load %arg3[%c0_5, %c0_6] : memref<1x128xf32, #tpu.memory_space<vmem>>, vector<1x128xf32>
    %6 = vector.broadcast %5 : vector<1x128xf32> to vector<256x128xf32>
    %7 = arith.addf %4, %6 : vector<256x128xf32>
    %cst = arith.constant 0.000000e+00 : f32
    %8 = vector.broadcast %cst : f32 to vector<256x128xf32>
    %9 = arith.maximumf %7, %8 : vector<256x128xf32>
    %cst_7 = arith.constant 0.000000e+00 : bf16
    %10 = vector.broadcast %cst_7 : bf16 to vector<1x18x128xbf16>
    %cst_8 = arith.constant 0.000000e+00 : bf16
    %11 = vector.broadcast %cst_8 : bf16 to vector<18x1x128xbf16>
    %c0_9 = arith.constant 0 : index
    %c0_10 = arith.constant 0 : index
    %c0_11 = arith.constant 0 : index
    %12 = vector.load %arg7[%c0_9, %c0_10, %c0_11] : memref<18x18x128xbf16, #tpu.memory_space<vmem>>, vector<1x18x128xbf16>
    tpu.vector_store %arg7[%c0_9, %c0_10, %c0_11], %10 {strides = array<i32>} : memref<18x18x128xbf16, #tpu.memory_space<vmem>>, vector<1x18x128xbf16>,
    %c17 = arith.constant 17 : index
    %c0_12 = arith.constant 0 : index
    %c0_13 = arith.constant 0 : index
    %13 = vector.load %arg7[%c17, %c0_12, %c0_13] : memref<18x18x128xbf16, #tpu.memory_space<vmem>>, vector<1x18x128xbf16>
    tpu.vector_store %arg7[%c17, %c0_12, %c0_13], %10 {strides = array<i32>} : memref<18x18x128xbf16, #tpu.memory_space<vmem>>, vector<1x18x128xbf16>,
    %c0_14 = arith.constant 0 : index
    %c0_15 = arith.constant 0 : index
    %c0_16 = arith.constant 0 : index
    %14 = vector.load %arg7[%c0_14, %c0_15, %c0_16] : memref<18x18x128xbf16, #tpu.memory_space<vmem>>, vector<18x1x128xbf16>
    tpu.vector_store %arg7[%c0_14, %c0_15, %c0_16], %11 {strides = array<i32>} : memref<18x18x128xbf16, #tpu.memory_space<vmem>>, vector<18x1x128xbf16>,
    %c0_17 = arith.constant 0 : index
    %c17_18 = arith.constant 17 : index
    %c0_19 = arith.constant 0 : index
    %15 = vector.load %arg7[%c0_17, %c17_18, %c0_19] : memref<18x18x128xbf16, #tpu.memory_space<vmem>>, vector<18x1x128xbf16>
    tpu.vector_store %arg7[%c0_17, %c17_18, %c0_19], %11 {strides = array<i32>} : memref<18x18x128xbf16, #tpu.memory_space<vmem>>, vector<18x1x128xbf16>,
    %16 = vector.shape_cast %9 : vector<256x128xf32> to vector<16x16x128xf32>
    %17 = arith.truncf %16 : vector<16x16x128xf32> to vector<16x16x128xbf16>
    %c1 = arith.constant 1 : index
    %c1_20 = arith.constant 1 : index
    %c0_21 = arith.constant 0 : index
    %18 = vector.load %arg7[%c1, %c1_20, %c0_21] : memref<18x18x128xbf16, #tpu.memory_space<vmem>>, vector<16x16x128xbf16>
    tpu.vector_store %arg7[%c1, %c1_20, %c0_21], %17 {strides = array<i32>} : memref<18x18x128xbf16, #tpu.memory_space<vmem>>, vector<16x16x128xbf16>,
    %c0_22 = arith.constant 0 : index
    %c0_23 = arith.constant 0 : index
    %c0_24 = arith.constant 0 : index
    %19 = vector.load %arg7[%c0_22, %c0_23, %c0_24] : memref<18x18x128xbf16, #tpu.memory_space<vmem>>, vector<16x16x128xbf16>
    %20 = vector.shape_cast %19 : vector<16x16x128xbf16> to vector<256x128xbf16>
    %c0_25 = arith.constant 0 : index
    %c0_26 = arith.constant 0 : index
    %21 = vector.load %arg8[%c0_25, %c0_26] : memref<256x1152xbf16, #tpu.memory_space<vmem>>, vector<256x128xbf16>
    tpu.vector_store %arg8[%c0_25, %c0_26], %20 {strides = array<i32>} : memref<256x1152xbf16, #tpu.memory_space<vmem>>, vector<256x128xbf16>,
    %c0_27 = arith.constant 0 : index
    %c1_28 = arith.constant 1 : index
    %c0_29 = arith.constant 0 : index
    %22 = vector.load %arg7[%c0_27, %c1_28, %c0_29] : memref<18x18x128xbf16, #tpu.memory_space<vmem>>, vector<16x16x128xbf16>
    %23 = vector.shape_cast %22 : vector<16x16x128xbf16> to vector<256x128xbf16>
    %c0_30 = arith.constant 0 : index
    %c128 = arith.constant 128 : index
    %24 = vector.load %arg8[%c0_30, %c128] : memref<256x1152xbf16, #tpu.memory_space<vmem>>, vector<256x128xbf16>
    tpu.vector_store %arg8[%c0_30, %c128], %23 {strides = array<i32>} : memref<256x1152xbf16, #tpu.memory_space<vmem>>, vector<256x128xbf16>,
    %c0_31 = arith.constant 0 : index
    %c2 = arith.constant 2 : index
    %c0_32 = arith.constant 0 : index
    %25 = vector.load %arg7[%c0_31, %c2, %c0_32] : memref<18x18x128xbf16, #tpu.memory_space<vmem>>, vector<16x16x128xbf16>
    %26 = vector.shape_cast %25 : vector<16x16x128xbf16> to vector<256x128xbf16>
    %c0_33 = arith.constant 0 : index
    %c256 = arith.constant 256 : index
    %27 = vector.load %arg8[%c0_33, %c256] : memref<256x1152xbf16, #tpu.memory_space<vmem>>, vector<256x128xbf16>
    tpu.vector_store %arg8[%c0_33, %c256], %26 {strides = array<i32>} : memref<256x1152xbf16, #tpu.memory_space<vmem>>, vector<256x128xbf16>,
    %c1_34 = arith.constant 1 : index
    %c0_35 = arith.constant 0 : index
    %c0_36 = arith.constant 0 : index
    %28 = vector.load %arg7[%c1_34, %c0_35, %c0_36] : memref<18x18x128xbf16, #tpu.memory_space<vmem>>, vector<16x16x128xbf16>
    %29 = vector.shape_cast %28 : vector<16x16x128xbf16> to vector<256x128xbf16>
    %c0_37 = arith.constant 0 : index
    %c384 = arith.constant 384 : index
    %30 = vector.load %arg8[%c0_37, %c384] : memref<256x1152xbf16, #tpu.memory_space<vmem>>, vector<256x128xbf16>
    tpu.vector_store %arg8[%c0_37, %c384], %29 {strides = array<i32>} : memref<256x1152xbf16, #tpu.memory_space<vmem>>, vector<256x128xbf16>,
    %c1_38 = arith.constant 1 : index
    %c1_39 = arith.constant 1 : index
    %c0_40 = arith.constant 0 : index
    %31 = vector.load %arg7[%c1_38, %c1_39, %c0_40] : memref<18x18x128xbf16, #tpu.memory_space<vmem>>, vector<16x16x128xbf16>
    %32 = vector.shape_cast %31 : vector<16x16x128xbf16> to vector<256x128xbf16>
    %c0_41 = arith.constant 0 : index
    %c512 = arith.constant 512 : index
    %33 = vector.load %arg8[%c0_41, %c512] : memref<256x1152xbf16, #tpu.memory_space<vmem>>, vector<256x128xbf16>
    tpu.vector_store %arg8[%c0_41, %c512], %32 {strides = array<i32>} : memref<256x1152xbf16, #tpu.memory_space<vmem>>, vector<256x128xbf16>,
    %c1_42 = arith.constant 1 : index
    %c2_43 = arith.constant 2 : index
    %c0_44 = arith.constant 0 : index
    %34 = vector.load %arg7[%c1_42, %c2_43, %c0_44] : memref<18x18x128xbf16, #tpu.memory_space<vmem>>, vector<16x16x128xbf16>
    %35 = vector.shape_cast %34 : vector<16x16x128xbf16> to vector<256x128xbf16>
    %c0_45 = arith.constant 0 : index
    %c640 = arith.constant 640 : index
    %36 = vector.load %arg8[%c0_45, %c640] : memref<256x1152xbf16, #tpu.memory_space<vmem>>, vector<256x128xbf16>
    tpu.vector_store %arg8[%c0_45, %c640], %35 {strides = array<i32>} : memref<256x1152xbf16, #tpu.memory_space<vmem>>, vector<256x128xbf16>,
    %c2_46 = arith.constant 2 : index
    %c0_47 = arith.constant 0 : index
    %c0_48 = arith.constant 0 : index
    %37 = vector.load %arg7[%c2_46, %c0_47, %c0_48] : memref<18x18x128xbf16, #tpu.memory_space<vmem>>, vector<16x16x128xbf16>
    %38 = vector.shape_cast %37 : vector<16x16x128xbf16> to vector<256x128xbf16>
    %c0_49 = arith.constant 0 : index
    %c768 = arith.constant 768 : index
    %39 = vector.load %arg8[%c0_49, %c768] : memref<256x1152xbf16, #tpu.memory_space<vmem>>, vector<256x128xbf16>
    tpu.vector_store %arg8[%c0_49, %c768], %38 {strides = array<i32>} : memref<256x1152xbf16, #tpu.memory_space<vmem>>, vector<256x128xbf16>,
    %c2_50 = arith.constant 2 : index
    %c1_51 = arith.constant 1 : index
    %c0_52 = arith.constant 0 : index
    %40 = vector.load %arg7[%c2_50, %c1_51, %c0_52] : memref<18x18x128xbf16, #tpu.memory_space<vmem>>, vector<16x16x128xbf16>
    %41 = vector.shape_cast %40 : vector<16x16x128xbf16> to vector<256x128xbf16>
    %c0_53 = arith.constant 0 : index
    %c896 = arith.constant 896 : index
    %42 = vector.load %arg8[%c0_53, %c896] : memref<256x1152xbf16, #tpu.memory_space<vmem>>, vector<256x128xbf16>
    tpu.vector_store %arg8[%c0_53, %c896], %41 {strides = array<i32>} : memref<256x1152xbf16, #tpu.memory_space<vmem>>, vector<256x128xbf16>,
    %c2_54 = arith.constant 2 : index
    %c2_55 = arith.constant 2 : index
    %c0_56 = arith.constant 0 : index
    %43 = vector.load %arg7[%c2_54, %c2_55, %c0_56] : memref<18x18x128xbf16, #tpu.memory_space<vmem>>, vector<16x16x128xbf16>
    %44 = vector.shape_cast %43 : vector<16x16x128xbf16> to vector<256x128xbf16>
    %c0_57 = arith.constant 0 : index
    %c1024 = arith.constant 1024 : index
    %45 = vector.load %arg8[%c0_57, %c1024] : memref<256x1152xbf16, #tpu.memory_space<vmem>>, vector<256x128xbf16>
    tpu.vector_store %arg8[%c0_57, %c1024], %44 {strides = array<i32>} : memref<256x1152xbf16, #tpu.memory_space<vmem>>, vector<256x128xbf16>,
    %c0_58 = arith.constant 0 : index
    %c0_59 = arith.constant 0 : index
    %46 = vector.load %arg8[%c0_58, %c0_59] : memref<256x1152xbf16, #tpu.memory_space<vmem>>, vector<256x1152xbf16>
    %c0_60 = arith.constant 0 : index
    %c0_61 = arith.constant 0 : index
    %47 = vector.load %arg4[%c0_60, %c0_61] : memref<1152x128xbf16, #tpu.memory_space<vmem>>, vector<1152x128xbf16>
    %cst_62 = arith.constant dense<0.000000e+00> : vector<256x128xf32>
    %48 = tpu.matmul %46, %47, %cst_62 {dimension_numbers = #tpu.dot_dimension_numbers<[1], [0], [0], [1], [0, 0, 1, 1], [], []>} : vector<256x1152xbf16>, vector<1152x128xbf16>, vector<256x128xf32> -> vector<256x128xf32>
    %c0_63 = arith.constant 0 : index
    %c0_64 = arith.constant 0 : index
    %49 = vector.load %arg5[%c0_63, %c0_64] : memref<1x128xf32, #tpu.memory_space<vmem>>, vector<1x128xf32>
    %50 = vector.broadcast %49 : vector<1x128xf32> to vector<256x128xf32>
    %51 = arith.addf %48, %50 : vector<256x128xf32>
    %52 = vector.shape_cast %51 : vector<256x128xf32> to vector<1x16x16x128xf32>
    %c0_65 = arith.constant 0 : index
    %c0_66 = arith.constant 0 : index
    %c0_67 = arith.constant 0 : index
    %c0_68 = arith.constant 0 : index
    %53 = vector.load %arg6[%c0_65, %c0_66, %c0_67, %c0_68] : memref<1x16x16x128xf32, #tpu.memory_space<vmem>>, vector<1x16x16x128xf32>
    tpu.vector_store %arg6[%c0_65, %c0_66, %c0_67, %c0_68], %52 {strides = array<i32>} : memref<1x16x16x128xf32, #tpu.memory_space<vmem>>, vector<1x16x16x128xf32>,
    return
  }
  func.func @transform_0(%arg0: i32) -> (i32, i32, i32, i32) {
    %c0_i32 = arith.constant 0 : i32
    %c0_i32_0 = arith.constant 0 : i32
    %c0_i32_1 = arith.constant 0 : i32
    %c0_i32_2 = arith.constant 0 : i32
    return %arg0, %c0_i32, %c0_i32_0, %c0_i32_1 : i32, i32, i32, i32
  }
  func.func @transform_1(%arg0: i32) -> (i32, i32) {
    %c0_i32 = arith.constant 0 : i32
    %c0_i32_0 = arith.constant 0 : i32
    %c0_i32_1 = arith.constant 0 : i32
    return %c0_i32, %c0_i32_0 : i32, i32
  }
  func.func @transform_2(%arg0: i32) -> (i32, i32) {
    %c0_i32 = arith.constant 0 : i32
    %c0_i32_0 = arith.constant 0 : i32
    %c0_i32_1 = arith.constant 0 : i32
    return %c0_i32, %c0_i32_0 : i32, i32
  }
  func.func @transform_3(%arg0: i32) -> (i32, i32) {
    %c0_i32 = arith.constant 0 : i32
    %c0_i32_0 = arith.constant 0 : i32
    %c0_i32_1 = arith.constant 0 : i32
    return %c0_i32, %c0_i32_0 : i32, i32
  }
  func.func @transform_4(%arg0: i32) -> (i32, i32) {
    %c0_i32 = arith.constant 0 : i32
    %c0_i32_0 = arith.constant 0 : i32
    %c0_i32_1 = arith.constant 0 : i32
    return %c0_i32, %c0_i32_0 : i32, i32
  }
  func.func @transform_5(%arg0: i32) -> (i32, i32, i32, i32) {
    %c0_i32 = arith.constant 0 : i32
    %c0_i32_0 = arith.constant 0 : i32
    %c0_i32_1 = arith.constant 0 : i32
    %c0_i32_2 = arith.constant 0 : i32
    return %arg0, %c0_i32, %c0_i32_0, %c0_i32_1 : i32, i32, i32, i32
  }
}

module attributes {stable_mosaic.version = 11 : i64} {
  func.func @_stage_kernel(%arg0: i32, %arg1: memref<1x16x16x128xf32, #tpu.memory_space<vmem>>, %arg2: memref<1x128xf32, #tpu.memory_space<vmem>>, %arg3: memref<1x128xf32, #tpu.memory_space<vmem>>, %arg4: memref<1152x128xbf16, #tpu.memory_space<vmem>>, %arg5: memref<1x128xf32, #tpu.memory_space<vmem>>, %arg6: memref<1x16x16x128xf32, #tpu.memory_space<vmem>>, %arg7: memref<1x16x16x128xf32, #tpu.memory_space<vmem>>, %arg8: memref<18x18x128xbf16, #tpu.memory_space<vmem>>, %arg9: memref<256x1152xbf16, #tpu.memory_space<vmem>>) attributes {dimension_semantics = [#tpu.dimension_semantics<parallel>], iteration_bounds = array<i64: 2>, scalar_prefetch = 0 : i64, scratch_operands = 2 : i64, tpu.core_type = #tpu.core_type<tc>, window_params = [{transform_indices = @transform_0, window_bounds = array<i64: 1, 16, 16, 128>}, {pipeline_mode = #tpu.pipeline_mode<synchronous>, transform_indices = @transform_1, window_bounds = array<i64: 1, 128>}, {pipeline_mode = #tpu.pipeline_mode<synchronous>, transform_indices = @transform_2, window_bounds = array<i64: 1, 128>}, {pipeline_mode = #tpu.pipeline_mode<synchronous>, transform_indices = @transform_3, window_bounds = array<i64: 1152, 128>}, {pipeline_mode = #tpu.pipeline_mode<synchronous>, transform_indices = @transform_4, window_bounds = array<i64: 1, 128>}, {transform_indices = @transform_5, window_bounds = array<i64: 1, 16, 16, 128>}, {transform_indices = @transform_6, window_bounds = array<i64: 1, 16, 16, 128>}]} {
    %c0 = arith.constant 0 : index
    %c0_0 = arith.constant 0 : index
    %c0_1 = arith.constant 0 : index
    %c0_2 = arith.constant 0 : index
    %0 = vector.load %arg1[%c0, %c0_0, %c0_1, %c0_2] : memref<1x16x16x128xf32, #tpu.memory_space<vmem>>, vector<1x16x16x128xf32>
    %1 = vector.shape_cast %0 : vector<1x16x16x128xf32> to vector<256x128xf32>
    %c0_3 = arith.constant 0 : index
    %c0_4 = arith.constant 0 : index
    %2 = vector.load %arg2[%c0_3, %c0_4] : memref<1x128xf32, #tpu.memory_space<vmem>>, vector<1x128xf32>
    %3 = vector.broadcast %2 : vector<1x128xf32> to vector<256x128xf32>
    %4 = arith.mulf %1, %3 : vector<256x128xf32>
    %c0_5 = arith.constant 0 : index
    %c0_6 = arith.constant 0 : index
    %5 = vector.load %arg3[%c0_5, %c0_6] : memref<1x128xf32, #tpu.memory_space<vmem>>, vector<1x128xf32>
    %6 = vector.broadcast %5 : vector<1x128xf32> to vector<256x128xf32>
    %7 = arith.addf %4, %6 : vector<256x128xf32>
    %cst = arith.constant 0.000000e+00 : f32
    %8 = vector.broadcast %cst : f32 to vector<256x128xf32>
    %9 = arith.maximumf %7, %8 : vector<256x128xf32>
    %cst_7 = arith.constant 0.000000e+00 : bf16
    %10 = vector.broadcast %cst_7 : bf16 to vector<1x18x128xbf16>
    %cst_8 = arith.constant 0.000000e+00 : bf16
    %11 = vector.broadcast %cst_8 : bf16 to vector<18x1x128xbf16>
    %c0_9 = arith.constant 0 : index
    %c0_10 = arith.constant 0 : index
    %c0_11 = arith.constant 0 : index
    %12 = vector.load %arg8[%c0_9, %c0_10, %c0_11] : memref<18x18x128xbf16, #tpu.memory_space<vmem>>, vector<1x18x128xbf16>
    tpu.vector_store %arg8[%c0_9, %c0_10, %c0_11], %10 {strides = array<i32>} : memref<18x18x128xbf16, #tpu.memory_space<vmem>>, vector<1x18x128xbf16>,
    %c17 = arith.constant 17 : index
    %c0_12 = arith.constant 0 : index
    %c0_13 = arith.constant 0 : index
    %13 = vector.load %arg8[%c17, %c0_12, %c0_13] : memref<18x18x128xbf16, #tpu.memory_space<vmem>>, vector<1x18x128xbf16>
    tpu.vector_store %arg8[%c17, %c0_12, %c0_13], %10 {strides = array<i32>} : memref<18x18x128xbf16, #tpu.memory_space<vmem>>, vector<1x18x128xbf16>,
    %c0_14 = arith.constant 0 : index
    %c0_15 = arith.constant 0 : index
    %c0_16 = arith.constant 0 : index
    %14 = vector.load %arg8[%c0_14, %c0_15, %c0_16] : memref<18x18x128xbf16, #tpu.memory_space<vmem>>, vector<18x1x128xbf16>
    tpu.vector_store %arg8[%c0_14, %c0_15, %c0_16], %11 {strides = array<i32>} : memref<18x18x128xbf16, #tpu.memory_space<vmem>>, vector<18x1x128xbf16>,
    %c0_17 = arith.constant 0 : index
    %c17_18 = arith.constant 17 : index
    %c0_19 = arith.constant 0 : index
    %15 = vector.load %arg8[%c0_17, %c17_18, %c0_19] : memref<18x18x128xbf16, #tpu.memory_space<vmem>>, vector<18x1x128xbf16>
    tpu.vector_store %arg8[%c0_17, %c17_18, %c0_19], %11 {strides = array<i32>} : memref<18x18x128xbf16, #tpu.memory_space<vmem>>, vector<18x1x128xbf16>,
    %16 = vector.shape_cast %9 : vector<256x128xf32> to vector<16x16x128xf32>
    %17 = arith.truncf %16 : vector<16x16x128xf32> to vector<16x16x128xbf16>
    %c1 = arith.constant 1 : index
    %c1_20 = arith.constant 1 : index
    %c0_21 = arith.constant 0 : index
    %18 = vector.load %arg8[%c1, %c1_20, %c0_21] : memref<18x18x128xbf16, #tpu.memory_space<vmem>>, vector<16x16x128xbf16>
    tpu.vector_store %arg8[%c1, %c1_20, %c0_21], %17 {strides = array<i32>} : memref<18x18x128xbf16, #tpu.memory_space<vmem>>, vector<16x16x128xbf16>,
    %c0_22 = arith.constant 0 : index
    %c0_23 = arith.constant 0 : index
    %c0_24 = arith.constant 0 : index
    %19 = vector.load %arg8[%c0_22, %c0_23, %c0_24] : memref<18x18x128xbf16, #tpu.memory_space<vmem>>, vector<16x16x128xbf16>
    %20 = vector.shape_cast %19 : vector<16x16x128xbf16> to vector<256x128xbf16>
    %c0_25 = arith.constant 0 : index
    %c0_26 = arith.constant 0 : index
    %21 = vector.load %arg9[%c0_25, %c0_26] : memref<256x1152xbf16, #tpu.memory_space<vmem>>, vector<256x128xbf16>
    tpu.vector_store %arg9[%c0_25, %c0_26], %20 {strides = array<i32>} : memref<256x1152xbf16, #tpu.memory_space<vmem>>, vector<256x128xbf16>,
    %c0_27 = arith.constant 0 : index
    %c1_28 = arith.constant 1 : index
    %c0_29 = arith.constant 0 : index
    %22 = vector.load %arg8[%c0_27, %c1_28, %c0_29] : memref<18x18x128xbf16, #tpu.memory_space<vmem>>, vector<16x16x128xbf16>
    %23 = vector.shape_cast %22 : vector<16x16x128xbf16> to vector<256x128xbf16>
    %c0_30 = arith.constant 0 : index
    %c128 = arith.constant 128 : index
    %24 = vector.load %arg9[%c0_30, %c128] : memref<256x1152xbf16, #tpu.memory_space<vmem>>, vector<256x128xbf16>
    tpu.vector_store %arg9[%c0_30, %c128], %23 {strides = array<i32>} : memref<256x1152xbf16, #tpu.memory_space<vmem>>, vector<256x128xbf16>,
    %c0_31 = arith.constant 0 : index
    %c2 = arith.constant 2 : index
    %c0_32 = arith.constant 0 : index
    %25 = vector.load %arg8[%c0_31, %c2, %c0_32] : memref<18x18x128xbf16, #tpu.memory_space<vmem>>, vector<16x16x128xbf16>
    %26 = vector.shape_cast %25 : vector<16x16x128xbf16> to vector<256x128xbf16>
    %c0_33 = arith.constant 0 : index
    %c256 = arith.constant 256 : index
    %27 = vector.load %arg9[%c0_33, %c256] : memref<256x1152xbf16, #tpu.memory_space<vmem>>, vector<256x128xbf16>
    tpu.vector_store %arg9[%c0_33, %c256], %26 {strides = array<i32>} : memref<256x1152xbf16, #tpu.memory_space<vmem>>, vector<256x128xbf16>,
    %c1_34 = arith.constant 1 : index
    %c0_35 = arith.constant 0 : index
    %c0_36 = arith.constant 0 : index
    %28 = vector.load %arg8[%c1_34, %c0_35, %c0_36] : memref<18x18x128xbf16, #tpu.memory_space<vmem>>, vector<16x16x128xbf16>
    %29 = vector.shape_cast %28 : vector<16x16x128xbf16> to vector<256x128xbf16>
    %c0_37 = arith.constant 0 : index
    %c384 = arith.constant 384 : index
    %30 = vector.load %arg9[%c0_37, %c384] : memref<256x1152xbf16, #tpu.memory_space<vmem>>, vector<256x128xbf16>
    tpu.vector_store %arg9[%c0_37, %c384], %29 {strides = array<i32>} : memref<256x1152xbf16, #tpu.memory_space<vmem>>, vector<256x128xbf16>,
    %c1_38 = arith.constant 1 : index
    %c1_39 = arith.constant 1 : index
    %c0_40 = arith.constant 0 : index
    %31 = vector.load %arg8[%c1_38, %c1_39, %c0_40] : memref<18x18x128xbf16, #tpu.memory_space<vmem>>, vector<16x16x128xbf16>
    %32 = vector.shape_cast %31 : vector<16x16x128xbf16> to vector<256x128xbf16>
    %c0_41 = arith.constant 0 : index
    %c512 = arith.constant 512 : index
    %33 = vector.load %arg9[%c0_41, %c512] : memref<256x1152xbf16, #tpu.memory_space<vmem>>, vector<256x128xbf16>
    tpu.vector_store %arg9[%c0_41, %c512], %32 {strides = array<i32>} : memref<256x1152xbf16, #tpu.memory_space<vmem>>, vector<256x128xbf16>,
    %c1_42 = arith.constant 1 : index
    %c2_43 = arith.constant 2 : index
    %c0_44 = arith.constant 0 : index
    %34 = vector.load %arg8[%c1_42, %c2_43, %c0_44] : memref<18x18x128xbf16, #tpu.memory_space<vmem>>, vector<16x16x128xbf16>
    %35 = vector.shape_cast %34 : vector<16x16x128xbf16> to vector<256x128xbf16>
    %c0_45 = arith.constant 0 : index
    %c640 = arith.constant 640 : index
    %36 = vector.load %arg9[%c0_45, %c640] : memref<256x1152xbf16, #tpu.memory_space<vmem>>, vector<256x128xbf16>
    tpu.vector_store %arg9[%c0_45, %c640], %35 {strides = array<i32>} : memref<256x1152xbf16, #tpu.memory_space<vmem>>, vector<256x128xbf16>,
    %c2_46 = arith.constant 2 : index
    %c0_47 = arith.constant 0 : index
    %c0_48 = arith.constant 0 : index
    %37 = vector.load %arg8[%c2_46, %c0_47, %c0_48] : memref<18x18x128xbf16, #tpu.memory_space<vmem>>, vector<16x16x128xbf16>
    %38 = vector.shape_cast %37 : vector<16x16x128xbf16> to vector<256x128xbf16>
    %c0_49 = arith.constant 0 : index
    %c768 = arith.constant 768 : index
    %39 = vector.load %arg9[%c0_49, %c768] : memref<256x1152xbf16, #tpu.memory_space<vmem>>, vector<256x128xbf16>
    tpu.vector_store %arg9[%c0_49, %c768], %38 {strides = array<i32>} : memref<256x1152xbf16, #tpu.memory_space<vmem>>, vector<256x128xbf16>,
    %c2_50 = arith.constant 2 : index
    %c1_51 = arith.constant 1 : index
    %c0_52 = arith.constant 0 : index
    %40 = vector.load %arg8[%c2_50, %c1_51, %c0_52] : memref<18x18x128xbf16, #tpu.memory_space<vmem>>, vector<16x16x128xbf16>
    %41 = vector.shape_cast %40 : vector<16x16x128xbf16> to vector<256x128xbf16>
    %c0_53 = arith.constant 0 : index
    %c896 = arith.constant 896 : index
    %42 = vector.load %arg9[%c0_53, %c896] : memref<256x1152xbf16, #tpu.memory_space<vmem>>, vector<256x128xbf16>
    tpu.vector_store %arg9[%c0_53, %c896], %41 {strides = array<i32>} : memref<256x1152xbf16, #tpu.memory_space<vmem>>, vector<256x128xbf16>,
    %c2_54 = arith.constant 2 : index
    %c2_55 = arith.constant 2 : index
    %c0_56 = arith.constant 0 : index
    %43 = vector.load %arg8[%c2_54, %c2_55, %c0_56] : memref<18x18x128xbf16, #tpu.memory_space<vmem>>, vector<16x16x128xbf16>
    %44 = vector.shape_cast %43 : vector<16x16x128xbf16> to vector<256x128xbf16>
    %c0_57 = arith.constant 0 : index
    %c1024 = arith.constant 1024 : index
    %45 = vector.load %arg9[%c0_57, %c1024] : memref<256x1152xbf16, #tpu.memory_space<vmem>>, vector<256x128xbf16>
    tpu.vector_store %arg9[%c0_57, %c1024], %44 {strides = array<i32>} : memref<256x1152xbf16, #tpu.memory_space<vmem>>, vector<256x128xbf16>,
    %c0_58 = arith.constant 0 : index
    %c0_59 = arith.constant 0 : index
    %46 = vector.load %arg9[%c0_58, %c0_59] : memref<256x1152xbf16, #tpu.memory_space<vmem>>, vector<256x1152xbf16>
    %c0_60 = arith.constant 0 : index
    %c0_61 = arith.constant 0 : index
    %47 = vector.load %arg4[%c0_60, %c0_61] : memref<1152x128xbf16, #tpu.memory_space<vmem>>, vector<1152x128xbf16>
    %cst_62 = arith.constant dense<0.000000e+00> : vector<256x128xf32>
    %48 = tpu.matmul %46, %47, %cst_62 {dimension_numbers = #tpu.dot_dimension_numbers<[1], [0], [0], [1], [0, 0, 1, 1], [], []>} : vector<256x1152xbf16>, vector<1152x128xbf16>, vector<256x128xf32> -> vector<256x128xf32>
    %c0_63 = arith.constant 0 : index
    %c0_64 = arith.constant 0 : index
    %49 = vector.load %arg5[%c0_63, %c0_64] : memref<1x128xf32, #tpu.memory_space<vmem>>, vector<1x128xf32>
    %50 = vector.broadcast %49 : vector<1x128xf32> to vector<256x128xf32>
    %51 = arith.addf %48, %50 : vector<256x128xf32>
    %c0_65 = arith.constant 0 : index
    %c0_66 = arith.constant 0 : index
    %c0_67 = arith.constant 0 : index
    %c0_68 = arith.constant 0 : index
    %52 = vector.load %arg6[%c0_65, %c0_66, %c0_67, %c0_68] : memref<1x16x16x128xf32, #tpu.memory_space<vmem>>, vector<1x16x16x128xf32>
    %53 = vector.shape_cast %52 : vector<1x16x16x128xf32> to vector<256x128xf32>
    %54 = arith.addf %51, %53 : vector<256x128xf32>
    %55 = vector.shape_cast %54 : vector<256x128xf32> to vector<1x16x16x128xf32>
    %c0_69 = arith.constant 0 : index
    %c0_70 = arith.constant 0 : index
    %c0_71 = arith.constant 0 : index
    %c0_72 = arith.constant 0 : index
    %56 = vector.load %arg7[%c0_69, %c0_70, %c0_71, %c0_72] : memref<1x16x16x128xf32, #tpu.memory_space<vmem>>, vector<1x16x16x128xf32>
    tpu.vector_store %arg7[%c0_69, %c0_70, %c0_71, %c0_72], %55 {strides = array<i32>} : memref<1x16x16x128xf32, #tpu.memory_space<vmem>>, vector<1x16x16x128xf32>,
    return
  }
  func.func @transform_0(%arg0: i32) -> (i32, i32, i32, i32) {
    %c0_i32 = arith.constant 0 : i32
    %c0_i32_0 = arith.constant 0 : i32
    %c0_i32_1 = arith.constant 0 : i32
    %c0_i32_2 = arith.constant 0 : i32
    return %arg0, %c0_i32, %c0_i32_0, %c0_i32_1 : i32, i32, i32, i32
  }
  func.func @transform_1(%arg0: i32) -> (i32, i32) {
    %c0_i32 = arith.constant 0 : i32
    %c0_i32_0 = arith.constant 0 : i32
    %c0_i32_1 = arith.constant 0 : i32
    return %c0_i32, %c0_i32_0 : i32, i32
  }
  func.func @transform_2(%arg0: i32) -> (i32, i32) {
    %c0_i32 = arith.constant 0 : i32
    %c0_i32_0 = arith.constant 0 : i32
    %c0_i32_1 = arith.constant 0 : i32
    return %c0_i32, %c0_i32_0 : i32, i32
  }
  func.func @transform_3(%arg0: i32) -> (i32, i32) {
    %c0_i32 = arith.constant 0 : i32
    %c0_i32_0 = arith.constant 0 : i32
    %c0_i32_1 = arith.constant 0 : i32
    return %c0_i32, %c0_i32_0 : i32, i32
  }
  func.func @transform_4(%arg0: i32) -> (i32, i32) {
    %c0_i32 = arith.constant 0 : i32
    %c0_i32_0 = arith.constant 0 : i32
    %c0_i32_1 = arith.constant 0 : i32
    return %c0_i32, %c0_i32_0 : i32, i32
  }
  func.func @transform_5(%arg0: i32) -> (i32, i32, i32, i32) {
    %c0_i32 = arith.constant 0 : i32
    %c0_i32_0 = arith.constant 0 : i32
    %c0_i32_1 = arith.constant 0 : i32
    %c0_i32_2 = arith.constant 0 : i32
    return %arg0, %c0_i32, %c0_i32_0, %c0_i32_1 : i32, i32, i32, i32
  }
  func.func @transform_6(%arg0: i32) -> (i32, i32, i32, i32) {
    %c0_i32 = arith.constant 0 : i32
    %c0_i32_0 = arith.constant 0 : i32
    %c0_i32_1 = arith.constant 0 : i32
    %c0_i32_2 = arith.constant 0 : i32
    return %arg0, %c0_i32, %c0_i32_0, %c0_i32_1 : i32, i32, i32, i32
  }
}

</mosaic_0001>

<llo_original>
// kernel: resnet_block.2
$region0: #{resnet_block.2}
  #allocation0 [shape = 'u32[]', space=smem, size = 0x4, offset = 0x4, fixed_abs, tag = 'smem constant byte address 0x4 - core index']
  #allocation1 [shape = 'u32[144,128]{1,0:T(1,128)}', space=vmem, size = 0x12000, scoped, tag = 'internal scratch']
  #allocation2 [shape = 'bf16[18,18,128]{2,1,0:T(8,128)(2,1)}', space=vmem, size = 0x1b000, scoped, tag = 'scratch operand']
  #allocation3 [shape = 'bf16[256,1152]{1,0:T(16,128)(2,1)}', space=vmem, size = 0x90000, scoped, tag = 'scratch operand']
  %s0 = inlined_call_operand.vmem [shape: f32[2,16,16,128], index: 0, kind: input, shape index: {}]
  %s1 = inlined_call_operand.vmem [shape: f32[1,128], index: 1, kind: input, shape index: {}]
  %s2 = inlined_call_operand.vmem [shape: f32[1,128], index: 2, kind: input, shape index: {}]
  %s3 = inlined_call_operand.vmem [shape: bf16[1152,128], index: 3, kind: input, shape index: {}]
  %s4 = inlined_call_operand.vmem [shape: f32[1,128], index: 4, kind: input, shape index: {}]
  %s5 = inlined_call_operand.vmem [shape: f32[2,16,16,128], index: 5, kind: output, shape index: {}]
  %s6 = sld [smem:[#allocation0]]
  $region53: #{resnet_block.2} parent=0
    _
  %s8 = ssub.s32 1, %s6
  %s9 = scalar_select 0, %s8, %s6
  loop: start=0, step=1, limit=4
  $region2: #{resnet_block.2} parent=0 // loop_pre_header
    _
  $region3: #{resnet_block.2} parent=0 // loop_header
    %s11 = sphi 0, %s15
    %p12 = scmp.ge.s32.totalorder %s11, 4
    %s21 = sphi 0, %s23
    %s24 = sphi 0, %s21
    %s25 = sphi 0, %s24
    %s41 = sphi 0, %s25
    %s45 = sphi 0, %s45
    %s47 = sphi 0, %s45
    %s48 = sphi 0, %s47
    %s62 = sphi 0, %s48
    %s66 = sphi 0, %s66
    %s68 = sphi 0, %s66
    %s69 = sphi 0, %s68
    %s83 = sphi 0, %s69
    %s87 = sphi 0, %s87
    %s89 = sphi 0, %s87
    %s90 = sphi 0, %s89
    %s104 = sphi 0, %s90
    %s108 = sphi 0, %s108
    %s110 = sphi 0, %s108
    %s111 = sphi 0, %s110
    %s125 = sphi 0, %s111
    %s131 = sphi 0, %s133
    %s134 = sphi 0, %s131
    %s135 = sphi 0, %s134
    %s151 = sphi 0, %s135
  $region4: #{resnet_block.2} parent=0 // loop_header_branch
    %14 = sbr.rel (%p12) target = $region8
  $region5: #{resnet_block.2} parent=0 // loop_body
    %s16 = ssub.s32 %s11, 1
    %s17 = ssub.s32 %s11, 2
    %s18 = sadd.s32 %s11, 1
    %s19 = ssub.s32 %s11, %s18
    %p20 = scmp.eq.s32.totalorder %s19, 0
    %s22 = sadd.s32 %s21, 1
    %s23 = scalar_select %p20, %s21, %s22
    %p26 = pneg %p20
    %p27 = scmp.eq.s32.totalorder %s11, 1
    %p28 = por %p26, %p27
    %p29 = scmp.ne.s32.totalorder %s21, %s24
    %p30 = scmp.eq.s32.totalorder %s11, 0
    %p31 = por %p29, %p30
    %p32 = scmp.ne.s32.totalorder %s21, %s24
    %p33 = scmp.eq.s32.totalorder %s16, 1
    %p34 = por %p32, %p33
    %p35 = scmp.ne.s32.totalorder %s24, %s25
    %p36 = scmp.eq.s32.totalorder %s16, 0
    %p37 = por %p35, %p36
    %p38 = scmp.ne.s32.totalorder %s24, %s25
    %p39 = scmp.eq.s32.totalorder %s17, 1
    %p40 = por %p38, %p39
    %p42 = scmp.ne.s32.totalorder %s25, %s41
    %p43 = scmp.eq.s32.totalorder %s17, 0
    %p44 = por %p42, %p43
    %s46 = sadd.s32 %s45, 1
    %p49 = scmp.eq.s32.totalorder %s11, 1
    %p50 = scmp.ne.s32.totalorder %s45, %s47
    %p51 = scmp.eq.s32.totalorder %s11, 0
    %p52 = por %p50, %p51
    %p53 = scmp.ne.s32.totalorder %s45, %s47
    %p54 = scmp.eq.s32.totalorder %s16, 1
    %p55 = por %p53, %p54
    %p56 = scmp.ne.s32.totalorder %s47, %s48
    %p57 = scmp.eq.s32.totalorder %s16, 0
    %p58 = por %p56, %p57
    %p59 = scmp.ne.s32.totalorder %s47, %s48
    %p60 = scmp.eq.s32.totalorder %s17, 1
    %p61 = por %p59, %p60
    %p63 = scmp.ne.s32.totalorder %s48, %s62
    %p64 = scmp.eq.s32.totalorder %s17, 0
    %p65 = por %p63, %p64
    %s67 = sadd.s32 %s66, 1
    %p70 = scmp.eq.s32.totalorder %s11, 1
    %p71 = scmp.ne.s32.totalorder %s66, %s68
    %p72 = scmp.eq.s32.totalorder %s11, 0
    %p73 = por %p71, %p72
    %p74 = scmp.ne.s32.totalorder %s66, %s68
    %p75 = scmp.eq.s32.totalorder %s16, 1
    %p76 = por %p74, %p75
    %p77 = scmp.ne.s32.totalorder %s68, %s69
    %p78 = scmp.eq.s32.totalorder %s16, 0
    %p79 = por %p77, %p78
    %p80 = scmp.ne.s32.totalorder %s68, %s69
    %p81 = scmp.eq.s32.totalorder %s17, 1
    %p82 = por %p80, %p81
    %p84 = scmp.ne.s32.totalorder %s69, %s83
    %p85 = scmp.eq.s32.totalorder %s17, 0
    %p86 = por %p84, %p85
    %s88 = sadd.s32 %s87, 1
    %p91 = scmp.eq.s32.totalorder %s11, 1
    %p92 = scmp.ne.s32.totalorder %s87, %s89
    %p93 = scmp.eq.s32.totalorder %s11, 0
    %p94 = por %p92, %p93
    %p95 = scmp.ne.s32.totalorder %s87, %s89
    %p96 = scmp.eq.s32.totalorder %s16, 1
    %p97 = por %p95, %p96
    %p98 = scmp.ne.s32.totalorder %s89, %s90
    %p99 = scmp.eq.s32.totalorder %s16, 0
    %p100 = por %p98, %p99
    %p101 = scmp.ne.s32.totalorder %s89, %s90
    %p102 = scmp.eq.s32.totalorder %s17, 1
    %p103 = por %p101, %p102
    %p105 = scmp.ne.s32.totalorder %s90, %s104
    %p106 = scmp.eq.s32.totalorder %s17, 0
    %p107 = por %p105, %p106
    %s109 = sadd.s32 %s108, 1
    %p112 = scmp.eq.s32.totalorder %s11, 1
    %p113 = scmp.ne.s32.totalorder %s108, %s110
    %p114 = scmp.eq.s32.totalorder %s11, 0
    %p115 = por %p113, %p114
    %p116 = scmp.ne.s32.totalorder %s108, %s110
    %p117 = scmp.eq.s32.totalorder %s16, 1
    %p118 = por %p116, %p117
    %p119 = scmp.ne.s32.totalorder %s110, %s111
    %p120 = scmp.eq.s32.totalorder %s16, 0
    %p121 = por %p119, %p120
    %p122 = scmp.ne.s32.totalorder %s110, %s111
    %p123 = scmp.eq.s32.totalorder %s17, 1
    %p124 = por %p122, %p123
    %p126 = scmp.ne.s32.totalorder %s111, %s125
    %p127 = scmp.eq.s32.totalorder %s17, 0
    %p128 = por %p126, %p127
    %s129 = ssub.s32 %s11, %s18
    %p130 = scmp.eq.s32.totalorder %s129, 0
    %s132 = sadd.s32 %s131, 1
    %s133 = scalar_select %p130, %s131, %s132
    %p136 = pneg %p130
    %p137 = scmp.eq.s32.totalorder %s11, 1
    %p138 = por %p136, %p137
    %p139 = scmp.ne.s32.totalorder %s131, %s134
    %p140 = scmp.eq.s32.totalorder %s11, 0
    %p141 = por %p139, %p140
    %p142 = scmp.ne.s32.totalorder %s131, %s134
    %p143 = scmp.eq.s32.totalorder %s16, 1
    %p144 = por %p142, %p143
    %p145 = scmp.ne.s32.totalorder %s134, %s135
    %p146 = scmp.eq.s32.totalorder %s16, 0
    %p147 = por %p145, %p146
    %p148 = scmp.ne.s32.totalorder %s134, %s135
    %p149 = scmp.eq.s32.totalorder %s17, 1
    %p150 = por %p148, %p149
    %p152 = scmp.ne.s32.totalorder %s135, %s151
    %p153 = scmp.eq.s32.totalorder %s17, 0
    %p154 = por %p152, %p153
    %p155 = scmp.le.s32.totalorder 1, %s11
    %p156 = scmp.lt.s32.totalorder %s11, 3
    %p157 = pnand %p155, %p156
    %p158 = pneg %p157
    // Predicated region
    $region9: #{resnet_block.2} parent=5 // pred_check
      _
    $region10: #{resnet_block.2} parent=5 // pred_check_branch
      %160 = sbr.rel (%p157) target = $region12
    $region11: #{resnet_block.2} parent=5 // pred_region
      %s161 = ssub.s32 %s11, 1
      // Predicated region
      $region13: #{resnet_block.2} parent=11 // pred_check
        %p162 = pneg %p58
      $region14: #{resnet_block.2} parent=11 // pred_check_branch
        %164 = sbr.rel (%p162) target = $region16
      $region15: #{resnet_block.2} parent=11 // pred_region
        _
      $region16: #{resnet_block.2} parent=11 // pred_fallthru
        _
      // Predicated region
      $region17: #{resnet_block.2} parent=11 // pred_check
        %p165 = pneg %p79
      $region18: #{resnet_block.2} parent=11 // pred_check_branch
        %167 = sbr.rel (%p165) target = $region20
      $region19: #{resnet_block.2} parent=11 // pred_region
        _
      $region20: #{resnet_block.2} parent=11 // pred_fallthru
        _
      // Predicated region
      $region21: #{resnet_block.2} parent=11 // pred_check
        %p168 = pneg %p100
      $region22: #{resnet_block.2} parent=11 // pred_check_branch
        %170 = sbr.rel (%p168) target = $region24
      $region23: #{resnet_block.2} parent=11 // pred_region
        _
      $region24: #{resnet_block.2} parent=11 // pred_fallthru
        _
      // Predicated region
      $region25: #{resnet_block.2} parent=11 // pred_check
        %p171 = pneg %p121
      $region26: #{resnet_block.2} parent=11 // pred_check_branch
        %173 = sbr.rel (%p171) target = $region28
      $region27: #{resnet_block.2} parent=11 // pred_region
        _
      $region28: #{resnet_block.2} parent=11 // pred_fallthru
        _
    $region12: #{resnet_block.2} parent=5 // pred_fallthru
      _
    %p174 = scmp.lt.s32.totalorder %s11, 2
    // Predicated region
    $region29: #{resnet_block.2} parent=5 // pred_check
      %p175 = pneg %p174
    $region30: #{resnet_block.2} parent=5 // pred_check_branch
      %177 = sbr.rel (%p175) target = $region32
    $region31: #{resnet_block.2} parent=5 // pred_region
      // Predicated region
      $region33: #{resnet_block.2} parent=31 // pred_check
        %p178 = pneg %p31
      $region34: #{resnet_block.2} parent=31 // pred_check_branch
        %180 = sbr.rel (%p178) target = $region36
      $region35: #{resnet_block.2} parent=31 // pred_region
        %p181 = scmp.lt.s32.totalorder %s11, 1
        %s182 = scalar_select %p181, %s11, 1
        %s183 = smul.addr %s182, 32
        %s184 = smul.addr %s183, 8
        %s185 = scalar_lea.vmem %s0, %s184
      $region36: #{resnet_block.2} parent=31 // pred_fallthru
        _
    $region32: #{resnet_block.2} parent=5 // pred_fallthru
      _
    %p186 = scmp.le.s32.totalorder 1, %s11
    %p187 = scmp.lt.s32.totalorder %s11, 3
    %p188 = pnand %p186, %p187
    %p189 = pneg %p188
    // Predicated region
    $region37: #{resnet_block.2} parent=5 // pred_check
      _
    $region38: #{resnet_block.2} parent=5 // pred_check_branch
      %191 = sbr.rel (%p188) target = $region40
    $region39: #{resnet_block.2} parent=5 // pred_region
      %s192 = ssub.s32 %s11, 1
      %p193 = scmp.lt.s32.totalorder %s16, 1
      %s194 = scalar_select %p193, %s16, 1
      %s195 = smul.addr %s194, 32
      %s196 = smul.addr %s195, 8
      %s197 = scalar_lea.vmem %s0, %s196
      %p198 = pneg %p37
      %p199 = pneg %p34
      %p200 = pneg %p58
      %p201 = pneg %p55
      %p202 = pneg %p79
      %p203 = pneg %p76
      %p204 = pneg %p100
      %p205 = pneg %p97
      %p206 = pneg %p121
      %p207 = pneg %p118
      %p208 = pneg %p147
      %p209 = pneg %p144
      %p210 = scmp.lt.s32.totalorder %s16, 1
      %s211 = scalar_select %p210, %s16, 1
      %s212 = smul.addr %s211, 32
      %s213 = smul.addr %s212, 8
      %s214 = scalar_lea.vmem %s5, %s213
      %p215 = scmp.lt.s32.totalorder %s16, 1
      %s216 = scalar_select %p215, %s16, 1
      %s217 = smul.addr %s216, 32
      %s218 = smul.addr %s217, 8
      %s219 = scalar_lea.vmem %s0, %s218
      %p220 = scmp.lt.s32.totalorder %s16, 1
      %s221 = scalar_select %p220, %s16, 1
      %s222 = smul.addr %s221, 32
      %s223 = smul.addr %s222, 8
      %s224 = scalar_lea.vmem %s5, %s223
      %v226 = vld [vmem:[%s219] sm:$0xff]
      %v227 = vld [vmem:[%s219 + $0x8] sm:$0xff]
      %v228 = vld [vmem:[%s219 + $0x10] sm:$0xff]
      %v229 = vld [vmem:[%s219 + $0x18] sm:$0xff]
      %v230 = vld [vmem:[%s219 + $0x20] sm:$0xff]
      %v231 = vld [vmem:[%s219 + $0x28] sm:$0xff]
      %v232 = vld [vmem:[%s219 + $0x30] sm:$0xff]
      %v233 = vld [vmem:[%s219 + $0x38] sm:$0xff]
      %v234 = vld [vmem:[%s219 + $0x40] sm:$0xff]
      %v235 = vld [vmem:[%s219 + $0x48] sm:$0xff]
      %v236 = vld [vmem:[%s219 + $0x50] sm:$0xff]
      %v237 = vld [vmem:[%s219 + $0x58] sm:$0xff]
      %v238 = vld [vmem:[%s219 + $0x60] sm:$0xff]
      %v239 = vld [vmem:[%s219 + $0x68] sm:$0xff]
      %v240 = vld [vmem:[%s219 + $0x70] sm:$0xff]
      %v241 = vld [vmem:[%s219 + $0x78] sm:$0xff]
      %v242 = vld [vmem:[%s219 + $0x80] sm:$0xff]
      %v243 = vld [vmem:[%s219 + $0x88] sm:$0xff]
      %v244 = vld [vmem:[%s219 + $0x90] sm:$0xff]
      %v245 = vld [vmem:[%s219 + $0x98] sm:$0xff]
      %v246 = vld [vmem:[%s219 + $0xa0] sm:$0xff]
      %v247 = vld [vmem:[%s219 + $0xa8] sm:$0xff]
      %v248 = vld [vmem:[%s219 + $0xb0] sm:$0xff]
      %v249 = vld [vmem:[%s219 + $0xb8] sm:$0xff]
      %v250 = vld [vmem:[%s219 + $0xc0] sm:$0xff]
      %v251 = vld [vmem:[%s219 + $0xc8] sm:$0xff]
      %v252 = vld [vmem:[%s219 + $0xd0] sm:$0xff]
      %v253 = vld [vmem:[%s219 + $0xd8] sm:$0xff]
      %v254 = vld [vmem:[%s219 + $0xe0] sm:$0xff]
      %v255 = vld [vmem:[%s219 + $0xe8] sm:$0xff]
      %v256 = vld [vmem:[%s219 + $0xf0] sm:$0xff]
      %v257 = vld [vmem:[%s219 + $0xf8] sm:$0xff]
      %v258 = vld [vmem:[%s1] sm:$0x1]
      %v260 = vlaneseq
      %v261 = vshrl.u32 %v260, 7
      %v262 = vsub.s32 0, %v261
      %v263 = vrot.slane %v258, %v262
      %v265 = vmul.f32 %v226, %v263
      %v266 = vmul.f32 %v227, %v263
      %v267 = vmul.f32 %v228, %v263
      %v268 = vmul.f32 %v229, %v263
      %v269 = vmul.f32 %v230, %v263
      %v270 = vmul.f32 %v231, %v263
      %v271 = vmul.f32 %v232, %v263
      %v272 = vmul.f32 %v233, %v263
      %v273 = vmul.f32 %v234, %v263
      %v274 = vmul.f32 %v235, %v263
      %v275 = vmul.f32 %v236, %v263
      %v276 = vmul.f32 %v237, %v263
      %v277 = vmul.f32 %v238, %v263
      %v278 = vmul.f32 %v239, %v263
      %v279 = vmul.f32 %v240, %v263
      %v280 = vmul.f32 %v241, %v263
      %v281 = vmul.f32 %v242, %v263
      %v282 = vmul.f32 %v243, %v263
      %v283 = vmul.f32 %v244, %v263
      %v284 = vmul.f32 %v245, %v263
      %v285 = vmul.f32 %v246, %v263
      %v286 = vmul.f32 %v247, %v263
      %v287 = vmul.f32 %v248, %v263
      %v288 = vmul.f32 %v249, %v263
      %v289 = vmul.f32 %v250, %v263
      %v290 = vmul.f32 %v251, %v263
      %v291 = vmul.f32 %v252, %v263
      %v292 = vmul.f32 %v253, %v263
      %v293 = vmul.f32 %v254, %v263
      %v294 = vmul.f32 %v255, %v263
      %v295 = vmul.f32 %v256, %v263
      %v296 = vmul.f32 %v257, %v263
      %v297 = vld [vmem:[%s2] sm:$0x1]
      %v299 = vlaneseq
      %v300 = vshrl.u32 %v299, 7
      %v301 = vsub.s32 0, %v300
      %v302 = vrot.slane %v297, %v301
      %v304 = vadd.f32 %v265, %v302
      %v305 = vadd.f32 %v266, %v302
      %v306 = vadd.f32 %v267, %v302
      %v307 = vadd.f32 %v268, %v302
      %v308 = vadd.f32 %v269, %v302
      %v309 = vadd.f32 %v270, %v302
      %v310 = vadd.f32 %v271, %v302
      %v311 = vadd.f32 %v272, %v302
      %v312 = vadd.f32 %v273, %v302
      %v313 = vadd.f32 %v274, %v302
      %v314 = vadd.f32 %v275, %v302
      %v315 = vadd.f32 %v276, %v302
      %v316 = vadd.f32 %v277, %v302
      %v317 = vadd.f32 %v278, %v302
      %v318 = vadd.f32 %v279, %v302
      %v319 = vadd.f32 %v280, %v302
      %v320 = vadd.f32 %v281, %v302
      %v321 = vadd.f32 %v282, %v302
      %v322 = vadd.f32 %v283, %v302
      %v323 = vadd.f32 %v284, %v302
      %v324 = vadd.f32 %v285, %v302
      %v325 = vadd.f32 %v286, %v302
      %v326 = vadd.f32 %v287, %v302
      %v327 = vadd.f32 %v288, %v302
      %v328 = vadd.f32 %v289, %v302
      %v329 = vadd.f32 %v290, %v302
      %v330 = vadd.f32 %v291, %v302
      %v331 = vadd.f32 %v292, %v302
      %v332 = vadd.f32 %v293, %v302
      %v333 = vadd.f32 %v294, %v302
      %v334 = vadd.f32 %v295, %v302
      %v335 = vadd.f32 %v296, %v302
      %v336 = vmax.f32 %v304, 0.0
      %v337 = vmax.f32 %v305, 0.0
      %v338 = vmax.f32 %v306, 0.0
      %v339 = vmax.f32 %v307, 0.0
      %v340 = vmax.f32 %v308, 0.0
      %v341 = vmax.f32 %v309, 0.0
      %v342 = vmax.f32 %v310, 0.0
      %v343 = vmax.f32 %v311, 0.0
      %v344 = vmax.f32 %v312, 0.0
      %v345 = vmax.f32 %v313, 0.0
      %v346 = vmax.f32 %v314, 0.0
      %v347 = vmax.f32 %v315, 0.0
      %v348 = vmax.f32 %v316, 0.0
      %v349 = vmax.f32 %v317, 0.0
      %v350 = vmax.f32 %v318, 0.0
      %v351 = vmax.f32 %v319, 0.0
      %v352 = vmax.f32 %v320, 0.0
      %v353 = vmax.f32 %v321, 0.0
      %v354 = vmax.f32 %v322, 0.0
      %v355 = vmax.f32 %v323, 0.0
      %v356 = vmax.f32 %v324, 0.0
      %v357 = vmax.f32 %v325, 0.0
      %v358 = vmax.f32 %v326, 0.0
      %v359 = vmax.f32 %v327, 0.0
      %v360 = vmax.f32 %v328, 0.0
      %v361 = vmax.f32 %v329, 0.0
      %v362 = vmax.f32 %v330, 0.0
      %v363 = vmax.f32 %v331, 0.0
      %v364 = vmax.f32 %v332, 0.0
      %v365 = vmax.f32 %v333, 0.0
      %v366 = vmax.f32 %v334, 0.0
      %v367 = vmax.f32 %v335, 0.0
      %368 = vst [vmem:[#allocation2] sm:$0xf] 0
      %369 = vst [vmem:[#allocation2 + $0x4] sm:$0xf] 0
      %370 = vst [vmem:[#allocation2 + $0x8] sm:$0x1] 0
      %s371 = scalar_lea.vmem [#allocation2], 204
      %372 = vst [vmem:[%s371] sm:$0xf] 0
      %373 = vst [vmem:[%s371 + $0x4] sm:$0xf] 0
      %374 = vst [vmem:[%s371 + $0x8] sm:$0x1] 0
      %vm375 = vcmask 1040384
      %vm376 = vsmask.f32 256
      %vm377 = vmand %vm375, %vm376
      %v378 = vld [vmem:[#allocation2] sm:$0x1]
      %v379 = vsel %vm377, 0, %v378
      %380 = vst [vmem:[#allocation2] sm:$0x1] %v379
      %v381 = vld [vmem:[#allocation2 + $0xc] sm:$0x1]
      %v382 = vsel %vm377, 0, %v381
      %383 = vst [vmem:[#allocation2 + $0xc] sm:$0x1] %v382
      %v384 = vld [vmem:[#allocation2 + $0x18] sm:$0x1]
      %v385 = vsel %vm377, 0, %v384
      %386 = vst [vmem:[#allocation2 + $0x18] sm:$0x1] %v385
      %v387 = vld [vmem:[#allocation2 + $0x24] sm:$0x1]
      %v388 = vsel %vm377, 0, %v387
      %389 = vst [vmem:[#allocation2 + $0x24] sm:$0x1] %v388
      %v390 = vld [vmem:[#allocation2 + $0x30] sm:$0x1]
      %v391 = vsel %vm377, 0, %v390
      %392 = vst [vmem:[#allocation2 + $0x30] sm:$0x1] %v391
      %v393 = vld [vmem:[#allocation2 + $0x3c] sm:$0x1]
      %v394 = vsel %vm377, 0, %v393
      %395 = vst [vmem:[#allocation2 + $0x3c] sm:$0x1] %v394
      %v396 = vld [vmem:[#allocation2 + $0x48] sm:$0x1]
      %v397 = vsel %vm377, 0, %v396
      %398 = vst [vmem:[#allocation2 + $0x48] sm:$0x1] %v397
      %v399 = vld [vmem:[#allocation2 + $0x54] sm:$0x1]
      %v400 = vsel %vm377, 0, %v399
      %401 = vst [vmem:[#allocation2 + $0x54] sm:$0x1] %v400
      %v402 = vld [vmem:[#allocation2 + $0x60] sm:$0x1]
      %v403 = vsel %vm377, 0, %v402
      %404 = vst [vmem:[#allocation2 + $0x60] sm:$0x1] %v403
      %v405 = vld [vmem:[#allocation2 + $0x6c] sm:$0x1]
      %v406 = vsel %vm377, 0, %v405
      %407 = vst [vmem:[#allocation2 + $0x6c] sm:$0x1] %v406
      %v408 = vld [vmem:[#allocation2 + $0x78] sm:$0x1]
      %v409 = vsel %vm377, 0, %v408
      %410 = vst [vmem:[#allocation2 + $0x78] sm:$0x1] %v409
      %v411 = vld [vmem:[#allocation2 + $0x84] sm:$0x1]
      %v412 = vsel %vm377, 0, %v411
      %413 = vst [vmem:[#allocation2 + $0x84] sm:$0x1] %v412
      %v414 = vld [vmem:[#allocation2 + $0x90] sm:$0x1]
      %v415 = vsel %vm377, 0, %v414
      %416 = vst [vmem:[#allocation2 + $0x90] sm:$0x1] %v415
      %v417 = vld [vmem:[#allocation2 + $0x9c] sm:$0x1]
      %v418 = vsel %vm377, 0, %v417
      %419 = vst [vmem:[#allocation2 + $0x9c] sm:$0x1] %v418
      %v420 = vld [vmem:[#allocation2 + $0xa8] sm:$0x1]
      %v421 = vsel %vm377, 0, %v420
      %422 = vst [vmem:[#allocation2 + $0xa8] sm:$0x1] %v421
      %v423 = vld [vmem:[#allocation2 + $0xb4] sm:$0x1]
      %v424 = vsel %vm377, 0, %v423
      %425 = vst [vmem:[#allocation2 + $0xb4] sm:$0x1] %v424
      %v426 = vld [vmem:[#allocation2 + $0xc0] sm:$0x1]
      %v427 = vsel %vm377, 0, %v426
      %428 = vst [vmem:[#allocation2 + $0xc0] sm:$0x1] %v427
      %v429 = vld [vmem:[#allocation2 + $0xcc] sm:$0x1]
      %v430 = vsel %vm377, 0, %v429
      %431 = vst [vmem:[#allocation2 + $0xcc] sm:$0x1] %v430
      %vm432 = vsmask.f32 7938
      %vm433 = vmand %vm375, %vm432
      %v434 = vld [vmem:[#allocation2 + $0x8] sm:$0x1]
      %v435 = vsel %vm433, 0, %v434
      %436 = vst [vmem:[#allocation2 + $0x8] sm:$0x1] %v435
      %v437 = vld [vmem:[#allocation2 + $0x14] sm:$0x1]
      %v438 = vsel %vm433, 0, %v437
      %439 = vst [vmem:[#allocation2 + $0x14] sm:$0x1] %v438
      %v440 = vld [vmem:[#allocation2 + $0x20] sm:$0x1]
      %v441 = vsel %vm433, 0, %v440
      %442 = vst [vmem:[#allocation2 + $0x20] sm:$0x1] %v441
      %v443 = vld [vmem:[#allocation2 + $0x2c] sm:$0x1]
      %v444 = vsel %vm433, 0, %v443
      %445 = vst [vmem:[#allocation2 + $0x2c] sm:$0x1] %v444
      %v446 = vld [vmem:[#allocation2 + $0x38] sm:$0x1]
      %v447 = vsel %vm433, 0, %v446
      %448 = vst [vmem:[#allocation2 + $0x38] sm:$0x1] %v447
      %v449 = vld [vmem:[#allocation2 + $0x44] sm:$0x1]
      %v450 = vsel %vm433, 0, %v449
      %451 = vst [vmem:[#allocation2 + $0x44] sm:$0x1] %v450
      %v452 = vld [vmem:[#allocation2 + $0x50] sm:$0x1]
      %v453 = vsel %vm433, 0, %v452
      %454 = vst [vmem:[#allocation2 + $0x50] sm:$0x1] %v453
      %v455 = vld [vmem:[#allocation2 + $0x5c] sm:$0x1]
      %v456 = vsel %vm433, 0, %v455
      %457 = vst [vmem:[#allocation2 + $0x5c] sm:$0x1] %v456
      %v458 = vld [vmem:[#allocation2 + $0x68] sm:$0x1]
      %v459 = vsel %vm433, 0, %v458
      %460 = vst [vmem:[#allocation2 + $0x68] sm:$0x1] %v459
      %v461 = vld [vmem:[#allocation2 + $0x74] sm:$0x1]
      %v462 = vsel %vm433, 0, %v461
      %463 = vst [vmem:[#allocation2 + $0x74] sm:$0x1] %v462
      %v464 = vld [vmem:[#allocation2 + $0x80] sm:$0x1]
      %v465 = vsel %vm433, 0, %v464
      %466 = vst [vmem:[#allocation2 + $0x80] sm:$0x1] %v465
      %v467 = vld [vmem:[#allocation2 + $0x8c] sm:$0x1]
      %v468 = vsel %vm433, 0, %v467
      %469 = vst [vmem:[#allocation2 + $0x8c] sm:$0x1] %v468
      %v470 = vld [vmem:[#allocation2 + $0x98] sm:$0x1]
      %v471 = vsel %vm433, 0, %v470
      %472 = vst [vmem:[#allocation2 + $0x98] sm:$0x1] %v471
      %v473 = vld [vmem:[#allocation2 + $0xa4] sm:$0x1]
      %v474 = vsel %vm433, 0, %v473
      %475 = vst [vmem:[#allocation2 + $0xa4] sm:$0x1] %v474
      %v476 = vld [vmem:[#allocation2 + $0xb0] sm:$0x1]
      %v477 = vsel %vm433, 0, %v476
      %478 = vst [vmem:[#allocation2 + $0xb0] sm:$0x1] %v477
      %v479 = vld [vmem:[#allocation2 + $0xbc] sm:$0x1]
      %v480 = vsel %vm433, 0, %v479
      %481 = vst [vmem:[#allocation2 + $0xbc] sm:$0x1] %v480
      %v482 = vld [vmem:[#allocation2 + $0xc8] sm:$0x1]
      %v483 = vsel %vm433, 0, %v482
      %484 = vst [vmem:[#allocation2 + $0xc8] sm:$0x1] %v483
      %v485 = vld [vmem:[#allocation2 + $0xd4] sm:$0x1]
      %v486 = vsel %vm433, 0, %v485
      %487 = vst [vmem:[#allocation2 + $0xd4] sm:$0x1] %v486
      %v488 = vpack.c.bf16 %v337, %v336
      %v489 = vpack.c.bf16 %v339, %v338
      %v490 = vpack.c.bf16 %v341, %v340
      %v491 = vpack.c.bf16 %v343, %v342
      %v492 = vpack.c.bf16 %v345, %v344
      %v493 = vpack.c.bf16 %v347, %v346
      %v494 = vpack.c.bf16 %v349, %v348
      %v495 = vpack.c.bf16 %v351, %v350
      %v496 = vpack.c.bf16 %v353, %v352
      %v497 = vpack.c.bf16 %v355, %v354
      %v498 = vpack.c.bf16 %v357, %v356
      %v499 = vpack.c.bf16 %v359, %v358
      %v500 = vpack.c.bf16 %v361, %v360
      %v501 = vpack.c.bf16 %v363, %v362
      %v502 = vpack.c.bf16 %v365, %v364
      %v503 = vpack.c.bf16 %v367, %v366
      %v520 = vunpack.c.l.b16 %v488
      %v521 = vunpack.c.h.b16 %v488
      %v522 = vunpack.c.l.b16 %v489
      %v523 = vunpack.c.h.b16 %v489
      %v524 = vunpack.c.l.b16 %v490
      %v525 = vunpack.c.h.b16 %v490
      %v526 = vunpack.c.l.b16 %v491
      %v527 = vunpack.c.h.b16 %v491
      %v528 = vunpack.c.l.b16 %v492
      %v529 = vunpack.c.h.b16 %v492
      %v530 = vunpack.c.l.b16 %v493
      %v531 = vunpack.c.h.b16 %v493
      %v532 = vunpack.c.l.b16 %v494
      %v533 = vunpack.c.h.b16 %v494
      %v534 = vunpack.c.l.b16 %v495
      %v535 = vunpack.c.h.b16 %v495
      %v536 = vunpack.c.l.b16 %v496
      %v537 = vunpack.c.h.b16 %v496
      %v538 = vunpack.c.l.b16 %v497
      %v539 = vunpack.c.h.b16 %v497
      %v540 = vunpack.c.l.b16 %v498
      %v541 = vunpack.c.h.b16 %v498
      %v542 = vunpack.c.l.b16 %v499
      %v543 = vunpack.c.h.b16 %v499
      %v544 = vunpack.c.l.b16 %v500
      %v545 = vunpack.c.h.b16 %v500
      %v546 = vunpack.c.l.b16 %v501
      %v547 = vunpack.c.h.b16 %v501
      %v548 = vunpack.c.l.b16 %v502
      %v549 = vunpack.c.h.b16 %v502
      %v550 = vunpack.c.l.b16 %v503
      %v551 = vunpack.c.h.b16 %v503
      %v552 = vpack.c.b16 %v520, %v520
      %v553 = vpack.c.b16 %v521, %v521
      %v554 = vpack.c.b16 %v522, %v522
      %v555 = vpack.c.b16 %v523, %v523
      %v556 = vpack.c.b16 %v524, %v524
      %v557 = vpack.c.b16 %v525, %v525
      %v558 = vpack.c.b16 %v526, %v526
      %v559 = vpack.c.b16 %v527, %v527
      %v560 = vpack.c.b16 %v528, %v528
      %v561 = vpack.c.b16 %v529, %v529
      %v562 = vpack.c.b16 %v530, %v530
      %v563 = vpack.c.b16 %v531, %v531
      %v564 = vpack.c.b16 %v532, %v532
      %v565 = vpack.c.b16 %v533, %v533
      %v566 = vpack.c.b16 %v534, %v534
      %v567 = vpack.c.b16 %v535, %v535
      %v568 = vpack.c.b16 %v536, %v536
      %v569 = vpack.c.b16 %v537, %v537
      %v570 = vpack.c.b16 %v538, %v538
      %v571 = vpack.c.b16 %v539, %v539
      %v572 = vpack.c.b16 %v540, %v540
      %v573 = vpack.c.b16 %v541, %v541
      %v574 = vpack.c.b16 %v542, %v542
      %v575 = vpack.c.b16 %v543, %v543
      %v576 = vpack.c.b16 %v544, %v544
      %v577 = vpack.c.b16 %v545, %v545
      %v578 = vpack.c.b16 %v546, %v546
      %v579 = vpack.c.b16 %v547, %v547
      %v580 = vpack.c.b16 %v548, %v548
      %v581 = vpack.c.b16 %v549, %v549
      %v582 = vpack.c.b16 %v550, %v550
      %v583 = vpack.c.b16 %v551, %v551
      %vm584 = vsmask.f32 4368
      %vm585 = vmor %vm376, %vm584
      %v587 = vshrl.u32 %v552, 16
      %v589 = vrot.slane %v587, 7
      %v590 = vshll.u32 %v552, 16
      %v592 = vor.u32 %v589, %v590
      %v593 = vrot.slane %v589, 4
      %v595 = vshrl.u32 %v553, 16
      %v597 = vrot.slane %v595, 7
      %v598 = vshll.u32 %v553, 16
      %v600 = vor.u32 %v597, %v598
      %v601 = vsel %vm585, %v593, %v600
      %v602 = vrot.slane %v597, 4
      %v604 = vshrl.u32 %v554, 16
      %v606 = vrot.slane %v604, 7
      %v607 = vshll.u32 %v554, 16
      %v609 = vor.u32 %v606, %v607
      %v610 = vrot.slane %v606, 4
      %v612 = vshrl.u32 %v555, 16
      %v614 = vrot.slane %v612, 7
      %v615 = vshll.u32 %v555, 16
      %v617 = vor.u32 %v614, %v615
      %v618 = vsel %vm585, %v610, %v617
      %v619 = vrot.slane %v614, 4
      %v621 = vshrl.u32 %v556, 16
      %v623 = vrot.slane %v621, 7
      %v624 = vshll.u32 %v556, 16
      %v626 = vor.u32 %v623, %v624
      %v627 = vrot.slane %v623, 4
      %v629 = vshrl.u32 %v557, 16
      %v631 = vrot.slane %v629, 7
      %v632 = vshll.u32 %v557, 16
      %v634 = vor.u32 %v631, %v632
      %v635 = vsel %vm585, %v627, %v634
      %v636 = vrot.slane %v631, 4
      %v638 = vshrl.u32 %v558, 16
      %v640 = vrot.slane %v638, 7
      %v641 = vshll.u32 %v558, 16
      %v643 = vor.u32 %v640, %v641
      %v644 = vrot.slane %v640, 4
      %v646 = vshrl.u32 %v559, 16
      %v648 = vrot.slane %v646, 7
      %v649 = vshll.u32 %v559, 16
      %v651 = vor.u32 %v648, %v649
      %v652 = vsel %vm585, %v644, %v651
      %v653 = vrot.slane %v648, 4
      %v655 = vshrl.u32 %v560, 16
      %v657 = vrot.slane %v655, 7
      %v658 = vshll.u32 %v560, 16
      %v660 = vor.u32 %v657, %v658
      %v661 = vrot.slane %v657, 4
      %v663 = vshrl.u32 %v561, 16
      %v665 = vrot.slane %v663, 7
      %v666 = vshll.u32 %v561, 16
      %v668 = vor.u32 %v665, %v666
      %v669 = vsel %vm585, %v661, %v668
      %v670 = vrot.slane %v665, 4
      %v672 = vshrl.u32 %v562, 16
      %v674 = vrot.slane %v672, 7
      %v675 = vshll.u32 %v562, 16
      %v677 = vor.u32 %v674, %v675
      %v678 = vrot.slane %v674, 4
      %v680 = vshrl.u32 %v563, 16
      %v682 = vrot.slane %v680, 7
      %v683 = vshll.u32 %v563, 16
      %v685 = vor.u32 %v682, %v683
      %v686 = vsel %vm585, %v678, %v685
      %v687 = vrot.slane %v682, 4
      %v689 = vshrl.u32 %v564, 16
      %v691 = vrot.slane %v689, 7
      %v692 = vshll.u32 %v564, 16
      %v694 = vor.u32 %v691, %v692
      %v695 = vrot.slane %v691, 4
      %v697 = vshrl.u32 %v565, 16
      %v699 = vrot.slane %v697, 7
      %v700 = vshll.u32 %v565, 16
      %v702 = vor.u32 %v699, %v700
      %v703 = vsel %vm585, %v695, %v702
      %v704 = vrot.slane %v699, 4
      %v706 = vshrl.u32 %v566, 16
      %v708 = vrot.slane %v706, 7
      %v709 = vshll.u32 %v566, 16
      %v711 = vor.u32 %v708, %v709
      %v712 = vrot.slane %v708, 4
      %v714 = vshrl.u32 %v567, 16
      %v716 = vrot.slane %v714, 7
      %v717 = vshll.u32 %v567, 16
      %v719 = vor.u32 %v716, %v717
      %v720 = vsel %vm585, %v712, %v719
      %v721 = vrot.slane %v716, 4
      %v723 = vshrl.u32 %v568, 16
      %v725 = vrot.slane %v723, 7
      %v726 = vshll.u32 %v568, 16
      %v728 = vor.u32 %v725, %v726
      %v729 = vrot.slane %v725, 4
      %v731 = vshrl.u32 %v569, 16
      %v733 = vrot.slane %v731, 7
      %v734 = vshll.u32 %v569, 16
      %v736 = vor.u32 %v733, %v734
      %v737 = vsel %vm585, %v729, %v736
      %v738 = vrot.slane %v733, 4
      %v740 = vshrl.u32 %v570, 16
      %v742 = vrot.slane %v740, 7
      %v743 = vshll.u32 %v570, 16
      %v745 = vor.u32 %v742, %v743
      %v746 = vrot.slane %v742, 4
      %v748 = vshrl.u32 %v571, 16
      %v750 = vrot.slane %v748, 7
      %v751 = vshll.u32 %v571, 16
      %v753 = vor.u32 %v750, %v751
      %v754 = vsel %vm585, %v746, %v753
      %v755 = vrot.slane %v750, 4
      %v757 = vshrl.u32 %v572, 16
      %v759 = vrot.slane %v757, 7
      %v760 = vshll.u32 %v572, 16
      %v762 = vor.u32 %v759, %v760
      %v763 = vrot.slane %v759, 4
      %v765 = vshrl.u32 %v573, 16
      %v767 = vrot.slane %v765, 7
      %v768 = vshll.u32 %v573, 16
      %v770 = vor.u32 %v767, %v768
      %v771 = vsel %vm585, %v763, %v770
      %v772 = vrot.slane %v767, 4
      %v774 = vshrl.u32 %v574, 16
      %v776 = vrot.slane %v774, 7
      %v777 = vshll.u32 %v574, 16
      %v779 = vor.u32 %v776, %v777
      %v780 = vrot.slane %v776, 4
      %v782 = vshrl.u32 %v575, 16
      %v784 = vrot.slane %v782, 7
      %v785 = vshll.u32 %v575, 16
      %v787 = vor.u32 %v784, %v785
      %v788 = vsel %vm585, %v780, %v787
      %v789 = vrot.slane %v784, 4
      %v791 = vshrl.u32 %v576, 16
      %v793 = vrot.slane %v791, 7
      %v794 = vshll.u32 %v576, 16
      %v796 = vor.u32 %v793, %v794
      %v797 = vrot.slane %v793, 4
      %v799 = vshrl.u32 %v577, 16
      %v801 = vrot.slane %v799, 7
      %v802 = vshll.u32 %v577, 16
      %v804 = vor.u32 %v801, %v802
      %v805 = vsel %vm585, %v797, %v804
      %v806 = vrot.slane %v801, 4
      %v808 = vshrl.u32 %v578, 16
      %v810 = vrot.slane %v808, 7
      %v811 = vshll.u32 %v578, 16
      %v813 = vor.u32 %v810, %v811
      %v814 = vrot.slane %v810, 4
      %v816 = vshrl.u32 %v579, 16
      %v818 = vrot.slane %v816, 7
      %v819 = vshll.u32 %v579, 16
      %v821 = vor.u32 %v818, %v819
      %v822 = vsel %vm585, %v814, %v821
      %v823 = vrot.slane %v818, 4
      %v825 = vshrl.u32 %v580, 16
      %v827 = vrot.slane %v825, 7
      %v828 = vshll.u32 %v580, 16
      %v830 = vor.u32 %v827, %v828
      %v831 = vrot.slane %v827, 4
      %v833 = vshrl.u32 %v581, 16
      %v835 = vrot.slane %v833, 7
      %v836 = vshll.u32 %v581, 16
      %v838 = vor.u32 %v835, %v836
      %v839 = vsel %vm585, %v831, %v838
      %v840 = vrot.slane %v835, 4
      %v842 = vshrl.u32 %v582, 16
      %v844 = vrot.slane %v842, 7
      %v845 = vshll.u32 %v582, 16
      %v847 = vor.u32 %v844, %v845
      %v848 = vrot.slane %v844, 4
      %v850 = vshrl.u32 %v583, 16
      %v852 = vrot.slane %v850, 7
      %v853 = vshll.u32 %v583, 16
      %v855 = vor.u32 %v852, %v853
      %v856 = vsel %vm585, %v848, %v855
      %v857 = vrot.slane %v852, 4
      %s906 = scalar_lea.vmem [#allocation2], 12
      %vm907 = vcmask 1043456
      %vm908 = vmand %vm907, %vm432
      %v909 = vld [vmem:[%s906] sm:$0xf]
      %v910 = vsel %vm908, %v592, %v909
      %911 = vst [vmem:[%s906] sm:$0xf] %v910
      %912 = vst [vmem:[%s906 + $0x4] sm:$0xf] %v601
      %v913 = vld [vmem:[%s906 + $0x8] sm:$0x1]
      %v914 = vsel %vm377, %v602, %v913
      %915 = vst [vmem:[%s906 + $0x8] sm:$0x1] %v914
      %v916 = vld [vmem:[%s906 + $0xc] sm:$0xf]
      %v917 = vsel %vm908, %v609, %v916
      %918 = vst [vmem:[%s906 + $0xc] sm:$0xf] %v917
      %919 = vst [vmem:[%s906 + $0x10] sm:$0xf] %v618
      %v920 = vld [vmem:[%s906 + $0x14] sm:$0x1]
      %v921 = vsel %vm377, %v619, %v920
      %922 = vst [vmem:[%s906 + $0x14] sm:$0x1] %v921
      %v923 = vld [vmem:[%s906 + $0x18] sm:$0xf]
      %v924 = vsel %vm908, %v626, %v923
      %925 = vst [vmem:[%s906 + $0x18] sm:$0xf] %v924
      %926 = vst [vmem:[%s906 + $0x1c] sm:$0xf] %v635
      %v927 = vld [vmem:[%s906 + $0x20] sm:$0x1]
      %v928 = vsel %vm377, %v636, %v927
      %929 = vst [vmem:[%s906 + $0x20] sm:$0x1] %v928
      %v930 = vld [vmem:[%s906 + $0x24] sm:$0xf]
      %v931 = vsel %vm908, %v643, %v930
      %932 = vst [vmem:[%s906 + $0x24] sm:$0xf] %v931
      %933 = vst [vmem:[%s906 + $0x28] sm:$0xf] %v652
      %v934 = vld [vmem:[%s906 + $0x2c] sm:$0x1]
      %v935 = vsel %vm377, %v653, %v934
      %936 = vst [vmem:[%s906 + $0x2c] sm:$0x1] %v935
      %v937 = vld [vmem:[%s906 + $0x30] sm:$0xf]
      %v938 = vsel %vm908, %v660, %v937
      %939 = vst [vmem:[%s906 + $0x30] sm:$0xf] %v938
      %940 = vst [vmem:[%s906 + $0x34] sm:$0xf] %v669
      %v941 = vld [vmem:[%s906 + $0x38] sm:$0x1]
      %v942 = vsel %vm377, %v670, %v941
      %943 = vst [vmem:[%s906 + $0x38] sm:$0x1] %v942
      %v944 = vld [vmem:[%s906 + $0x3c] sm:$0xf]
      %v945 = vsel %vm908, %v677, %v944
      %946 = vst [vmem:[%s906 + $0x3c] sm:$0xf] %v945
      %947 = vst [vmem:[%s906 + $0x40] sm:$0xf] %v686
      %v948 = vld [vmem:[%s906 + $0x44] sm:$0x1]
      %v949 = vsel %vm377, %v687, %v948
      %950 = vst [vmem:[%s906 + $0x44] sm:$0x1] %v949
      %v951 = vld [vmem:[%s906 + $0x48] sm:$0xf]
      %v952 = vsel %vm908, %v694, %v951
      %953 = vst [vmem:[%s906 + $0x48] sm:$0xf] %v952
      %954 = vst [vmem:[%s906 + $0x4c] sm:$0xf] %v703
      %v955 = vld [vmem:[%s906 + $0x50] sm:$0x1]
      %v956 = vsel %vm377, %v704, %v955
      %957 = vst [vmem:[%s906 + $0x50] sm:$0x1] %v956
      %v958 = vld [vmem:[%s906 + $0x54] sm:$0xf]
      %v959 = vsel %vm908, %v711, %v958
      %960 = vst [vmem:[%s906 + $0x54] sm:$0xf] %v959
      %961 = vst [vmem:[%s906 + $0x58] sm:$0xf] %v720
      %v962 = vld [vmem:[%s906 + $0x5c] sm:$0x1]
      %v963 = vsel %vm377, %v721, %v962
      %964 = vst [vmem:[%s906 + $0x5c] sm:$0x1] %v963
      %v965 = vld [vmem:[%s906 + $0x60] sm:$0xf]
      %v966 = vsel %vm908, %v728, %v965
      %967 = vst [vmem:[%s906 + $0x60] sm:$0xf] %v966
      %968 = vst [vmem:[%s906 + $0x64] sm:$0xf] %v737
      %v969 = vld [vmem:[%s906 + $0x68] sm:$0x1]
      %v970 = vsel %vm377, %v738, %v969
      %971 = vst [vmem:[%s906 + $0x68] sm:$0x1] %v970
      %v972 = vld [vmem:[%s906 + $0x6c] sm:$0xf]
      %v973 = vsel %vm908, %v745, %v972
      %974 = vst [vmem:[%s906 + $0x6c] sm:$0xf] %v973
      %975 = vst [vmem:[%s906 + $0x70] sm:$0xf] %v754
      %v976 = vld [vmem:[%s906 + $0x74] sm:$0x1]
      %v977 = vsel %vm377, %v755, %v976
      %978 = vst [vmem:[%s906 + $0x74] sm:$0x1] %v977
      %v979 = vld [vmem:[%s906 + $0x78] sm:$0xf]
      %v980 = vsel %vm908, %v762, %v979
      %981 = vst [vmem:[%s906 + $0x78] sm:$0xf] %v980
      %982 = vst [vmem:[%s906 + $0x7c] sm:$0xf] %v771
      %v983 = vld [vmem:[%s906 + $0x80] sm:$0x1]
      %v984 = vsel %vm377, %v772, %v983
      %985 = vst [vmem:[%s906 + $0x80] sm:$0x1] %v984
      %v986 = vld [vmem:[%s906 + $0x84] sm:$0xf]
      %v987 = vsel %vm908, %v779, %v986
      %988 = vst [vmem:[%s906 + $0x84] sm:$0xf] %v987
      %989 = vst [vmem:[%s906 + $0x88] sm:$0xf] %v788
      %v990 = vld [vmem:[%s906 + $0x8c] sm:$0x1]
      %v991 = vsel %vm377, %v789, %v990
      %992 = vst [vmem:[%s906 + $0x8c] sm:$0x1] %v991
      %v993 = vld [vmem:[%s906 + $0x90] sm:$0xf]
      %v994 = vsel %vm908, %v796, %v993
      %995 = vst [vmem:[%s906 + $0x90] sm:$0xf] %v994
      %996 = vst [vmem:[%s906 + $0x94] sm:$0xf] %v805
      %v997 = vld [vmem:[%s906 + $0x98] sm:$0x1]
      %v998 = vsel %vm377, %v806, %v997
      %999 = vst [vmem:[%s906 + $0x98] sm:$0x1] %v998
      %v1000 = vld [vmem:[%s906 + $0x9c] sm:$0xf]
      %v1001 = vsel %vm908, %v813, %v1000
      %1002 = vst [vmem:[%s906 + $0x9c] sm:$0xf] %v1001
      %1003 = vst [vmem:[%s906 + $0xa0] sm:$0xf] %v822
      %v1004 = vld [vmem:[%s906 + $0xa4] sm:$0x1]
      %v1005 = vsel %vm377, %v823, %v1004
      %1006 = vst [vmem:[%s906 + $0xa4] sm:$0x1] %v1005
      %v1007 = vld [vmem:[%s906 + $0xa8] sm:$0xf]
      %v1008 = vsel %vm908, %v830, %v1007
      %1009 = vst [vmem:[%s906 + $0xa8] sm:$0xf] %v1008
      %1010 = vst [vmem:[%s906 + $0xac] sm:$0xf] %v839
      %v1011 = vld [vmem:[%s906 + $0xb0] sm:$0x1]
      %v1012 = vsel %vm377, %v840, %v1011
      %1013 = vst [vmem:[%s906 + $0xb0] sm:$0x1] %v1012
      %v1014 = vld [vmem:[%s906 + $0xb4] sm:$0xf]
      %v1015 = vsel %vm908, %v847, %v1014
      %1016 = vst [vmem:[%s906 + $0xb4] sm:$0xf] %v1015
      %1017 = vst [vmem:[%s906 + $0xb8] sm:$0xf] %v856
      %v1018 = vld [vmem:[%s906 + $0xbc] sm:$0x1]
      %v1019 = vsel %vm377, %v857, %v1018
      %1020 = vst [vmem:[%s906 + $0xbc] sm:$0x1] %v1019
      %v1021 = vld [vmem:[#allocation2] sm:$0xf]
      %v1022 = vld [vmem:[#allocation2 + $0x4] sm:$0xf]
      %v1023 = vld [vmem:[#allocation2 + $0xc] sm:$0xf]
      %v1024 = vld [vmem:[#allocation2 + $0x10] sm:$0xf]
      %v1025 = vld [vmem:[#allocation2 + $0x18] sm:$0xf]
      %v1026 = vld [vmem:[#allocation2 + $0x1c] sm:$0xf]
      %v1027 = vld [vmem:[#allocation2 + $0x24] sm:$0xf]
      %v1028 = vld [vmem:[#allocation2 + $0x28] sm:$0xf]
      %v1029 = vld [vmem:[#allocation2 + $0x30] sm:$0xf]
      %v1030 = vld [vmem:[#allocation2 + $0x34] sm:$0xf]
      %v1031 = vld [vmem:[#allocation2 + $0x3c] sm:$0xf]
      %v1032 = vld [vmem:[#allocation2 + $0x40] sm:$0xf]
      %v1033 = vld [vmem:[#allocation2 + $0x48] sm:$0xf]
      %v1034 = vld [vmem:[#allocation2 + $0x4c] sm:$0xf]
      %v1035 = vld [vmem:[#allocation2 + $0x54] sm:$0xf]
      %v1036 = vld [vmem:[#allocation2 + $0x58] sm:$0xf]
      %v1037 = vld [vmem:[#allocation2 + $0x60] sm:$0xf]
      %v1038 = vld [vmem:[#allocation2 + $0x64] sm:$0xf]
      %v1039 = vld [vmem:[#allocation2 + $0x6c] sm:$0xf]
      %v1040 = vld [vmem:[#allocation2 + $0x70] sm:$0xf]
      %v1041 = vld [vmem:[#allocation2 + $0x78] sm:$0xf]
      %v1042 = vld [vmem:[#allocation2 + $0x7c] sm:$0xf]
      %v1043 = vld [vmem:[#allocation2 + $0x84] sm:$0xf]
      %v1044 = vld [vmem:[#allocation2 + $0x88] sm:$0xf]
      %v1045 = vld [vmem:[#allocation2 + $0x90] sm:$0xf]
      %v1046 = vld [vmem:[#allocation2 + $0x94] sm:$0xf]
      %v1047 = vld [vmem:[#allocation2 + $0x9c] sm:$0xf]
      %v1048 = vld [vmem:[#allocation2 + $0xa0] sm:$0xf]
      %v1049 = vld [vmem:[#allocation2 + $0xa8] sm:$0xf]
      %v1050 = vld [vmem:[#allocation2 + $0xac] sm:$0xf]
      %v1051 = vld [vmem:[#allocation2 + $0xb4] sm:$0xf]
      %v1052 = vld [vmem:[#allocation2 + $0xb8] sm:$0xf]
      %v1085 = vunpack.c.l.b16 %v1021
      %v1086 = vunpack.c.l.b16 %v1022
      %v1087 = vunpack.c.l.b16 %v1023
      %v1088 = vunpack.c.l.b16 %v1024
      %v1089 = vunpack.c.l.b16 %v1025
      %v1090 = vunpack.c.l.b16 %v1026
      %v1091 = vunpack.c.l.b16 %v1027
      %v1092 = vunpack.c.l.b16 %v1028
      %v1093 = vunpack.c.l.b16 %v1029
      %v1094 = vunpack.c.l.b16 %v1030
      %v1095 = vunpack.c.l.b16 %v1031
      %v1096 = vunpack.c.l.b16 %v1032
      %v1097 = vunpack.c.l.b16 %v1033
      %v1098 = vunpack.c.l.b16 %v1034
      %v1099 = vunpack.c.l.b16 %v1035
      %v1100 = vunpack.c.l.b16 %v1036
      %v1101 = vunpack.c.l.b16 %v1037
      %v1102 = vunpack.c.l.b16 %v1038
      %v1103 = vunpack.c.l.b16 %v1039
      %v1104 = vunpack.c.l.b16 %v1040
      %v1105 = vunpack.c.l.b16 %v1041
      %v1106 = vunpack.c.l.b16 %v1042
      %v1107 = vunpack.c.l.b16 %v1043
      %v1108 = vunpack.c.l.b16 %v1044
      %v1109 = vunpack.c.l.b16 %v1045
      %v1110 = vunpack.c.l.b16 %v1046
      %v1111 = vunpack.c.l.b16 %v1047
      %v1112 = vunpack.c.l.b16 %v1048
      %v1113 = vunpack.c.l.b16 %v1049
      %v1114 = vunpack.c.l.b16 %v1050
      %v1115 = vunpack.c.l.b16 %v1051
      %v1116 = vunpack.c.l.b16 %v1052
      %v1117 = vpack.c.b16 %v1086, %v1085
      %v1118 = vpack.c.b16 %v1088, %v1087
      %v1119 = vpack.c.b16 %v1090, %v1089
      %v1120 = vpack.c.b16 %v1092, %v1091
      %v1121 = vpack.c.b16 %v1094, %v1093
      %v1122 = vpack.c.b16 %v1096, %v1095
      %v1123 = vpack.c.b16 %v1098, %v1097
      %v1124 = vpack.c.b16 %v1100, %v1099
      %v1125 = vpack.c.b16 %v1102, %v1101
      %v1126 = vpack.c.b16 %v1104, %v1103
      %v1127 = vpack.c.b16 %v1106, %v1105
      %v1128 = vpack.c.b16 %v1108, %v1107
      %v1129 = vpack.c.b16 %v1110, %v1109
      %v1130 = vpack.c.b16 %v1112, %v1111
      %v1131 = vpack.c.b16 %v1114, %v1113
      %v1132 = vpack.c.b16 %v1116, %v1115
      %1149 = vst [vmem:[#allocation3] sm:$0xff] %v1117
      %1150 = vst [vmem:[#allocation3 + $0x48] sm:$0xff] %v1118
      %1151 = vst [vmem:[#allocation3 + $0x90] sm:$0xff] %v1119
      %1152 = vst [vmem:[#allocation3 + $0xd8] sm:$0xff] %v1120
      %1153 = vst [vmem:[#allocation3 + $0x120] sm:$0xff] %v1121
      %1154 = vst [vmem:[#allocation3 + $0x168] sm:$0xff] %v1122
      %1155 = vst [vmem:[#allocation3 + $0x1b0] sm:$0xff] %v1123
      %1156 = vst [vmem:[#allocation3 + $0x1f8] sm:$0xff] %v1124
      %1157 = vst [vmem:[#allocation3 + $0x240] sm:$0xff] %v1125
      %1158 = vst [vmem:[#allocation3 + $0x288] sm:$0xff] %v1126
      %1159 = vst [vmem:[#allocation3 + $0x2d0] sm:$0xff] %v1127
      %1160 = vst [vmem:[#allocation3 + $0x318] sm:$0xff] %v1128
      %1161 = vst [vmem:[#allocation3 + $0x360] sm:$0xff] %v1129
      %1162 = vst [vmem:[#allocation3 + $0x3a8] sm:$0xff] %v1130
      %1163 = vst [vmem:[#allocation3 + $0x3f0] sm:$0xff] %v1131
      %1164 = vst [vmem:[#allocation3 + $0x438] sm:$0xff] %v1132
      %v1165 = vld [vmem:[#allocation2] sm:$0xf]
      %v1166 = vld [vmem:[#allocation2 + $0x4] sm:$0xf]
      %v1167 = vld [vmem:[#allocation2 + $0x8] sm:$0x1]
      %v1168 = vld [vmem:[#allocation2 + $0xc] sm:$0xf]
      %v1169 = vld [vmem:[#allocation2 + $0x10] sm:$0xf]
      %v1170 = vld [vmem:[#allocation2 + $0x14] sm:$0x1]
      %v1171 = vld [vmem:[#allocation2 + $0x18] sm:$0xf]
      %v1172 = vld [vmem:[#allocation2 + $0x1c] sm:$0xf]
      %v1173 = vld [vmem:[#allocation2 + $0x20] sm:$0x1]
      %v1174 = vld [vmem:[#allocation2 + $0x24] sm:$0xf]
      %v1175 = vld [vmem:[#allocation2 + $0x28] sm:$0xf]
      %v1176 = vld [vmem:[#allocation2 + $0x2c] sm:$0x1]
      %v1177 = vld [vmem:[#allocation2 + $0x30] sm:$0xf]
      %v1178 = vld [vmem:[#allocation2 + $0x34] sm:$0xf]
      %v1179 = vld [vmem:[#allocation2 + $0x38] sm:$0x1]
      %v1180 = vld [vmem:[#allocation2 + $0x3c] sm:$0xf]
      %v1181 = vld [vmem:[#allocation2 + $0x40] sm:$0xf]
      %v1182 = vld [vmem:[#allocation2 + $0x44] sm:$0x1]
      %v1183 = vld [vmem:[#allocation2 + $0x48] sm:$0xf]
      %v1184 = vld [vmem:[#allocation2 + $0x4c] sm:$0xf]
      %v1185 = vld [vmem:[#allocation2 + $0x50] sm:$0x1]
      %v1186 = vld [vmem:[#allocation2 + $0x54] sm:$0xf]
      %v1187 = vld [vmem:[#allocation2 + $0x58] sm:$0xf]
      %v1188 = vld [vmem:[#allocation2 + $0x5c] sm:$0x1]
      %v1189 = vld [vmem:[#allocation2 + $0x60] sm:$0xf]
      %v1190 = vld [vmem:[#allocation2 + $0x64] sm:$0xf]
      %v1191 = vld [vmem:[#allocation2 + $0x68] sm:$0x1]
      %v1192 = vld [vmem:[#allocation2 + $0x6c] sm:$0xf]
      %v1193 = vld [vmem:[#allocation2 + $0x70] sm:$0xf]
      %v1194 = vld [vmem:[#allocation2 + $0x74] sm:$0x1]
      %v1195 = vld [vmem:[#allocation2 + $0x78] sm:$0xf]
      %v1196 = vld [vmem:[#allocation2 + $0x7c] sm:$0xf]
      %v1197 = vld [vmem:[#allocation2 + $0x80] sm:$0x1]
      %v1198 = vld [vmem:[#allocation2 + $0x84] sm:$0xf]
      %v1199 = vld [vmem:[#allocation2 + $0x88] sm:$0xf]
      %v1200 = vld [vmem:[#allocation2 + $0x8c] sm:$0x1]
      %v1201 = vld [vmem:[#allocation2 + $0x90] sm:$0xf]
      %v1202 = vld [vmem:[#allocation2 + $0x94] sm:$0xf]
      %v1203 = vld [vmem:[#allocation2 + $0x98] sm:$0x1]
      %v1204 = vld [vmem:[#allocation2 + $0x9c] sm:$0xf]
      %v1205 = vld [vmem:[#allocation2 + $0xa0] sm:$0xf]
      %v1206 = vld [vmem:[#allocation2 + $0xa4] sm:$0x1]
      %v1207 = vld [vmem:[#allocation2 + $0xa8] sm:$0xf]
      %v1208 = vld [vmem:[#allocation2 + $0xac] sm:$0xf]
      %v1209 = vld [vmem:[#allocation2 + $0xb0] sm:$0x1]
      %v1210 = vld [vmem:[#allocation2 + $0xb4] sm:$0xf]
      %v1211 = vld [vmem:[#allocation2 + $0xb8] sm:$0xf]
      %v1212 = vld [vmem:[#allocation2 + $0xbc] sm:$0x1]
      %vm1213 = vsmask.f32 3328
      %vm1214 = vsmask.f32 7440
      %vm1215 = vmor %vm1213, %vm1214
      %v1217 = vshrl.u32 %v1165, 16
      %v1219 = vrot.slane %v1217, 4
      %v1220 = vshll.u32 %v1165, 16
      %v1222 = vrot.slane %v1220, 5
      %v1223 = vor.u32 %v1219, %v1222
      %v1224 = vrot.slane %v1223, 4
      %v1226 = vshll.u32 %v1166, 16
      %v1228 = vrot.slane %v1226, 5
      %v1229 = vsel %vm1215, %v1224, %v1228
      %v1230 = vshrl.u32 %v1166, 16
      %v1232 = vrot.slane %v1230, 4
      %v1233 = vor.u32 %v1232, %v1228
      %v1234 = vrot.slane %v1233, 4
      %v1236 = vshll.u32 %v1167, 16
      %v1238 = vrot.slane %v1236, 5
      %v1239 = vsel %vm1215, %v1234, %v1238
      %v1241 = vshrl.u32 %v1168, 16
      %v1243 = vrot.slane %v1241, 4
      %v1244 = vshll.u32 %v1168, 16
      %v1246 = vrot.slane %v1244, 5
      %v1247 = vor.u32 %v1243, %v1246
      %v1248 = vrot.slane %v1247, 4
      %v1250 = vshll.u32 %v1169, 16
      %v1252 = vrot.slane %v1250, 5
      %v1253 = vsel %vm1215, %v1248, %v1252
      %v1254 = vshrl.u32 %v1169, 16
      %v1256 = vrot.slane %v1254, 4
      %v1257 = vor.u32 %v1256, %v1252
      %v1258 = vrot.slane %v1257, 4
      %v1260 = vshll.u32 %v1170, 16
      %v1262 = vrot.slane %v1260, 5
      %v1263 = vsel %vm1215, %v1258, %v1262
      %v1265 = vshrl.u32 %v1171, 16
      %v1267 = vrot.slane %v1265, 4
      %v1268 = vshll.u32 %v1171, 16
      %v1270 = vrot.slane %v1268, 5
      %v1271 = vor.u32 %v1267, %v1270
      %v1272 = vrot.slane %v1271, 4
      %v1274 = vshll.u32 %v1172, 16
      %v1276 = vrot.slane %v1274, 5
      %v1277 = vsel %vm1215, %v1272, %v1276
      %v1278 = vshrl.u32 %v1172, 16
      %v1280 = vrot.slane %v1278, 4
      %v1281 = vor.u32 %v1280, %v1276
      %v1282 = vrot.slane %v1281, 4
      %v1284 = vshll.u32 %v1173, 16
      %v1286 = vrot.slane %v1284, 5
      %v1287 = vsel %vm1215, %v1282, %v1286
      %v1289 = vshrl.u32 %v1174, 16
      %v1291 = vrot.slane %v1289, 4
      %v1292 = vshll.u32 %v1174, 16
      %v1294 = vrot.slane %v1292, 5
      %v1295 = vor.u32 %v1291, %v1294
      %v1296 = vrot.slane %v1295, 4
      %v1298 = vshll.u32 %v1175, 16
      %v1300 = vrot.slane %v1298, 5
      %v1301 = vsel %vm1215, %v1296, %v1300
      %v1302 = vshrl.u32 %v1175, 16
      %v1304 = vrot.slane %v1302, 4
      %v1305 = vor.u32 %v1304, %v1300
      %v1306 = vrot.slane %v1305, 4
      %v1308 = vshll.u32 %v1176, 16
      %v1310 = vrot.slane %v1308, 5
      %v1311 = vsel %vm1215, %v1306, %v1310
      %v1313 = vshrl.u32 %v1177, 16
      %v1315 = vrot.slane %v1313, 4
      %v1316 = vshll.u32 %v1177, 16
      %v1318 = vrot.slane %v1316, 5
      %v1319 = vor.u32 %v1315, %v1318
      %v1320 = vrot.slane %v1319, 4
      %v1322 = vshll.u32 %v1178, 16
      %v1324 = vrot.slane %v1322, 5
      %v1325 = vsel %vm1215, %v1320, %v1324
      %v1326 = vshrl.u32 %v1178, 16
      %v1328 = vrot.slane %v1326, 4
      %v1329 = vor.u32 %v1328, %v1324
      %v1330 = vrot.slane %v1329, 4
      %v1332 = vshll.u32 %v1179, 16
      %v1334 = vrot.slane %v1332, 5
      %v1335 = vsel %vm1215, %v1330, %v1334
      %v1337 = vshrl.u32 %v1180, 16
      %v1339 = vrot.slane %v1337, 4
      %v1340 = vshll.u32 %v1180, 16
      %v1342 = vrot.slane %v1340, 5
      %v1343 = vor.u32 %v1339, %v1342
      %v1344 = vrot.slane %v1343, 4
      %v1346 = vshll.u32 %v1181, 16
      %v1348 = vrot.slane %v1346, 5
      %v1349 = vsel %vm1215, %v1344, %v1348
      %v1350 = vshrl.u32 %v1181, 16
      %v1352 = vrot.slane %v1350, 4
      %v1353 = vor.u32 %v1352, %v1348
      %v1354 = vrot.slane %v1353, 4
      %v1356 = vshll.u32 %v1182, 16
      %v1358 = vrot.slane %v1356, 5
      %v1359 = vsel %vm1215, %v1354, %v1358
      %v1361 = vshrl.u32 %v1183, 16
      %v1363 = vrot.slane %v1361, 4
      %v1364 = vshll.u32 %v1183, 16
      %v1366 = vrot.slane %v1364, 5
      %v1367 = vor.u32 %v1363, %v1366
      %v1368 = vrot.slane %v1367, 4
      %v1370 = vshll.u32 %v1184, 16
      %v1372 = vrot.slane %v1370, 5
      %v1373 = vsel %vm1215, %v1368, %v1372
      %v1374 = vshrl.u32 %v1184, 16
      %v1376 = vrot.slane %v1374, 4
      %v1377 = vor.u32 %v1376, %v1372
      %v1378 = vrot.slane %v1377, 4
      %v1380 = vshll.u32 %v1185, 16
      %v1382 = vrot.slane %v1380, 5
      %v1383 = vsel %vm1215, %v1378, %v1382
      %v1385 = vshrl.u32 %v1186, 16
      %v1387 = vrot.slane %v1385, 4
      %v1388 = vshll.u32 %v1186, 16
      %v1390 = vrot.slane %v1388, 5
      %v1391 = vor.u32 %v1387, %v1390
      %v1392 = vrot.slane %v1391, 4
      %v1394 = vshll.u32 %v1187, 16
      %v1396 = vrot.slane %v1394, 5
      %v1397 = vsel %vm1215, %v1392, %v1396
      %v1398 = vshrl.u32 %v1187, 16
      %v1400 = vrot.slane %v1398, 4
      %v1401 = vor.u32 %v1400, %v1396
      %v1402 = vrot.slane %v1401, 4
      %v1404 = vshll.u32 %v1188, 16
      %v1406 = vrot.slane %v1404, 5
      %v1407 = vsel %vm1215, %v1402, %v1406
      %v1409 = vshrl.u32 %v1189, 16
      %v1411 = vrot.slane %v1409, 4
      %v1412 = vshll.u32 %v1189, 16
      %v1414 = vrot.slane %v1412, 5
      %v1415 = vor.u32 %v1411, %v1414
      %v1416 = vrot.slane %v1415, 4
      %v1418 = vshll.u32 %v1190, 16
      %v1420 = vrot.slane %v1418, 5
      %v1421 = vsel %vm1215, %v1416, %v1420
      %v1422 = vshrl.u32 %v1190, 16
      %v1424 = vrot.slane %v1422, 4
      %v1425 = vor.u32 %v1424, %v1420
      %v1426 = vrot.slane %v1425, 4
      %v1428 = vshll.u32 %v1191, 16
      %v1430 = vrot.slane %v1428, 5
      %v1431 = vsel %vm1215, %v1426, %v1430
      %v1433 = vshrl.u32 %v1192, 16
      %v1435 = vrot.slane %v1433, 4
      %v1436 = vshll.u32 %v1192, 16
      %v1438 = vrot.slane %v1436, 5
      %v1439 = vor.u32 %v1435, %v1438
      %v1440 = vrot.slane %v1439, 4
      %v1442 = vshll.u32 %v1193, 16
      %v1444 = vrot.slane %v1442, 5
      %v1445 = vsel %vm1215, %v1440, %v1444
      %v1446 = vshrl.u32 %v1193, 16
      %v1448 = vrot.slane %v1446, 4
      %v1449 = vor.u32 %v1448, %v1444
      %v1450 = vrot.slane %v1449, 4
      %v1452 = vshll.u32 %v1194, 16
      %v1454 = vrot.slane %v1452, 5
      %v1455 = vsel %vm1215, %v1450, %v1454
      %v1457 = vshrl.u32 %v1195, 16
      %v1459 = vrot.slane %v1457, 4
      %v1460 = vshll.u32 %v1195, 16
      %v1462 = vrot.slane %v1460, 5
      %v1463 = vor.u32 %v1459, %v1462
      %v1464 = vrot.slane %v1463, 4
      %v1466 = vshll.u32 %v1196, 16
      %v1468 = vrot.slane %v1466, 5
      %v1469 = vsel %vm1215, %v1464, %v1468
      %v1470 = vshrl.u32 %v1196, 16
      %v1472 = vrot.slane %v1470, 4
      %v1473 = vor.u32 %v1472, %v1468
      %v1474 = vrot.slane %v1473, 4
      %v1476 = vshll.u32 %v1197, 16
      %v1478 = vrot.slane %v1476, 5
      %v1479 = vsel %vm1215, %v1474, %v1478
      %v1481 = vshrl.u32 %v1198, 16
      %v1483 = vrot.slane %v1481, 4
      %v1484 = vshll.u32 %v1198, 16
      %v1486 = vrot.slane %v1484, 5
      %v1487 = vor.u32 %v1483, %v1486
      %v1488 = vrot.slane %v1487, 4
      %v1490 = vshll.u32 %v1199, 16
      %v1492 = vrot.slane %v1490, 5
      %v1493 = vsel %vm1215, %v1488, %v1492
      %v1494 = vshrl.u32 %v1199, 16
      %v1496 = vrot.slane %v1494, 4
      %v1497 = vor.u32 %v1496, %v1492
      %v1498 = vrot.slane %v1497, 4
      %v1500 = vshll.u32 %v1200, 16
      %v1502 = vrot.slane %v1500, 5
      %v1503 = vsel %vm1215, %v1498, %v1502
      %v1505 = vshrl.u32 %v1201, 16
      %v1507 = vrot.slane %v1505, 4
      %v1508 = vshll.u32 %v1201, 16
      %v1510 = vrot.slane %v1508, 5
      %v1511 = vor.u32 %v1507, %v1510
      %v1512 = vrot.slane %v1511, 4
      %v1514 = vshll.u32 %v1202, 16
      %v1516 = vrot.slane %v1514, 5
      %v1517 = vsel %vm1215, %v1512, %v1516
      %v1518 = vshrl.u32 %v1202, 16
      %v1520 = vrot.slane %v1518, 4
      %v1521 = vor.u32 %v1520, %v1516
      %v1522 = vrot.slane %v1521, 4
      %v1524 = vshll.u32 %v1203, 16
      %v1526 = vrot.slane %v1524, 5
      %v1527 = vsel %vm1215, %v1522, %v1526
      %v1529 = vshrl.u32 %v1204, 16
      %v1531 = vrot.slane %v1529, 4
      %v1532 = vshll.u32 %v1204, 16
      %v1534 = vrot.slane %v1532, 5
      %v1535 = vor.u32 %v1531, %v1534
      %v1536 = vrot.slane %v1535, 4
      %v1538 = vshll.u32 %v1205, 16
      %v1540 = vrot.slane %v1538, 5
      %v1541 = vsel %vm1215, %v1536, %v1540
      %v1542 = vshrl.u32 %v1205, 16
      %v1544 = vrot.slane %v1542, 4
      %v1545 = vor.u32 %v1544, %v1540
      %v1546 = vrot.slane %v1545, 4
      %v1548 = vshll.u32 %v1206, 16
      %v1550 = vrot.slane %v1548, 5
      %v1551 = vsel %vm1215, %v1546, %v1550
      %v1553 = vshrl.u32 %v1207, 16
      %v1555 = vrot.slane %v1553, 4
      %v1556 = vshll.u32 %v1207, 16
      %v1558 = vrot.slane %v1556, 5
      %v1559 = vor.u32 %v1555, %v1558
      %v1560 = vrot.slane %v1559, 4
      %v1562 = vshll.u32 %v1208, 16
      %v1564 = vrot.slane %v1562, 5
      %v1565 = vsel %vm1215, %v1560, %v1564
      %v1566 = vshrl.u32 %v1208, 16
      %v1568 = vrot.slane %v1566, 4
      %v1569 = vor.u32 %v1568, %v1564
      %v1570 = vrot.slane %v1569, 4
      %v1572 = vshll.u32 %v1209, 16
      %v1574 = vrot.slane %v1572, 5
      %v1575 = vsel %vm1215, %v1570, %v1574
      %v1577 = vshrl.u32 %v1210, 16
      %v1579 = vrot.slane %v1577, 4
      %v1580 = vshll.u32 %v1210, 16
      %v1582 = vrot.slane %v1580, 5
      %v1583 = vor.u32 %v1579, %v1582
      %v1584 = vrot.slane %v1583, 4
      %v1586 = vshll.u32 %v1211, 16
      %v1588 = vrot.slane %v1586, 5
      %v1589 = vsel %vm1215, %v1584, %v1588
      %v1590 = vshrl.u32 %v1211, 16
      %v1592 = vrot.slane %v1590, 4
      %v1593 = vor.u32 %v1592, %v1588
      %v1594 = vrot.slane %v1593, 4
      %v1596 = vshll.u32 %v1212, 16
      %v1598 = vrot.slane %v1596, 5
      %v1599 = vsel %vm1215, %v1594, %v1598
      %v1600 = vunpack.c.l.b16 %v1229
      %v1601 = vunpack.c.l.b16 %v1239
      %v1602 = vunpack.c.l.b16 %v1253
      %v1603 = vunpack.c.l.b16 %v1263
      %v1604 = vunpack.c.l.b16 %v1277
      %v1605 = vunpack.c.l.b16 %v1287
      %v1606 = vunpack.c.l.b16 %v1301
      %v1607 = vunpack.c.l.b16 %v1311
      %v1608 = vunpack.c.l.b16 %v1325
      %v1609 = vunpack.c.l.b16 %v1335
      %v1610 = vunpack.c.l.b16 %v1349
      %v1611 = vunpack.c.l.b16 %v1359
      %v1612 = vunpack.c.l.b16 %v1373
      %v1613 = vunpack.c.l.b16 %v1383
      %v1614 = vunpack.c.l.b16 %v1397
      %v1615 = vunpack.c.l.b16 %v1407
      %v1616 = vunpack.c.l.b16 %v1421
      %v1617 = vunpack.c.l.b16 %v1431
      %v1618 = vunpack.c.l.b16 %v1445
      %v1619 = vunpack.c.l.b16 %v1455
      %v1620 = vunpack.c.l.b16 %v1469
      %v1621 = vunpack.c.l.b16 %v1479
      %v1622 = vunpack.c.l.b16 %v1493
      %v1623 = vunpack.c.l.b16 %v1503
      %v1624 = vunpack.c.l.b16 %v1517
      %v1625 = vunpack.c.l.b16 %v1527
      %v1626 = vunpack.c.l.b16 %v1541
      %v1627 = vunpack.c.l.b16 %v1551
      %v1628 = vunpack.c.l.b16 %v1565
      %v1629 = vunpack.c.l.b16 %v1575
      %v1630 = vunpack.c.l.b16 %v1589
      %v1631 = vunpack.c.l.b16 %v1599
      %v1632 = vpack.c.b16 %v1601, %v1600
      %v1633 = vpack.c.b16 %v1603, %v1602
      %v1634 = vpack.c.b16 %v1605, %v1604
      %v1635 = vpack.c.b16 %v1607, %v1606
      %v1636 = vpack.c.b16 %v1609, %v1608
      %v1637 = vpack.c.b16 %v1611, %v1610
      %v1638 = vpack.c.b16 %v1613, %v1612
      %v1639 = vpack.c.b16 %v1615, %v1614
      %v1640 = vpack.c.b16 %v1617, %v1616
      %v1641 = vpack.c.b16 %v1619, %v1618
      %v1642 = vpack.c.b16 %v1621, %v1620
      %v1643 = vpack.c.b16 %v1623, %v1622
      %v1644 = vpack.c.b16 %v1625, %v1624
      %v1645 = vpack.c.b16 %v1627, %v1626
      %v1646 = vpack.c.b16 %v1629, %v1628
      %v1647 = vpack.c.b16 %v1631, %v1630
      %1664 = vst [vmem:[#allocation3 + $0x8] sm:$0xff] %v1632
      %1665 = vst [vmem:[#allocation3 + $0x50] sm:$0xff] %v1633
      %1666 = vst [vmem:[#allocation3 + $0x98] sm:$0xff] %v1634
      %1667 = vst [vmem:[#allocation3 + $0xe0] sm:$0xff] %v1635
      %1668 = vst [vmem:[#allocation3 + $0x128] sm:$0xff] %v1636
      %1669 = vst [vmem:[#allocation3 + $0x170] sm:$0xff] %v1637
      %1670 = vst [vmem:[#allocation3 + $0x1b8] sm:$0xff] %v1638
      %1671 = vst [vmem:[#allocation3 + $0x200] sm:$0xff] %v1639
      %1672 = vst [vmem:[#allocation3 + $0x248] sm:$0xff] %v1640
      %1673 = vst [vmem:[#allocation3 + $0x290] sm:$0xff] %v1641
      %1674 = vst [vmem:[#allocation3 + $0x2d8] sm:$0xff] %v1642
      %1675 = vst [vmem:[#allocation3 + $0x320] sm:$0xff] %v1643
      %1676 = vst [vmem:[#allocation3 + $0x368] sm:$0xff] %v1644
      %1677 = vst [vmem:[#allocation3 + $0x3b0] sm:$0xff] %v1645
      %1678 = vst [vmem:[#allocation3 + $0x3f8] sm:$0xff] %v1646
      %1679 = vst [vmem:[#allocation3 + $0x440] sm:$0xff] %v1647
      %v1680 = vld [vmem:[#allocation2] sm:$0xe]
      %v1681 = vld [vmem:[#allocation2 + $0x4] sm:$0xf]
      %v1682 = vld [vmem:[#allocation2 + $0x8] sm:$0x1]
      %v1683 = vld [vmem:[#allocation2 + $0xc] sm:$0xe]
      %v1684 = vld [vmem:[#allocation2 + $0x10] sm:$0xf]
      %v1685 = vld [vmem:[#allocation2 + $0x14] sm:$0x1]
      %v1686 = vld [vmem:[#allocation2 + $0x18] sm:$0xe]
      %v1687 = vld [vmem:[#allocation2 + $0x1c] sm:$0xf]
      %v1688 = vld [vmem:[#allocation2 + $0x20] sm:$0x1]
      %v1689 = vld [vmem:[#allocation2 + $0x24] sm:$0xe]
      %v1690 = vld [vmem:[#allocation2 + $0x28] sm:$0xf]
      %v1691 = vld [vmem:[#allocation2 + $0x2c] sm:$0x1]
      %v1692 = vld [vmem:[#allocation2 + $0x30] sm:$0xe]
      %v1693 = vld [vmem:[#allocation2 + $0x34] sm:$0xf]
      %v1694 = vld [vmem:[#allocation2 + $0x38] sm:$0x1]
      %v1695 = vld [vmem:[#allocation2 + $0x3c] sm:$0xe]
      %v1696 = vld [vmem:[#allocation2 + $0x40] sm:$0xf]
      %v1697 = vld [vmem:[#allocation2 + $0x44] sm:$0x1]
      %v1698 = vld [vmem:[#allocation2 + $0x48] sm:$0xe]
      %v1699 = vld [vmem:[#allocation2 + $0x4c] sm:$0xf]
      %v1700 = vld [vmem:[#allocation2 + $0x50] sm:$0x1]
      %v1701 = vld [vmem:[#allocation2 + $0x54] sm:$0xe]
      %v1702 = vld [vmem:[#allocation2 + $0x58] sm:$0xf]
      %v1703 = vld [vmem:[#allocation2 + $0x5c] sm:$0x1]
      %v1704 = vld [vmem:[#allocation2 + $0x60] sm:$0xe]
      %v1705 = vld [vmem:[#allocation2 + $0x64] sm:$0xf]
      %v1706 = vld [vmem:[#allocation2 + $0x68] sm:$0x1]
      %v1707 = vld [vmem:[#allocation2 + $0x6c] sm:$0xe]
      %v1708 = vld [vmem:[#allocation2 + $0x70] sm:$0xf]
      %v1709 = vld [vmem:[#allocation2 + $0x74] sm:$0x1]
      %v1710 = vld [vmem:[#allocation2 + $0x78] sm:$0xe]
      %v1711 = vld [vmem:[#allocation2 + $0x7c] sm:$0xf]
      %v1712 = vld [vmem:[#allocation2 + $0x80] sm:$0x1]
      %v1713 = vld [vmem:[#allocation2 + $0x84] sm:$0xe]
      %v1714 = vld [vmem:[#allocation2 + $0x88] sm:$0xf]
      %v1715 = vld [vmem:[#allocation2 + $0x8c] sm:$0x1]
      %v1716 = vld [vmem:[#allocation2 + $0x90] sm:$0xe]
      %v1717 = vld [vmem:[#allocation2 + $0x94] sm:$0xf]
      %v1718 = vld [vmem:[#allocation2 + $0x98] sm:$0x1]
      %v1719 = vld [vmem:[#allocation2 + $0x9c] sm:$0xe]
      %v1720 = vld [vmem:[#allocation2 + $0xa0] sm:$0xf]
      %v1721 = vld [vmem:[#allocation2 + $0xa4] sm:$0x1]
      %v1722 = vld [vmem:[#allocation2 + $0xa8] sm:$0xe]
      %v1723 = vld [vmem:[#allocation2 + $0xac] sm:$0xf]
      %v1724 = vld [vmem:[#allocation2 + $0xb0] sm:$0x1]
      %v1725 = vld [vmem:[#allocation2 + $0xb4] sm:$0xe]
      %v1726 = vld [vmem:[#allocation2 + $0xb8] sm:$0xf]
      %v1727 = vld [vmem:[#allocation2 + $0xbc] sm:$0x1]
      %vm1776 = vcmask 1042432
      %vm1777 = vcmask 1046532
      %vm1778 = vmor %vm1776, %vm1777
      %v1779 = vrot.slane %v1680, 5
      %v1780 = vrot.slane %v1779, 4
      %v1781 = vrot.slane %v1681, 5
      %v1782 = vsel %vm1778, %v1780, %v1781
      %v1783 = vrot.slane %v1781, 4
      %v1784 = vrot.slane %v1682, 5
      %v1785 = vsel %vm1778, %v1783, %v1784
      %v1786 = vrot.slane %v1683, 5
      %v1787 = vrot.slane %v1786, 4
      %v1788 = vrot.slane %v1684, 5
      %v1789 = vsel %vm1778, %v1787, %v1788
      %v1790 = vrot.slane %v1788, 4
      %v1791 = vrot.slane %v1685, 5
      %v1792 = vsel %vm1778, %v1790, %v1791
      %v1793 = vrot.slane %v1686, 5
      %v1794 = vrot.slane %v1793, 4
      %v1795 = vrot.slane %v1687, 5
      %v1796 = vsel %vm1778, %v1794, %v1795
      %v1797 = vrot.slane %v1795, 4
      %v1798 = vrot.slane %v1688, 5
      %v1799 = vsel %vm1778, %v1797, %v1798
      %v1800 = vrot.slane %v1689, 5
      %v1801 = vrot.slane %v1800, 4
      %v1802 = vrot.slane %v1690, 5
      %v1803 = vsel %vm1778, %v1801, %v1802
      %v1804 = vrot.slane %v1802, 4
      %v1805 = vrot.slane %v1691, 5
      %v1806 = vsel %vm1778, %v1804, %v1805
      %v1807 = vrot.slane %v1692, 5
      %v1808 = vrot.slane %v1807, 4
      %v1809 = vrot.slane %v1693, 5
      %v1810 = vsel %vm1778, %v1808, %v1809
      %v1811 = vrot.slane %v1809, 4
      %v1812 = vrot.slane %v1694, 5
      %v1813 = vsel %vm1778, %v1811, %v1812
      %v1814 = vrot.slane %v1695, 5
      %v1815 = vrot.slane %v1814, 4
      %v1816 = vrot.slane %v1696, 5
      %v1817 = vsel %vm1778, %v1815, %v1816
      %v1818 = vrot.slane %v1816, 4
      %v1819 = vrot.slane %v1697, 5
      %v1820 = vsel %vm1778, %v1818, %v1819
      %v1821 = vrot.slane %v1698, 5
      %v1822 = vrot.slane %v1821, 4
      %v1823 = vrot.slane %v1699, 5
      %v1824 = vsel %vm1778, %v1822, %v1823
      %v1825 = vrot.slane %v1823, 4
      %v1826 = vrot.slane %v1700, 5
      %v1827 = vsel %vm1778, %v1825, %v1826
      %v1828 = vrot.slane %v1701, 5
      %v1829 = vrot.slane %v1828, 4
      %v1830 = vrot.slane %v1702, 5
      %v1831 = vsel %vm1778, %v1829, %v1830
      %v1832 = vrot.slane %v1830, 4
      %v1833 = vrot.slane %v1703, 5
      %v1834 = vsel %vm1778, %v1832, %v1833
      %v1835 = vrot.slane %v1704, 5
      %v1836 = vrot.slane %v1835, 4
      %v1837 = vrot.slane %v1705, 5
      %v1838 = vsel %vm1778, %v1836, %v1837
      %v1839 = vrot.slane %v1837, 4
      %v1840 = vrot.slane %v1706, 5
      %v1841 = vsel %vm1778, %v1839, %v1840
      %v1842 = vrot.slane %v1707, 5
      %v1843 = vrot.slane %v1842, 4
      %v1844 = vrot.slane %v1708, 5
      %v1845 = vsel %vm1778, %v1843, %v1844
      %v1846 = vrot.slane %v1844, 4
      %v1847 = vrot.slane %v1709, 5
      %v1848 = vsel %vm1778, %v1846, %v1847
      %v1849 = vrot.slane %v1710, 5
      %v1850 = vrot.slane %v1849, 4
      %v1851 = vrot.slane %v1711, 5
      %v1852 = vsel %vm1778, %v1850, %v1851
      %v1853 = vrot.slane %v1851, 4
      %v1854 = vrot.slane %v1712, 5
      %v1855 = vsel %vm1778, %v1853, %v1854
      %v1856 = vrot.slane %v1713, 5
      %v1857 = vrot.slane %v1856, 4
      %v1858 = vrot.slane %v1714, 5
      %v1859 = vsel %vm1778, %v1857, %v1858
      %v1860 = vrot.slane %v1858, 4
      %v1861 = vrot.slane %v1715, 5
      %v1862 = vsel %vm1778, %v1860, %v1861
      %v1863 = vrot.slane %v1716, 5
      %v1864 = vrot.slane %v1863, 4
      %v1865 = vrot.slane %v1717, 5
      %v1866 = vsel %vm1778, %v1864, %v1865
      %v1867 = vrot.slane %v1865, 4
      %v1868 = vrot.slane %v1718, 5
      %v1869 = vsel %vm1778, %v1867, %v1868
      %v1870 = vrot.slane %v1719, 5
      %v1871 = vrot.slane %v1870, 4
      %v1872 = vrot.slane %v1720, 5
      %v1873 = vsel %vm1778, %v1871, %v1872
      %v1874 = vrot.slane %v1872, 4
      %v1875 = vrot.slane %v1721, 5
      %v1876 = vsel %vm1778, %v1874, %v1875
      %v1877 = vrot.slane %v1722, 5
      %v1878 = vrot.slane %v1877, 4
      %v1879 = vrot.slane %v1723, 5
      %v1880 = vsel %vm1778, %v1878, %v1879
      %v1881 = vrot.slane %v1879, 4
      %v1882 = vrot.slane %v1724, 5
      %v1883 = vsel %vm1778, %v1881, %v1882
      %v1884 = vrot.slane %v1725, 5
      %v1885 = vrot.slane %v1884, 4
      %v1886 = vrot.slane %v1726, 5
      %v1887 = vsel %vm1778, %v1885, %v1886
      %v1888 = vrot.slane %v1886, 4
      %v1889 = vrot.slane %v1727, 5
      %v1890 = vsel %vm1778, %v1888, %v1889
      %v1891 = vunpack.c.l.b16 %v1782
      %v1892 = vunpack.c.l.b16 %v1785
      %v1893 = vunpack.c.l.b16 %v1789
      %v1894 = vunpack.c.l.b16 %v1792
      %v1895 = vunpack.c.l.b16 %v1796
      %v1896 = vunpack.c.l.b16 %v1799
      %v1897 = vunpack.c.l.b16 %v1803
      %v1898 = vunpack.c.l.b16 %v1806
      %v1899 = vunpack.c.l.b16 %v1810
      %v1900 = vunpack.c.l.b16 %v1813
      %v1901 = vunpack.c.l.b16 %v1817
      %v1902 = vunpack.c.l.b16 %v1820
      %v1903 = vunpack.c.l.b16 %v1824
      %v1904 = vunpack.c.l.b16 %v1827
      %v1905 = vunpack.c.l.b16 %v1831
      %v1906 = vunpack.c.l.b16 %v1834
      %v1907 = vunpack.c.l.b16 %v1838
      %v1908 = vunpack.c.l.b16 %v1841
      %v1909 = vunpack.c.l.b16 %v1845
      %v1910 = vunpack.c.l.b16 %v1848
      %v1911 = vunpack.c.l.b16 %v1852
      %v1912 = vunpack.c.l.b16 %v1855
      %v1913 = vunpack.c.l.b16 %v1859
      %v1914 = vunpack.c.l.b16 %v1862
      %v1915 = vunpack.c.l.b16 %v1866
      %v1916 = vunpack.c.l.b16 %v1869
      %v1917 = vunpack.c.l.b16 %v1873
      %v1918 = vunpack.c.l.b16 %v1876
      %v1919 = vunpack.c.l.b16 %v1880
      %v1920 = vunpack.c.l.b16 %v1883
      %v1921 = vunpack.c.l.b16 %v1887
      %v1922 = vunpack.c.l.b16 %v1890
      %v1923 = vpack.c.b16 %v1892, %v1891
      %v1924 = vpack.c.b16 %v1894, %v1893
      %v1925 = vpack.c.b16 %v1896, %v1895
      %v1926 = vpack.c.b16 %v1898, %v1897
      %v1927 = vpack.c.b16 %v1900, %v1899
      %v1928 = vpack.c.b16 %v1902, %v1901
      %v1929 = vpack.c.b16 %v1904, %v1903
      %v1930 = vpack.c.b16 %v1906, %v1905
      %v1931 = vpack.c.b16 %v1908, %v1907
      %v1932 = vpack.c.b16 %v1910, %v1909
      %v1933 = vpack.c.b16 %v1912, %v1911
      %v1934 = vpack.c.b16 %v1914, %v1913
      %v1935 = vpack.c.b16 %v1916, %v1915
      %v1936 = vpack.c.b16 %v1918, %v1917
      %v1937 = vpack.c.b16 %v1920, %v1919
      %v1938 = vpack.c.b16 %v1922, %v1921
      %1955 = vst [vmem:[#allocation3 + $0x10] sm:$0xff] %v1923
      %1956 = vst [vmem:[#allocation3 + $0x58] sm:$0xff] %v1924
      %1957 = vst [vmem:[#allocation3 + $0xa0] sm:$0xff] %v1925
      %1958 = vst [vmem:[#allocation3 + $0xe8] sm:$0xff] %v1926
      %1959 = vst [vmem:[#allocation3 + $0x130] sm:$0xff] %v1927
      %1960 = vst [vmem:[#allocation3 + $0x178] sm:$0xff] %v1928
      %1961 = vst [vmem:[#allocation3 + $0x1c0] sm:$0xff] %v1929
      %1962 = vst [vmem:[#allocation3 + $0x208] sm:$0xff] %v1930
      %1963 = vst [vmem:[#allocation3 + $0x250] sm:$0xff] %v1931
      %1964 = vst [vmem:[#allocation3 + $0x298] sm:$0xff] %v1932
      %1965 = vst [vmem:[#allocation3 + $0x2e0] sm:$0xff] %v1933
      %1966 = vst [vmem:[#allocation3 + $0x328] sm:$0xff] %v1934
      %1967 = vst [vmem:[#allocation3 + $0x370] sm:$0xff] %v1935
      %1968 = vst [vmem:[#allocation3 + $0x3b8] sm:$0xff] %v1936
      %1969 = vst [vmem:[#allocation3 + $0x400] sm:$0xff] %v1937
      %1970 = vst [vmem:[#allocation3 + $0x448] sm:$0xff] %v1938
      %v1971 = vld [vmem:[%s906] sm:$0xf]
      %v1972 = vld [vmem:[%s906 + $0x4] sm:$0xf]
      %v1973 = vld [vmem:[%s906 + $0xc] sm:$0xf]
      %v1974 = vld [vmem:[%s906 + $0x10] sm:$0xf]
      %v1975 = vld [vmem:[%s906 + $0x18] sm:$0xf]
      %v1976 = vld [vmem:[%s906 + $0x1c] sm:$0xf]
      %v1977 = vld [vmem:[%s906 + $0x24] sm:$0xf]
      %v1978 = vld [vmem:[%s906 + $0x28] sm:$0xf]
      %v1979 = vld [vmem:[%s906 + $0x30] sm:$0xf]
      %v1980 = vld [vmem:[%s906 + $0x34] sm:$0xf]
      %v1981 = vld [vmem:[%s906 + $0x3c] sm:$0xf]
      %v1982 = vld [vmem:[%s906 + $0x40] sm:$0xf]
      %v1983 = vld [vmem:[%s906 + $0x48] sm:$0xf]
      %v1984 = vld [vmem:[%s906 + $0x4c] sm:$0xf]
      %v1985 = vld [vmem:[%s906 + $0x54] sm:$0xf]
      %v1986 = vld [vmem:[%s906 + $0x58] sm:$0xf]
      %v1987 = vld [vmem:[%s906 + $0x60] sm:$0xf]
      %v1988 = vld [vmem:[%s906 + $0x64] sm:$0xf]
      %v1989 = vld [vmem:[%s906 + $0x6c] sm:$0xf]
      %v1990 = vld [vmem:[%s906 + $0x70] sm:$0xf]
      %v1991 = vld [vmem:[%s906 + $0x78] sm:$0xf]
      %v1992 = vld [vmem:[%s906 + $0x7c] sm:$0xf]
      %v1993 = vld [vmem:[%s906 + $0x84] sm:$0xf]
      %v1994 = vld [vmem:[%s906 + $0x88] sm:$0xf]
      %v1995 = vld [vmem:[%s906 + $0x90] sm:$0xf]
      %v1996 = vld [vmem:[%s906 + $0x94] sm:$0xf]
      %v1997 = vld [vmem:[%s906 + $0x9c] sm:$0xf]
      %v1998 = vld [vmem:[%s906 + $0xa0] sm:$0xf]
      %v1999 = vld [vmem:[%s906 + $0xa8] sm:$0xf]
      %v2000 = vld [vmem:[%s906 + $0xac] sm:$0xf]
      %v2001 = vld [vmem:[%s906 + $0xb4] sm:$0xf]
      %v2002 = vld [vmem:[%s906 + $0xb8] sm:$0xf]
      %v2035 = vunpack.c.l.b16 %v1971
      %v2036 = vunpack.c.l.b16 %v1972
      %v2037 = vunpack.c.l.b16 %v1973
      %v2038 = vunpack.c.l.b16 %v1974
      %v2039 = vunpack.c.l.b16 %v1975
      %v2040 = vunpack.c.l.b16 %v1976
      %v2041 = vunpack.c.l.b16 %v1977
      %v2042 = vunpack.c.l.b16 %v1978
      %v2043 = vunpack.c.l.b16 %v1979
      %v2044 = vunpack.c.l.b16 %v1980
      %v2045 = vunpack.c.l.b16 %v1981
      %v2046 = vunpack.c.l.b16 %v1982
      %v2047 = vunpack.c.l.b16 %v1983
      %v2048 = vunpack.c.l.b16 %v1984
      %v2049 = vunpack.c.l.b16 %v1985
      %v2050 = vunpack.c.l.b16 %v1986
      %v2051 = vunpack.c.l.b16 %v1987
      %v2052 = vunpack.c.l.b16 %v1988
      %v2053 = vunpack.c.l.b16 %v1989
      %v2054 = vunpack.c.l.b16 %v1990
      %v2055 = vunpack.c.l.b16 %v1991
      %v2056 = vunpack.c.l.b16 %v1992
      %v2057 = vunpack.c.l.b16 %v1993
      %v2058 = vunpack.c.l.b16 %v1994
      %v2059 = vunpack.c.l.b16 %v1995
      %v2060 = vunpack.c.l.b16 %v1996
      %v2061 = vunpack.c.l.b16 %v1997
      %v2062 = vunpack.c.l.b16 %v1998
      %v2063 = vunpack.c.l.b16 %v1999
      %v2064 = vunpack.c.l.b16 %v2000
      %v2065 = vunpack.c.l.b16 %v2001
      %v2066 = vunpack.c.l.b16 %v2002
      %v2067 = vpack.c.b16 %v2036, %v2035
      %v2068 = vpack.c.b16 %v2038, %v2037
      %v2069 = vpack.c.b16 %v2040, %v2039
      %v2070 = vpack.c.b16 %v2042, %v2041
      %v2071 = vpack.c.b16 %v2044, %v2043
      %v2072 = vpack.c.b16 %v2046, %v2045
      %v2073 = vpack.c.b16 %v2048, %v2047
      %v2074 = vpack.c.b16 %v2050, %v2049
      %v2075 = vpack.c.b16 %v2052, %v2051
      %v2076 = vpack.c.b16 %v2054, %v2053
      %v2077 = vpack.c.b16 %v2056, %v2055
      %v2078 = vpack.c.b16 %v2058, %v2057
      %v2079 = vpack.c.b16 %v2060, %v2059
      %v2080 = vpack.c.b16 %v2062, %v2061
      %v2081 = vpack.c.b16 %v2064, %v2063
      %v2082 = vpack.c.b16 %v2066, %v2065
      %2099 = vst [vmem:[#allocation3 + $0x18] sm:$0xff] %v2067
      %2100 = vst [vmem:[#allocation3 + $0x60] sm:$0xff] %v2068
      %2101 = vst [vmem:[#allocation3 + $0xa8] sm:$0xff] %v2069
      %2102 = vst [vmem:[#allocation3 + $0xf0] sm:$0xff] %v2070
      %2103 = vst [vmem:[#allocation3 + $0x138] sm:$0xff] %v2071
      %2104 = vst [vmem:[#allocation3 + $0x180] sm:$0xff] %v2072
      %2105 = vst [vmem:[#allocation3 + $0x1c8] sm:$0xff] %v2073
      %2106 = vst [vmem:[#allocation3 + $0x210] sm:$0xff] %v2074
      %2107 = vst [vmem:[#allocation3 + $0x258] sm:$0xff] %v2075
      %2108 = vst [vmem:[#allocation3 + $0x2a0] sm:$0xff] %v2076
      %2109 = vst [vmem:[#allocation3 + $0x2e8] sm:$0xff] %v2077
      %2110 = vst [vmem:[#allocation3 + $0x330] sm:$0xff] %v2078
      %2111 = vst [vmem:[#allocation3 + $0x378] sm:$0xff] %v2079
      %2112 = vst [vmem:[#allocation3 + $0x3c0] sm:$0xff] %v2080
      %2113 = vst [vmem:[#allocation3 + $0x408] sm:$0xff] %v2081
      %2114 = vst [vmem:[#allocation3 + $0x450] sm:$0xff] %v2082
      %v2115 = vld [vmem:[%s906] sm:$0xf]
      %v2116 = vld [vmem:[%s906 + $0x4] sm:$0xf]
      %v2117 = vld [vmem:[%s906 + $0x8] sm:$0x1]
      %v2118 = vld [vmem:[%s906 + $0xc] sm:$0xf]
      %v2119 = vld [vmem:[%s906 + $0x10] sm:$0xf]
      %v2120 = vld [vmem:[%s906 + $0x14] sm:$0x1]
      %v2121 = vld [vmem:[%s906 + $0x18] sm:$0xf]
      %v2122 = vld [vmem:[%s906 + $0x1c] sm:$0xf]
      %v2123 = vld [vmem:[%s906 + $0x20] sm:$0x1]
      %v2124 = vld [vmem:[%s906 + $0x24] sm:$0xf]
      %v2125 = vld [vmem:[%s906 + $0x28] sm:$0xf]
      %v2126 = vld [vmem:[%s906 + $0x2c] sm:$0x1]
      %v2127 = vld [vmem:[%s906 + $0x30] sm:$0xf]
      %v2128 = vld [vmem:[%s906 + $0x34] sm:$0xf]
      %v2129 = vld [vmem:[%s906 + $0x38] sm:$0x1]
      %v2130 = vld [vmem:[%s906 + $0x3c] sm:$0xf]
      %v2131 = vld [vmem:[%s906 + $0x40] sm:$0xf]
      %v2132 = vld [vmem:[%s906 + $0x44] sm:$0x1]
      %v2133 = vld [vmem:[%s906 + $0x48] sm:$0xf]
      %v2134 = vld [vmem:[%s906 + $0x4c] sm:$0xf]
      %v2135 = vld [vmem:[%s906 + $0x50] sm:$0x1]
      %v2136 = vld [vmem:[%s906 + $0x54] sm:$0xf]
      %v2137 = vld [vmem:[%s906 + $0x58] sm:$0xf]
      %v2138 = vld [vmem:[%s906 + $0x5c] sm:$0x1]
      %v2139 = vld [vmem:[%s906 + $0x60] sm:$0xf]
      %v2140 = vld [vmem:[%s906 + $0x64] sm:$0xf]
      %v2141 = vld [vmem:[%s906 + $0x68] sm:$0x1]
      %v2142 = vld [vmem:[%s906 + $0x6c] sm:$0xf]
      %v2143 = vld [vmem:[%s906 + $0x70] sm:$0xf]
      %v2144 = vld [vmem:[%s906 + $0x74] sm:$0x1]
      %v2145 = vld [vmem:[%s906 + $0x78] sm:$0xf]
      %v2146 = vld [vmem:[%s906 + $0x7c] sm:$0xf]
      %v2147 = vld [vmem:[%s906 + $0x80] sm:$0x1]
      %v2148 = vld [vmem:[%s906 + $0x84] sm:$0xf]
      %v2149 = vld [vmem:[%s906 + $0x88] sm:$0xf]
      %v2150 = vld [vmem:[%s906 + $0x8c] sm:$0x1]
      %v2151 = vld [vmem:[%s906 + $0x90] sm:$0xf]
      %v2152 = vld [vmem:[%s906 + $0x94] sm:$0xf]
      %v2153 = vld [vmem:[%s906 + $0x98] sm:$0x1]
      %v2154 = vld [vmem:[%s906 + $0x9c] sm:$0xf]
      %v2155 = vld [vmem:[%s906 + $0xa0] sm:$0xf]
      %v2156 = vld [vmem:[%s906 + $0xa4] sm:$0x1]
      %v2157 = vld [vmem:[%s906 + $0xa8] sm:$0xf]
      %v2158 = vld [vmem:[%s906 + $0xac] sm:$0xf]
      %v2159 = vld [vmem:[%s906 + $0xb0] sm:$0x1]
      %v2160 = vld [vmem:[%s906 + $0xb4] sm:$0xf]
      %v2161 = vld [vmem:[%s906 + $0xb8] sm:$0xf]
      %v2162 = vld [vmem:[%s906 + $0xbc] sm:$0x1]
      %v2164 = vshrl.u32 %v2115, 16
      %v2166 = vrot.slane %v2164, 4
      %v2167 = vshll.u32 %v2115, 16
      %v2169 = vrot.slane %v2167, 5
      %v2170 = vor.u32 %v2166, %v2169
      %v2171 = vrot.slane %v2170, 4
      %v2173 = vshll.u32 %v2116, 16
      %v2175 = vrot.slane %v2173, 5
      %v2176 = vsel %vm1215, %v2171, %v2175
      %v2177 = vshrl.u32 %v2116, 16
      %v2179 = vrot.slane %v2177, 4
      %v2180 = vor.u32 %v2179, %v2175
      %v2181 = vrot.slane %v2180, 4
      %v2183 = vshll.u32 %v2117, 16
      %v2185 = vrot.slane %v2183, 5
      %v2186 = vsel %vm1215, %v2181, %v2185
      %v2188 = vshrl.u32 %v2118, 16
      %v2190 = vrot.slane %v2188, 4
      %v2191 = vshll.u32 %v2118, 16
      %v2193 = vrot.slane %v2191, 5
      %v2194 = vor.u32 %v2190, %v2193
      %v2195 = vrot.slane %v2194, 4
      %v2197 = vshll.u32 %v2119, 16
      %v2199 = vrot.slane %v2197, 5
      %v2200 = vsel %vm1215, %v2195, %v2199
      %v2201 = vshrl.u32 %v2119, 16
      %v2203 = vrot.slane %v2201, 4
      %v2204 = vor.u32 %v2203, %v2199
      %v2205 = vrot.slane %v2204, 4
      %v2207 = vshll.u32 %v2120, 16
      %v2209 = vrot.slane %v2207, 5
      %v2210 = vsel %vm1215, %v2205, %v2209
      %v2212 = vshrl.u32 %v2121, 16
      %v2214 = vrot.slane %v2212, 4
      %v2215 = vshll.u32 %v2121, 16
      %v2217 = vrot.slane %v2215, 5
      %v2218 = vor.u32 %v2214, %v2217
      %v2219 = vrot.slane %v2218, 4
      %v2221 = vshll.u32 %v2122, 16
      %v2223 = vrot.slane %v2221, 5
      %v2224 = vsel %vm1215, %v2219, %v2223
      %v2225 = vshrl.u32 %v2122, 16
      %v2227 = vrot.slane %v2225, 4
      %v2228 = vor.u32 %v2227, %v2223
      %v2229 = vrot.slane %v2228, 4
      %v2231 = vshll.u32 %v2123, 16
      %v2233 = vrot.slane %v2231, 5
      %v2234 = vsel %vm1215, %v2229, %v2233
      %v2236 = vshrl.u32 %v2124, 16
      %v2238 = vrot.slane %v2236, 4
      %v2239 = vshll.u32 %v2124, 16
      %v2241 = vrot.slane %v2239, 5
      %v2242 = vor.u32 %v2238, %v2241
      %v2243 = vrot.slane %v2242, 4
      %v2245 = vshll.u32 %v2125, 16
      %v2247 = vrot.slane %v2245, 5
      %v2248 = vsel %vm1215, %v2243, %v2247
      %v2249 = vshrl.u32 %v2125, 16
      %v2251 = vrot.slane %v2249, 4
      %v2252 = vor.u32 %v2251, %v2247
      %v2253 = vrot.slane %v2252, 4
      %v2255 = vshll.u32 %v2126, 16
      %v2257 = vrot.slane %v2255, 5
      %v2258 = vsel %vm1215, %v2253, %v2257
      %v2260 = vshrl.u32 %v2127, 16
      %v2262 = vrot.slane %v2260, 4
      %v2263 = vshll.u32 %v2127, 16
      %v2265 = vrot.slane %v2263, 5
      %v2266 = vor.u32 %v2262, %v2265
      %v2267 = vrot.slane %v2266, 4
      %v2269 = vshll.u32 %v2128, 16
      %v2271 = vrot.slane %v2269, 5
      %v2272 = vsel %vm1215, %v2267, %v2271
      %v2273 = vshrl.u32 %v2128, 16
      %v2275 = vrot.slane %v2273, 4
      %v2276 = vor.u32 %v2275, %v2271
      %v2277 = vrot.slane %v2276, 4
      %v2279 = vshll.u32 %v2129, 16
      %v2281 = vrot.slane %v2279, 5
      %v2282 = vsel %vm1215, %v2277, %v2281
      %v2284 = vshrl.u32 %v2130, 16
      %v2286 = vrot.slane %v2284, 4
      %v2287 = vshll.u32 %v2130, 16
      %v2289 = vrot.slane %v2287, 5
      %v2290 = vor.u32 %v2286, %v2289
      %v2291 = vrot.slane %v2290, 4
      %v2293 = vshll.u32 %v2131, 16
      %v2295 = vrot.slane %v2293, 5
      %v2296 = vsel %vm1215, %v2291, %v2295
      %v2297 = vshrl.u32 %v2131, 16
      %v2299 = vrot.slane %v2297, 4
      %v2300 = vor.u32 %v2299, %v2295
      %v2301 = vrot.slane %v2300, 4
      %v2303 = vshll.u32 %v2132, 16
      %v2305 = vrot.slane %v2303, 5
      %v2306 = vsel %vm1215, %v2301, %v2305
      %v2308 = vshrl.u32 %v2133, 16
      %v2310 = vrot.slane %v2308, 4
      %v2311 = vshll.u32 %v2133, 16
      %v2313 = vrot.slane %v2311, 5
      %v2314 = vor.u32 %v2310, %v2313
      %v2315 = vrot.slane %v2314, 4
      %v2317 = vshll.u32 %v2134, 16
      %v2319 = vrot.slane %v2317, 5
      %v2320 = vsel %vm1215, %v2315, %v2319
      %v2321 = vshrl.u32 %v2134, 16
      %v2323 = vrot.slane %v2321, 4
      %v2324 = vor.u32 %v2323, %v2319
      %v2325 = vrot.slane %v2324, 4
      %v2327 = vshll.u32 %v2135, 16
      %v2329 = vrot.slane %v2327, 5
      %v2330 = vsel %vm1215, %v2325, %v2329
      %v2332 = vshrl.u32 %v2136, 16
      %v2334 = vrot.slane %v2332, 4
      %v2335 = vshll.u32 %v2136, 16
      %v2337 = vrot.slane %v2335, 5
      %v2338 = vor.u32 %v2334, %v2337
      %v2339 = vrot.slane %v2338, 4
      %v2341 = vshll.u32 %v2137, 16
      %v2343 = vrot.slane %v2341, 5
      %v2344 = vsel %vm1215, %v2339, %v2343
      %v2345 = vshrl.u32 %v2137, 16
      %v2347 = vrot.slane %v2345, 4
      %v2348 = vor.u32 %v2347, %v2343
      %v2349 = vrot.slane %v2348, 4
      %v2351 = vshll.u32 %v2138, 16
      %v2353 = vrot.slane %v2351, 5
      %v2354 = vsel %vm1215, %v2349, %v2353
      %v2356 = vshrl.u32 %v2139, 16
      %v2358 = vrot.slane %v2356, 4
      %v2359 = vshll.u32 %v2139, 16
      %v2361 = vrot.slane %v2359, 5
      %v2362 = vor.u32 %v2358, %v2361
      %v2363 = vrot.slane %v2362, 4
      %v2365 = vshll.u32 %v2140, 16
      %v2367 = vrot.slane %v2365, 5
      %v2368 = vsel %vm1215, %v2363, %v2367
      %v2369 = vshrl.u32 %v2140, 16
      %v2371 = vrot.slane %v2369, 4
      %v2372 = vor.u32 %v2371, %v2367
      %v2373 = vrot.slane %v2372, 4
      %v2375 = vshll.u32 %v2141, 16
      %v2377 = vrot.slane %v2375, 5
      %v2378 = vsel %vm1215, %v2373, %v2377
      %v2380 = vshrl.u32 %v2142, 16
      %v2382 = vrot.slane %v2380, 4
      %v2383 = vshll.u32 %v2142, 16
      %v2385 = vrot.slane %v2383, 5
      %v2386 = vor.u32 %v2382, %v2385
      %v2387 = vrot.slane %v2386, 4
      %v2389 = vshll.u32 %v2143, 16
      %v2391 = vrot.slane %v2389, 5
      %v2392 = vsel %vm1215, %v2387, %v2391
      %v2393 = vshrl.u32 %v2143, 16
      %v2395 = vrot.slane %v2393, 4
      %v2396 = vor.u32 %v2395, %v2391
      %v2397 = vrot.slane %v2396, 4
      %v2399 = vshll.u32 %v2144, 16
      %v2401 = vrot.slane %v2399, 5
      %v2402 = vsel %vm1215, %v2397, %v2401
      %v2404 = vshrl.u32 %v2145, 16
      %v2406 = vrot.slane %v2404, 4
      %v2407 = vshll.u32 %v2145, 16
      %v2409 = vrot.slane %v2407, 5
      %v2410 = vor.u32 %v2406, %v2409
      %v2411 = vrot.slane %v2410, 4
      %v2413 = vshll.u32 %v2146, 16
      %v2415 = vrot.slane %v2413, 5
      %v2416 = vsel %vm1215, %v2411, %v2415
      %v2417 = vshrl.u32 %v2146, 16
      %v2419 = vrot.slane %v2417, 4
      %v2420 = vor.u32 %v2419, %v2415
      %v2421 = vrot.slane %v2420, 4
      %v2423 = vshll.u32 %v2147, 16
      %v2425 = vrot.slane %v2423, 5
      %v2426 = vsel %vm1215, %v2421, %v2425
      %v2428 = vshrl.u32 %v2148, 16
      %v2430 = vrot.slane %v2428, 4
      %v2431 = vshll.u32 %v2148, 16
      %v2433 = vrot.slane %v2431, 5
      %v2434 = vor.u32 %v2430, %v2433
      %v2435 = vrot.slane %v2434, 4
      %v2437 = vshll.u32 %v2149, 16
      %v2439 = vrot.slane %v2437, 5
      %v2440 = vsel %vm1215, %v2435, %v2439
      %v2441 = vshrl.u32 %v2149, 16
      %v2443 = vrot.slane %v2441, 4
      %v2444 = vor.u32 %v2443, %v2439
      %v2445 = vrot.slane %v2444, 4
      %v2447 = vshll.u32 %v2150, 16
      %v2449 = vrot.slane %v2447, 5
      %v2450 = vsel %vm1215, %v2445, %v2449
      %v2452 = vshrl.u32 %v2151, 16
      %v2454 = vrot.slane %v2452, 4
      %v2455 = vshll.u32 %v2151, 16
      %v2457 = vrot.slane %v2455, 5
      %v2458 = vor.u32 %v2454, %v2457
      %v2459 = vrot.slane %v2458, 4
      %v2461 = vshll.u32 %v2152, 16
      %v2463 = vrot.slane %v2461, 5
      %v2464 = vsel %vm1215, %v2459, %v2463
      %v2465 = vshrl.u32 %v2152, 16
      %v2467 = vrot.slane %v2465, 4
      %v2468 = vor.u32 %v2467, %v2463
      %v2469 = vrot.slane %v2468, 4
      %v2471 = vshll.u32 %v2153, 16
      %v2473 = vrot.slane %v2471, 5
      %v2474 = vsel %vm1215, %v2469, %v2473
      %v2476 = vshrl.u32 %v2154, 16
      %v2478 = vrot.slane %v2476, 4
      %v2479 = vshll.u32 %v2154, 16
      %v2481 = vrot.slane %v2479, 5
      %v2482 = vor.u32 %v2478, %v2481
      %v2483 = vrot.slane %v2482, 4
      %v2485 = vshll.u32 %v2155, 16
      %v2487 = vrot.slane %v2485, 5
      %v2488 = vsel %vm1215, %v2483, %v2487
      %v2489 = vshrl.u32 %v2155, 16
      %v2491 = vrot.slane %v2489, 4
      %v2492 = vor.u32 %v2491, %v2487
      %v2493 = vrot.slane %v2492, 4
      %v2495 = vshll.u32 %v2156, 16
      %v2497 = vrot.slane %v2495, 5
      %v2498 = vsel %vm1215, %v2493, %v2497
      %v2500 = vshrl.u32 %v2157, 16
      %v2502 = vrot.slane %v2500, 4
      %v2503 = vshll.u32 %v2157, 16
      %v2505 = vrot.slane %v2503, 5
      %v2506 = vor.u32 %v2502, %v2505
      %v2507 = vrot.slane %v2506, 4
      %v2509 = vshll.u32 %v2158, 16
      %v2511 = vrot.slane %v2509, 5
      %v2512 = vsel %vm1215, %v2507, %v2511
      %v2513 = vshrl.u32 %v2158, 16
      %v2515 = vrot.slane %v2513, 4
      %v2516 = vor.u32 %v2515, %v2511
      %v2517 = vrot.slane %v2516, 4
      %v2519 = vshll.u32 %v2159, 16
      %v2521 = vrot.slane %v2519, 5
      %v2522 = vsel %vm1215, %v2517, %v2521
      %v2524 = vshrl.u32 %v2160, 16
      %v2526 = vrot.slane %v2524, 4
      %v2527 = vshll.u32 %v2160, 16
      %v2529 = vrot.slane %v2527, 5
      %v2530 = vor.u32 %v2526, %v2529
      %v2531 = vrot.slane %v2530, 4
      %v2533 = vshll.u32 %v2161, 16
      %v2535 = vrot.slane %v2533, 5
      %v2536 = vsel %vm1215, %v2531, %v2535
      %v2537 = vshrl.u32 %v2161, 16
      %v2539 = vrot.slane %v2537, 4
      %v2540 = vor.u32 %v2539, %v2535
      %v2541 = vrot.slane %v2540, 4
      %v2543 = vshll.u32 %v2162, 16
      %v2545 = vrot.slane %v2543, 5
      %v2546 = vsel %vm1215, %v2541, %v2545
      %v2547 = vunpack.c.l.b16 %v2176
      %v2548 = vunpack.c.l.b16 %v2186
      %v2549 = vunpack.c.l.b16 %v2200
      %v2550 = vunpack.c.l.b16 %v2210
      %v2551 = vunpack.c.l.b16 %v2224
      %v2552 = vunpack.c.l.b16 %v2234
      %v2553 = vunpack.c.l.b16 %v2248
      %v2554 = vunpack.c.l.b16 %v2258
      %v2555 = vunpack.c.l.b16 %v2272
      %v2556 = vunpack.c.l.b16 %v2282
      %v2557 = vunpack.c.l.b16 %v2296
      %v2558 = vunpack.c.l.b16 %v2306
      %v2559 = vunpack.c.l.b16 %v2320
      %v2560 = vunpack.c.l.b16 %v2330
      %v2561 = vunpack.c.l.b16 %v2344
      %v2562 = vunpack.c.l.b16 %v2354
      %v2563 = vunpack.c.l.b16 %v2368
      %v2564 = vunpack.c.l.b16 %v2378
      %v2565 = vunpack.c.l.b16 %v2392
      %v2566 = vunpack.c.l.b16 %v2402
      %v2567 = vunpack.c.l.b16 %v2416
      %v2568 = vunpack.c.l.b16 %v2426
      %v2569 = vunpack.c.l.b16 %v2440
      %v2570 = vunpack.c.l.b16 %v2450
      %v2571 = vunpack.c.l.b16 %v2464
      %v2572 = vunpack.c.l.b16 %v2474
      %v2573 = vunpack.c.l.b16 %v2488
      %v2574 = vunpack.c.l.b16 %v2498
      %v2575 = vunpack.c.l.b16 %v2512
      %v2576 = vunpack.c.l.b16 %v2522
      %v2577 = vunpack.c.l.b16 %v2536
      %v2578 = vunpack.c.l.b16 %v2546
      %v2579 = vpack.c.b16 %v2548, %v2547
      %v2580 = vpack.c.b16 %v2550, %v2549
      %v2581 = vpack.c.b16 %v2552, %v2551
      %v2582 = vpack.c.b16 %v2554, %v2553
      %v2583 = vpack.c.b16 %v2556, %v2555
      %v2584 = vpack.c.b16 %v2558, %v2557
      %v2585 = vpack.c.b16 %v2560, %v2559
      %v2586 = vpack.c.b16 %v2562, %v2561
      %v2587 = vpack.c.b16 %v2564, %v2563
      %v2588 = vpack.c.b16 %v2566, %v2565
      %v2589 = vpack.c.b16 %v2568, %v2567
      %v2590 = vpack.c.b16 %v2570, %v2569
      %v2591 = vpack.c.b16 %v2572, %v2571
      %v2592 = vpack.c.b16 %v2574, %v2573
      %v2593 = vpack.c.b16 %v2576, %v2575
      %v2594 = vpack.c.b16 %v2578, %v2577
      %2611 = vst [vmem:[#allocation3 + $0x20] sm:$0xff] %v2579
      %2612 = vst [vmem:[#allocation3 + $0x68] sm:$0xff] %v2580
      %2613 = vst [vmem:[#allocation3 + $0xb0] sm:$0xff] %v2581
      %2614 = vst [vmem:[#allocation3 + $0xf8] sm:$0xff] %v2582
      %2615 = vst [vmem:[#allocation3 + $0x140] sm:$0xff] %v2583
      %2616 = vst [vmem:[#allocation3 + $0x188] sm:$0xff] %v2584
      %2617 = vst [vmem:[#allocation3 + $0x1d0] sm:$0xff] %v2585
      %2618 = vst [vmem:[#allocation3 + $0x218] sm:$0xff] %v2586
      %2619 = vst [vmem:[#allocation3 + $0x260] sm:$0xff] %v2587
      %2620 = vst [vmem:[#allocation3 + $0x2a8] sm:$0xff] %v2588
      %2621 = vst [vmem:[#allocation3 + $0x2f0] sm:$0xff] %v2589
      %2622 = vst [vmem:[#allocation3 + $0x338] sm:$0xff] %v2590
      %2623 = vst [vmem:[#allocation3 + $0x380] sm:$0xff] %v2591
      %2624 = vst [vmem:[#allocation3 + $0x3c8] sm:$0xff] %v2592
      %2625 = vst [vmem:[#allocation3 + $0x410] sm:$0xff] %v2593
      %2626 = vst [vmem:[#allocation3 + $0x458] sm:$0xff] %v2594
      %v2627 = vld [vmem:[%s906] sm:$0xe]
      %v2628 = vld [vmem:[%s906 + $0x4] sm:$0xf]
      %v2629 = vld [vmem:[%s906 + $0x8] sm:$0x1]
      %v2630 = vld [vmem:[%s906 + $0xc] sm:$0xe]
      %v2631 = vld [vmem:[%s906 + $0x10] sm:$0xf]
      %v2632 = vld [vmem:[%s906 + $0x14] sm:$0x1]
      %v2633 = vld [vmem:[%s906 + $0x18] sm:$0xe]
      %v2634 = vld [vmem:[%s906 + $0x1c] sm:$0xf]
      %v2635 = vld [vmem:[%s906 + $0x20] sm:$0x1]
      %v2636 = vld [vmem:[%s906 + $0x24] sm:$0xe]
      %v2637 = vld [vmem:[%s906 + $0x28] sm:$0xf]
      %v2638 = vld [vmem:[%s906 + $0x2c] sm:$0x1]
      %v2639 = vld [vmem:[%s906 + $0x30] sm:$0xe]
      %v2640 = vld [vmem:[%s906 + $0x34] sm:$0xf]
      %v2641 = vld [vmem:[%s906 + $0x38] sm:$0x1]
      %v2642 = vld [vmem:[%s906 + $0x3c] sm:$0xe]
      %v2643 = vld [vmem:[%s906 + $0x40] sm:$0xf]
      %v2644 = vld [vmem:[%s906 + $0x44] sm:$0x1]
      %v2645 = vld [vmem:[%s906 + $0x48] sm:$0xe]
      %v2646 = vld [vmem:[%s906 + $0x4c] sm:$0xf]
      %v2647 = vld [vmem:[%s906 + $0x50] sm:$0x1]
      %v2648 = vld [vmem:[%s906 + $0x54] sm:$0xe]
      %v2649 = vld [vmem:[%s906 + $0x58] sm:$0xf]
      %v2650 = vld [vmem:[%s906 + $0x5c] sm:$0x1]
      %v2651 = vld [vmem:[%s906 + $0x60] sm:$0xe]
      %v2652 = vld [vmem:[%s906 + $0x64] sm:$0xf]
      %v2653 = vld [vmem:[%s906 + $0x68] sm:$0x1]
      %v2654 = vld [vmem:[%s906 + $0x6c] sm:$0xe]
      %v2655 = vld [vmem:[%s906 + $0x70] sm:$0xf]
      %v2656 = vld [vmem:[%s906 + $0x74] sm:$0x1]
      %v2657 = vld [vmem:[%s906 + $0x78] sm:$0xe]
      %v2658 = vld [vmem:[%s906 + $0x7c] sm:$0xf]
      %v2659 = vld [vmem:[%s906 + $0x80] sm:$0x1]
      %v2660 = vld [vmem:[%s906 + $0x84] sm:$0xe]
      %v2661 = vld [vmem:[%s906 + $0x88] sm:$0xf]
      %v2662 = vld [vmem:[%s906 + $0x8c] sm:$0x1]
      %v2663 = vld [vmem:[%s906 + $0x90] sm:$0xe]
      %v2664 = vld [vmem:[%s906 + $0x94] sm:$0xf]
      %v2665 = vld [vmem:[%s906 + $0x98] sm:$0x1]
      %v2666 = vld [vmem:[%s906 + $0x9c] sm:$0xe]
      %v2667 = vld [vmem:[%s906 + $0xa0] sm:$0xf]
      %v2668 = vld [vmem:[%s906 + $0xa4] sm:$0x1]
      %v2669 = vld [vmem:[%s906 + $0xa8] sm:$0xe]
      %v2670 = vld [vmem:[%s906 + $0xac] sm:$0xf]
      %v2671 = vld [vmem:[%s906 + $0xb0] sm:$0x1]
      %v2672 = vld [vmem:[%s906 + $0xb4] sm:$0xe]
      %v2673 = vld [vmem:[%s906 + $0xb8] sm:$0xf]
      %v2674 = vld [vmem:[%s906 + $0xbc] sm:$0x1]
      %v2723 = vrot.slane %v2627, 5
      %v2724 = vrot.slane %v2723, 4
      %v2725 = vrot.slane %v2628, 5
      %v2726 = vsel %vm1778, %v2724, %v2725
      %v2727 = vrot.slane %v2725, 4
      %v2728 = vrot.slane %v2629, 5
      %v2729 = vsel %vm1778, %v2727, %v2728
      %v2730 = vrot.slane %v2630, 5
      %v2731 = vrot.slane %v2730, 4
      %v2732 = vrot.slane %v2631, 5
      %v2733 = vsel %vm1778, %v2731, %v2732
      %v2734 = vrot.slane %v2732, 4
      %v2735 = vrot.slane %v2632, 5
      %v2736 = vsel %vm1778, %v2734, %v2735
      %v2737 = vrot.slane %v2633, 5
      %v2738 = vrot.slane %v2737, 4
      %v2739 = vrot.slane %v2634, 5
      %v2740 = vsel %vm1778, %v2738, %v2739
      %v2741 = vrot.slane %v2739, 4
      %v2742 = vrot.slane %v2635, 5
      %v2743 = vsel %vm1778, %v2741, %v2742
      %v2744 = vrot.slane %v2636, 5
      %v2745 = vrot.slane %v2744, 4
      %v2746 = vrot.slane %v2637, 5
      %v2747 = vsel %vm1778, %v2745, %v2746
      %v2748 = vrot.slane %v2746, 4
      %v2749 = vrot.slane %v2638, 5
      %v2750 = vsel %vm1778, %v2748, %v2749
      %v2751 = vrot.slane %v2639, 5
      %v2752 = vrot.slane %v2751, 4
      %v2753 = vrot.slane %v2640, 5
      %v2754 = vsel %vm1778, %v2752, %v2753
      %v2755 = vrot.slane %v2753, 4
      %v2756 = vrot.slane %v2641, 5
      %v2757 = vsel %vm1778, %v2755, %v2756
      %v2758 = vrot.slane %v2642, 5
      %v2759 = vrot.slane %v2758, 4
      %v2760 = vrot.slane %v2643, 5
      %v2761 = vsel %vm1778, %v2759, %v2760
      %v2762 = vrot.slane %v2760, 4
      %v2763 = vrot.slane %v2644, 5
      %v2764 = vsel %vm1778, %v2762, %v2763
      %v2765 = vrot.slane %v2645, 5
      %v2766 = vrot.slane %v2765, 4
      %v2767 = vrot.slane %v2646, 5
      %v2768 = vsel %vm1778, %v2766, %v2767
      %v2769 = vrot.slane %v2767, 4
      %v2770 = vrot.slane %v2647, 5
      %v2771 = vsel %vm1778, %v2769, %v2770
      %v2772 = vrot.slane %v2648, 5
      %v2773 = vrot.slane %v2772, 4
      %v2774 = vrot.slane %v2649, 5
      %v2775 = vsel %vm1778, %v2773, %v2774
      %v2776 = vrot.slane %v2774, 4
      %v2777 = vrot.slane %v2650, 5
      %v2778 = vsel %vm1778, %v2776, %v2777
      %v2779 = vrot.slane %v2651, 5
      %v2780 = vrot.slane %v2779, 4
      %v2781 = vrot.slane %v2652, 5
      %v2782 = vsel %vm1778, %v2780, %v2781
      %v2783 = vrot.slane %v2781, 4
      %v2784 = vrot.slane %v2653, 5
      %v2785 = vsel %vm1778, %v2783, %v2784
      %v2786 = vrot.slane %v2654, 5
      %v2787 = vrot.slane %v2786, 4
      %v2788 = vrot.slane %v2655, 5
      %v2789 = vsel %vm1778, %v2787, %v2788
      %v2790 = vrot.slane %v2788, 4
      %v2791 = vrot.slane %v2656, 5
      %v2792 = vsel %vm1778, %v2790, %v2791
      %v2793 = vrot.slane %v2657, 5
      %v2794 = vrot.slane %v2793, 4
      %v2795 = vrot.slane %v2658, 5
      %v2796 = vsel %vm1778, %v2794, %v2795
      %v2797 = vrot.slane %v2795, 4
      %v2798 = vrot.slane %v2659, 5
      %v2799 = vsel %vm1778, %v2797, %v2798
      %v2800 = vrot.slane %v2660, 5
      %v2801 = vrot.slane %v2800, 4
      %v2802 = vrot.slane %v2661, 5
      %v2803 = vsel %vm1778, %v2801, %v2802
      %v2804 = vrot.slane %v2802, 4
      %v2805 = vrot.slane %v2662, 5
      %v2806 = vsel %vm1778, %v2804, %v2805
      %v2807 = vrot.slane %v2663, 5
      %v2808 = vrot.slane %v2807, 4
      %v2809 = vrot.slane %v2664, 5
      %v2810 = vsel %vm1778, %v2808, %v2809
      %v2811 = vrot.slane %v2809, 4
      %v2812 = vrot.slane %v2665, 5
      %v2813 = vsel %vm1778, %v2811, %v2812
      %v2814 = vrot.slane %v2666, 5
      %v2815 = vrot.slane %v2814, 4
      %v2816 = vrot.slane %v2667, 5
      %v2817 = vsel %vm1778, %v2815, %v2816
      %v2818 = vrot.slane %v2816, 4
      %v2819 = vrot.slane %v2668, 5
      %v2820 = vsel %vm1778, %v2818, %v2819
      %v2821 = vrot.slane %v2669, 5
      %v2822 = vrot.slane %v2821, 4
      %v2823 = vrot.slane %v2670, 5
      %v2824 = vsel %vm1778, %v2822, %v2823
      %v2825 = vrot.slane %v2823, 4
      %v2826 = vrot.slane %v2671, 5
      %v2827 = vsel %vm1778, %v2825, %v2826
      %v2828 = vrot.slane %v2672, 5
      %v2829 = vrot.slane %v2828, 4
      %v2830 = vrot.slane %v2673, 5
      %v2831 = vsel %vm1778, %v2829, %v2830
      %v2832 = vrot.slane %v2830, 4
      %v2833 = vrot.slane %v2674, 5
      %v2834 = vsel %vm1778, %v2832, %v2833
      %v2835 = vunpack.c.l.b16 %v2726
      %v2836 = vunpack.c.l.b16 %v2729
      %v2837 = vunpack.c.l.b16 %v2733
      %v2838 = vunpack.c.l.b16 %v2736
      %v2839 = vunpack.c.l.b16 %v2740
      %v2840 = vunpack.c.l.b16 %v2743
      %v2841 = vunpack.c.l.b16 %v2747
      %v2842 = vunpack.c.l.b16 %v2750
      %v2843 = vunpack.c.l.b16 %v2754
      %v2844 = vunpack.c.l.b16 %v2757
      %v2845 = vunpack.c.l.b16 %v2761
      %v2846 = vunpack.c.l.b16 %v2764
      %v2847 = vunpack.c.l.b16 %v2768
      %v2848 = vunpack.c.l.b16 %v2771
      %v2849 = vunpack.c.l.b16 %v2775
      %v2850 = vunpack.c.l.b16 %v2778
      %v2851 = vunpack.c.l.b16 %v2782
      %v2852 = vunpack.c.l.b16 %v2785
      %v2853 = vunpack.c.l.b16 %v2789
      %v2854 = vunpack.c.l.b16 %v2792
      %v2855 = vunpack.c.l.b16 %v2796
      %v2856 = vunpack.c.l.b16 %v2799
      %v2857 = vunpack.c.l.b16 %v2803
      %v2858 = vunpack.c.l.b16 %v2806
      %v2859 = vunpack.c.l.b16 %v2810
      %v2860 = vunpack.c.l.b16 %v2813
      %v2861 = vunpack.c.l.b16 %v2817
      %v2862 = vunpack.c.l.b16 %v2820
      %v2863 = vunpack.c.l.b16 %v2824
      %v2864 = vunpack.c.l.b16 %v2827
      %v2865 = vunpack.c.l.b16 %v2831
      %v2866 = vunpack.c.l.b16 %v2834
      %v2867 = vpack.c.b16 %v2836, %v2835
      %v2868 = vpack.c.b16 %v2838, %v2837
      %v2869 = vpack.c.b16 %v2840, %v2839
      %v2870 = vpack.c.b16 %v2842, %v2841
      %v2871 = vpack.c.b16 %v2844, %v2843
      %v2872 = vpack.c.b16 %v2846, %v2845
      %v2873 = vpack.c.b16 %v2848, %v2847
      %v2874 = vpack.c.b16 %v2850, %v2849
      %v2875 = vpack.c.b16 %v2852, %v2851
      %v2876 = vpack.c.b16 %v2854, %v2853
      %v2877 = vpack.c.b16 %v2856, %v2855
      %v2878 = vpack.c.b16 %v2858, %v2857
      %v2879 = vpack.c.b16 %v2860, %v2859
      %v2880 = vpack.c.b16 %v2862, %v2861
      %v2881 = vpack.c.b16 %v2864, %v2863
      %v2882 = vpack.c.b16 %v2866, %v2865
      %2899 = vst [vmem:[#allocation3 + $0x28] sm:$0xff] %v2867
      %2900 = vst [vmem:[#allocation3 + $0x70] sm:$0xff] %v2868
      %2901 = vst [vmem:[#allocation3 + $0xb8] sm:$0xff] %v2869
      %2902 = vst [vmem:[#allocation3 + $0x100] sm:$0xff] %v2870
      %2903 = vst [vmem:[#allocation3 + $0x148] sm:$0xff] %v2871
      %2904 = vst [vmem:[#allocation3 + $0x190] sm:$0xff] %v2872
      %2905 = vst [vmem:[#allocation3 + $0x1d8] sm:$0xff] %v2873
      %2906 = vst [vmem:[#allocation3 + $0x220] sm:$0xff] %v2874
      %2907 = vst [vmem:[#allocation3 + $0x268] sm:$0xff] %v2875
      %2908 = vst [vmem:[#allocation3 + $0x2b0] sm:$0xff] %v2876
      %2909 = vst [vmem:[#allocation3 + $0x2f8] sm:$0xff] %v2877
      %2910 = vst [vmem:[#allocation3 + $0x340] sm:$0xff] %v2878
      %2911 = vst [vmem:[#allocation3 + $0x388] sm:$0xff] %v2879
      %2912 = vst [vmem:[#allocation3 + $0x3d0] sm:$0xff] %v2880
      %2913 = vst [vmem:[#allocation3 + $0x418] sm:$0xff] %v2881
      %2914 = vst [vmem:[#allocation3 + $0x460] sm:$0xff] %v2882
      %s2915 = scalar_lea.vmem [#allocation2], 24
      %v2916 = vld [vmem:[%s2915] sm:$0xf]
      %v2917 = vld [vmem:[%s2915 + $0x4] sm:$0xf]
      %v2918 = vld [vmem:[%s2915 + $0xc] sm:$0xf]
      %v2919 = vld [vmem:[%s2915 + $0x10] sm:$0xf]
      %v2920 = vld [vmem:[%s2915 + $0x18] sm:$0xf]
      %v2921 = vld [vmem:[%s2915 + $0x1c] sm:$0xf]
      %v2922 = vld [vmem:[%s2915 + $0x24] sm:$0xf]
      %v2923 = vld [vmem:[%s2915 + $0x28] sm:$0xf]
      %v2924 = vld [vmem:[%s2915 + $0x30] sm:$0xf]
      %v2925 = vld [vmem:[%s2915 + $0x34] sm:$0xf]
      %v2926 = vld [vmem:[%s2915 + $0x3c] sm:$0xf]
      %v2927 = vld [vmem:[%s2915 + $0x40] sm:$0xf]
      %v2928 = vld [vmem:[%s2915 + $0x48] sm:$0xf]
      %v2929 = vld [vmem:[%s2915 + $0x4c] sm:$0xf]
      %v2930 = vld [vmem:[%s2915 + $0x54] sm:$0xf]
      %v2931 = vld [vmem:[%s2915 + $0x58] sm:$0xf]
      %v2932 = vld [vmem:[%s2915 + $0x60] sm:$0xf]
      %v2933 = vld [vmem:[%s2915 + $0x64] sm:$0xf]
      %v2934 = vld [vmem:[%s2915 + $0x6c] sm:$0xf]
      %v2935 = vld [vmem:[%s2915 + $0x70] sm:$0xf]
      %v2936 = vld [vmem:[%s2915 + $0x78] sm:$0xf]
      %v2937 = vld [vmem:[%s2915 + $0x7c] sm:$0xf]
      %v2938 = vld [vmem:[%s2915 + $0x84] sm:$0xf]
      %v2939 = vld [vmem:[%s2915 + $0x88] sm:$0xf]
      %v2940 = vld [vmem:[%s2915 + $0x90] sm:$0xf]
      %v2941 = vld [vmem:[%s2915 + $0x94] sm:$0xf]
      %v2942 = vld [vmem:[%s2915 + $0x9c] sm:$0xf]
      %v2943 = vld [vmem:[%s2915 + $0xa0] sm:$0xf]
      %v2944 = vld [vmem:[%s2915 + $0xa8] sm:$0xf]
      %v2945 = vld [vmem:[%s2915 + $0xac] sm:$0xf]
      %v2946 = vld [vmem:[%s2915 + $0xb4] sm:$0xf]
      %v2947 = vld [vmem:[%s2915 + $0xb8] sm:$0xf]
      %v2980 = vunpack.c.l.b16 %v2916
      %v2981 = vunpack.c.l.b16 %v2917
      %v2982 = vunpack.c.l.b16 %v2918
      %v2983 = vunpack.c.l.b16 %v2919
      %v2984 = vunpack.c.l.b16 %v2920
      %v2985 = vunpack.c.l.b16 %v2921
      %v2986 = vunpack.c.l.b16 %v2922
      %v2987 = vunpack.c.l.b16 %v2923
      %v2988 = vunpack.c.l.b16 %v2924
      %v2989 = vunpack.c.l.b16 %v2925
      %v2990 = vunpack.c.l.b16 %v2926
      %v2991 = vunpack.c.l.b16 %v2927
      %v2992 = vunpack.c.l.b16 %v2928
      %v2993 = vunpack.c.l.b16 %v2929
      %v2994 = vunpack.c.l.b16 %v2930
      %v2995 = vunpack.c.l.b16 %v2931
      %v2996 = vunpack.c.l.b16 %v2932
      %v2997 = vunpack.c.l.b16 %v2933
      %v2998 = vunpack.c.l.b16 %v2934
      %v2999 = vunpack.c.l.b16 %v2935
      %v3000 = vunpack.c.l.b16 %v2936
      %v3001 = vunpack.c.l.b16 %v2937
      %v3002 = vunpack.c.l.b16 %v2938
      %v3003 = vunpack.c.l.b16 %v2939
      %v3004 = vunpack.c.l.b16 %v2940
      %v3005 = vunpack.c.l.b16 %v2941
      %v3006 = vunpack.c.l.b16 %v2942
      %v3007 = vunpack.c.l.b16 %v2943
      %v3008 = vunpack.c.l.b16 %v2944
      %v3009 = vunpack.c.l.b16 %v2945
      %v3010 = vunpack.c.l.b16 %v2946
      %v3011 = vunpack.c.l.b16 %v2947
      %v3012 = vpack.c.b16 %v2981, %v2980
      %v3013 = vpack.c.b16 %v2983, %v2982
      %v3014 = vpack.c.b16 %v2985, %v2984
      %v3015 = vpack.c.b16 %v2987, %v2986
      %v3016 = vpack.c.b16 %v2989, %v2988
      %v3017 = vpack.c.b16 %v2991, %v2990
      %v3018 = vpack.c.b16 %v2993, %v2992
      %v3019 = vpack.c.b16 %v2995, %v2994
      %v3020 = vpack.c.b16 %v2997, %v2996
      %v3021 = vpack.c.b16 %v2999, %v2998
      %v3022 = vpack.c.b16 %v3001, %v3000
      %v3023 = vpack.c.b16 %v3003, %v3002
      %v3024 = vpack.c.b16 %v3005, %v3004
      %v3025 = vpack.c.b16 %v3007, %v3006
      %v3026 = vpack.c.b16 %v3009, %v3008
      %v3027 = vpack.c.b16 %v3011, %v3010
      %3044 = vst [vmem:[#allocation3 + $0x30] sm:$0xff] %v3012
      %3045 = vst [vmem:[#allocation3 + $0x78] sm:$0xff] %v3013
      %3046 = vst [vmem:[#allocation3 + $0xc0] sm:$0xff] %v3014
      %3047 = vst [vmem:[#allocation3 + $0x108] sm:$0xff] %v3015
      %3048 = vst [vmem:[#allocation3 + $0x150] sm:$0xff] %v3016
      %3049 = vst [vmem:[#allocation3 + $0x198] sm:$0xff] %v3017
      %3050 = vst [vmem:[#allocation3 + $0x1e0] sm:$0xff] %v3018
      %3051 = vst [vmem:[#allocation3 + $0x228] sm:$0xff] %v3019
      %3052 = vst [vmem:[#allocation3 + $0x270] sm:$0xff] %v3020
      %3053 = vst [vmem:[#allocation3 + $0x2b8] sm:$0xff] %v3021
      %3054 = vst [vmem:[#allocation3 + $0x300] sm:$0xff] %v3022
      %3055 = vst [vmem:[#allocation3 + $0x348] sm:$0xff] %v3023
      %3056 = vst [vmem:[#allocation3 + $0x390] sm:$0xff] %v3024
      %3057 = vst [vmem:[#allocation3 + $0x3d8] sm:$0xff] %v3025
      %3058 = vst [vmem:[#allocation3 + $0x420] sm:$0xff] %v3026
      %3059 = vst [vmem:[#allocation3 + $0x468] sm:$0xff] %v3027
      %v3060 = vld [vmem:[%s2915] sm:$0xf]
      %v3061 = vld [vmem:[%s2915 + $0x4] sm:$0xf]
      %v3062 = vld [vmem:[%s2915 + $0x8] sm:$0x1]
      %v3063 = vld [vmem:[%s2915 + $0xc] sm:$0xf]
      %v3064 = vld [vmem:[%s2915 + $0x10] sm:$0xf]
      %v3065 = vld [vmem:[%s2915 + $0x14] sm:$0x1]
      %v3066 = vld [vmem:[%s2915 + $0x18] sm:$0xf]
      %v3067 = vld [vmem:[%s2915 + $0x1c] sm:$0xf]
      %v3068 = vld [vmem:[%s2915 + $0x20] sm:$0x1]
      %v3069 = vld [vmem:[%s2915 + $0x24] sm:$0xf]
      %v3070 = vld [vmem:[%s2915 + $0x28] sm:$0xf]
      %v3071 = vld [vmem:[%s2915 + $0x2c] sm:$0x1]
      %v3072 = vld [vmem:[%s2915 + $0x30] sm:$0xf]
      %v3073 = vld [vmem:[%s2915 + $0x34] sm:$0xf]
      %v3074 = vld [vmem:[%s2915 + $0x38] sm:$0x1]
      %v3075 = vld [vmem:[%s2915 + $0x3c] sm:$0xf]
      %v3076 = vld [vmem:[%s2915 + $0x40] sm:$0xf]
      %v3077 = vld [vmem:[%s2915 + $0x44] sm:$0x1]
      %v3078 = vld [vmem:[%s2915 + $0x48] sm:$0xf]
      %v3079 = vld [vmem:[%s2915 + $0x4c] sm:$0xf]
      %v3080 = vld [vmem:[%s2915 + $0x50] sm:$0x1]
      %v3081 = vld [vmem:[%s2915 + $0x54] sm:$0xf]
      %v3082 = vld [vmem:[%s2915 + $0x58] sm:$0xf]
      %v3083 = vld [vmem:[%s2915 + $0x5c] sm:$0x1]
      %v3084 = vld [vmem:[%s2915 + $0x60] sm:$0xf]
      %v3085 = vld [vmem:[%s2915 + $0x64] sm:$0xf]
      %v3086 = vld [vmem:[%s2915 + $0x68] sm:$0x1]
      %v3087 = vld [vmem:[%s2915 + $0x6c] sm:$0xf]
      %v3088 = vld [vmem:[%s2915 + $0x70] sm:$0xf]
      %v3089 = vld [vmem:[%s2915 + $0x74] sm:$0x1]
      %v3090 = vld [vmem:[%s2915 + $0x78] sm:$0xf]
      %v3091 = vld [vmem:[%s2915 + $0x7c] sm:$0xf]
      %v3092 = vld [vmem:[%s2915 + $0x80] sm:$0x1]
      %v3093 = vld [vmem:[%s2915 + $0x84] sm:$0xf]
      %v3094 = vld [vmem:[%s2915 + $0x88] sm:$0xf]
      %v3095 = vld [vmem:[%s2915 + $0x8c] sm:$0x1]
      %v3096 = vld [vmem:[%s2915 + $0x90] sm:$0xf]
      %v3097 = vld [vmem:[%s2915 + $0x94] sm:$0xf]
      %v3098 = vld [vmem:[%s2915 + $0x98] sm:$0x1]
      %v3099 = vld [vmem:[%s2915 + $0x9c] sm:$0xf]
      %v3100 = vld [vmem:[%s2915 + $0xa0] sm:$0xf]
      %v3101 = vld [vmem:[%s2915 + $0xa4] sm:$0x1]
      %v3102 = vld [vmem:[%s2915 + $0xa8] sm:$0xf]
      %v3103 = vld [vmem:[%s2915 + $0xac] sm:$0xf]
      %v3104 = vld [vmem:[%s2915 + $0xb0] sm:$0x1]
      %v3105 = vld [vmem:[%s2915 + $0xb4] sm:$0xf]
      %v3106 = vld [vmem:[%s2915 + $0xb8] sm:$0xf]
      %v3107 = vld [vmem:[%s2915 + $0xbc] sm:$0x1]
      %v3109 = vshrl.u32 %v3060, 16
      %v3111 = vrot.slane %v3109, 4
      %v3112 = vshll.u32 %v3060, 16
      %v3114 = vrot.slane %v3112, 5
      %v3115 = vor.u32 %v3111, %v3114
      %v3116 = vrot.slane %v3115, 4
      %v3118 = vshll.u32 %v3061, 16
      %v3120 = vrot.slane %v3118, 5
      %v3121 = vsel %vm1215, %v3116, %v3120
      %v3122 = vshrl.u32 %v3061, 16
      %v3124 = vrot.slane %v3122, 4
      %v3125 = vor.u32 %v3124, %v3120
      %v3126 = vrot.slane %v3125, 4
      %v3128 = vshll.u32 %v3062, 16
      %v3130 = vrot.slane %v3128, 5
      %v3131 = vsel %vm1215, %v3126, %v3130
      %v3133 = vshrl.u32 %v3063, 16
      %v3135 = vrot.slane %v3133, 4
      %v3136 = vshll.u32 %v3063, 16
      %v3138 = vrot.slane %v3136, 5
      %v3139 = vor.u32 %v3135, %v3138
      %v3140 = vrot.slane %v3139, 4
      %v3142 = vshll.u32 %v3064, 16
      %v3144 = vrot.slane %v3142, 5
      %v3145 = vsel %vm1215, %v3140, %v3144
      %v3146 = vshrl.u32 %v3064, 16
      %v3148 = vrot.slane %v3146, 4
      %v3149 = vor.u32 %v3148, %v3144
      %v3150 = vrot.slane %v3149, 4
      %v3152 = vshll.u32 %v3065, 16
      %v3154 = vrot.slane %v3152, 5
      %v3155 = vsel %vm1215, %v3150, %v3154
      %v3157 = vshrl.u32 %v3066, 16
      %v3159 = vrot.slane %v3157, 4
      %v3160 = vshll.u32 %v3066, 16
      %v3162 = vrot.slane %v3160, 5
      %v3163 = vor.u32 %v3159, %v3162
      %v3164 = vrot.slane %v3163, 4
      %v3166 = vshll.u32 %v3067, 16
      %v3168 = vrot.slane %v3166, 5
      %v3169 = vsel %vm1215, %v3164, %v3168
      %v3170 = vshrl.u32 %v3067, 16
      %v3172 = vrot.slane %v3170, 4
      %v3173 = vor.u32 %v3172, %v3168
      %v3174 = vrot.slane %v3173, 4
      %v3176 = vshll.u32 %v3068, 16
      %v3178 = vrot.slane %v3176, 5
      %v3179 = vsel %vm1215, %v3174, %v3178
      %v3181 = vshrl.u32 %v3069, 16
      %v3183 = vrot.slane %v3181, 4
      %v3184 = vshll.u32 %v3069, 16
      %v3186 = vrot.slane %v3184, 5
      %v3187 = vor.u32 %v3183, %v3186
      %v3188 = vrot.slane %v3187, 4
      %v3190 = vshll.u32 %v3070, 16
      %v3192 = vrot.slane %v3190, 5
      %v3193 = vsel %vm1215, %v3188, %v3192
      %v3194 = vshrl.u32 %v3070, 16
      %v3196 = vrot.slane %v3194, 4
      %v3197 = vor.u32 %v3196, %v3192
      %v3198 = vrot.slane %v3197, 4
      %v3200 = vshll.u32 %v3071, 16
      %v3202 = vrot.slane %v3200, 5
      %v3203 = vsel %vm1215, %v3198, %v3202
      %v3205 = vshrl.u32 %v3072, 16
      %v3207 = vrot.slane %v3205, 4
      %v3208 = vshll.u32 %v3072, 16
      %v3210 = vrot.slane %v3208, 5
      %v3211 = vor.u32 %v3207, %v3210
      %v3212 = vrot.slane %v3211, 4
      %v3214 = vshll.u32 %v3073, 16
      %v3216 = vrot.slane %v3214, 5
      %v3217 = vsel %vm1215, %v3212, %v3216
      %v3218 = vshrl.u32 %v3073, 16
      %v3220 = vrot.slane %v3218, 4
      %v3221 = vor.u32 %v3220, %v3216
      %v3222 = vrot.slane %v3221, 4
      %v3224 = vshll.u32 %v3074, 16
      %v3226 = vrot.slane %v3224, 5
      %v3227 = vsel %vm1215, %v3222, %v3226
      %v3229 = vshrl.u32 %v3075, 16
      %v3231 = vrot.slane %v3229, 4
      %v3232 = vshll.u32 %v3075, 16
      %v3234 = vrot.slane %v3232, 5
      %v3235 = vor.u32 %v3231, %v3234
      %v3236 = vrot.slane %v3235, 4
      %v3238 = vshll.u32 %v3076, 16
      %v3240 = vrot.slane %v3238, 5
      %v3241 = vsel %vm1215, %v3236, %v3240
      %v3242 = vshrl.u32 %v3076, 16
      %v3244 = vrot.slane %v3242, 4
      %v3245 = vor.u32 %v3244, %v3240
      %v3246 = vrot.slane %v3245, 4
      %v3248 = vshll.u32 %v3077, 16
      %v3250 = vrot.slane %v3248, 5
      %v3251 = vsel %vm1215, %v3246, %v3250
      %v3253 = vshrl.u32 %v3078, 16
      %v3255 = vrot.slane %v3253, 4
      %v3256 = vshll.u32 %v3078, 16
      %v3258 = vrot.slane %v3256, 5
      %v3259 = vor.u32 %v3255, %v3258
      %v3260 = vrot.slane %v3259, 4
      %v3262 = vshll.u32 %v3079, 16
      %v3264 = vrot.slane %v3262, 5
      %v3265 = vsel %vm1215, %v3260, %v3264
      %v3266 = vshrl.u32 %v3079, 16
      %v3268 = vrot.slane %v3266, 4
      %v3269 = vor.u32 %v3268, %v3264
      %v3270 = vrot.slane %v3269, 4
      %v3272 = vshll.u32 %v3080, 16
      %v3274 = vrot.slane %v3272, 5
      %v3275 = vsel %vm1215, %v3270, %v3274
      %v3277 = vshrl.u32 %v3081, 16
      %v3279 = vrot.slane %v3277, 4
      %v3280 = vshll.u32 %v3081, 16
      %v3282 = vrot.slane %v3280, 5
      %v3283 = vor.u32 %v3279, %v3282
      %v3284 = vrot.slane %v3283, 4
      %v3286 = vshll.u32 %v3082, 16
      %v3288 = vrot.slane %v3286, 5
      %v3289 = vsel %vm1215, %v3284, %v3288
      %v3290 = vshrl.u32 %v3082, 16
      %v3292 = vrot.slane %v3290, 4
      %v3293 = vor.u32 %v3292, %v3288
      %v3294 = vrot.slane %v3293, 4
      %v3296 = vshll.u32 %v3083, 16
      %v3298 = vrot.slane %v3296, 5
      %v3299 = vsel %vm1215, %v3294, %v3298
      %v3301 = vshrl.u32 %v3084, 16
      %v3303 = vrot.slane %v3301, 4
      %v3304 = vshll.u32 %v3084, 16
      %v3306 = vrot.slane %v3304, 5
      %v3307 = vor.u32 %v3303, %v3306
      %v3308 = vrot.slane %v3307, 4
      %v3310 = vshll.u32 %v3085, 16
      %v3312 = vrot.slane %v3310, 5
      %v3313 = vsel %vm1215, %v3308, %v3312
      %v3314 = vshrl.u32 %v3085, 16
      %v3316 = vrot.slane %v3314, 4
      %v3317 = vor.u32 %v3316, %v3312
      %v3318 = vrot.slane %v3317, 4
      %v3320 = vshll.u32 %v3086, 16
      %v3322 = vrot.slane %v3320, 5
      %v3323 = vsel %vm1215, %v3318, %v3322
      %v3325 = vshrl.u32 %v3087, 16
      %v3327 = vrot.slane %v3325, 4
      %v3328 = vshll.u32 %v3087, 16
      %v3330 = vrot.slane %v3328, 5
      %v3331 = vor.u32 %v3327, %v3330
      %v3332 = vrot.slane %v3331, 4
      %v3334 = vshll.u32 %v3088, 16
      %v3336 = vrot.slane %v3334, 5
      %v3337 = vsel %vm1215, %v3332, %v3336
      %v3338 = vshrl.u32 %v3088, 16
      %v3340 = vrot.slane %v3338, 4
      %v3341 = vor.u32 %v3340, %v3336
      %v3342 = vrot.slane %v3341, 4
      %v3344 = vshll.u32 %v3089, 16
      %v3346 = vrot.slane %v3344, 5
      %v3347 = vsel %vm1215, %v3342, %v3346
      %v3349 = vshrl.u32 %v3090, 16
      %v3351 = vrot.slane %v3349, 4
      %v3352 = vshll.u32 %v3090, 16
      %v3354 = vrot.slane %v3352, 5
      %v3355 = vor.u32 %v3351, %v3354
      %v3356 = vrot.slane %v3355, 4
      %v3358 = vshll.u32 %v3091, 16
      %v3360 = vrot.slane %v3358, 5
      %v3361 = vsel %vm1215, %v3356, %v3360
      %v3362 = vshrl.u32 %v3091, 16
      %v3364 = vrot.slane %v3362, 4
      %v3365 = vor.u32 %v3364, %v3360
      %v3366 = vrot.slane %v3365, 4
      %v3368 = vshll.u32 %v3092, 16
      %v3370 = vrot.slane %v3368, 5
      %v3371 = vsel %vm1215, %v3366, %v3370
      %v3373 = vshrl.u32 %v3093, 16
      %v3375 = vrot.slane %v3373, 4
      %v3376 = vshll.u32 %v3093, 16
      %v3378 = vrot.slane %v3376, 5
      %v3379 = vor.u32 %v3375, %v3378
      %v3380 = vrot.slane %v3379, 4
      %v3382 = vshll.u32 %v3094, 16
      %v3384 = vrot.slane %v3382, 5
      %v3385 = vsel %vm1215, %v3380, %v3384
      %v3386 = vshrl.u32 %v3094, 16
      %v3388 = vrot.slane %v3386, 4
      %v3389 = vor.u32 %v3388, %v3384
      %v3390 = vrot.slane %v3389, 4
      %v3392 = vshll.u32 %v3095, 16
      %v3394 = vrot.slane %v3392, 5
      %v3395 = vsel %vm1215, %v3390, %v3394
      %v3397 = vshrl.u32 %v3096, 16
      %v3399 = vrot.slane %v3397, 4
      %v3400 = vshll.u32 %v3096, 16
      %v3402 = vrot.slane %v3400, 5
      %v3403 = vor.u32 %v3399, %v3402
      %v3404 = vrot.slane %v3403, 4
      %v3406 = vshll.u32 %v3097, 16
      %v3408 = vrot.slane %v3406, 5
      %v3409 = vsel %vm1215, %v3404, %v3408
      %v3410 = vshrl.u32 %v3097, 16
      %v3412 = vrot.slane %v3410, 4
      %v3413 = vor.u32 %v3412, %v3408
      %v3414 = vrot.slane %v3413, 4
      %v3416 = vshll.u32 %v3098, 16
      %v3418 = vrot.slane %v3416, 5
      %v3419 = vsel %vm1215, %v3414, %v3418
      %v3421 = vshrl.u32 %v3099, 16
      %v3423 = vrot.slane %v3421, 4
      %v3424 = vshll.u32 %v3099, 16
      %v3426 = vrot.slane %v3424, 5
      %v3427 = vor.u32 %v3423, %v3426
      %v3428 = vrot.slane %v3427, 4
      %v3430 = vshll.u32 %v3100, 16
      %v3432 = vrot.slane %v3430, 5
      %v3433 = vsel %vm1215, %v3428, %v3432
      %v3434 = vshrl.u32 %v3100, 16
      %v3436 = vrot.slane %v3434, 4
      %v3437 = vor.u32 %v3436, %v3432
      %v3438 = vrot.slane %v3437, 4
      %v3440 = vshll.u32 %v3101, 16
      %v3442 = vrot.slane %v3440, 5
      %v3443 = vsel %vm1215, %v3438, %v3442
      %v3445 = vshrl.u32 %v3102, 16
      %v3447 = vrot.slane %v3445, 4
      %v3448 = vshll.u32 %v3102, 16
      %v3450 = vrot.slane %v3448, 5
      %v3451 = vor.u32 %v3447, %v3450
      %v3452 = vrot.slane %v3451, 4
      %v3454 = vshll.u32 %v3103, 16
      %v3456 = vrot.slane %v3454, 5
      %v3457 = vsel %vm1215, %v3452, %v3456
      %v3458 = vshrl.u32 %v3103, 16
      %v3460 = vrot.slane %v3458, 4
      %v3461 = vor.u32 %v3460, %v3456
      %v3462 = vrot.slane %v3461, 4
      %v3464 = vshll.u32 %v3104, 16
      %v3466 = vrot.slane %v3464, 5
      %v3467 = vsel %vm1215, %v3462, %v3466
      %v3469 = vshrl.u32 %v3105, 16
      %v3471 = vrot.slane %v3469, 4
      %v3472 = vshll.u32 %v3105, 16
      %v3474 = vrot.slane %v3472, 5
      %v3475 = vor.u32 %v3471, %v3474
      %v3476 = vrot.slane %v3475, 4
      %v3478 = vshll.u32 %v3106, 16
      %v3480 = vrot.slane %v3478, 5
      %v3481 = vsel %vm1215, %v3476, %v3480
      %v3482 = vshrl.u32 %v3106, 16
      %v3484 = vrot.slane %v3482, 4
      %v3485 = vor.u32 %v3484, %v3480
      %v3486 = vrot.slane %v3485, 4
      %v3488 = vshll.u32 %v3107, 16
      %v3490 = vrot.slane %v3488, 5
      %v3491 = vsel %vm1215, %v3486, %v3490
      %v3492 = vunpack.c.l.b16 %v3121
      %v3493 = vunpack.c.l.b16 %v3131
      %v3494 = vunpack.c.l.b16 %v3145
      %v3495 = vunpack.c.l.b16 %v3155
      %v3496 = vunpack.c.l.b16 %v3169
      %v3497 = vunpack.c.l.b16 %v3179
      %v3498 = vunpack.c.l.b16 %v3193
      %v3499 = vunpack.c.l.b16 %v3203
      %v3500 = vunpack.c.l.b16 %v3217
      %v3501 = vunpack.c.l.b16 %v3227
      %v3502 = vunpack.c.l.b16 %v3241
      %v3503 = vunpack.c.l.b16 %v3251
      %v3504 = vunpack.c.l.b16 %v3265
      %v3505 = vunpack.c.l.b16 %v3275
      %v3506 = vunpack.c.l.b16 %v3289
      %v3507 = vunpack.c.l.b16 %v3299
      %v3508 = vunpack.c.l.b16 %v3313
      %v3509 = vunpack.c.l.b16 %v3323
      %v3510 = vunpack.c.l.b16 %v3337
      %v3511 = vunpack.c.l.b16 %v3347
      %v3512 = vunpack.c.l.b16 %v3361
      %v3513 = vunpack.c.l.b16 %v3371
      %v3514 = vunpack.c.l.b16 %v3385
      %v3515 = vunpack.c.l.b16 %v3395
      %v3516 = vunpack.c.l.b16 %v3409
      %v3517 = vunpack.c.l.b16 %v3419
      %v3518 = vunpack.c.l.b16 %v3433
      %v3519 = vunpack.c.l.b16 %v3443
      %v3520 = vunpack.c.l.b16 %v3457
      %v3521 = vunpack.c.l.b16 %v3467
      %v3522 = vunpack.c.l.b16 %v3481
      %v3523 = vunpack.c.l.b16 %v3491
      %v3524 = vpack.c.b16 %v3493, %v3492
      %v3525 = vpack.c.b16 %v3495, %v3494
      %v3526 = vpack.c.b16 %v3497, %v3496
      %v3527 = vpack.c.b16 %v3499, %v3498
      %v3528 = vpack.c.b16 %v3501, %v3500
      %v3529 = vpack.c.b16 %v3503, %v3502
      %v3530 = vpack.c.b16 %v3505, %v3504
      %v3531 = vpack.c.b16 %v3507, %v3506
      %v3532 = vpack.c.b16 %v3509, %v3508
      %v3533 = vpack.c.b16 %v3511, %v3510
      %v3534 = vpack.c.b16 %v3513, %v3512
      %v3535 = vpack.c.b16 %v3515, %v3514
      %v3536 = vpack.c.b16 %v3517, %v3516
      %v3537 = vpack.c.b16 %v3519, %v3518
      %v3538 = vpack.c.b16 %v3521, %v3520
      %v3539 = vpack.c.b16 %v3523, %v3522
      %3556 = vst [vmem:[#allocation3 + $0x38] sm:$0xff] %v3524
      %3557 = vst [vmem:[#allocation3 + $0x80] sm:$0xff] %v3525
      %3558 = vst [vmem:[#allocation3 + $0xc8] sm:$0xff] %v3526
      %3559 = vst [vmem:[#allocation3 + $0x110] sm:$0xff] %v3527
      %3560 = vst [vmem:[#allocation3 + $0x158] sm:$0xff] %v3528
      %3561 = vst [vmem:[#allocation3 + $0x1a0] sm:$0xff] %v3529
      %3562 = vst [vmem:[#allocation3 + $0x1e8] sm:$0xff] %v3530
      %3563 = vst [vmem:[#allocation3 + $0x230] sm:$0xff] %v3531
      %3564 = vst [vmem:[#allocation3 + $0x278] sm:$0xff] %v3532
      %3565 = vst [vmem:[#allocation3 + $0x2c0] sm:$0xff] %v3533
      %3566 = vst [vmem:[#allocation3 + $0x308] sm:$0xff] %v3534
      %3567 = vst [vmem:[#allocation3 + $0x350] sm:$0xff] %v3535
      %3568 = vst [vmem:[#allocation3 + $0x398] sm:$0xff] %v3536
      %3569 = vst [vmem:[#allocation3 + $0x3e0] sm:$0xff] %v3537
      %3570 = vst [vmem:[#allocation3 + $0x428] sm:$0xff] %v3538
      %3571 = vst [vmem:[#allocation3 + $0x470] sm:$0xff] %v3539
      %v3572 = vld [vmem:[%s2915] sm:$0xe]
      %v3573 = vld [vmem:[%s2915 + $0x4] sm:$0xf]
      %v3574 = vld [vmem:[%s2915 + $0x8] sm:$0x1]
      %v3575 = vld [vmem:[%s2915 + $0xc] sm:$0xe]
      %v3576 = vld [vmem:[%s2915 + $0x10] sm:$0xf]
      %v3577 = vld [vmem:[%s2915 + $0x14] sm:$0x1]
      %v3578 = vld [vmem:[%s2915 + $0x18] sm:$0xe]
      %v3579 = vld [vmem:[%s2915 + $0x1c] sm:$0xf]
      %v3580 = vld [vmem:[%s2915 + $0x20] sm:$0x1]
      %v3581 = vld [vmem:[%s2915 + $0x24] sm:$0xe]
      %v3582 = vld [vmem:[%s2915 + $0x28] sm:$0xf]
      %v3583 = vld [vmem:[%s2915 + $0x2c] sm:$0x1]
      %v3584 = vld [vmem:[%s2915 + $0x30] sm:$0xe]
      %v3585 = vld [vmem:[%s2915 + $0x34] sm:$0xf]
      %v3586 = vld [vmem:[%s2915 + $0x38] sm:$0x1]
      %v3587 = vld [vmem:[%s2915 + $0x3c] sm:$0xe]
      %v3588 = vld [vmem:[%s2915 + $0x40] sm:$0xf]
      %v3589 = vld [vmem:[%s2915 + $0x44] sm:$0x1]
      %v3590 = vld [vmem:[%s2915 + $0x48] sm:$0xe]
      %v3591 = vld [vmem:[%s2915 + $0x4c] sm:$0xf]
      %v3592 = vld [vmem:[%s2915 + $0x50] sm:$0x1]
      %v3593 = vld [vmem:[%s2915 + $0x54] sm:$0xe]
      %v3594 = vld [vmem:[%s2915 + $0x58] sm:$0xf]
      %v3595 = vld [vmem:[%s2915 + $0x5c] sm:$0x1]
      %v3596 = vld [vmem:[%s2915 + $0x60] sm:$0xe]
      %v3597 = vld [vmem:[%s2915 + $0x64] sm:$0xf]
      %v3598 = vld [vmem:[%s2915 + $0x68] sm:$0x1]
      %v3599 = vld [vmem:[%s2915 + $0x6c] sm:$0xe]
      %v3600 = vld [vmem:[%s2915 + $0x70] sm:$0xf]
      %v3601 = vld [vmem:[%s2915 + $0x74] sm:$0x1]
      %v3602 = vld [vmem:[%s2915 + $0x78] sm:$0xe]
      %v3603 = vld [vmem:[%s2915 + $0x7c] sm:$0xf]
      %v3604 = vld [vmem:[%s2915 + $0x80] sm:$0x1]
      %v3605 = vld [vmem:[%s2915 + $0x84] sm:$0xe]
      %v3606 = vld [vmem:[%s2915 + $0x88] sm:$0xf]
      %v3607 = vld [vmem:[%s2915 + $0x8c] sm:$0x1]
      %v3608 = vld [vmem:[%s2915 + $0x90] sm:$0xe]
      %v3609 = vld [vmem:[%s2915 + $0x94] sm:$0xf]
      %v3610 = vld [vmem:[%s2915 + $0x98] sm:$0x1]
      %v3611 = vld [vmem:[%s2915 + $0x9c] sm:$0xe]
      %v3612 = vld [vmem:[%s2915 + $0xa0] sm:$0xf]
      %v3613 = vld [vmem:[%s2915 + $0xa4] sm:$0x1]
      %v3614 = vld [vmem:[%s2915 + $0xa8] sm:$0xe]
      %v3615 = vld [vmem:[%s2915 + $0xac] sm:$0xf]
      %v3616 = vld [vmem:[%s2915 + $0xb0] sm:$0x1]
      %v3617 = vld [vmem:[%s2915 + $0xb4] sm:$0xe]
      %v3618 = vld [vmem:[%s2915 + $0xb8] sm:$0xf]
      %v3619 = vld [vmem:[%s2915 + $0xbc] sm:$0x1]
      %v3668 = vrot.slane %v3572, 5
      %v3669 = vrot.slane %v3668, 4
      %v3670 = vrot.slane %v3573, 5
      %v3671 = vsel %vm1778, %v3669, %v3670
      %v3672 = vrot.slane %v3670, 4
      %v3673 = vrot.slane %v3574, 5
      %v3674 = vsel %vm1778, %v3672, %v3673
      %v3675 = vrot.slane %v3575, 5
      %v3676 = vrot.slane %v3675, 4
      %v3677 = vrot.slane %v3576, 5
      %v3678 = vsel %vm1778, %v3676, %v3677
      %v3679 = vrot.slane %v3677, 4
      %v3680 = vrot.slane %v3577, 5
      %v3681 = vsel %vm1778, %v3679, %v3680
      %v3682 = vrot.slane %v3578, 5
      %v3683 = vrot.slane %v3682, 4
      %v3684 = vrot.slane %v3579, 5
      %v3685 = vsel %vm1778, %v3683, %v3684
      %v3686 = vrot.slane %v3684, 4
      %v3687 = vrot.slane %v3580, 5
      %v3688 = vsel %vm1778, %v3686, %v3687
      %v3689 = vrot.slane %v3581, 5
      %v3690 = vrot.slane %v3689, 4
      %v3691 = vrot.slane %v3582, 5
      %v3692 = vsel %vm1778, %v3690, %v3691
      %v3693 = vrot.slane %v3691, 4
      %v3694 = vrot.slane %v3583, 5
      %v3695 = vsel %vm1778, %v3693, %v3694
      %v3696 = vrot.slane %v3584, 5
      %v3697 = vrot.slane %v3696, 4
      %v3698 = vrot.slane %v3585, 5
      %v3699 = vsel %vm1778, %v3697, %v3698
      %v3700 = vrot.slane %v3698, 4
      %v3701 = vrot.slane %v3586, 5
      %v3702 = vsel %vm1778, %v3700, %v3701
      %v3703 = vrot.slane %v3587, 5
      %v3704 = vrot.slane %v3703, 4
      %v3705 = vrot.slane %v3588, 5
      %v3706 = vsel %vm1778, %v3704, %v3705
      %v3707 = vrot.slane %v3705, 4
      %v3708 = vrot.slane %v3589, 5
      %v3709 = vsel %vm1778, %v3707, %v3708
      %v3710 = vrot.slane %v3590, 5
      %v3711 = vrot.slane %v3710, 4
      %v3712 = vrot.slane %v3591, 5
      %v3713 = vsel %vm1778, %v3711, %v3712
      %v3714 = vrot.slane %v3712, 4
      %v3715 = vrot.slane %v3592, 5
      %v3716 = vsel %vm1778, %v3714, %v3715
      %v3717 = vrot.slane %v3593, 5
      %v3718 = vrot.slane %v3717, 4
      %v3719 = vrot.slane %v3594, 5
      %v3720 = vsel %vm1778, %v3718, %v3719
      %v3721 = vrot.slane %v3719, 4
      %v3722 = vrot.slane %v3595, 5
      %v3723 = vsel %vm1778, %v3721, %v3722
      %v3724 = vrot.slane %v3596, 5
      %v3725 = vrot.slane %v3724, 4
      %v3726 = vrot.slane %v3597, 5
      %v3727 = vsel %vm1778, %v3725, %v3726
      %v3728 = vrot.slane %v3726, 4
      %v3729 = vrot.slane %v3598, 5
      %v3730 = vsel %vm1778, %v3728, %v3729
      %v3731 = vrot.slane %v3599, 5
      %v3732 = vrot.slane %v3731, 4
      %v3733 = vrot.slane %v3600, 5
      %v3734 = vsel %vm1778, %v3732, %v3733
      %v3735 = vrot.slane %v3733, 4
      %v3736 = vrot.slane %v3601, 5
      %v3737 = vsel %vm1778, %v3735, %v3736
      %v3738 = vrot.slane %v3602, 5
      %v3739 = vrot.slane %v3738, 4
      %v3740 = vrot.slane %v3603, 5
      %v3741 = vsel %vm1778, %v3739, %v3740
      %v3742 = vrot.slane %v3740, 4
      %v3743 = vrot.slane %v3604, 5
      %v3744 = vsel %vm1778, %v3742, %v3743
      %v3745 = vrot.slane %v3605, 5
      %v3746 = vrot.slane %v3745, 4
      %v3747 = vrot.slane %v3606, 5
      %v3748 = vsel %vm1778, %v3746, %v3747
      %v3749 = vrot.slane %v3747, 4
      %v3750 = vrot.slane %v3607, 5
      %v3751 = vsel %vm1778, %v3749, %v3750
      %v3752 = vrot.slane %v3608, 5
      %v3753 = vrot.slane %v3752, 4
      %v3754 = vrot.slane %v3609, 5
      %v3755 = vsel %vm1778, %v3753, %v3754
      %v3756 = vrot.slane %v3754, 4
      %v3757 = vrot.slane %v3610, 5
      %v3758 = vsel %vm1778, %v3756, %v3757
      %v3759 = vrot.slane %v3611, 5
      %v3760 = vrot.slane %v3759, 4
      %v3761 = vrot.slane %v3612, 5
      %v3762 = vsel %vm1778, %v3760, %v3761
      %v3763 = vrot.slane %v3761, 4
      %v3764 = vrot.slane %v3613, 5
      %v3765 = vsel %vm1778, %v3763, %v3764
      %v3766 = vrot.slane %v3614, 5
      %v3767 = vrot.slane %v3766, 4
      %v3768 = vrot.slane %v3615, 5
      %v3769 = vsel %vm1778, %v3767, %v3768
      %v3770 = vrot.slane %v3768, 4
      %v3771 = vrot.slane %v3616, 5
      %v3772 = vsel %vm1778, %v3770, %v3771
      %v3773 = vrot.slane %v3617, 5
      %v3774 = vrot.slane %v3773, 4
      %v3775 = vrot.slane %v3618, 5
      %v3776 = vsel %vm1778, %v3774, %v3775
      %v3777 = vrot.slane %v3775, 4
      %v3778 = vrot.slane %v3619, 5
      %v3779 = vsel %vm1778, %v3777, %v3778
      %v3780 = vunpack.c.l.b16 %v3671
      %v3781 = vunpack.c.l.b16 %v3674
      %v3782 = vunpack.c.l.b16 %v3678
      %v3783 = vunpack.c.l.b16 %v3681
      %v3784 = vunpack.c.l.b16 %v3685
      %v3785 = vunpack.c.l.b16 %v3688
      %v3786 = vunpack.c.l.b16 %v3692
      %v3787 = vunpack.c.l.b16 %v3695
      %v3788 = vunpack.c.l.b16 %v3699
      %v3789 = vunpack.c.l.b16 %v3702
      %v3790 = vunpack.c.l.b16 %v3706
      %v3791 = vunpack.c.l.b16 %v3709
      %v3792 = vunpack.c.l.b16 %v3713
      %v3793 = vunpack.c.l.b16 %v3716
      %v3794 = vunpack.c.l.b16 %v3720
      %v3795 = vunpack.c.l.b16 %v3723
      %v3796 = vunpack.c.l.b16 %v3727
      %v3797 = vunpack.c.l.b16 %v3730
      %v3798 = vunpack.c.l.b16 %v3734
      %v3799 = vunpack.c.l.b16 %v3737
      %v3800 = vunpack.c.l.b16 %v3741
      %v3801 = vunpack.c.l.b16 %v3744
      %v3802 = vunpack.c.l.b16 %v3748
      %v3803 = vunpack.c.l.b16 %v3751
      %v3804 = vunpack.c.l.b16 %v3755
      %v3805 = vunpack.c.l.b16 %v3758
      %v3806 = vunpack.c.l.b16 %v3762
      %v3807 = vunpack.c.l.b16 %v3765
      %v3808 = vunpack.c.l.b16 %v3769
      %v3809 = vunpack.c.l.b16 %v3772
      %v3810 = vunpack.c.l.b16 %v3776
      %v3811 = vunpack.c.l.b16 %v3779
      %v3812 = vpack.c.b16 %v3781, %v3780
      %v3813 = vpack.c.b16 %v3783, %v3782
      %v3814 = vpack.c.b16 %v3785, %v3784
      %v3815 = vpack.c.b16 %v3787, %v3786
      %v3816 = vpack.c.b16 %v3789, %v3788
      %v3817 = vpack.c.b16 %v3791, %v3790
      %v3818 = vpack.c.b16 %v3793, %v3792
      %v3819 = vpack.c.b16 %v3795, %v3794
      %v3820 = vpack.c.b16 %v3797, %v3796
      %v3821 = vpack.c.b16 %v3799, %v3798
      %v3822 = vpack.c.b16 %v3801, %v3800
      %v3823 = vpack.c.b16 %v3803, %v3802
      %v3824 = vpack.c.b16 %v3805, %v3804
      %v3825 = vpack.c.b16 %v3807, %v3806
      %v3826 = vpack.c.b16 %v3809, %v3808
      %v3827 = vpack.c.b16 %v3811, %v3810
      %3844 = vst [vmem:[#allocation3 + $0x40] sm:$0xff] %v3812
      %3845 = vst [vmem:[#allocation3 + $0x88] sm:$0xff] %v3813
      %3846 = vst [vmem:[#allocation3 + $0xd0] sm:$0xff] %v3814
      %3847 = vst [vmem:[#allocation3 + $0x118] sm:$0xff] %v3815
      %3848 = vst [vmem:[#allocation3 + $0x160] sm:$0xff] %v3816
      %3849 = vst [vmem:[#allocation3 + $0x1a8] sm:$0xff] %v3817
      %3850 = vst [vmem:[#allocation3 + $0x1f0] sm:$0xff] %v3818
      %3851 = vst [vmem:[#allocation3 + $0x238] sm:$0xff] %v3819
      %3852 = vst [vmem:[#allocation3 + $0x280] sm:$0xff] %v3820
      %3853 = vst [vmem:[#allocation3 + $0x2c8] sm:$0xff] %v3821
      %3854 = vst [vmem:[#allocation3 + $0x310] sm:$0xff] %v3822
      %3855 = vst [vmem:[#allocation3 + $0x358] sm:$0xff] %v3823
      %3856 = vst [vmem:[#allocation3 + $0x3a0] sm:$0xff] %v3824
      %3857 = vst [vmem:[#allocation3 + $0x3e8] sm:$0xff] %v3825
      %3858 = vst [vmem:[#allocation3 + $0x430] sm:$0xff] %v3826
      %3859 = vst [vmem:[#allocation3 + $0x478] sm:$0xff] %v3827
      %v3860 = vld [vmem:[#allocation3] sm:$0xff]
      %v3861 = vld [vmem:[#allocation3 + $0x8] sm:$0xff]
      %v3862 = vld [vmem:[#allocation3 + $0x10] sm:$0xff]
      %v3863 = vld [vmem:[#allocation3 + $0x18] sm:$0xff]
      %v3864 = vld [vmem:[#allocation3 + $0x20] sm:$0xff]
      %v3865 = vld [vmem:[#allocation3 + $0x28] sm:$0xff]
      %v3866 = vld [vmem:[#allocation3 + $0x30] sm:$0xff]
      %v3867 = vld [vmem:[#allocation3 + $0x38] sm:$0xff]
      %v3868 = vld [vmem:[#allocation3 + $0x40] sm:$0xff]
      %v3869 = vld [vmem:[#allocation3 + $0x48] sm:$0xff]
      %v3870 = vld [vmem:[#allocation3 + $0x50] sm:$0xff]
      %v3871 = vld [vmem:[#allocation3 + $0x58] sm:$0xff]
      %v3872 = vld [vmem:[#allocation3 + $0x60] sm:$0xff]
      %v3873 = vld [vmem:[#allocation3 + $0x68] sm:$0xff]
      %v3874 = vld [vmem:[#allocation3 + $0x70] sm:$0xff]
      %v3875 = vld [vmem:[#allocation3 + $0x78] sm:$0xff]
      %v3876 = vld [vmem:[#allocation3 + $0x80] sm:$0xff]
      %v3877 = vld [vmem:[#allocation3 + $0x88] sm:$0xff]
      %v3878 = vld [vmem:[#allocation3 + $0x90] sm:$0xff]
      %v3879 = vld [vmem:[#allocation3 + $0x98] sm:$0xff]
      %v3880 = vld [vmem:[#allocation3 + $0xa0] sm:$0xff]
      %v3881 = vld [vmem:[#allocation3 + $0xa8] sm:$0xff]
      %v3882 = vld [vmem:[#allocation3 + $0xb0] sm:$0xff]
      %v3883 = vld [vmem:[#allocation3 + $0xb8] sm:$0xff]
      %v3884 = vld [vmem:[#allocation3 + $0xc0] sm:$0xff]
      %v3885 = vld [vmem:[#allocation3 + $0xc8] sm:$0xff]
      %v3886 = vld [vmem:[#allocation3 + $0xd0] sm:$0xff]
      %v3887 = vld [vmem:[#allocation3 + $0xd8] sm:$0xff]
      %v3888 = vld [vmem:[#allocation3 + $0xe0] sm:$0xff]
      %v3889 = vld [vmem:[#allocation3 + $0xe8] sm:$0xff]
      %v3890 = vld [vmem:[#allocation3 + $0xf0] sm:$0xff]
      %v3891 = vld [vmem:[#allocation3 + $0xf8] sm:$0xff]
      %v3892 = vld [vmem:[#allocation3 + $0x100] sm:$0xff]
      %v3893 = vld [vmem:[#allocation3 + $0x108] sm:$0xff]
      %v3894 = vld [vmem:[#allocation3 + $0x110] sm:$0xff]
      %v3895 = vld [vmem:[#allocation3 + $0x118] sm:$0xff]
      %v3896 = vld [vmem:[#allocation3 + $0x120] sm:$0xff]
      %v3897 = vld [vmem:[#allocation3 + $0x128] sm:$0xff]
      %v3898 = vld [vmem:[#allocation3 + $0x130] sm:$0xff]
      %v3899 = vld [vmem:[#allocation3 + $0x138] sm:$0xff]
      %v3900 = vld [vmem:[#allocation3 + $0x140] sm:$0xff]
      %v3901 = vld [vmem:[#allocation3 + $0x148] sm:$0xff]
      %v3902 = vld [vmem:[#allocation3 + $0x150] sm:$0xff]
      %v3903 = vld [vmem:[#allocation3 + $0x158] sm:$0xff]
      %v3904 = vld [vmem:[#allocation3 + $0x160] sm:$0xff]
      %v3905 = vld [vmem:[#allocation3 + $0x168] sm:$0xff]
      %v3906 = vld [vmem:[#allocation3 + $0x170] sm:$0xff]
      %v3907 = vld [vmem:[#allocation3 + $0x178] sm:$0xff]
      %v3908 = vld [vmem:[#allocation3 + $0x180] sm:$0xff]
      %v3909 = vld [vmem:[#allocation3 + $0x188] sm:$0xff]
      %v3910 = vld [vmem:[#allocation3 + $0x190] sm:$0xff]
      %v3911 = vld [vmem:[#allocation3 + $0x198] sm:$0xff]
      %v3912 = vld [vmem:[#allocation3 + $0x1a0] sm:$0xff]
      %v3913 = vld [vmem:[#allocation3 + $0x1a8] sm:$0xff]
      %v3914 = vld [vmem:[#allocation3 + $0x1b0] sm:$0xff]
      %v3915 = vld [vmem:[#allocation3 + $0x1b8] sm:$0xff]
      %v3916 = vld [vmem:[#allocation3 + $0x1c0] sm:$0xff]
      %v3917 = vld [vmem:[#allocation3 + $0x1c8] sm:$0xff]
      %v3918 = vld [vmem:[#allocation3 + $0x1d0] sm:$0xff]
      %v3919 = vld [vmem:[#allocation3 + $0x1d8] sm:$0xff]
      %v3920 = vld [vmem:[#allocation3 + $0x1e0] sm:$0xff]
      %v3921 = vld [vmem:[#allocation3 + $0x1e8] sm:$0xff]
      %v3922 = vld [vmem:[#allocation3 + $0x1f0] sm:$0xff]
      %v3923 = vld [vmem:[#allocation3 + $0x1f8] sm:$0xff]
      %v3924 = vld [vmem:[#allocation3 + $0x200] sm:$0xff]
      %v3925 = vld [vmem:[#allocation3 + $0x208] sm:$0xff]
      %v3926 = vld [vmem:[#allocation3 + $0x210] sm:$0xff]
      %v3927 = vld [vmem:[#allocation3 + $0x218] sm:$0xff]
      %v3928 = vld [vmem:[#allocation3 + $0x220] sm:$0xff]
      %v3929 = vld [vmem:[#allocation3 + $0x228] sm:$0xff]
      %v3930 = vld [vmem:[#allocation3 + $0x230] sm:$0xff]
      %v3931 = vld [vmem:[#allocation3 + $0x238] sm:$0xff]
      %v3932 = vld [vmem:[#allocation3 + $0x240] sm:$0xff]
      %v3933 = vld [vmem:[#allocation3 + $0x248] sm:$0xff]
      %v3934 = vld [vmem:[#allocation3 + $0x250] sm:$0xff]
      %v3935 = vld [vmem:[#allocation3 + $0x258] sm:$0xff]
      %v3936 = vld [vmem:[#allocation3 + $0x260] sm:$0xff]
      %v3937 = vld [vmem:[#allocation3 + $0x268] sm:$0xff]
      %v3938 = vld [vmem:[#allocation3 + $0x270] sm:$0xff]
      %v3939 = vld [vmem:[#allocation3 + $0x278] sm:$0xff]
      %v3940 = vld [vmem:[#allocation3 + $0x280] sm:$0xff]
      %v3941 = vld [vmem:[#allocation3 + $0x288] sm:$0xff]
      %v3942 = vld [vmem:[#allocation3 + $0x290] sm:$0xff]
      %v3943 = vld [vmem:[#allocation3 + $0x298] sm:$0xff]
      %v3944 = vld [vmem:[#allocation3 + $0x2a0] sm:$0xff]
      %v3945 = vld [vmem:[#allocation3 + $0x2a8] sm:$0xff]
      %v3946 = vld [vmem:[#allocation3 + $0x2b0] sm:$0xff]
      %v3947 = vld [vmem:[#allocation3 + $0x2b8] sm:$0xff]
      %v3948 = vld [vmem:[#allocation3 + $0x2c0] sm:$0xff]
      %v3949 = vld [vmem:[#allocation3 + $0x2c8] sm:$0xff]
      %v3950 = vld [vmem:[#allocation3 + $0x2d0] sm:$0xff]
      %v3951 = vld [vmem:[#allocation3 + $0x2d8] sm:$0xff]
      %v3952 = vld [vmem:[#allocation3 + $0x2e0] sm:$0xff]
      %v3953 = vld [vmem:[#allocation3 + $0x2e8] sm:$0xff]
      %v3954 = vld [vmem:[#allocation3 + $0x2f0] sm:$0xff]
      %v3955 = vld [vmem:[#allocation3 + $0x2f8] sm:$0xff]
      %v3956 = vld [vmem:[#allocation3 + $0x300] sm:$0xff]
      %v3957 = vld [vmem:[#allocation3 + $0x308] sm:$0xff]
      %v3958 = vld [vmem:[#allocation3 + $0x310] sm:$0xff]
      %v3959 = vld [vmem:[#allocation3 + $0x318] sm:$0xff]
      %v3960 = vld [vmem:[#allocation3 + $0x320] sm:$0xff]
      %v3961 = vld [vmem:[#allocation3 + $0x328] sm:$0xff]
      %v3962 = vld [vmem:[#allocation3 + $0x330] sm:$0xff]
      %v3963 = vld [vmem:[#allocation3 + $0x338] sm:$0xff]
      %v3964 = vld [vmem:[#allocation3 + $0x340] sm:$0xff]
      %v3965 = vld [vmem:[#allocation3 + $0x348] sm:$0xff]
      %v3966 = vld [vmem:[#allocation3 + $0x350] sm:$0xff]
      %v3967 = vld [vmem:[#allocation3 + $0x358] sm:$0xff]
      %v3968 = vld [vmem:[#allocation3 + $0x360] sm:$0xff]
      %v3969 = vld [vmem:[#allocation3 + $0x368] sm:$0xff]
      %v3970 = vld [vmem:[#allocation3 + $0x370] sm:$0xff]
      %v3971 = vld [vmem:[#allocation3 + $0x378] sm:$0xff]
      %v3972 = vld [vmem:[#allocation3 + $0x380] sm:$0xff]
      %v3973 = vld [vmem:[#allocation3 + $0x388] sm:$0xff]
      %v3974 = vld [vmem:[#allocation3 + $0x390] sm:$0xff]
      %v3975 = vld [vmem:[#allocation3 + $0x398] sm:$0xff]
      %v3976 = vld [vmem:[#allocation3 + $0x3a0] sm:$0xff]
      %v3977 = vld [vmem:[#allocation3 + $0x3a8] sm:$0xff]
      %v3978 = vld [vmem:[#allocation3 + $0x3b0] sm:$0xff]
      %v3979 = vld [vmem:[#allocation3 + $0x3b8] sm:$0xff]
      %v3980 = vld [vmem:[#allocation3 + $0x3c0] sm:$0xff]
      %v3981 = vld [vmem:[#allocation3 + $0x3c8] sm:$0xff]
      %v3982 = vld [vmem:[#allocation3 + $0x3d0] sm:$0xff]
      %v3983 = vld [vmem:[#allocation3 + $0x3d8] sm:$0xff]
      %v3984 = vld [vmem:[#allocation3 + $0x3e0] sm:$0xff]
      %v3985 = vld [vmem:[#allocation3 + $0x3e8] sm:$0xff]
      %v3986 = vld [vmem:[#allocation3 + $0x3f0] sm:$0xff]
      %v3987 = vld [vmem:[#allocation3 + $0x3f8] sm:$0xff]
      %v3988 = vld [vmem:[#allocation3 + $0x400] sm:$0xff]
      %v3989 = vld [vmem:[#allocation3 + $0x408] sm:$0xff]
      %v3990 = vld [vmem:[#allocation3 + $0x410] sm:$0xff]
      %v3991 = vld [vmem:[#allocation3 + $0x418] sm:$0xff]
      %v3992 = vld [vmem:[#allocation3 + $0x420] sm:$0xff]
      %v3993 = vld [vmem:[#allocation3 + $0x428] sm:$0xff]
      %v3994 = vld [vmem:[#allocation3 + $0x430] sm:$0xff]
      %v3995 = vld [vmem:[#allocation3 + $0x438] sm:$0xff]
      %v3996 = vld [vmem:[#allocation3 + $0x440] sm:$0xff]
      %v3997 = vld [vmem:[#allocation3 + $0x448] sm:$0xff]
      %v3998 = vld [vmem:[#allocation3 + $0x450] sm:$0xff]
      %v3999 = vld [vmem:[#allocation3 + $0x458] sm:$0xff]
      %v4000 = vld [vmem:[#allocation3 + $0x460] sm:$0xff]
      %v4001 = vld [vmem:[#allocation3 + $0x468] sm:$0xff]
      %v4002 = vld [vmem:[#allocation3 + $0x470] sm:$0xff]
      %v4003 = vld [vmem:[#allocation3 + $0x478] sm:$0xff]
      %v4004 = vld [vmem:[%s3] sm:$0xf]
      %v4005 = vld [vmem:[%s3 + $0x4] sm:$0xf]
      %v4006 = vld [vmem:[%s3 + $0x8] sm:$0xf]
      %v4007 = vld [vmem:[%s3 + $0xc] sm:$0xf]
      %v4008 = vld [vmem:[%s3 + $0x10] sm:$0xf]
      %v4009 = vld [vmem:[%s3 + $0x14] sm:$0xf]
      %v4010 = vld [vmem:[%s3 + $0x18] sm:$0xf]
      %v4011 = vld [vmem:[%s3 + $0x1c] sm:$0xf]
      %v4012 = vld [vmem:[%s3 + $0x20] sm:$0xf]
      %v4013 = vld [vmem:[%s3 + $0x24] sm:$0xf]
      %v4014 = vld [vmem:[%s3 + $0x28] sm:$0xf]
      %v4015 = vld [vmem:[%s3 + $0x2c] sm:$0xf]
      %v4016 = vld [vmem:[%s3 + $0x30] sm:$0xf]
      %v4017 = vld [vmem:[%s3 + $0x34] sm:$0xf]
      %v4018 = vld [vmem:[%s3 + $0x38] sm:$0xf]
      %v4019 = vld [vmem:[%s3 + $0x3c] sm:$0xf]
      %v4020 = vld [vmem:[%s3 + $0x40] sm:$0xf]
      %v4021 = vld [vmem:[%s3 + $0x44] sm:$0xf]
      %v4022 = vld [vmem:[%s3 + $0x48] sm:$0xf]
      %v4023 = vld [vmem:[%s3 + $0x4c] sm:$0xf]
      %v4024 = vld [vmem:[%s3 + $0x50] sm:$0xf]
      %v4025 = vld [vmem:[%s3 + $0x54] sm:$0xf]
      %v4026 = vld [vmem:[%s3 + $0x58] sm:$0xf]
      %v4027 = vld [vmem:[%s3 + $0x5c] sm:$0xf]
      %v4028 = vld [vmem:[%s3 + $0x60] sm:$0xf]
      %v4029 = vld [vmem:[%s3 + $0x64] sm:$0xf]
      %v4030 = vld [vmem:[%s3 + $0x68] sm:$0xf]
      %v4031 = vld [vmem:[%s3 + $0x6c] sm:$0xf]
      %v4032 = vld [vmem:[%s3 + $0x70] sm:$0xf]
      %v4033 = vld [vmem:[%s3 + $0x74] sm:$0xf]
      %v4034 = vld [vmem:[%s3 + $0x78] sm:$0xf]
      %v4035 = vld [vmem:[%s3 + $0x7c] sm:$0xf]
      %v4036 = vld [vmem:[%s3 + $0x80] sm:$0xf]
      %v4037 = vld [vmem:[%s3 + $0x84] sm:$0xf]
      %v4038 = vld [vmem:[%s3 + $0x88] sm:$0xf]
      %v4039 = vld [vmem:[%s3 + $0x8c] sm:$0xf]
      %v4040 = vld [vmem:[%s3 + $0x90] sm:$0xf]
      %v4041 = vld [vmem:[%s3 + $0x94] sm:$0xf]
      %v4042 = vld [vmem:[%s3 + $0x98] sm:$0xf]
      %v4043 = vld [vmem:[%s3 + $0x9c] sm:$0xf]
      %v4044 = vld [vmem:[%s3 + $0xa0] sm:$0xf]
      %v4045 = vld [vmem:[%s3 + $0xa4] sm:$0xf]
      %v4046 = vld [vmem:[%s3 + $0xa8] sm:$0xf]
      %v4047 = vld [vmem:[%s3 + $0xac] sm:$0xf]
      %v4048 = vld [vmem:[%s3 + $0xb0] sm:$0xf]
      %v4049 = vld [vmem:[%s3 + $0xb4] sm:$0xf]
      %v4050 = vld [vmem:[%s3 + $0xb8] sm:$0xf]
      %v4051 = vld [vmem:[%s3 + $0xbc] sm:$0xf]
      %v4052 = vld [vmem:[%s3 + $0xc0] sm:$0xf]
      %v4053 = vld [vmem:[%s3 + $0xc4] sm:$0xf]
      %v4054 = vld [vmem:[%s3 + $0xc8] sm:$0xf]
      %v4055 = vld [vmem:[%s3 + $0xcc] sm:$0xf]
      %v4056 = vld [vmem:[%s3 + $0xd0] sm:$0xf]
      %v4057 = vld [vmem:[%s3 + $0xd4] sm:$0xf]
      %v4058 = vld [vmem:[%s3 + $0xd8] sm:$0xf]
      %v4059 = vld [vmem:[%s3 + $0xdc] sm:$0xf]
      %v4060 = vld [vmem:[%s3 + $0xe0] sm:$0xf]
      %v4061 = vld [vmem:[%s3 + $0xe4] sm:$0xf]
      %v4062 = vld [vmem:[%s3 + $0xe8] sm:$0xf]
      %v4063 = vld [vmem:[%s3 + $0xec] sm:$0xf]
      %v4064 = vld [vmem:[%s3 + $0xf0] sm:$0xf]
      %v4065 = vld [vmem:[%s3 + $0xf4] sm:$0xf]
      %v4066 = vld [vmem:[%s3 + $0xf8] sm:$0xf]
      %v4067 = vld [vmem:[%s3 + $0xfc] sm:$0xf]
      %v4068 = vld [vmem:[%s3 + $0x100] sm:$0xf]
      %v4069 = vld [vmem:[%s3 + $0x104] sm:$0xf]
      %v4070 = vld [vmem:[%s3 + $0x108] sm:$0xf]
      %v4071 = vld [vmem:[%s3 + $0x10c] sm:$0xf]
      %v4072 = vld [vmem:[%s3 + $0x110] sm:$0xf]
      %v4073 = vld [vmem:[%s3 + $0x114] sm:$0xf]
      %v4074 = vld [vmem:[%s3 + $0x118] sm:$0xf]
      %v4075 = vld [vmem:[%s3 + $0x11c] sm:$0xf]
      %v4076 = vld [vmem:[%s3 + $0x120] sm:$0xf]
      %v4077 = vld [vmem:[%s3 + $0x124] sm:$0xf]
      %v4078 = vld [vmem:[%s3 + $0x128] sm:$0xf]
      %v4079 = vld [vmem:[%s3 + $0x12c] sm:$0xf]
      %v4080 = vld [vmem:[%s3 + $0x130] sm:$0xf]
      %v4081 = vld [vmem:[%s3 + $0x134] sm:$0xf]
      %v4082 = vld [vmem:[%s3 + $0x138] sm:$0xf]
      %v4083 = vld [vmem:[%s3 + $0x13c] sm:$0xf]
      %v4084 = vld [vmem:[%s3 + $0x140] sm:$0xf]
      %v4085 = vld [vmem:[%s3 + $0x144] sm:$0xf]
      %v4086 = vld [vmem:[%s3 + $0x148] sm:$0xf]
      %v4087 = vld [vmem:[%s3 + $0x14c] sm:$0xf]
      %v4088 = vld [vmem:[%s3 + $0x150] sm:$0xf]
      %v4089 = vld [vmem:[%s3 + $0x154] sm:$0xf]
      %v4090 = vld [vmem:[%s3 + $0x158] sm:$0xf]
      %v4091 = vld [vmem:[%s3 + $0x15c] sm:$0xf]
      %v4092 = vld [vmem:[%s3 + $0x160] sm:$0xf]
      %v4093 = vld [vmem:[%s3 + $0x164] sm:$0xf]
      %v4094 = vld [vmem:[%s3 + $0x168] sm:$0xf]
      %v4095 = vld [vmem:[%s3 + $0x16c] sm:$0xf]
      %v4096 = vld [vmem:[%s3 + $0x170] sm:$0xf]
      %v4097 = vld [vmem:[%s3 + $0x174] sm:$0xf]
      %v4098 = vld [vmem:[%s3 + $0x178] sm:$0xf]
      %v4099 = vld [vmem:[%s3 + $0x17c] sm:$0xf]
      %v4100 = vld [vmem:[%s3 + $0x180] sm:$0xf]
      %v4101 = vld [vmem:[%s3 + $0x184] sm:$0xf]
      %v4102 = vld [vmem:[%s3 + $0x188] sm:$0xf]
      %v4103 = vld [vmem:[%s3 + $0x18c] sm:$0xf]
      %v4104 = vld [vmem:[%s3 + $0x190] sm:$0xf]
      %v4105 = vld [vmem:[%s3 + $0x194] sm:$0xf]
      %v4106 = vld [vmem:[%s3 + $0x198] sm:$0xf]
      %v4107 = vld [vmem:[%s3 + $0x19c] sm:$0xf]
      %v4108 = vld [vmem:[%s3 + $0x1a0] sm:$0xf]
      %v4109 = vld [vmem:[%s3 + $0x1a4] sm:$0xf]
      %v4110 = vld [vmem:[%s3 + $0x1a8] sm:$0xf]
      %v4111 = vld [vmem:[%s3 + $0x1ac] sm:$0xf]
      %v4112 = vld [vmem:[%s3 + $0x1b0] sm:$0xf]
      %v4113 = vld [vmem:[%s3 + $0x1b4] sm:$0xf]
      %v4114 = vld [vmem:[%s3 + $0x1b8] sm:$0xf]
      %v4115 = vld [vmem:[%s3 + $0x1bc] sm:$0xf]
      %v4116 = vld [vmem:[%s3 + $0x1c0] sm:$0xf]
      %v4117 = vld [vmem:[%s3 + $0x1c4] sm:$0xf]
      %v4118 = vld [vmem:[%s3 + $0x1c8] sm:$0xf]
      %v4119 = vld [vmem:[%s3 + $0x1cc] sm:$0xf]
      %v4120 = vld [vmem:[%s3 + $0x1d0] sm:$0xf]
      %v4121 = vld [vmem:[%s3 + $0x1d4] sm:$0xf]
      %v4122 = vld [vmem:[%s3 + $0x1d8] sm:$0xf]
      %v4123 = vld [vmem:[%s3 + $0x1dc] sm:$0xf]
      %v4124 = vld [vmem:[%s3 + $0x1e0] sm:$0xf]
      %v4125 = vld [vmem:[%s3 + $0x1e4] sm:$0xf]
      %v4126 = vld [vmem:[%s3 + $0x1e8] sm:$0xf]
      %v4127 = vld [vmem:[%s3 + $0x1ec] sm:$0xf]
      %v4128 = vld [vmem:[%s3 + $0x1f0] sm:$0xf]
      %v4129 = vld [vmem:[%s3 + $0x1f4] sm:$0xf]
      %v4130 = vld [vmem:[%s3 + $0x1f8] sm:$0xf]
      %v4131 = vld [vmem:[%s3 + $0x1fc] sm:$0xf]
      %v4132 = vld [vmem:[%s3 + $0x200] sm:$0xf]
      %v4133 = vld [vmem:[%s3 + $0x204] sm:$0xf]
      %v4134 = vld [vmem:[%s3 + $0x208] sm:$0xf]
      %v4135 = vld [vmem:[%s3 + $0x20c] sm:$0xf]
      %v4136 = vld [vmem:[%s3 + $0x210] sm:$0xf]
      %v4137 = vld [vmem:[%s3 + $0x214] sm:$0xf]
      %v4138 = vld [vmem:[%s3 + $0x218] sm:$0xf]
      %v4139 = vld [vmem:[%s3 + $0x21c] sm:$0xf]
      %v4140 = vld [vmem:[%s3 + $0x220] sm:$0xf]
      %v4141 = vld [vmem:[%s3 + $0x224] sm:$0xf]
      %v4142 = vld [vmem:[%s3 + $0x228] sm:$0xf]
      %v4143 = vld [vmem:[%s3 + $0x22c] sm:$0xf]
      %v4144 = vld [vmem:[%s3 + $0x230] sm:$0xf]
      %v4145 = vld [vmem:[%s3 + $0x234] sm:$0xf]
      %v4146 = vld [vmem:[%s3 + $0x238] sm:$0xf]
      %v4147 = vld [vmem:[%s3 + $0x23c] sm:$0xf]
      %v4148 = vld [vmem:[%s4] sm:$0x1]
      %v4150 = vlaneseq
      %v4151 = vshrl.u32 %v4150, 7
      %v4152 = vsub.s32 0, %v4151
      %v4153 = vrot.slane %v4148, %v4152
      %v4299 = vunpack.c.l.b16 %v4004
      %v4300 = vunpack.c.l.b16 %v4005
      %v4301 = vunpack.c.l.b16 %v4006
      %v4302 = vunpack.c.l.b16 %v4007
      %v4303 = vunpack.c.l.b16 %v4008
      %v4304 = vunpack.c.l.b16 %v4009
      %v4305 = vunpack.c.l.b16 %v4010
      %v4306 = vunpack.c.l.b16 %v4011
      %v4307 = vunpack.c.l.b16 %v4012
      %v4308 = vunpack.c.l.b16 %v4013
      %v4309 = vunpack.c.l.b16 %v4014
      %v4310 = vunpack.c.l.b16 %v4015
      %v4311 = vunpack.c.l.b16 %v4016
      %v4312 = vunpack.c.l.b16 %v4017
      %v4313 = vunpack.c.l.b16 %v4018
      %v4314 = vunpack.c.l.b16 %v4019
      %v4315 = vunpack.c.l.b16 %v4020
      %v4316 = vunpack.c.l.b16 %v4021
      %v4317 = vunpack.c.l.b16 %v4022
      %v4318 = vunpack.c.l.b16 %v4023
      %v4319 = vunpack.c.l.b16 %v4024
      %v4320 = vunpack.c.l.b16 %v4025
      %v4321 = vunpack.c.l.b16 %v4026
      %v4322 = vunpack.c.l.b16 %v4027
      %v4323 = vunpack.c.l.b16 %v4028
      %v4324 = vunpack.c.l.b16 %v4029
      %v4325 = vunpack.c.l.b16 %v4030
      %v4326 = vunpack.c.l.b16 %v4031
      %v4327 = vunpack.c.l.b16 %v4032
      %v4328 = vunpack.c.l.b16 %v4033
      %v4329 = vunpack.c.l.b16 %v4034
      %v4330 = vunpack.c.l.b16 %v4035
      %v4331 = vunpack.c.l.b16 %v4036
      %v4332 = vunpack.c.l.b16 %v4037
      %v4333 = vunpack.c.l.b16 %v4038
      %v4334 = vunpack.c.l.b16 %v4039
      %v4335 = vunpack.c.l.b16 %v4040
      %v4336 = vunpack.c.l.b16 %v4041
      %v4337 = vunpack.c.l.b16 %v4042
      %v4338 = vunpack.c.l.b16 %v4043
      %v4339 = vunpack.c.l.b16 %v4044
      %v4340 = vunpack.c.l.b16 %v4045
      %v4341 = vunpack.c.l.b16 %v4046
      %v4342 = vunpack.c.l.b16 %v4047
      %v4343 = vunpack.c.l.b16 %v4048
      %v4344 = vunpack.c.l.b16 %v4049
      %v4345 = vunpack.c.l.b16 %v4050
      %v4346 = vunpack.c.l.b16 %v4051
      %v4347 = vunpack.c.l.b16 %v4052
      %v4348 = vunpack.c.l.b16 %v4053
      %v4349 = vunpack.c.l.b16 %v4054
      %v4350 = vunpack.c.l.b16 %v4055
      %v4351 = vunpack.c.l.b16 %v4056
      %v4352 = vunpack.c.l.b16 %v4057
      %v4353 = vunpack.c.l.b16 %v4058
      %v4354 = vunpack.c.l.b16 %v4059
      %v4355 = vunpack.c.l.b16 %v4060
      %v4356 = vunpack.c.l.b16 %v4061
      %v4357 = vunpack.c.l.b16 %v4062
      %v4358 = vunpack.c.l.b16 %v4063
      %v4359 = vunpack.c.l.b16 %v4064
      %v4360 = vunpack.c.l.b16 %v4065
      %v4361 = vunpack.c.l.b16 %v4066
      %v4362 = vunpack.c.l.b16 %v4067
      %v4363 = vunpack.c.l.b16 %v4068
      %v4364 = vunpack.c.l.b16 %v4069
      %v4365 = vunpack.c.l.b16 %v4070
      %v4366 = vunpack.c.l.b16 %v4071
      %v4367 = vunpack.c.l.b16 %v4072
      %v4368 = vunpack.c.l.b16 %v4073
      %v4369 = vunpack.c.l.b16 %v4074
      %v4370 = vunpack.c.l.b16 %v4075
      %v4371 = vunpack.c.l.b16 %v4076
      %v4372 = vunpack.c.l.b16 %v4077
      %v4373 = vunpack.c.l.b16 %v4078
      %v4374 = vunpack.c.l.b16 %v4079
      %v4375 = vunpack.c.l.b16 %v4080
      %v4376 = vunpack.c.l.b16 %v4081
      %v4377 = vunpack.c.l.b16 %v4082
      %v4378 = vunpack.c.l.b16 %v4083
      %v4379 = vunpack.c.l.b16 %v4084
      %v4380 = vunpack.c.l.b16 %v4085
      %v4381 = vunpack.c.l.b16 %v4086
      %v4382 = vunpack.c.l.b16 %v4087
      %v4383 = vunpack.c.l.b16 %v4088
      %v4384 = vunpack.c.l.b16 %v4089
      %v4385 = vunpack.c.l.b16 %v4090
      %v4386 = vunpack.c.l.b16 %v4091
      %v4387 = vunpack.c.l.b16 %v4092
      %v4388 = vunpack.c.l.b16 %v4093
      %v4389 = vunpack.c.l.b16 %v4094
      %v4390 = vunpack.c.l.b16 %v4095
      %v4391 = vunpack.c.l.b16 %v4096
      %v4392 = vunpack.c.l.b16 %v4097
      %v4393 = vunpack.c.l.b16 %v4098
      %v4394 = vunpack.c.l.b16 %v4099
      %v4395 = vunpack.c.l.b16 %v4100
      %v4396 = vunpack.c.l.b16 %v4101
      %v4397 = vunpack.c.l.b16 %v4102
      %v4398 = vunpack.c.l.b16 %v4103
      %v4399 = vunpack.c.l.b16 %v4104
      %v4400 = vunpack.c.l.b16 %v4105
      %v4401 = vunpack.c.l.b16 %v4106
      %v4402 = vunpack.c.l.b16 %v4107
      %v4403 = vunpack.c.l.b16 %v4108
      %v4404 = vunpack.c.l.b16 %v4109
      %v4405 = vunpack.c.l.b16 %v4110
      %v4406 = vunpack.c.l.b16 %v4111
      %v4407 = vunpack.c.l.b16 %v4112
      %v4408 = vunpack.c.l.b16 %v4113
      %v4409 = vunpack.c.l.b16 %v4114
      %v4410 = vunpack.c.l.b16 %v4115
      %v4411 = vunpack.c.l.b16 %v4116
      %v4412 = vunpack.c.l.b16 %v4117
      %v4413 = vunpack.c.l.b16 %v4118
      %v4414 = vunpack.c.l.b16 %v4119
      %v4415 = vunpack.c.l.b16 %v4120
      %v4416 = vunpack.c.l.b16 %v4121
      %v4417 = vunpack.c.l.b16 %v4122
      %v4418 = vunpack.c.l.b16 %v4123
      %v4419 = vunpack.c.l.b16 %v4124
      %v4420 = vunpack.c.l.b16 %v4125
      %v4421 = vunpack.c.l.b16 %v4126
      %v4422 = vunpack.c.l.b16 %v4127
      %v4423 = vunpack.c.l.b16 %v4128
      %v4424 = vunpack.c.l.b16 %v4129
      %v4425 = vunpack.c.l.b16 %v4130
      %v4426 = vunpack.c.l.b16 %v4131
      %v4427 = vunpack.c.l.b16 %v4132
      %v4428 = vunpack.c.l.b16 %v4133
      %v4429 = vunpack.c.l.b16 %v4134
      %v4430 = vunpack.c.l.b16 %v4135
      %v4431 = vunpack.c.l.b16 %v4136
      %v4432 = vunpack.c.l.b16 %v4137
      %v4433 = vunpack.c.l.b16 %v4138
      %v4434 = vunpack.c.l.b16 %v4139
      %v4435 = vunpack.c.l.b16 %v4140
      %v4436 = vunpack.c.l.b16 %v4141
      %v4437 = vunpack.c.l.b16 %v4142
      %v4438 = vunpack.c.l.b16 %v4143
      %v4439 = vunpack.c.l.b16 %v4144
      %v4440 = vunpack.c.l.b16 %v4145
      %v4441 = vunpack.c.l.b16 %v4146
      %v4442 = vunpack.c.l.b16 %v4147
      %v4443 = vpack.c.b16 %v4300, %v4299
      %v4444 = vpack.c.b16 %v4302, %v4301
      %v4445 = vpack.c.b16 %v4304, %v4303
      %v4446 = vpack.c.b16 %v4306, %v4305
      %v4447 = vpack.c.b16 %v4308, %v4307
      %v4448 = vpack.c.b16 %v4310, %v4309
      %v4449 = vpack.c.b16 %v4312, %v4311
      %v4450 = vpack.c.b16 %v4314, %v4313
      %v4451 = vpack.c.b16 %v4316, %v4315
      %v4452 = vpack.c.b16 %v4318, %v4317
      %v4453 = vpack.c.b16 %v4320, %v4319
      %v4454 = vpack.c.b16 %v4322, %v4321
      %v4455 = vpack.c.b16 %v4324, %v4323
      %v4456 = vpack.c.b16 %v4326, %v4325
      %v4457 = vpack.c.b16 %v4328, %v4327
      %v4458 = vpack.c.b16 %v4330, %v4329
      %v4459 = vpack.c.b16 %v4332, %v4331
      %v4460 = vpack.c.b16 %v4334, %v4333
      %v4461 = vpack.c.b16 %v4336, %v4335
      %v4462 = vpack.c.b16 %v4338, %v4337
      %v4463 = vpack.c.b16 %v4340, %v4339
      %v4464 = vpack.c.b16 %v4342, %v4341
      %v4465 = vpack.c.b16 %v4344, %v4343
      %v4466 = vpack.c.b16 %v4346, %v4345
      %v4467 = vpack.c.b16 %v4348, %v4347
      %v4468 = vpack.c.b16 %v4350, %v4349
      %v4469 = vpack.c.b16 %v4352, %v4351
      %v4470 = vpack.c.b16 %v4354, %v4353
      %v4471 = vpack.c.b16 %v4356, %v4355
      %v4472 = vpack.c.b16 %v4358, %v4357
      %v4473 = vpack.c.b16 %v4360, %v4359
      %v4474 = vpack.c.b16 %v4362, %v4361
      %v4475 = vpack.c.b16 %v4364, %v4363
      %v4476 = vpack.c.b16 %v4366, %v4365
      %v4477 = vpack.c.b16 %v4368, %v4367
      %v4478 = vpack.c.b16 %v4370, %v4369
      %v4479 = vpack.c.b16 %v4372, %v4371
      %v4480 = vpack.c.b16 %v4374, %v4373
      %v4481 = vpack.c.b16 %v4376, %v4375
      %v4482 = vpack.c.b16 %v4378, %v4377
      %v4483 = vpack.c.b16 %v4380, %v4379
      %v4484 = vpack.c.b16 %v4382, %v4381
      %v4485 = vpack.c.b16 %v4384, %v4383
      %v4486 = vpack.c.b16 %v4386, %v4385
      %v4487 = vpack.c.b16 %v4388, %v4387
      %v4488 = vpack.c.b16 %v4390, %v4389
      %v4489 = vpack.c.b16 %v4392, %v4391
      %v4490 = vpack.c.b16 %v4394, %v4393
      %v4491 = vpack.c.b16 %v4396, %v4395
      %v4492 = vpack.c.b16 %v4398, %v4397
      %v4493 = vpack.c.b16 %v4400, %v4399
      %v4494 = vpack.c.b16 %v4402, %v4401
      %v4495 = vpack.c.b16 %v4404, %v4403
      %v4496 = vpack.c.b16 %v4406, %v4405
      %v4497 = vpack.c.b16 %v4408, %v4407
      %v4498 = vpack.c.b16 %v4410, %v4409
      %v4499 = vpack.c.b16 %v4412, %v4411
      %v4500 = vpack.c.b16 %v4414, %v4413
      %v4501 = vpack.c.b16 %v4416, %v4415
      %v4502 = vpack.c.b16 %v4418, %v4417
      %v4503 = vpack.c.b16 %v4420, %v4419
      %v4504 = vpack.c.b16 %v4422, %v4421
      %v4505 = vpack.c.b16 %v4424, %v4423
      %v4506 = vpack.c.b16 %v4426, %v4425
      %v4507 = vpack.c.b16 %v4428, %v4427
      %v4508 = vpack.c.b16 %v4430, %v4429
      %v4509 = vpack.c.b16 %v4432, %v4431
      %v4510 = vpack.c.b16 %v4434, %v4433
      %v4511 = vpack.c.b16 %v4436, %v4435
      %v4512 = vpack.c.b16 %v4438, %v4437
      %v4513 = vpack.c.b16 %v4440, %v4439
      %v4514 = vpack.c.b16 %v4442, %v4441
      %4587 = vmatprep.subr.bf16.mxu0 0
      %4588 = vmatpush1.bf16.msra.mxu0 %v4443
      %4589 = vmatprep.subr.bf16.mxu0 0
      %4590 = vmatpush1.bf16.msra.mxu0 %v4444
      %4591 = vmatprep.subr.bf16.mxu0 0
      %4592 = vmatpush1.bf16.msra.mxu0 %v4445
      %4593 = vmatprep.subr.bf16.mxu0 0
      %4594 = vmatpush1.bf16.msra.mxu0 %v4446
      %4595 = vmatprep.subr.bf16.mxu0 0
      %4596 = vmatpush1.bf16.msra.mxu0 %v4447
      %4597 = vmatprep.subr.bf16.mxu0 0
      %4598 = vmatpush1.bf16.msra.mxu0 %v4448
      %4599 = vmatprep.subr.bf16.mxu0 0
      %4600 = vmatpush1.bf16.msra.mxu0 %v4449
      %4601 = vmatprep.subr.bf16.mxu0 0
      %4602 = vmatpush1.bf16.msra.mxu0 %v4450
      %4603 = vmatprep.subr.bf16.mxu0 0
      %4604 = vmatpush1.bf16.msra.mxu0 %v4451
      %4605 = vmatprep.subr.bf16.mxu0 0
      %4606 = vmatpush1.bf16.msra.mxu0 %v4452
      %4607 = vmatprep.subr.bf16.mxu0 0
      %4608 = vmatpush1.bf16.msra.mxu0 %v4453
      %4609 = vmatprep.subr.bf16.mxu0 0
      %4610 = vmatpush1.bf16.msra.mxu0 %v4454
      %4611 = vmatprep.subr.bf16.mxu0 0
      %4612 = vmatpush1.bf16.msra.mxu0 %v4455
      %4613 = vmatprep.subr.bf16.mxu0 0
      %4614 = vmatpush1.bf16.msra.mxu0 %v4456
      %4615 = vmatprep.subr.bf16.mxu0 0
      %4616 = vmatpush1.bf16.msra.mxu0 %v4457
      %4617 = vmatprep.subr.bf16.mxu0 0
      %4618 = vmatpush1.bf16.msra.mxu0 %v4458
      %4619 = vmatprep.mubr.bf16.mxu0 %v3861
      %4620 = vmatmul.mubr.bf16.gmra.mrb[0].mxu0 %v3860
      %v4621 = vpop.f32.mrb[0].mxu0
      %v4622 = vadd.f32 %v4153, %v4621
      %v4623 = vpop.f32.mrb[0].mxu0
      %v4624 = vpop.f32.mrb[0].mxu0
      %v4625 = vadd.f32 %v4153, %v4624
      %v4626 = vpop.f32.mrb[0].mxu0
      %4627 = vmatprep.mubr.bf16.mxu0 %v3870
      %4628 = vmatmul.mubr.bf16.gmra.mrb[0].mxu0 %v3869
      %v4629 = vpop.f32.mrb[0].mxu0
      %v4630 = vadd.f32 %v4153, %v4629
      %v4631 = vpop.f32.mrb[0].mxu0
      %v4632 = vpop.f32.mrb[0].mxu0
      %v4633 = vadd.f32 %v4153, %v4632
      %v4634 = vpop.f32.mrb[0].mxu0
      %4635 = vmatprep.mubr.bf16.mxu0 %v3879
      %4636 = vmatmul.mubr.bf16.gmra.mrb[0].mxu0 %v3878
      %v4637 = vpop.f32.mrb[0].mxu0
      %v4638 = vadd.f32 %v4153, %v4637
      %v4639 = vpop.f32.mrb[0].mxu0
      %v4640 = vpop.f32.mrb[0].mxu0
      %v4641 = vadd.f32 %v4153, %v4640
      %v4642 = vpop.f32.mrb[0].mxu0
      %4643 = vmatprep.mubr.bf16.mxu0 %v3888
      %4644 = vmatmul.mubr.bf16.gmra.mrb[0].mxu0 %v3887
      %v4645 = vpop.f32.mrb[0].mxu0
      %v4646 = vadd.f32 %v4153, %v4645
      %v4647 = vpop.f32.mrb[0].mxu0
      %v4648 = vpop.f32.mrb[0].mxu0
      %v4649 = vadd.f32 %v4153, %v4648
      %v4650 = vpop.f32.mrb[0].mxu0
      %4651 = vmatprep.mubr.bf16.mxu0 %v3897
      %4652 = vmatmul.mubr.bf16.gmra.mrb[0].mxu0 %v3896
      %v4653 = vpop.f32.mrb[0].mxu0
      %v4654 = vadd.f32 %v4153, %v4653
      %v4655 = vpop.f32.mrb[0].mxu0
      %v4656 = vpop.f32.mrb[0].mxu0
      %v4657 = vadd.f32 %v4153, %v4656
      %v4658 = vpop.f32.mrb[0].mxu0
      %4659 = vmatprep.mubr.bf16.mxu0 %v3906
      %4660 = vmatmul.mubr.bf16.gmra.mrb[0].mxu0 %v3905
      %v4661 = vpop.f32.mrb[0].mxu0
      %v4662 = vadd.f32 %v4153, %v4661
      %v4663 = vpop.f32.mrb[0].mxu0
      %v4664 = vpop.f32.mrb[0].mxu0
      %v4665 = vadd.f32 %v4153, %v4664
      %v4666 = vpop.f32.mrb[0].mxu0
      %4667 = vmatprep.mubr.bf16.mxu0 %v3915
      %4668 = vmatmul.mubr.bf16.gmra.mrb[0].mxu0 %v3914
      %v4669 = vpop.f32.mrb[0].mxu0
      %v4670 = vadd.f32 %v4153, %v4669
      %v4671 = vpop.f32.mrb[0].mxu0
      %v4672 = vpop.f32.mrb[0].mxu0
      %v4673 = vadd.f32 %v4153, %v4672
      %v4674 = vpop.f32.mrb[0].mxu0
      %4675 = vmatprep.mubr.bf16.mxu0 %v3924
      %4676 = vmatmul.mubr.bf16.gmra.mrb[0].mxu0 %v3923
      %v4677 = vpop.f32.mrb[0].mxu0
      %v4678 = vadd.f32 %v4153, %v4677
      %v4679 = vpop.f32.mrb[0].mxu0
      %v4680 = vpop.f32.mrb[0].mxu0
      %v4681 = vadd.f32 %v4153, %v4680
      %v4682 = vpop.f32.mrb[0].mxu0
      %4683 = vmatprep.mubr.bf16.mxu0 %v3933
      %4684 = vmatmul.mubr.bf16.gmra.mrb[0].mxu0 %v3932
      %v4685 = vpop.f32.mrb[0].mxu0
      %v4686 = vadd.f32 %v4153, %v4685
      %v4687 = vpop.f32.mrb[0].mxu0
      %v4688 = vpop.f32.mrb[0].mxu0
      %v4689 = vadd.f32 %v4153, %v4688
      %v4690 = vpop.f32.mrb[0].mxu0
      %4691 = vmatprep.mubr.bf16.mxu0 %v3942
      %4692 = vmatmul.mubr.bf16.gmra.mrb[0].mxu0 %v3941
      %v4693 = vpop.f32.mrb[0].mxu0
      %v4694 = vadd.f32 %v4153, %v4693
      %v4695 = vpop.f32.mrb[0].mxu0
      %v4696 = vpop.f32.mrb[0].mxu0
      %v4697 = vadd.f32 %v4153, %v4696
      %v4698 = vpop.f32.mrb[0].mxu0
      %4699 = vmatprep.mubr.bf16.mxu0 %v3951
      %4700 = vmatmul.mubr.bf16.gmra.mrb[0].mxu0 %v3950
      %v4701 = vpop.f32.mrb[0].mxu0
      %v4702 = vadd.f32 %v4153, %v4701
      %v4703 = vpop.f32.mrb[0].mxu0
      %v4704 = vpop.f32.mrb[0].mxu0
      %v4705 = vadd.f32 %v4153, %v4704
      %v4706 = vpop.f32.mrb[0].mxu0
      %4707 = vmatprep.mubr.bf16.mxu0 %v3960
      %4708 = vmatmul.mubr.bf16.gmra.mrb[0].mxu0 %v3959
      %v4709 = vpop.f32.mrb[0].mxu0
      %v4710 = vadd.f32 %v4153, %v4709
      %v4711 = vpop.f32.mrb[0].mxu0
      %v4712 = vpop.f32.mrb[0].mxu0
      %v4713 = vadd.f32 %v4153, %v4712
      %v4714 = vpop.f32.mrb[0].mxu0
      %4715 = vmatprep.mubr.bf16.mxu0 %v3969
      %4716 = vmatmul.mubr.bf16.gmra.mrb[0].mxu0 %v3968
      %v4717 = vpop.f32.mrb[0].mxu0
      %v4718 = vadd.f32 %v4153, %v4717
      %v4719 = vpop.f32.mrb[0].mxu0
      %v4720 = vpop.f32.mrb[0].mxu0
      %v4721 = vadd.f32 %v4153, %v4720
      %v4722 = vpop.f32.mrb[0].mxu0
      %4723 = vmatprep.mubr.bf16.mxu0 %v3978
      %4724 = vmatmul.mubr.bf16.gmra.mrb[0].mxu0 %v3977
      %v4725 = vpop.f32.mrb[0].mxu0
      %v4726 = vadd.f32 %v4153, %v4725
      %v4727 = vpop.f32.mrb[0].mxu0
      %v4728 = vpop.f32.mrb[0].mxu0
      %v4729 = vadd.f32 %v4153, %v4728
      %v4730 = vpop.f32.mrb[0].mxu0
      %4731 = vmatprep.mubr.bf16.mxu0 %v3987
      %4732 = vmatmul.mubr.bf16.gmra.mrb[0].mxu0 %v3986
      %v4733 = vpop.f32.mrb[0].mxu0
      %v4734 = vadd.f32 %v4153, %v4733
      %v4735 = vpop.f32.mrb[0].mxu0
      %v4736 = vpop.f32.mrb[0].mxu0
      %v4737 = vadd.f32 %v4153, %v4736
      %v4738 = vpop.f32.mrb[0].mxu0
      %4739 = vmatprep.mubr.bf16.mxu0 %v3996
      %4740 = vmatmul.mubr.bf16.gmra.mrb[0].mxu0 %v3995
      %v4741 = vpop.f32.mrb[0].mxu0
      %v4742 = vadd.f32 %v4153, %v4741
      %v4743 = vpop.f32.mrb[0].mxu0
      %v4744 = vpop.f32.mrb[0].mxu0
      %v4745 = vadd.f32 %v4153, %v4744
      %v4746 = vpop.f32.mrb[0].mxu0
      %4747 = vdwg.mxu0
      %4748 = vmatprep.subr.bf16.mxu0 0
      %4749 = vmatpush1.bf16.msra.mxu0 %v4459
      %4750 = vmatprep.subr.bf16.mxu0 0
      %4751 = vmatpush1.bf16.msra.mxu0 %v4460
      %4752 = vmatprep.subr.bf16.mxu0 0
      %4753 = vmatpush1.bf16.msra.mxu0 %v4461
      %4754 = vmatprep.subr.bf16.mxu0 0
      %4755 = vmatpush1.bf16.msra.mxu0 %v4462
      %4756 = vmatprep.subr.bf16.mxu0 0
      %4757 = vmatpush1.bf16.msra.mxu0 %v4463
      %4758 = vmatprep.subr.bf16.mxu0 0
      %4759 = vmatpush1.bf16.msra.mxu0 %v4464
      %4760 = vmatprep.subr.bf16.mxu0 0
      %4761 = vmatpush1.bf16.msra.mxu0 %v4465
      %4762 = vmatprep.subr.bf16.mxu0 0
      %4763 = vmatpush1.bf16.msra.mxu0 %v4466
      %4764 = vmatprep.subr.bf16.mxu0 0
      %4765 = vmatpush1.bf16.msra.mxu0 %v4467
      %4766 = vmatprep.subr.bf16.mxu0 0
      %4767 = vmatpush1.bf16.msra.mxu0 %v4468
      %4768 = vmatprep.subr.bf16.mxu0 0
      %4769 = vmatpush1.bf16.msra.mxu0 %v4469
      %4770 = vmatprep.subr.bf16.mxu0 0
      %4771 = vmatpush1.bf16.msra.mxu0 %v4470
      %4772 = vmatprep.subr.bf16.mxu0 0
      %4773 = vmatpush1.bf16.msra.mxu0 %v4471
      %4774 = vmatprep.subr.bf16.mxu0 0
      %4775 = vmatpush1.bf16.msra.mxu0 %v4472
      %4776 = vmatprep.subr.bf16.mxu0 0
      %4777 = vmatpush1.bf16.msra.mxu0 %v4473
      %4778 = vmatprep.subr.bf16.mxu0 0
      %4779 = vmatpush1.bf16.msra.mxu0 %v4474
      %4780 = vmatprep.mubr.bf16.mxu0 %v3863
      %4781 = vmatmul.mubr.bf16.gmra.mrb[0].mxu0 %v3862
      %v4782 = vpop.f32.mrb[0].mxu0
      %v4783 = vadd.f32 %v4622, %v4782
      %v4784 = vpop.f32.mrb[0].mxu0
      %v4785 = vpop.f32.mrb[0].mxu0
      %v4786 = vadd.f32 %v4625, %v4785
      %v4787 = vpop.f32.mrb[0].mxu0
      %4788 = vmatprep.mubr.bf16.mxu0 %v3872
      %4789 = vmatmul.mubr.bf16.gmra.mrb[0].mxu0 %v3871
      %v4790 = vpop.f32.mrb[0].mxu0
      %v4791 = vadd.f32 %v4630, %v4790
      %v4792 = vpop.f32.mrb[0].mxu0
      %v4793 = vpop.f32.mrb[0].mxu0
      %v4794 = vadd.f32 %v4633, %v4793
      %v4795 = vpop.f32.mrb[0].mxu0
      %4796 = vmatprep.mubr.bf16.mxu0 %v3881
      %4797 = vmatmul.mubr.bf16.gmra.mrb[0].mxu0 %v3880
      %v4798 = vpop.f32.mrb[0].mxu0
      %v4799 = vadd.f32 %v4638, %v4798
      %v4800 = vpop.f32.mrb[0].mxu0
      %v4801 = vpop.f32.mrb[0].mxu0
      %v4802 = vadd.f32 %v4641, %v4801
      %v4803 = vpop.f32.mrb[0].mxu0
      %4804 = vmatprep.mubr.bf16.mxu0 %v3890
      %4805 = vmatmul.mubr.bf16.gmra.mrb[0].mxu0 %v3889
      %v4806 = vpop.f32.mrb[0].mxu0
      %v4807 = vadd.f32 %v4646, %v4806
      %v4808 = vpop.f32.mrb[0].mxu0
      %v4809 = vpop.f32.mrb[0].mxu0
      %v4810 = vadd.f32 %v4649, %v4809
      %v4811 = vpop.f32.mrb[0].mxu0
      %4812 = vmatprep.mubr.bf16.mxu0 %v3899
      %4813 = vmatmul.mubr.bf16.gmra.mrb[0].mxu0 %v3898
      %v4814 = vpop.f32.mrb[0].mxu0
      %v4815 = vadd.f32 %v4654, %v4814
      %v4816 = vpop.f32.mrb[0].mxu0
      %v4817 = vpop.f32.mrb[0].mxu0
      %v4818 = vadd.f32 %v4657, %v4817
      %v4819 = vpop.f32.mrb[0].mxu0
      %4820 = vmatprep.mubr.bf16.mxu0 %v3908
      %4821 = vmatmul.mubr.bf16.gmra.mrb[0].mxu0 %v3907
      %v4822 = vpop.f32.mrb[0].mxu0
      %v4823 = vadd.f32 %v4662, %v4822
      %v4824 = vpop.f32.mrb[0].mxu0
      %v4825 = vpop.f32.mrb[0].mxu0
      %v4826 = vadd.f32 %v4665, %v4825
      %v4827 = vpop.f32.mrb[0].mxu0
      %4828 = vmatprep.mubr.bf16.mxu0 %v3917
      %4829 = vmatmul.mubr.bf16.gmra.mrb[0].mxu0 %v3916
      %v4830 = vpop.f32.mrb[0].mxu0
      %v4831 = vadd.f32 %v4670, %v4830
      %v4832 = vpop.f32.mrb[0].mxu0
      %v4833 = vpop.f32.mrb[0].mxu0
      %v4834 = vadd.f32 %v4673, %v4833
      %v4835 = vpop.f32.mrb[0].mxu0
      %4836 = vmatprep.mubr.bf16.mxu0 %v3926
      %4837 = vmatmul.mubr.bf16.gmra.mrb[0].mxu0 %v3925
      %v4838 = vpop.f32.mrb[0].mxu0
      %v4839 = vadd.f32 %v4678, %v4838
      %v4840 = vpop.f32.mrb[0].mxu0
      %v4841 = vpop.f32.mrb[0].mxu0
      %v4842 = vadd.f32 %v4681, %v4841
      %v4843 = vpop.f32.mrb[0].mxu0
      %4844 = vmatprep.mubr.bf16.mxu0 %v3935
      %4845 = vmatmul.mubr.bf16.gmra.mrb[0].mxu0 %v3934
      %v4846 = vpop.f32.mrb[0].mxu0
      %v4847 = vadd.f32 %v4686, %v4846
      %v4848 = vpop.f32.mrb[0].mxu0
      %v4849 = vpop.f32.mrb[0].mxu0
      %v4850 = vadd.f32 %v4689, %v4849
      %v4851 = vpop.f32.mrb[0].mxu0
      %4852 = vmatprep.mubr.bf16.mxu0 %v3944
      %4853 = vmatmul.mubr.bf16.gmra.mrb[0].mxu0 %v3943
      %v4854 = vpop.f32.mrb[0].mxu0
      %v4855 = vadd.f32 %v4694, %v4854
      %v4856 = vpop.f32.mrb[0].mxu0
      %v4857 = vpop.f32.mrb[0].mxu0
      %v4858 = vadd.f32 %v4697, %v4857
      %v4859 = vpop.f32.mrb[0].mxu0
      %4860 = vmatprep.mubr.bf16.mxu0 %v3953
      %4861 = vmatmul.mubr.bf16.gmra.mrb[0].mxu0 %v3952
      %v4862 = vpop.f32.mrb[0].mxu0
      %v4863 = vadd.f32 %v4702, %v4862
      %v4864 = vpop.f32.mrb[0].mxu0
      %v4865 = vpop.f32.mrb[0].mxu0
      %v4866 = vadd.f32 %v4705, %v4865
      %v4867 = vpop.f32.mrb[0].mxu0
      %4868 = vmatprep.mubr.bf16.mxu0 %v3962
      %4869 = vmatmul.mubr.bf16.gmra.mrb[0].mxu0 %v3961
      %v4870 = vpop.f32.mrb[0].mxu0
      %v4871 = vadd.f32 %v4710, %v4870
      %v4872 = vpop.f32.mrb[0].mxu0
      %v4873 = vpop.f32.mrb[0].mxu0
      %v4874 = vadd.f32 %v4713, %v4873
      %v4875 = vpop.f32.mrb[0].mxu0
      %4876 = vmatprep.mubr.bf16.mxu0 %v3971
      %4877 = vmatmul.mubr.bf16.gmra.mrb[0].mxu0 %v3970
      %v4878 = vpop.f32.mrb[0].mxu0
      %v4879 = vadd.f32 %v4718, %v4878
      %v4880 = vpop.f32.mrb[0].mxu0
      %v4881 = vpop.f32.mrb[0].mxu0
      %v4882 = vadd.f32 %v4721, %v4881
      %v4883 = vpop.f32.mrb[0].mxu0
      %4884 = vmatprep.mubr.bf16.mxu0 %v3980
      %4885 = vmatmul.mubr.bf16.gmra.mrb[0].mxu0 %v3979
      %v4886 = vpop.f32.mrb[0].mxu0
      %v4887 = vadd.f32 %v4726, %v4886
      %v4888 = vpop.f32.mrb[0].mxu0
      %v4889 = vpop.f32.mrb[0].mxu0
      %v4890 = vadd.f32 %v4729, %v4889
      %v4891 = vpop.f32.mrb[0].mxu0
      %4892 = vmatprep.mubr.bf16.mxu0 %v3989
      %4893 = vmatmul.mubr.bf16.gmra.mrb[0].mxu0 %v3988
      %v4894 = vpop.f32.mrb[0].mxu0
      %v4895 = vadd.f32 %v4734, %v4894
      %v4896 = vpop.f32.mrb[0].mxu0
      %v4897 = vpop.f32.mrb[0].mxu0
      %v4898 = vadd.f32 %v4737, %v4897
      %v4899 = vpop.f32.mrb[0].mxu0
      %4900 = vmatprep.mubr.bf16.mxu0 %v3998
      %4901 = vmatmul.mubr.bf16.gmra.mrb[0].mxu0 %v3997
      %v4902 = vpop.f32.mrb[0].mxu0
      %v4903 = vadd.f32 %v4742, %v4902
      %v4904 = vpop.f32.mrb[0].mxu0
      %v4905 = vpop.f32.mrb[0].mxu0
      %v4906 = vadd.f32 %v4745, %v4905
      %v4907 = vpop.f32.mrb[0].mxu0
      %4908 = vdwg.mxu0
      %4909 = vmatprep.subr.bf16.mxu0 0
      %4910 = vmatpush1.bf16.msra.mxu0 %v4475
      %4911 = vmatprep.subr.bf16.mxu0 0
      %4912 = vmatpush1.bf16.msra.mxu0 %v4476
      %4913 = vmatprep.subr.bf16.mxu0 0
      %4914 = vmatpush1.bf16.msra.mxu0 %v4477
      %4915 = vmatprep.subr.bf16.mxu0 0
      %4916 = vmatpush1.bf16.msra.mxu0 %v4478
      %4917 = vmatprep.subr.bf16.mxu0 0
      %4918 = vmatpush1.bf16.msra.mxu0 %v4479
      %4919 = vmatprep.subr.bf16.mxu0 0
      %4920 = vmatpush1.bf16.msra.mxu0 %v4480
      %4921 = vmatprep.subr.bf16.mxu0 0
      %4922 = vmatpush1.bf16.msra.mxu0 %v4481
      %4923 = vmatprep.subr.bf16.mxu0 0
      %4924 = vmatpush1.bf16.msra.mxu0 %v4482
      %4925 = vmatprep.subr.bf16.mxu0 0
      %4926 = vmatpush1.bf16.msra.mxu0 %v4483
      %4927 = vmatprep.subr.bf16.mxu0 0
      %4928 = vmatpush1.bf16.msra.mxu0 %v4484
      %4929 = vmatprep.subr.bf16.mxu0 0
      %4930 = vmatpush1.bf16.msra.mxu0 %v4485
      %4931 = vmatprep.subr.bf16.mxu0 0
      %4932 = vmatpush1.bf16.msra.mxu0 %v4486
      %4933 = vmatprep.subr.bf16.mxu0 0
      %4934 = vmatpush1.bf16.msra.mxu0 %v4487
      %4935 = vmatprep.subr.bf16.mxu0 0
      %4936 = vmatpush1.bf16.msra.mxu0 %v4488
      %4937 = vmatprep.subr.bf16.mxu0 0
      %4938 = vmatpush1.bf16.msra.mxu0 %v4489
      %4939 = vmatprep.subr.bf16.mxu0 0
      %4940 = vmatpush1.bf16.msra.mxu0 %v4490
      %4941 = vmatprep.mubr.bf16.mxu0 %v3865
      %4942 = vmatmul.mubr.bf16.gmra.mrb[0].mxu0 %v3864
      %v4943 = vpop.f32.mrb[0].mxu0
      %v4944 = vadd.f32 %v4783, %v4943
      %v4945 = vpop.f32.mrb[0].mxu0
      %v4946 = vpop.f32.mrb[0].mxu0
      %v4947 = vadd.f32 %v4786, %v4946
      %v4948 = vpop.f32.mrb[0].mxu0
      %4949 = vmatprep.mubr.bf16.mxu0 %v3874
      %4950 = vmatmul.mubr.bf16.gmra.mrb[0].mxu0 %v3873
      %v4951 = vpop.f32.mrb[0].mxu0
      %v4952 = vadd.f32 %v4791, %v4951
      %v4953 = vpop.f32.mrb[0].mxu0
      %v4954 = vpop.f32.mrb[0].mxu0
      %v4955 = vadd.f32 %v4794, %v4954
      %v4956 = vpop.f32.mrb[0].mxu0
      %4957 = vmatprep.mubr.bf16.mxu0 %v3883
      %4958 = vmatmul.mubr.bf16.gmra.mrb[0].mxu0 %v3882
      %v4959 = vpop.f32.mrb[0].mxu0
      %v4960 = vadd.f32 %v4799, %v4959
      %v4961 = vpop.f32.mrb[0].mxu0
      %v4962 = vpop.f32.mrb[0].mxu0
      %v4963 = vadd.f32 %v4802, %v4962
      %v4964 = vpop.f32.mrb[0].mxu0
      %4965 = vmatprep.mubr.bf16.mxu0 %v3892
      %4966 = vmatmul.mubr.bf16.gmra.mrb[0].mxu0 %v3891
      %v4967 = vpop.f32.mrb[0].mxu0
      %v4968 = vadd.f32 %v4807, %v4967
      %v4969 = vpop.f32.mrb[0].mxu0
      %v4970 = vpop.f32.mrb[0].mxu0
      %v4971 = vadd.f32 %v4810, %v4970
      %v4972 = vpop.f32.mrb[0].mxu0
      %4973 = vmatprep.mubr.bf16.mxu0 %v3901
      %4974 = vmatmul.mubr.bf16.gmra.mrb[0].mxu0 %v3900
      %v4975 = vpop.f32.mrb[0].mxu0
      %v4976 = vadd.f32 %v4815, %v4975
      %v4977 = vpop.f32.mrb[0].mxu0
      %v4978 = vpop.f32.mrb[0].mxu0
      %v4979 = vadd.f32 %v4818, %v4978
      %v4980 = vpop.f32.mrb[0].mxu0
      %4981 = vmatprep.mubr.bf16.mxu0 %v3910
      %4982 = vmatmul.mubr.bf16.gmra.mrb[0].mxu0 %v3909
      %v4983 = vpop.f32.mrb[0].mxu0
      %v4984 = vadd.f32 %v4823, %v4983
      %v4985 = vpop.f32.mrb[0].mxu0
      %v4986 = vpop.f32.mrb[0].mxu0
      %v4987 = vadd.f32 %v4826, %v4986
      %v4988 = vpop.f32.mrb[0].mxu0
      %4989 = vmatprep.mubr.bf16.mxu0 %v3919
      %4990 = vmatmul.mubr.bf16.gmra.mrb[0].mxu0 %v3918
      %v4991 = vpop.f32.mrb[0].mxu0
      %v4992 = vadd.f32 %v4831, %v4991
      %v4993 = vpop.f32.mrb[0].mxu0
      %v4994 = vpop.f32.mrb[0].mxu0
      %v4995 = vadd.f32 %v4834, %v4994
      %v4996 = vpop.f32.mrb[0].mxu0
      %4997 = vmatprep.mubr.bf16.mxu0 %v3928
      %4998 = vmatmul.mubr.bf16.gmra.mrb[0].mxu0 %v3927
      %v4999 = vpop.f32.mrb[0].mxu0
      %v5000 = vadd.f32 %v4839, %v4999
      %v5001 = vpop.f32.mrb[0].mxu0
      %v5002 = vpop.f32.mrb[0].mxu0
      %v5003 = vadd.f32 %v4842, %v5002
      %v5004 = vpop.f32.mrb[0].mxu0
      %5005 = vmatprep.mubr.bf16.mxu0 %v3937
      %5006 = vmatmul.mubr.bf16.gmra.mrb[0].mxu0 %v3936
      %v5007 = vpop.f32.mrb[0].mxu0
      %v5008 = vadd.f32 %v4847, %v5007
      %v5009 = vpop.f32.mrb[0].mxu0
      %v5010 = vpop.f32.mrb[0].mxu0
      %v5011 = vadd.f32 %v4850, %v5010
      %v5012 = vpop.f32.mrb[0].mxu0
      %5013 = vmatprep.mubr.bf16.mxu0 %v3946
      %5014 = vmatmul.mubr.bf16.gmra.mrb[0].mxu0 %v3945
      %v5015 = vpop.f32.mrb[0].mxu0
      %v5016 = vadd.f32 %v4855, %v5015
      %v5017 = vpop.f32.mrb[0].mxu0
      %v5018 = vpop.f32.mrb[0].mxu0
      %v5019 = vadd.f32 %v4858, %v5018
      %v5020 = vpop.f32.mrb[0].mxu0
      %5021 = vmatprep.mubr.bf16.mxu0 %v3955
      %5022 = vmatmul.mubr.bf16.gmra.mrb[0].mxu0 %v3954
      %v5023 = vpop.f32.mrb[0].mxu0
      %v5024 = vadd.f32 %v4863, %v5023
      %v5025 = vpop.f32.mrb[0].mxu0
      %v5026 = vpop.f32.mrb[0].mxu0
      %v5027 = vadd.f32 %v4866, %v5026
      %v5028 = vpop.f32.mrb[0].mxu0
      %5029 = vmatprep.mubr.bf16.mxu0 %v3964
      %5030 = vmatmul.mubr.bf16.gmra.mrb[0].mxu0 %v3963
      %v5031 = vpop.f32.mrb[0].mxu0
      %v5032 = vadd.f32 %v4871, %v5031
      %v5033 = vpop.f32.mrb[0].mxu0
      %v5034 = vpop.f32.mrb[0].mxu0
      %v5035 = vadd.f32 %v4874, %v5034
      %v5036 = vpop.f32.mrb[0].mxu0
      %5037 = vmatprep.mubr.bf16.mxu0 %v3973
      %5038 = vmatmul.mubr.bf16.gmra.mrb[0].mxu0 %v3972
      %v5039 = vpop.f32.mrb[0].mxu0
      %v5040 = vadd.f32 %v4879, %v5039
      %v5041 = vpop.f32.mrb[0].mxu0
      %v5042 = vpop.f32.mrb[0].mxu0
      %v5043 = vadd.f32 %v4882, %v5042
      %v5044 = vpop.f32.mrb[0].mxu0
      %5045 = vmatprep.mubr.bf16.mxu0 %v3982
      %5046 = vmatmul.mubr.bf16.gmra.mrb[0].mxu0 %v3981
      %v5047 = vpop.f32.mrb[0].mxu0
      %v5048 = vadd.f32 %v4887, %v5047
      %v5049 = vpop.f32.mrb[0].mxu0
      %v5050 = vpop.f32.mrb[0].mxu0
      %v5051 = vadd.f32 %v4890, %v5050
      %v5052 = vpop.f32.mrb[0].mxu0
      %5053 = vmatprep.mubr.bf16.mxu0 %v3991
      %5054 = vmatmul.mubr.bf16.gmra.mrb[0].mxu0 %v3990
      %v5055 = vpop.f32.mrb[0].mxu0
      %v5056 = vadd.f32 %v4895, %v5055
      %v5057 = vpop.f32.mrb[0].mxu0
      %v5058 = vpop.f32.mrb[0].mxu0
      %v5059 = vadd.f32 %v4898, %v5058
      %v5060 = vpop.f32.mrb[0].mxu0
      %5061 = vmatprep.mubr.bf16.mxu0 %v4000
      %5062 = vmatmul.mubr.bf16.gmra.mrb[0].mxu0 %v3999
      %v5063 = vpop.f32.mrb[0].mxu0
      %v5064 = vadd.f32 %v4903, %v5063
      %v5065 = vpop.f32.mrb[0].mxu0
      %v5066 = vpop.f32.mrb[0].mxu0
      %v5067 = vadd.f32 %v4906, %v5066
      %v5068 = vpop.f32.mrb[0].mxu0
      %5069 = vdwg.mxu0
      %5070 = vmatprep.subr.bf16.mxu0 0
      %5071 = vmatpush1.bf16.msra.mxu0 %v4491
      %5072 = vmatprep.subr.bf16.mxu0 0
      %5073 = vmatpush1.bf16.msra.mxu0 %v4492
      %5074 = vmatprep.subr.bf16.mxu0 0
      %5075 = vmatpush1.bf16.msra.mxu0 %v4493
      %5076 = vmatprep.subr.bf16.mxu0 0
      %5077 = vmatpush1.bf16.msra.mxu0 %v4494
      %5078 = vmatprep.subr.bf16.mxu0 0
      %5079 = vmatpush1.bf16.msra.mxu0 %v4495
      %5080 = vmatprep.subr.bf16.mxu0 0
      %5081 = vmatpush1.bf16.msra.mxu0 %v4496
      %5082 = vmatprep.subr.bf16.mxu0 0
      %5083 = vmatpush1.bf16.msra.mxu0 %v4497
      %5084 = vmatprep.subr.bf16.mxu0 0
      %5085 = vmatpush1.bf16.msra.mxu0 %v4498
      %5086 = vmatprep.subr.bf16.mxu0 0
      %5087 = vmatpush1.bf16.msra.mxu0 %v4499
      %5088 = vmatprep.subr.bf16.mxu0 0
      %5089 = vmatpush1.bf16.msra.mxu0 %v4500
      %5090 = vmatprep.subr.bf16.mxu0 0
      %5091 = vmatpush1.bf16.msra.mxu0 %v4501
      %5092 = vmatprep.subr.bf16.mxu0 0
      %5093 = vmatpush1.bf16.msra.mxu0 %v4502
      %5094 = vmatprep.subr.bf16.mxu0 0
      %5095 = vmatpush1.bf16.msra.mxu0 %v4503
      %5096 = vmatprep.subr.bf16.mxu0 0
      %5097 = vmatpush1.bf16.msra.mxu0 %v4504
      %5098 = vmatprep.subr.bf16.mxu0 0
      %5099 = vmatpush1.bf16.msra.mxu0 %v4505
      %5100 = vmatprep.subr.bf16.mxu0 0
      %5101 = vmatpush1.bf16.msra.mxu0 %v4506
      %5102 = vmatprep.mubr.bf16.mxu0 %v3867
      %5103 = vmatmul.mubr.bf16.gmra.mrb[0].mxu0 %v3866
      %v5104 = vpop.f32.mrb[0].mxu0
      %v5105 = vadd.f32 %v4944, %v5104
      %v5106 = vpop.f32.mrb[0].mxu0
      %v5107 = vpop.f32.mrb[0].mxu0
      %v5108 = vadd.f32 %v4947, %v5107
      %v5109 = vpop.f32.mrb[0].mxu0
      %5110 = vmatprep.mubr.bf16.mxu0 %v3876
      %5111 = vmatmul.mubr.bf16.gmra.mrb[0].mxu0 %v3875
      %v5112 = vpop.f32.mrb[0].mxu0
      %v5113 = vadd.f32 %v4952, %v5112
      %v5114 = vpop.f32.mrb[0].mxu0
      %v5115 = vpop.f32.mrb[0].mxu0
      %v5116 = vadd.f32 %v4955, %v5115
      %v5117 = vpop.f32.mrb[0].mxu0
      %5118 = vmatprep.mubr.bf16.mxu0 %v3885
      %5119 = vmatmul.mubr.bf16.gmra.mrb[0].mxu0 %v3884
      %v5120 = vpop.f32.mrb[0].mxu0
      %v5121 = vadd.f32 %v4960, %v5120
      %v5122 = vpop.f32.mrb[0].mxu0
      %v5123 = vpop.f32.mrb[0].mxu0
      %v5124 = vadd.f32 %v4963, %v5123
      %v5125 = vpop.f32.mrb[0].mxu0
      %5126 = vmatprep.mubr.bf16.mxu0 %v3894
      %5127 = vmatmul.mubr.bf16.gmra.mrb[0].mxu0 %v3893
      %v5128 = vpop.f32.mrb[0].mxu0
      %v5129 = vadd.f32 %v4968, %v5128
      %v5130 = vpop.f32.mrb[0].mxu0
      %v5131 = vpop.f32.mrb[0].mxu0
      %v5132 = vadd.f32 %v4971, %v5131
      %v5133 = vpop.f32.mrb[0].mxu0
      %5134 = vmatprep.mubr.bf16.mxu0 %v3903
      %5135 = vmatmul.mubr.bf16.gmra.mrb[0].mxu0 %v3902
      %v5136 = vpop.f32.mrb[0].mxu0
      %v5137 = vadd.f32 %v4976, %v5136
      %v5138 = vpop.f32.mrb[0].mxu0
      %v5139 = vpop.f32.mrb[0].mxu0
      %v5140 = vadd.f32 %v4979, %v5139
      %v5141 = vpop.f32.mrb[0].mxu0
      %5142 = vmatprep.mubr.bf16.mxu0 %v3912
      %5143 = vmatmul.mubr.bf16.gmra.mrb[0].mxu0 %v3911
      %v5144 = vpop.f32.mrb[0].mxu0
      %v5145 = vadd.f32 %v4984, %v5144
      %v5146 = vpop.f32.mrb[0].mxu0
      %v5147 = vpop.f32.mrb[0].mxu0
      %v5148 = vadd.f32 %v4987, %v5147
      %v5149 = vpop.f32.mrb[0].mxu0
      %5150 = vmatprep.mubr.bf16.mxu0 %v3921
      %5151 = vmatmul.mubr.bf16.gmra.mrb[0].mxu0 %v3920
      %v5152 = vpop.f32.mrb[0].mxu0
      %v5153 = vadd.f32 %v4992, %v5152
      %v5154 = vpop.f32.mrb[0].mxu0
      %v5155 = vpop.f32.mrb[0].mxu0
      %v5156 = vadd.f32 %v4995, %v5155
      %v5157 = vpop.f32.mrb[0].mxu0
      %5158 = vmatprep.mubr.bf16.mxu0 %v3930
      %5159 = vmatmul.mubr.bf16.gmra.mrb[0].mxu0 %v3929
      %v5160 = vpop.f32.mrb[0].mxu0
      %v5161 = vadd.f32 %v5000, %v5160
      %v5162 = vpop.f32.mrb[0].mxu0
      %v5163 = vpop.f32.mrb[0].mxu0
      %v5164 = vadd.f32 %v5003, %v5163
      %v5165 = vpop.f32.mrb[0].mxu0
      %5166 = vmatprep.mubr.bf16.mxu0 %v3939
      %5167 = vmatmul.mubr.bf16.gmra.mrb[0].mxu0 %v3938
      %v5168 = vpop.f32.mrb[0].mxu0
      %v5169 = vadd.f32 %v5008, %v5168
      %v5170 = vpop.f32.mrb[0].mxu0
      %v5171 = vpop.f32.mrb[0].mxu0
      %v5172 = vadd.f32 %v5011, %v5171
      %v5173 = vpop.f32.mrb[0].mxu0
      %5174 = vmatprep.mubr.bf16.mxu0 %v3948
      %5175 = vmatmul.mubr.bf16.gmra.mrb[0].mxu0 %v3947
      %v5176 = vpop.f32.mrb[0].mxu0
      %v5177 = vadd.f32 %v5016, %v5176
      %v5178 = vpop.f32.mrb[0].mxu0
      %v5179 = vpop.f32.mrb[0].mxu0
      %v5180 = vadd.f32 %v5019, %v5179
      %v5181 = vpop.f32.mrb[0].mxu0
      %5182 = vmatprep.mubr.bf16.mxu0 %v3957
      %5183 = vmatmul.mubr.bf16.gmra.mrb[0].mxu0 %v3956
      %v5184 = vpop.f32.mrb[0].mxu0
      %v5185 = vadd.f32 %v5024, %v5184
      %v5186 = vpop.f32.mrb[0].mxu0
      %v5187 = vpop.f32.mrb[0].mxu0
      %v5188 = vadd.f32 %v5027, %v5187
      %v5189 = vpop.f32.mrb[0].mxu0
      %5190 = vmatprep.mubr.bf16.mxu0 %v3966
      %5191 = vmatmul.mubr.bf16.gmra.mrb[0].mxu0 %v3965
      %v5192 = vpop.f32.mrb[0].mxu0
      %v5193 = vadd.f32 %v5032, %v5192
      %v5194 = vpop.f32.mrb[0].mxu0
      %v5195 = vpop.f32.mrb[0].mxu0
      %v5196 = vadd.f32 %v5035, %v5195
      %v5197 = vpop.f32.mrb[0].mxu0
      %5198 = vmatprep.mubr.bf16.mxu0 %v3975
      %5199 = vmatmul.mubr.bf16.gmra.mrb[0].mxu0 %v3974
      %v5200 = vpop.f32.mrb[0].mxu0
      %v5201 = vadd.f32 %v5040, %v5200
      %v5202 = vpop.f32.mrb[0].mxu0
      %v5203 = vpop.f32.mrb[0].mxu0
      %v5204 = vadd.f32 %v5043, %v5203
      %v5205 = vpop.f32.mrb[0].mxu0
      %5206 = vmatprep.mubr.bf16.mxu0 %v3984
      %5207 = vmatmul.mubr.bf16.gmra.mrb[0].mxu0 %v3983
      %v5208 = vpop.f32.mrb[0].mxu0
      %v5209 = vadd.f32 %v5048, %v5208
      %v5210 = vpop.f32.mrb[0].mxu0
      %v5211 = vpop.f32.mrb[0].mxu0
      %v5212 = vadd.f32 %v5051, %v5211
      %v5213 = vpop.f32.mrb[0].mxu0
      %5214 = vmatprep.mubr.bf16.mxu0 %v3993
      %5215 = vmatmul.mubr.bf16.gmra.mrb[0].mxu0 %v3992
      %v5216 = vpop.f32.mrb[0].mxu0
      %v5217 = vadd.f32 %v5056, %v5216
      %v5218 = vpop.f32.mrb[0].mxu0
      %v5219 = vpop.f32.mrb[0].mxu0
      %v5220 = vadd.f32 %v5059, %v5219
      %v5221 = vpop.f32.mrb[0].mxu0
      %5222 = vmatprep.mubr.bf16.mxu0 %v4002
      %5223 = vmatmul.mubr.bf16.gmra.mrb[0].mxu0 %v4001
      %v5224 = vpop.f32.mrb[0].mxu0
      %v5225 = vadd.f32 %v5064, %v5224
      %v5226 = vpop.f32.mrb[0].mxu0
      %v5227 = vpop.f32.mrb[0].mxu0
      %v5228 = vadd.f32 %v5067, %v5227
      %v5229 = vpop.f32.mrb[0].mxu0
      %5230 = vdwg.mxu0
      %5231 = vmatprep.subr.bf16.mxu0 0
      %5232 = vmatpush1.bf16.msra.mxu0 %v4507
      %5233 = vmatprep.subr.bf16.mxu0 0
      %5234 = vmatpush1.bf16.msra.mxu0 %v4508
      %5235 = vmatprep.subr.bf16.mxu0 0
      %5236 = vmatpush1.bf16.msra.mxu0 %v4509
      %5237 = vmatprep.subr.bf16.mxu0 0
      %5238 = vmatpush1.bf16.msra.mxu0 %v4510
      %5239 = vmatprep.subr.bf16.mxu0 0
      %5240 = vmatpush1.bf16.msra.mxu0 %v4511
      %5241 = vmatprep.subr.bf16.mxu0 0
      %5242 = vmatpush1.bf16.msra.mxu0 %v4512
      %5243 = vmatprep.subr.bf16.mxu0 0
      %5244 = vmatpush1.bf16.msra.mxu0 %v4513
      %5245 = vmatprep.subr.bf16.mxu0 0
      %5246 = vmatpush1.bf16.msra.mxu0 %v4514
      %5247 = vmatprep.subr.bf16.mxu0 0
      %5248 = vmatpush1.bf16.msra.mxu0 0
      %5249 = vmatprep.subr.bf16.mxu0 0
      %5250 = vmatpush1.bf16.msra.mxu0 0
      %5251 = vmatprep.subr.bf16.mxu0 0
      %5252 = vmatpush1.bf16.msra.mxu0 0
      %5253 = vmatprep.subr.bf16.mxu0 0
      %5254 = vmatpush1.bf16.msra.mxu0 0
      %5255 = vmatprep.subr.bf16.mxu0 0
      %5256 = vmatpush1.bf16.msra.mxu0 0
      %5257 = vmatprep.subr.bf16.mxu0 0
      %5258 = vmatpush1.bf16.msra.mxu0 0
      %5259 = vmatprep.subr.bf16.mxu0 0
      %5260 = vmatpush1.bf16.msra.mxu0 0
      %5261 = vmatprep.subr.bf16.mxu0 0
      %5262 = vmatpush1.bf16.msra.mxu0 0
      %5263 = vmatprep.mubr.bf16.mxu0 0
      %5264 = vmatmul.mubr.bf16.gmra.mrb[0].mxu0 %v3868
      %v5265 = vpop.f32.mrb[0].mxu0
      %v5266 = vadd.f32 %v5105, %v5265
      %v5267 = vpop.f32.mrb[0].mxu0
      %v5268 = vpop.f32.mrb[0].mxu0
      %v5269 = vadd.f32 %v5108, %v5268
      %v5270 = vpop.f32.mrb[0].mxu0
      %5271 = vmatprep.mubr.bf16.mxu0 0
      %5272 = vmatmul.mubr.bf16.gmra.mrb[0].mxu0 %v3877
      %v5273 = vpop.f32.mrb[0].mxu0
      %v5274 = vadd.f32 %v5113, %v5273
      %v5275 = vpop.f32.mrb[0].mxu0
      %v5276 = vpop.f32.mrb[0].mxu0
      %v5277 = vadd.f32 %v5116, %v5276
      %v5278 = vpop.f32.mrb[0].mxu0
      %5279 = vmatprep.mubr.bf16.mxu0 0
      %5280 = vmatmul.mubr.bf16.gmra.mrb[0].mxu0 %v3886
      %v5281 = vpop.f32.mrb[0].mxu0
      %v5282 = vadd.f32 %v5121, %v5281
      %v5283 = vpop.f32.mrb[0].mxu0
      %v5284 = vpop.f32.mrb[0].mxu0
      %v5285 = vadd.f32 %v5124, %v5284
      %v5286 = vpop.f32.mrb[0].mxu0
      %5287 = vmatprep.mubr.bf16.mxu0 0
      %5288 = vmatmul.mubr.bf16.gmra.mrb[0].mxu0 %v3895
      %v5289 = vpop.f32.mrb[0].mxu0
      %v5290 = vadd.f32 %v5129, %v5289
      %v5291 = vpop.f32.mrb[0].mxu0
      %v5292 = vpop.f32.mrb[0].mxu0
      %v5293 = vadd.f32 %v5132, %v5292
      %v5294 = vpop.f32.mrb[0].mxu0
      %5295 = vmatprep.mubr.bf16.mxu0 0
      %5296 = vmatmul.mubr.bf16.gmra.mrb[0].mxu0 %v3904
      %v5297 = vpop.f32.mrb[0].mxu0
      %v5298 = vadd.f32 %v5137, %v5297
      %v5299 = vpop.f32.mrb[0].mxu0
      %v5300 = vpop.f32.mrb[0].mxu0
      %v5301 = vadd.f32 %v5140, %v5300
      %v5302 = vpop.f32.mrb[0].mxu0
      %5303 = vmatprep.mubr.bf16.mxu0 0
      %5304 = vmatmul.mubr.bf16.gmra.mrb[0].mxu0 %v3913
      %v5305 = vpop.f32.mrb[0].mxu0
      %v5306 = vadd.f32 %v5145, %v5305
      %v5307 = vpop.f32.mrb[0].mxu0
      %v5308 = vpop.f32.mrb[0].mxu0
      %v5309 = vadd.f32 %v5148, %v5308
      %v5310 = vpop.f32.mrb[0].mxu0
      %5311 = vmatprep.mubr.bf16.mxu0 0
      %5312 = vmatmul.mubr.bf16.gmra.mrb[0].mxu0 %v3922
      %v5313 = vpop.f32.mrb[0].mxu0
      %v5314 = vadd.f32 %v5153, %v5313
      %v5315 = vpop.f32.mrb[0].mxu0
      %v5316 = vpop.f32.mrb[0].mxu0
      %v5317 = vadd.f32 %v5156, %v5316
      %v5318 = vpop.f32.mrb[0].mxu0
      %5319 = vmatprep.mubr.bf16.mxu0 0
      %5320 = vmatmul.mubr.bf16.gmra.mrb[0].mxu0 %v3931
      %v5321 = vpop.f32.mrb[0].mxu0
      %v5322 = vadd.f32 %v5161, %v5321
      %v5323 = vpop.f32.mrb[0].mxu0
      %v5324 = vpop.f32.mrb[0].mxu0
      %v5325 = vadd.f32 %v5164, %v5324
      %v5326 = vpop.f32.mrb[0].mxu0
      %5327 = vmatprep.mubr.bf16.mxu0 0
      %5328 = vmatmul.mubr.bf16.gmra.mrb[0].mxu0 %v3940
      %v5329 = vpop.f32.mrb[0].mxu0
      %v5330 = vadd.f32 %v5169, %v5329
      %v5331 = vpop.f32.mrb[0].mxu0
      %v5332 = vpop.f32.mrb[0].mxu0
      %v5333 = vadd.f32 %v5172, %v5332
      %v5334 = vpop.f32.mrb[0].mxu0
      %5335 = vmatprep.mubr.bf16.mxu0 0
      %5336 = vmatmul.mubr.bf16.gmra.mrb[0].mxu0 %v3949
      %v5337 = vpop.f32.mrb[0].mxu0
      %v5338 = vadd.f32 %v5177, %v5337
      %v5339 = vpop.f32.mrb[0].mxu0
      %v5340 = vpop.f32.mrb[0].mxu0
      %v5341 = vadd.f32 %v5180, %v5340
      %v5342 = vpop.f32.mrb[0].mxu0
      %5343 = vmatprep.mubr.bf16.mxu0 0
      %5344 = vmatmul.mubr.bf16.gmra.mrb[0].mxu0 %v3958
      %v5345 = vpop.f32.mrb[0].mxu0
      %v5346 = vadd.f32 %v5185, %v5345
      %v5347 = vpop.f32.mrb[0].mxu0
      %v5348 = vpop.f32.mrb[0].mxu0
      %v5349 = vadd.f32 %v5188, %v5348
      %v5350 = vpop.f32.mrb[0].mxu0
      %5351 = vmatprep.mubr.bf16.mxu0 0
      %5352 = vmatmul.mubr.bf16.gmra.mrb[0].mxu0 %v3967
      %v5353 = vpop.f32.mrb[0].mxu0
      %v5354 = vadd.f32 %v5193, %v5353
      %v5355 = vpop.f32.mrb[0].mxu0
      %v5356 = vpop.f32.mrb[0].mxu0
      %v5357 = vadd.f32 %v5196, %v5356
      %v5358 = vpop.f32.mrb[0].mxu0
      %5359 = vmatprep.mubr.bf16.mxu0 0
      %5360 = vmatmul.mubr.bf16.gmra.mrb[0].mxu0 %v3976
      %v5361 = vpop.f32.mrb[0].mxu0
      %v5362 = vadd.f32 %v5201, %v5361
      %v5363 = vpop.f32.mrb[0].mxu0
      %v5364 = vpop.f32.mrb[0].mxu0
      %v5365 = vadd.f32 %v5204, %v5364
      %v5366 = vpop.f32.mrb[0].mxu0
      %5367 = vmatprep.mubr.bf16.mxu0 0
      %5368 = vmatmul.mubr.bf16.gmra.mrb[0].mxu0 %v3985
      %v5369 = vpop.f32.mrb[0].mxu0
      %v5370 = vadd.f32 %v5209, %v5369
      %v5371 = vpop.f32.mrb[0].mxu0
      %v5372 = vpop.f32.mrb[0].mxu0
      %v5373 = vadd.f32 %v5212, %v5372
      %v5374 = vpop.f32.mrb[0].mxu0
      %5375 = vmatprep.mubr.bf16.mxu0 0
      %5376 = vmatmul.mubr.bf16.gmra.mrb[0].mxu0 %v3994
      %v5377 = vpop.f32.mrb[0].mxu0
      %v5378 = vadd.f32 %v5217, %v5377
      %v5379 = vpop.f32.mrb[0].mxu0
      %v5380 = vpop.f32.mrb[0].mxu0
      %v5381 = vadd.f32 %v5220, %v5380
      %v5382 = vpop.f32.mrb[0].mxu0
      %5383 = vmatprep.mubr.bf16.mxu0 0
      %5384 = vmatmul.mubr.bf16.gmra.mrb[0].mxu0 %v4003
      %v5385 = vpop.f32.mrb[0].mxu0
      %v5386 = vadd.f32 %v5225, %v5385
      %v5387 = vpop.f32.mrb[0].mxu0
      %v5388 = vpop.f32.mrb[0].mxu0
      %v5389 = vadd.f32 %v5228, %v5388
      %v5390 = vpop.f32.mrb[0].mxu0
      %5391 = vdwg.mxu0
      %5392 = vst [vmem:[%s224] sm:$0xff] %v5266
      %5393 = vst [vmem:[%s224 + $0x8] sm:$0xff] %v5269
      %5394 = vst [vmem:[%s224 + $0x10] sm:$0xff] %v5274
      %5395 = vst [vmem:[%s224 + $0x18] sm:$0xff] %v5277
      %5396 = vst [vmem:[%s224 + $0x20] sm:$0xff] %v5282
      %5397 = vst [vmem:[%s224 + $0x28] sm:$0xff] %v5285
      %5398 = vst [vmem:[%s224 + $0x30] sm:$0xff] %v5290
      %5399 = vst [vmem:[%s224 + $0x38] sm:$0xff] %v5293
      %5400 = vst [vmem:[%s224 + $0x40] sm:$0xff] %v5298
      %5401 = vst [vmem:[%s224 + $0x48] sm:$0xff] %v5301
      %5402 = vst [vmem:[%s224 + $0x50] sm:$0xff] %v5306
      %5403 = vst [vmem:[%s224 + $0x58] sm:$0xff] %v5309
      %5404 = vst [vmem:[%s224 + $0x60] sm:$0xff] %v5314
      %5405 = vst [vmem:[%s224 + $0x68] sm:$0xff] %v5317
      %5406 = vst [vmem:[%s224 + $0x70] sm:$0xff] %v5322
      %5407 = vst [vmem:[%s224 + $0x78] sm:$0xff] %v5325
      %5408 = vst [vmem:[%s224 + $0x80] sm:$0xff] %v5330
      %5409 = vst [vmem:[%s224 + $0x88] sm:$0xff] %v5333
      %5410 = vst [vmem:[%s224 + $0x90] sm:$0xff] %v5338
      %5411 = vst [vmem:[%s224 + $0x98] sm:$0xff] %v5341
      %5412 = vst [vmem:[%s224 + $0xa0] sm:$0xff] %v5346
      %5413 = vst [vmem:[%s224 + $0xa8] sm:$0xff] %v5349
      %5414 = vst [vmem:[%s224 + $0xb0] sm:$0xff] %v5354
      %5415 = vst [vmem:[%s224 + $0xb8] sm:$0xff] %v5357
      %5416 = vst [vmem:[%s224 + $0xc0] sm:$0xff] %v5362
      %5417 = vst [vmem:[%s224 + $0xc8] sm:$0xff] %v5365
      %5418 = vst [vmem:[%s224 + $0xd0] sm:$0xff] %v5370
      %5419 = vst [vmem:[%s224 + $0xd8] sm:$0xff] %v5373
      %5420 = vst [vmem:[%s224 + $0xe0] sm:$0xff] %v5378
      %5421 = vst [vmem:[%s224 + $0xe8] sm:$0xff] %v5381
      %5422 = vst [vmem:[%s224 + $0xf0] sm:$0xff] %v5386
      %5423 = vst [vmem:[%s224 + $0xf8] sm:$0xff] %v5389
      %p5424 = scmp.lt.s32.totalorder %s16, 1
      %s5425 = scalar_select %p5424, %s16, 1
      %s5426 = smul.addr %s5425, 32
      %s5427 = smul.addr %s5426, 8
      %s5428 = scalar_lea.vmem %s5, %s5427
      // Predicated region
      $region41: #{resnet_block.2} parent=39 // pred_check
        %p5429 = pneg %p144
      $region42: #{resnet_block.2} parent=39 // pred_check_branch
        %5431 = sbr.rel (%p5429) target = $region44
      $region43: #{resnet_block.2} parent=39 // pred_region
        _
      $region44: #{resnet_block.2} parent=39 // pred_fallthru
        _
    $region40: #{resnet_block.2} parent=5 // pred_fallthru
      _
    %p5432 = scmp.le.s32.totalorder 2, %s11
    // Predicated region
    $region45: #{resnet_block.2} parent=5 // pred_check
      %p5433 = pneg %p5432
    $region46: #{resnet_block.2} parent=5 // pred_check_branch
      %5435 = sbr.rel (%p5433) target = $region48
    $region47: #{resnet_block.2} parent=5 // pred_region
      %s5436 = ssub.s32 %s11, 2
      // Predicated region
      $region49: #{resnet_block.2} parent=47 // pred_check
        %p5437 = pneg %p150
      $region50: #{resnet_block.2} parent=47 // pred_check_branch
        %5439 = sbr.rel (%p5437) target = $region52
      $region51: #{resnet_block.2} parent=47 // pred_region
        %p5440 = scmp.lt.s32.totalorder %s17, 1
        %s5441 = scalar_select %p5440, %s17, 1
        %s5442 = smul.addr %s5441, 32
        %s5443 = smul.addr %s5442, 8
        %s5444 = scalar_lea.vmem %s5, %s5443
      $region52: #{resnet_block.2} parent=47 // pred_fallthru
        _
    $region48: #{resnet_block.2} parent=5 // pred_fallthru
      _
  $region6: #{resnet_block.2} parent=0 // loop_footer
    %s15 = sadd.s32 1, %s11
  $region7: #{resnet_block.2} parent=0 // loop_footer_branch
    %10 = sbr.rel target = $region3
  $region8: #{resnet_block.2} parent=0 // loop_exit
    _

// kernel: resnet_block.3
$region0: #{resnet_block.3}
  #allocation0 [shape = 'u32[]', space=smem, size = 0x4, offset = 0x4, fixed_abs, tag = 'smem constant byte address 0x4 - core index']
  #allocation1 [shape = 'u32[144,128]{1,0:T(1,128)}', space=vmem, size = 0x12000, scoped, tag = 'internal scratch']
  #allocation2 [shape = 'bf16[18,18,128]{2,1,0:T(8,128)(2,1)}', space=vmem, size = 0x1b000, scoped, tag = 'scratch operand']
  #allocation3 [shape = 'bf16[256,1152]{1,0:T(16,128)(2,1)}', space=vmem, size = 0x90000, scoped, tag = 'scratch operand']
  %s0 = inlined_call_operand.vmem [shape: f32[2,16,16,128], index: 0, kind: input, shape index: {}]
  %s1 = inlined_call_operand.vmem [shape: f32[1,128], index: 1, kind: input, shape index: {}]
  %s2 = inlined_call_operand.vmem [shape: f32[1,128], index: 2, kind: input, shape index: {}]
  %s3 = inlined_call_operand.vmem [shape: bf16[1152,128], index: 3, kind: input, shape index: {}]
  %s4 = inlined_call_operand.vmem [shape: f32[1,128], index: 4, kind: input, shape index: {}]
  %s5 = inlined_call_operand.vmem [shape: f32[2,16,16,128], index: 5, kind: input, shape index: {}]
  %s6 = inlined_call_operand.vmem [shape: f32[2,16,16,128], index: 6, kind: output, shape index: {}]
  %s7 = sld [smem:[#allocation0]]
  $region57: #{resnet_block.3} parent=0
    _
  %s9 = ssub.s32 1, %s7
  %s10 = scalar_select 0, %s9, %s7
  loop: start=0, step=1, limit=4
  $region2: #{resnet_block.3} parent=0 // loop_pre_header
    _
  $region3: #{resnet_block.3} parent=0 // loop_header
    %s12 = sphi 0, %s16
    %p13 = scmp.ge.s32.totalorder %s12, 4
    %s22 = sphi 0, %s24
    %s25 = sphi 0, %s22
    %s26 = sphi 0, %s25
    %s42 = sphi 0, %s26
    %s46 = sphi 0, %s46
    %s48 = sphi 0, %s46
    %s49 = sphi 0, %s48
    %s63 = sphi 0, %s49
    %s67 = sphi 0, %s67
    %s69 = sphi 0, %s67
    %s70 = sphi 0, %s69
    %s84 = sphi 0, %s70
    %s88 = sphi 0, %s88
    %s90 = sphi 0, %s88
    %s91 = sphi 0, %s90
    %s105 = sphi 0, %s91
    %s109 = sphi 0, %s109
    %s111 = sphi 0, %s109
    %s112 = sphi 0, %s111
    %s126 = sphi 0, %s112
    %s132 = sphi 0, %s134
    %s135 = sphi 0, %s132
    %s136 = sphi 0, %s135
    %s152 = sphi 0, %s136
    %s158 = sphi 0, %s160
    %s161 = sphi 0, %s158
    %s162 = sphi 0, %s161
    %s178 = sphi 0, %s162
  $region4: #{resnet_block.3} parent=0 // loop_header_branch
    %15 = sbr.rel (%p13) target = $region8
  $region5: #{resnet_block.3} parent=0 // loop_body
    %s17 = ssub.s32 %s12, 1
    %s18 = ssub.s32 %s12, 2
    %s19 = sadd.s32 %s12, 1
    %s20 = ssub.s32 %s12, %s19
    %p21 = scmp.eq.s32.totalorder %s20, 0
    %s23 = sadd.s32 %s22, 1
    %s24 = scalar_select %p21, %s22, %s23
    %p27 = pneg %p21
    %p28 = scmp.eq.s32.totalorder %s12, 1
    %p29 = por %p27, %p28
    %p30 = scmp.ne.s32.totalorder %s22, %s25
    %p31 = scmp.eq.s32.totalorder %s12, 0
    %p32 = por %p30, %p31
    %p33 = scmp.ne.s32.totalorder %s22, %s25
    %p34 = scmp.eq.s32.totalorder %s17, 1
    %p35 = por %p33, %p34
    %p36 = scmp.ne.s32.totalorder %s25, %s26
    %p37 = scmp.eq.s32.totalorder %s17, 0
    %p38 = por %p36, %p37
    %p39 = scmp.ne.s32.totalorder %s25, %s26
    %p40 = scmp.eq.s32.totalorder %s18, 1
    %p41 = por %p39, %p40
    %p43 = scmp.ne.s32.totalorder %s26, %s42
    %p44 = scmp.eq.s32.totalorder %s18, 0
    %p45 = por %p43, %p44
    %s47 = sadd.s32 %s46, 1
    %p50 = scmp.eq.s32.totalorder %s12, 1
    %p51 = scmp.ne.s32.totalorder %s46, %s48
    %p52 = scmp.eq.s32.totalorder %s12, 0
    %p53 = por %p51, %p52
    %p54 = scmp.ne.s32.totalorder %s46, %s48
    %p55 = scmp.eq.s32.totalorder %s17, 1
    %p56 = por %p54, %p55
    %p57 = scmp.ne.s32.totalorder %s48, %s49
    %p58 = scmp.eq.s32.totalorder %s17, 0
    %p59 = por %p57, %p58
    %p60 = scmp.ne.s32.totalorder %s48, %s49
    %p61 = scmp.eq.s32.totalorder %s18, 1
    %p62 = por %p60, %p61
    %p64 = scmp.ne.s32.totalorder %s49, %s63
    %p65 = scmp.eq.s32.totalorder %s18, 0
    %p66 = por %p64, %p65
    %s68 = sadd.s32 %s67, 1
    %p71 = scmp.eq.s32.totalorder %s12, 1
    %p72 = scmp.ne.s32.totalorder %s67, %s69
    %p73 = scmp.eq.s32.totalorder %s12, 0
    %p74 = por %p72, %p73
    %p75 = scmp.ne.s32.totalorder %s67, %s69
    %p76 = scmp.eq.s32.totalorder %s17, 1
    %p77 = por %p75, %p76
    %p78 = scmp.ne.s32.totalorder %s69, %s70
    %p79 = scmp.eq.s32.totalorder %s17, 0
    %p80 = por %p78, %p79
    %p81 = scmp.ne.s32.totalorder %s69, %s70
    %p82 = scmp.eq.s32.totalorder %s18, 1
    %p83 = por %p81, %p82
    %p85 = scmp.ne.s32.totalorder %s70, %s84
    %p86 = scmp.eq.s32.totalorder %s18, 0
    %p87 = por %p85, %p86
    %s89 = sadd.s32 %s88, 1
    %p92 = scmp.eq.s32.totalorder %s12, 1
    %p93 = scmp.ne.s32.totalorder %s88, %s90
    %p94 = scmp.eq.s32.totalorder %s12, 0
    %p95 = por %p93, %p94
    %p96 = scmp.ne.s32.totalorder %s88, %s90
    %p97 = scmp.eq.s32.totalorder %s17, 1
    %p98 = por %p96, %p97
    %p99 = scmp.ne.s32.totalorder %s90, %s91
    %p100 = scmp.eq.s32.totalorder %s17, 0
    %p101 = por %p99, %p100
    %p102 = scmp.ne.s32.totalorder %s90, %s91
    %p103 = scmp.eq.s32.totalorder %s18, 1
    %p104 = por %p102, %p103
    %p106 = scmp.ne.s32.totalorder %s91, %s105
    %p107 = scmp.eq.s32.totalorder %s18, 0
    %p108 = por %p106, %p107
    %s110 = sadd.s32 %s109, 1
    %p113 = scmp.eq.s32.totalorder %s12, 1
    %p114 = scmp.ne.s32.totalorder %s109, %s111
    %p115 = scmp.eq.s32.totalorder %s12, 0
    %p116 = por %p114, %p115
    %p117 = scmp.ne.s32.totalorder %s109, %s111
    %p118 = scmp.eq.s32.totalorder %s17, 1
    %p119 = por %p117, %p118
    %p120 = scmp.ne.s32.totalorder %s111, %s112
    %p121 = scmp.eq.s32.totalorder %s17, 0
    %p122 = por %p120, %p121
    %p123 = scmp.ne.s32.totalorder %s111, %s112
    %p124 = scmp.eq.s32.totalorder %s18, 1
    %p125 = por %p123, %p124
    %p127 = scmp.ne.s32.totalorder %s112, %s126
    %p128 = scmp.eq.s32.totalorder %s18, 0
    %p129 = por %p127, %p128
    %s130 = ssub.s32 %s12, %s19
    %p131 = scmp.eq.s32.totalorder %s130, 0
    %s133 = sadd.s32 %s132, 1
    %s134 = scalar_select %p131, %s132, %s133
    %p137 = pneg %p131
    %p138 = scmp.eq.s32.totalorder %s12, 1
    %p139 = por %p137, %p138
    %p140 = scmp.ne.s32.totalorder %s132, %s135
    %p141 = scmp.eq.s32.totalorder %s12, 0
    %p142 = por %p140, %p141
    %p143 = scmp.ne.s32.totalorder %s132, %s135
    %p144 = scmp.eq.s32.totalorder %s17, 1
    %p145 = por %p143, %p144
    %p146 = scmp.ne.s32.totalorder %s135, %s136
    %p147 = scmp.eq.s32.totalorder %s17, 0
    %p148 = por %p146, %p147
    %p149 = scmp.ne.s32.totalorder %s135, %s136
    %p150 = scmp.eq.s32.totalorder %s18, 1
    %p151 = por %p149, %p150
    %p153 = scmp.ne.s32.totalorder %s136, %s152
    %p154 = scmp.eq.s32.totalorder %s18, 0
    %p155 = por %p153, %p154
    %s156 = ssub.s32 %s12, %s19
    %p157 = scmp.eq.s32.totalorder %s156, 0
    %s159 = sadd.s32 %s158, 1
    %s160 = scalar_select %p157, %s158, %s159
    %p163 = pneg %p157
    %p164 = scmp.eq.s32.totalorder %s12, 1
    %p165 = por %p163, %p164
    %p166 = scmp.ne.s32.totalorder %s158, %s161
    %p167 = scmp.eq.s32.totalorder %s12, 0
    %p168 = por %p166, %p167
    %p169 = scmp.ne.s32.totalorder %s158, %s161
    %p170 = scmp.eq.s32.totalorder %s17, 1
    %p171 = por %p169, %p170
    %p172 = scmp.ne.s32.totalorder %s161, %s162
    %p173 = scmp.eq.s32.totalorder %s17, 0
    %p174 = por %p172, %p173
    %p175 = scmp.ne.s32.totalorder %s161, %s162
    %p176 = scmp.eq.s32.totalorder %s18, 1
    %p177 = por %p175, %p176
    %p179 = scmp.ne.s32.totalorder %s162, %s178
    %p180 = scmp.eq.s32.totalorder %s18, 0
    %p181 = por %p179, %p180
    %p182 = scmp.le.s32.totalorder 1, %s12
    %p183 = scmp.lt.s32.totalorder %s12, 3
    %p184 = pnand %p182, %p183
    %p185 = pneg %p184
    // Predicated region
    $region9: #{resnet_block.3} parent=5 // pred_check
      _
    $region10: #{resnet_block.3} parent=5 // pred_check_branch
      %187 = sbr.rel (%p184) target = $region12
    $region11: #{resnet_block.3} parent=5 // pred_region
      %s188 = ssub.s32 %s12, 1
      // Predicated region
      $region13: #{resnet_block.3} parent=11 // pred_check
        %p189 = pneg %p59
      $region14: #{resnet_block.3} parent=11 // pred_check_branch
        %191 = sbr.rel (%p189) target = $region16
      $region15: #{resnet_block.3} parent=11 // pred_region
        _
      $region16: #{resnet_block.3} parent=11 // pred_fallthru
        _
      // Predicated region
      $region17: #{resnet_block.3} parent=11 // pred_check
        %p192 = pneg %p80
      $region18: #{resnet_block.3} parent=11 // pred_check_branch
        %194 = sbr.rel (%p192) target = $region20
      $region19: #{resnet_block.3} parent=11 // pred_region
        _
      $region20: #{resnet_block.3} parent=11 // pred_fallthru
        _
      // Predicated region
      $region21: #{resnet_block.3} parent=11 // pred_check
        %p195 = pneg %p101
      $region22: #{resnet_block.3} parent=11 // pred_check_branch
        %197 = sbr.rel (%p195) target = $region24
      $region23: #{resnet_block.3} parent=11 // pred_region
        _
      $region24: #{resnet_block.3} parent=11 // pred_fallthru
        _
      // Predicated region
      $region25: #{resnet_block.3} parent=11 // pred_check
        %p198 = pneg %p122
      $region26: #{resnet_block.3} parent=11 // pred_check_branch
        %200 = sbr.rel (%p198) target = $region28
      $region27: #{resnet_block.3} parent=11 // pred_region
        _
      $region28: #{resnet_block.3} parent=11 // pred_fallthru
        _
    $region12: #{resnet_block.3} parent=5 // pred_fallthru
      _
    %p201 = scmp.lt.s32.totalorder %s12, 2
    // Predicated region
    $region29: #{resnet_block.3} parent=5 // pred_check
      %p202 = pneg %p201
    $region30: #{resnet_block.3} parent=5 // pred_check_branch
      %204 = sbr.rel (%p202) target = $region32
    $region31: #{resnet_block.3} parent=5 // pred_region
      // Predicated region
      $region33: #{resnet_block.3} parent=31 // pred_check
        %p205 = pneg %p32
      $region34: #{resnet_block.3} parent=31 // pred_check_branch
        %207 = sbr.rel (%p205) target = $region36
      $region35: #{resnet_block.3} parent=31 // pred_region
        %p208 = scmp.lt.s32.totalorder %s12, 1
        %s209 = scalar_select %p208, %s12, 1
        %s210 = smul.addr %s209, 32
        %s211 = smul.addr %s210, 8
        %s212 = scalar_lea.vmem %s0, %s211
      $region36: #{resnet_block.3} parent=31 // pred_fallthru
        _
      // Predicated region
      $region37: #{resnet_block.3} parent=31 // pred_check
        %p213 = pneg %p142
      $region38: #{resnet_block.3} parent=31 // pred_check_branch
        %215 = sbr.rel (%p213) target = $region40
      $region39: #{resnet_block.3} parent=31 // pred_region
        %p216 = scmp.lt.s32.totalorder %s12, 1
        %s217 = scalar_select %p216, %s12, 1
        %s218 = smul.addr %s217, 32
        %s219 = smul.addr %s218, 8
        %s220 = scalar_lea.vmem %s5, %s219
      $region40: #{resnet_block.3} parent=31 // pred_fallthru
        _
    $region32: #{resnet_block.3} parent=5 // pred_fallthru
      _
    %p221 = scmp.le.s32.totalorder 1, %s12
    %p222 = scmp.lt.s32.totalorder %s12, 3
    %p223 = pnand %p221, %p222
    %p224 = pneg %p223
    // Predicated region
    $region41: #{resnet_block.3} parent=5 // pred_check
      _
    $region42: #{resnet_block.3} parent=5 // pred_check_branch
      %226 = sbr.rel (%p223) target = $region44
    $region43: #{resnet_block.3} parent=5 // pred_region
      %s227 = ssub.s32 %s12, 1
      %p228 = scmp.lt.s32.totalorder %s17, 1
      %s229 = scalar_select %p228, %s17, 1
      %s230 = smul.addr %s229, 32
      %s231 = smul.addr %s230, 8
      %s232 = scalar_lea.vmem %s0, %s231
      %p233 = pneg %p38
      %p234 = pneg %p35
      %p235 = pneg %p59
      %p236 = pneg %p56
      %p237 = pneg %p80
      %p238 = pneg %p77
      %p239 = pneg %p101
      %p240 = pneg %p98
      %p241 = pneg %p122
      %p242 = pneg %p119
      %p243 = scmp.lt.s32.totalorder %s17, 1
      %s244 = scalar_select %p243, %s17, 1
      %s245 = smul.addr %s244, 32
      %s246 = smul.addr %s245, 8
      %s247 = scalar_lea.vmem %s5, %s246
      %p248 = pneg %p148
      %p249 = pneg %p145
      %p250 = pneg %p174
      %p251 = pneg %p171
      %p252 = scmp.lt.s32.totalorder %s17, 1
      %s253 = scalar_select %p252, %s17, 1
      %s254 = smul.addr %s253, 32
      %s255 = smul.addr %s254, 8
      %s256 = scalar_lea.vmem %s6, %s255
      %p257 = scmp.lt.s32.totalorder %s17, 1
      %s258 = scalar_select %p257, %s17, 1
      %s259 = smul.addr %s258, 32
      %s260 = smul.addr %s259, 8
      %s261 = scalar_lea.vmem %s0, %s260
      %p262 = scmp.lt.s32.totalorder %s17, 1
      %s263 = scalar_select %p262, %s17, 1
      %s264 = smul.addr %s263, 32
      %s265 = smul.addr %s264, 8
      %s266 = scalar_lea.vmem %s5, %s265
      %p267 = scmp.lt.s32.totalorder %s17, 1
      %s268 = scalar_select %p267, %s17, 1
      %s269 = smul.addr %s268, 32
      %s270 = smul.addr %s269, 8
      %s271 = scalar_lea.vmem %s6, %s270
      %v273 = vld [vmem:[%s261] sm:$0xff]
      %v274 = vld [vmem:[%s261 + $0x8] sm:$0xff]
      %v275 = vld [vmem:[%s261 + $0x10] sm:$0xff]
      %v276 = vld [vmem:[%s261 + $0x18] sm:$0xff]
      %v277 = vld [vmem:[%s261 + $0x20] sm:$0xff]
      %v278 = vld [vmem:[%s261 + $0x28] sm:$0xff]
      %v279 = vld [vmem:[%s261 + $0x30] sm:$0xff]
      %v280 = vld [vmem:[%s261 + $0x38] sm:$0xff]
      %v281 = vld [vmem:[%s261 + $0x40] sm:$0xff]
      %v282 = vld [vmem:[%s261 + $0x48] sm:$0xff]
      %v283 = vld [vmem:[%s261 + $0x50] sm:$0xff]
      %v284 = vld [vmem:[%s261 + $0x58] sm:$0xff]
      %v285 = vld [vmem:[%s261 + $0x60] sm:$0xff]
      %v286 = vld [vmem:[%s261 + $0x68] sm:$0xff]
      %v287 = vld [vmem:[%s261 + $0x70] sm:$0xff]
      %v288 = vld [vmem:[%s261 + $0x78] sm:$0xff]
      %v289 = vld [vmem:[%s261 + $0x80] sm:$0xff]
      %v290 = vld [vmem:[%s261 + $0x88] sm:$0xff]
      %v291 = vld [vmem:[%s261 + $0x90] sm:$0xff]
      %v292 = vld [vmem:[%s261 + $0x98] sm:$0xff]
      %v293 = vld [vmem:[%s261 + $0xa0] sm:$0xff]
      %v294 = vld [vmem:[%s261 + $0xa8] sm:$0xff]
      %v295 = vld [vmem:[%s261 + $0xb0] sm:$0xff]
      %v296 = vld [vmem:[%s261 + $0xb8] sm:$0xff]
      %v297 = vld [vmem:[%s261 + $0xc0] sm:$0xff]
      %v298 = vld [vmem:[%s261 + $0xc8] sm:$0xff]
      %v299 = vld [vmem:[%s261 + $0xd0] sm:$0xff]
      %v300 = vld [vmem:[%s261 + $0xd8] sm:$0xff]
      %v301 = vld [vmem:[%s261 + $0xe0] sm:$0xff]
      %v302 = vld [vmem:[%s261 + $0xe8] sm:$0xff]
      %v303 = vld [vmem:[%s261 + $0xf0] sm:$0xff]
      %v304 = vld [vmem:[%s261 + $0xf8] sm:$0xff]
      %v305 = vld [vmem:[%s1] sm:$0x1]
      %v307 = vlaneseq
      %v308 = vshrl.u32 %v307, 7
      %v309 = vsub.s32 0, %v308
      %v310 = vrot.slane %v305, %v309
      %v312 = vmul.f32 %v273, %v310
      %v313 = vmul.f32 %v274, %v310
      %v314 = vmul.f32 %v275, %v310
      %v315 = vmul.f32 %v276, %v310
      %v316 = vmul.f32 %v277, %v310
      %v317 = vmul.f32 %v278, %v310
      %v318 = vmul.f32 %v279, %v310
      %v319 = vmul.f32 %v280, %v310
      %v320 = vmul.f32 %v281, %v310
      %v321 = vmul.f32 %v282, %v310
      %v322 = vmul.f32 %v283, %v310
      %v323 = vmul.f32 %v284, %v310
      %v324 = vmul.f32 %v285, %v310
      %v325 = vmul.f32 %v286, %v310
      %v326 = vmul.f32 %v287, %v310
      %v327 = vmul.f32 %v288, %v310
      %v328 = vmul.f32 %v289, %v310
      %v329 = vmul.f32 %v290, %v310
      %v330 = vmul.f32 %v291, %v310
      %v331 = vmul.f32 %v292, %v310
      %v332 = vmul.f32 %v293, %v310
      %v333 = vmul.f32 %v294, %v310
      %v334 = vmul.f32 %v295, %v310
      %v335 = vmul.f32 %v296, %v310
      %v336 = vmul.f32 %v297, %v310
      %v337 = vmul.f32 %v298, %v310
      %v338 = vmul.f32 %v299, %v310
      %v339 = vmul.f32 %v300, %v310
      %v340 = vmul.f32 %v301, %v310
      %v341 = vmul.f32 %v302, %v310
      %v342 = vmul.f32 %v303, %v310
      %v343 = vmul.f32 %v304, %v310
      %v344 = vld [vmem:[%s2] sm:$0x1]
      %v346 = vlaneseq
      %v347 = vshrl.u32 %v346, 7
      %v348 = vsub.s32 0, %v347
      %v349 = vrot.slane %v344, %v348
      %v351 = vadd.f32 %v312, %v349
      %v352 = vadd.f32 %v313, %v349
      %v353 = vadd.f32 %v314, %v349
      %v354 = vadd.f32 %v315, %v349
      %v355 = vadd.f32 %v316, %v349
      %v356 = vadd.f32 %v317, %v349
      %v357 = vadd.f32 %v318, %v349
      %v358 = vadd.f32 %v319, %v349
      %v359 = vadd.f32 %v320, %v349
      %v360 = vadd.f32 %v321, %v349
      %v361 = vadd.f32 %v322, %v349
      %v362 = vadd.f32 %v323, %v349
      %v363 = vadd.f32 %v324, %v349
      %v364 = vadd.f32 %v325, %v349
      %v365 = vadd.f32 %v326, %v349
      %v366 = vadd.f32 %v327, %v349
      %v367 = vadd.f32 %v328, %v349
      %v368 = vadd.f32 %v329, %v349
      %v369 = vadd.f32 %v330, %v349
      %v370 = vadd.f32 %v331, %v349
      %v371 = vadd.f32 %v332, %v349
      %v372 = vadd.f32 %v333, %v349
      %v373 = vadd.f32 %v334, %v349
      %v374 = vadd.f32 %v335, %v349
      %v375 = vadd.f32 %v336, %v349
      %v376 = vadd.f32 %v337, %v349
      %v377 = vadd.f32 %v338, %v349
      %v378 = vadd.f32 %v339, %v349
      %v379 = vadd.f32 %v340, %v349
      %v380 = vadd.f32 %v341, %v349
      %v381 = vadd.f32 %v342, %v349
      %v382 = vadd.f32 %v343, %v349
      %v383 = vmax.f32 %v351, 0.0
      %v384 = vmax.f32 %v352, 0.0
      %v385 = vmax.f32 %v353, 0.0
      %v386 = vmax.f32 %v354, 0.0
      %v387 = vmax.f32 %v355, 0.0
      %v388 = vmax.f32 %v356, 0.0
      %v389 = vmax.f32 %v357, 0.0
      %v390 = vmax.f32 %v358, 0.0
      %v391 = vmax.f32 %v359, 0.0
      %v392 = vmax.f32 %v360, 0.0
      %v393 = vmax.f32 %v361, 0.0
      %v394 = vmax.f32 %v362, 0.0
      %v395 = vmax.f32 %v363, 0.0
      %v396 = vmax.f32 %v364, 0.0
      %v397 = vmax.f32 %v365, 0.0
      %v398 = vmax.f32 %v366, 0.0
      %v399 = vmax.f32 %v367, 0.0
      %v400 = vmax.f32 %v368, 0.0
      %v401 = vmax.f32 %v369, 0.0
      %v402 = vmax.f32 %v370, 0.0
      %v403 = vmax.f32 %v371, 0.0
      %v404 = vmax.f32 %v372, 0.0
      %v405 = vmax.f32 %v373, 0.0
      %v406 = vmax.f32 %v374, 0.0
      %v407 = vmax.f32 %v375, 0.0
      %v408 = vmax.f32 %v376, 0.0
      %v409 = vmax.f32 %v377, 0.0
      %v410 = vmax.f32 %v378, 0.0
      %v411 = vmax.f32 %v379, 0.0
      %v412 = vmax.f32 %v380, 0.0
      %v413 = vmax.f32 %v381, 0.0
      %v414 = vmax.f32 %v382, 0.0
      %415 = vst [vmem:[#allocation2] sm:$0xf] 0
      %416 = vst [vmem:[#allocation2 + $0x4] sm:$0xf] 0
      %417 = vst [vmem:[#allocation2 + $0x8] sm:$0x1] 0
      %s418 = scalar_lea.vmem [#allocation2], 204
      %419 = vst [vmem:[%s418] sm:$0xf] 0
      %420 = vst [vmem:[%s418 + $0x4] sm:$0xf] 0
      %421 = vst [vmem:[%s418 + $0x8] sm:$0x1] 0
      %vm422 = vcmask 1040384
      %vm423 = vsmask.f32 256
      %vm424 = vmand %vm422, %vm423
      %v425 = vld [vmem:[#allocation2] sm:$0x1]
      %v426 = vsel %vm424, 0, %v425
      %427 = vst [vmem:[#allocation2] sm:$0x1] %v426
      %v428 = vld [vmem:[#allocation2 + $0xc] sm:$0x1]
      %v429 = vsel %vm424, 0, %v428
      %430 = vst [vmem:[#allocation2 + $0xc] sm:$0x1] %v429
      %v431 = vld [vmem:[#allocation2 + $0x18] sm:$0x1]
      %v432 = vsel %vm424, 0, %v431
      %433 = vst [vmem:[#allocation2 + $0x18] sm:$0x1] %v432
      %v434 = vld [vmem:[#allocation2 + $0x24] sm:$0x1]
      %v435 = vsel %vm424, 0, %v434
      %436 = vst [vmem:[#allocation2 + $0x24] sm:$0x1] %v435
      %v437 = vld [vmem:[#allocation2 + $0x30] sm:$0x1]
      %v438 = vsel %vm424, 0, %v437
      %439 = vst [vmem:[#allocation2 + $0x30] sm:$0x1] %v438
      %v440 = vld [vmem:[#allocation2 + $0x3c] sm:$0x1]
      %v441 = vsel %vm424, 0, %v440
      %442 = vst [vmem:[#allocation2 + $0x3c] sm:$0x1] %v441
      %v443 = vld [vmem:[#allocation2 + $0x48] sm:$0x1]
      %v444 = vsel %vm424, 0, %v443
      %445 = vst [vmem:[#allocation2 + $0x48] sm:$0x1] %v444
      %v446 = vld [vmem:[#allocation2 + $0x54] sm:$0x1]
      %v447 = vsel %vm424, 0, %v446
      %448 = vst [vmem:[#allocation2 + $0x54] sm:$0x1] %v447
      %v449 = vld [vmem:[#allocation2 + $0x60] sm:$0x1]
      %v450 = vsel %vm424, 0, %v449
      %451 = vst [vmem:[#allocation2 + $0x60] sm:$0x1] %v450
      %v452 = vld [vmem:[#allocation2 + $0x6c] sm:$0x1]
      %v453 = vsel %vm424, 0, %v452
      %454 = vst [vmem:[#allocation2 + $0x6c] sm:$0x1] %v453
      %v455 = vld [vmem:[#allocation2 + $0x78] sm:$0x1]
      %v456 = vsel %vm424, 0, %v455
      %457 = vst [vmem:[#allocation2 + $0x78] sm:$0x1] %v456
      %v458 = vld [vmem:[#allocation2 + $0x84] sm:$0x1]
      %v459 = vsel %vm424, 0, %v458
      %460 = vst [vmem:[#allocation2 + $0x84] sm:$0x1] %v459
      %v461 = vld [vmem:[#allocation2 + $0x90] sm:$0x1]
      %v462 = vsel %vm424, 0, %v461
      %463 = vst [vmem:[#allocation2 + $0x90] sm:$0x1] %v462
      %v464 = vld [vmem:[#allocation2 + $0x9c] sm:$0x1]
      %v465 = vsel %vm424, 0, %v464
      %466 = vst [vmem:[#allocation2 + $0x9c] sm:$0x1] %v465
      %v467 = vld [vmem:[#allocation2 + $0xa8] sm:$0x1]
      %v468 = vsel %vm424, 0, %v467
      %469 = vst [vmem:[#allocation2 + $0xa8] sm:$0x1] %v468
      %v470 = vld [vmem:[#allocation2 + $0xb4] sm:$0x1]
      %v471 = vsel %vm424, 0, %v470
      %472 = vst [vmem:[#allocation2 + $0xb4] sm:$0x1] %v471
      %v473 = vld [vmem:[#allocation2 + $0xc0] sm:$0x1]
      %v474 = vsel %vm424, 0, %v473
      %475 = vst [vmem:[#allocation2 + $0xc0] sm:$0x1] %v474
      %v476 = vld [vmem:[#allocation2 + $0xcc] sm:$0x1]
      %v477 = vsel %vm424, 0, %v476
      %478 = vst [vmem:[#allocation2 + $0xcc] sm:$0x1] %v477
      %vm479 = vsmask.f32 7938
      %vm480 = vmand %vm422, %vm479
      %v481 = vld [vmem:[#allocation2 + $0x8] sm:$0x1]
      %v482 = vsel %vm480, 0, %v481
      %483 = vst [vmem:[#allocation2 + $0x8] sm:$0x1] %v482
      %v484 = vld [vmem:[#allocation2 + $0x14] sm:$0x1]
      %v485 = vsel %vm480, 0, %v484
      %486 = vst [vmem:[#allocation2 + $0x14] sm:$0x1] %v485
      %v487 = vld [vmem:[#allocation2 + $0x20] sm:$0x1]
      %v488 = vsel %vm480, 0, %v487
      %489 = vst [vmem:[#allocation2 + $0x20] sm:$0x1] %v488
      %v490 = vld [vmem:[#allocation2 + $0x2c] sm:$0x1]
      %v491 = vsel %vm480, 0, %v490
      %492 = vst [vmem:[#allocation2 + $0x2c] sm:$0x1] %v491
      %v493 = vld [vmem:[#allocation2 + $0x38] sm:$0x1]
      %v494 = vsel %vm480, 0, %v493
      %495 = vst [vmem:[#allocation2 + $0x38] sm:$0x1] %v494
      %v496 = vld [vmem:[#allocation2 + $0x44] sm:$0x1]
      %v497 = vsel %vm480, 0, %v496
      %498 = vst [vmem:[#allocation2 + $0x44] sm:$0x1] %v497
      %v499 = vld [vmem:[#allocation2 + $0x50] sm:$0x1]
      %v500 = vsel %vm480, 0, %v499
      %501 = vst [vmem:[#allocation2 + $0x50] sm:$0x1] %v500
      %v502 = vld [vmem:[#allocation2 + $0x5c] sm:$0x1]
      %v503 = vsel %vm480, 0, %v502
      %504 = vst [vmem:[#allocation2 + $0x5c] sm:$0x1] %v503
      %v505 = vld [vmem:[#allocation2 + $0x68] sm:$0x1]
      %v506 = vsel %vm480, 0, %v505
      %507 = vst [vmem:[#allocation2 + $0x68] sm:$0x1] %v506
      %v508 = vld [vmem:[#allocation2 + $0x74] sm:$0x1]
      %v509 = vsel %vm480, 0, %v508
      %510 = vst [vmem:[#allocation2 + $0x74] sm:$0x1] %v509
      %v511 = vld [vmem:[#allocation2 + $0x80] sm:$0x1]
      %v512 = vsel %vm480, 0, %v511
      %513 = vst [vmem:[#allocation2 + $0x80] sm:$0x1] %v512
      %v514 = vld [vmem:[#allocation2 + $0x8c] sm:$0x1]
      %v515 = vsel %vm480, 0, %v514
      %516 = vst [vmem:[#allocation2 + $0x8c] sm:$0x1] %v515
      %v517 = vld [vmem:[#allocation2 + $0x98] sm:$0x1]
      %v518 = vsel %vm480, 0, %v517
      %519 = vst [vmem:[#allocation2 + $0x98] sm:$0x1] %v518
      %v520 = vld [vmem:[#allocation2 + $0xa4] sm:$0x1]
      %v521 = vsel %vm480, 0, %v520
      %522 = vst [vmem:[#allocation2 + $0xa4] sm:$0x1] %v521
      %v523 = vld [vmem:[#allocation2 + $0xb0] sm:$0x1]
      %v524 = vsel %vm480, 0, %v523
      %525 = vst [vmem:[#allocation2 + $0xb0] sm:$0x1] %v524
      %v526 = vld [vmem:[#allocation2 + $0xbc] sm:$0x1]
      %v527 = vsel %vm480, 0, %v526
      %528 = vst [vmem:[#allocation2 + $0xbc] sm:$0x1] %v527
      %v529 = vld [vmem:[#allocation2 + $0xc8] sm:$0x1]
      %v530 = vsel %vm480, 0, %v529
      %531 = vst [vmem:[#allocation2 + $0xc8] sm:$0x1] %v530
      %v532 = vld [vmem:[#allocation2 + $0xd4] sm:$0x1]
      %v533 = vsel %vm480, 0, %v532
      %534 = vst [vmem:[#allocation2 + $0xd4] sm:$0x1] %v533
      %v535 = vpack.c.bf16 %v384, %v383
      %v536 = vpack.c.bf16 %v386, %v385
      %v537 = vpack.c.bf16 %v388, %v387
      %v538 = vpack.c.bf16 %v390, %v389
      %v539 = vpack.c.bf16 %v392, %v391
      %v540 = vpack.c.bf16 %v394, %v393
      %v541 = vpack.c.bf16 %v396, %v395
      %v542 = vpack.c.bf16 %v398, %v397
      %v543 = vpack.c.bf16 %v400, %v399
      %v544 = vpack.c.bf16 %v402, %v401
      %v545 = vpack.c.bf16 %v404, %v403
      %v546 = vpack.c.bf16 %v406, %v405
      %v547 = vpack.c.bf16 %v408, %v407
      %v548 = vpack.c.bf16 %v410, %v409
      %v549 = vpack.c.bf16 %v412, %v411
      %v550 = vpack.c.bf16 %v414, %v413
      %v567 = vunpack.c.l.b16 %v535
      %v568 = vunpack.c.h.b16 %v535
      %v569 = vunpack.c.l.b16 %v536
      %v570 = vunpack.c.h.b16 %v536
      %v571 = vunpack.c.l.b16 %v537
      %v572 = vunpack.c.h.b16 %v537
      %v573 = vunpack.c.l.b16 %v538
      %v574 = vunpack.c.h.b16 %v538
      %v575 = vunpack.c.l.b16 %v539
      %v576 = vunpack.c.h.b16 %v539
      %v577 = vunpack.c.l.b16 %v540
      %v578 = vunpack.c.h.b16 %v540
      %v579 = vunpack.c.l.b16 %v541
      %v580 = vunpack.c.h.b16 %v541
      %v581 = vunpack.c.l.b16 %v542
      %v582 = vunpack.c.h.b16 %v542
      %v583 = vunpack.c.l.b16 %v543
      %v584 = vunpack.c.h.b16 %v543
      %v585 = vunpack.c.l.b16 %v544
      %v586 = vunpack.c.h.b16 %v544
      %v587 = vunpack.c.l.b16 %v545
      %v588 = vunpack.c.h.b16 %v545
      %v589 = vunpack.c.l.b16 %v546
      %v590 = vunpack.c.h.b16 %v546
      %v591 = vunpack.c.l.b16 %v547
      %v592 = vunpack.c.h.b16 %v547
      %v593 = vunpack.c.l.b16 %v548
      %v594 = vunpack.c.h.b16 %v548
      %v595 = vunpack.c.l.b16 %v549
      %v596 = vunpack.c.h.b16 %v549
      %v597 = vunpack.c.l.b16 %v550
      %v598 = vunpack.c.h.b16 %v550
      %v599 = vpack.c.b16 %v567, %v567
      %v600 = vpack.c.b16 %v568, %v568
      %v601 = vpack.c.b16 %v569, %v569
      %v602 = vpack.c.b16 %v570, %v570
      %v603 = vpack.c.b16 %v571, %v571
      %v604 = vpack.c.b16 %v572, %v572
      %v605 = vpack.c.b16 %v573, %v573
      %v606 = vpack.c.b16 %v574, %v574
      %v607 = vpack.c.b16 %v575, %v575
      %v608 = vpack.c.b16 %v576, %v576
      %v609 = vpack.c.b16 %v577, %v577
      %v610 = vpack.c.b16 %v578, %v578
      %v611 = vpack.c.b16 %v579, %v579
      %v612 = vpack.c.b16 %v580, %v580
      %v613 = vpack.c.b16 %v581, %v581
      %v614 = vpack.c.b16 %v582, %v582
      %v615 = vpack.c.b16 %v583, %v583
      %v616 = vpack.c.b16 %v584, %v584
      %v617 = vpack.c.b16 %v585, %v585
      %v618 = vpack.c.b16 %v586, %v586
      %v619 = vpack.c.b16 %v587, %v587
      %v620 = vpack.c.b16 %v588, %v588
      %v621 = vpack.c.b16 %v589, %v589
      %v622 = vpack.c.b16 %v590, %v590
      %v623 = vpack.c.b16 %v591, %v591
      %v624 = vpack.c.b16 %v592, %v592
      %v625 = vpack.c.b16 %v593, %v593
      %v626 = vpack.c.b16 %v594, %v594
      %v627 = vpack.c.b16 %v595, %v595
      %v628 = vpack.c.b16 %v596, %v596
      %v629 = vpack.c.b16 %v597, %v597
      %v630 = vpack.c.b16 %v598, %v598
      %vm631 = vsmask.f32 4368
      %vm632 = vmor %vm423, %vm631
      %v634 = vshrl.u32 %v599, 16
      %v636 = vrot.slane %v634, 7
      %v637 = vshll.u32 %v599, 16
      %v639 = vor.u32 %v636, %v637
      %v640 = vrot.slane %v636, 4
      %v642 = vshrl.u32 %v600, 16
      %v644 = vrot.slane %v642, 7
      %v645 = vshll.u32 %v600, 16
      %v647 = vor.u32 %v644, %v645
      %v648 = vsel %vm632, %v640, %v647
      %v649 = vrot.slane %v644, 4
      %v651 = vshrl.u32 %v601, 16
      %v653 = vrot.slane %v651, 7
      %v654 = vshll.u32 %v601, 16
      %v656 = vor.u32 %v653, %v654
      %v657 = vrot.slane %v653, 4
      %v659 = vshrl.u32 %v602, 16
      %v661 = vrot.slane %v659, 7
      %v662 = vshll.u32 %v602, 16
      %v664 = vor.u32 %v661, %v662
      %v665 = vsel %vm632, %v657, %v664
      %v666 = vrot.slane %v661, 4
      %v668 = vshrl.u32 %v603, 16
      %v670 = vrot.slane %v668, 7
      %v671 = vshll.u32 %v603, 16
      %v673 = vor.u32 %v670, %v671
      %v674 = vrot.slane %v670, 4
      %v676 = vshrl.u32 %v604, 16
      %v678 = vrot.slane %v676, 7
      %v679 = vshll.u32 %v604, 16
      %v681 = vor.u32 %v678, %v679
      %v682 = vsel %vm632, %v674, %v681
      %v683 = vrot.slane %v678, 4
      %v685 = vshrl.u32 %v605, 16
      %v687 = vrot.slane %v685, 7
      %v688 = vshll.u32 %v605, 16
      %v690 = vor.u32 %v687, %v688
      %v691 = vrot.slane %v687, 4
      %v693 = vshrl.u32 %v606, 16
      %v695 = vrot.slane %v693, 7
      %v696 = vshll.u32 %v606, 16
      %v698 = vor.u32 %v695, %v696
      %v699 = vsel %vm632, %v691, %v698
      %v700 = vrot.slane %v695, 4
      %v702 = vshrl.u32 %v607, 16
      %v704 = vrot.slane %v702, 7
      %v705 = vshll.u32 %v607, 16
      %v707 = vor.u32 %v704, %v705
      %v708 = vrot.slane %v704, 4
      %v710 = vshrl.u32 %v608, 16
      %v712 = vrot.slane %v710, 7
      %v713 = vshll.u32 %v608, 16
      %v715 = vor.u32 %v712, %v713
      %v716 = vsel %vm632, %v708, %v715
      %v717 = vrot.slane %v712, 4
      %v719 = vshrl.u32 %v609, 16
      %v721 = vrot.slane %v719, 7
      %v722 = vshll.u32 %v609, 16
      %v724 = vor.u32 %v721, %v722
      %v725 = vrot.slane %v721, 4
      %v727 = vshrl.u32 %v610, 16
      %v729 = vrot.slane %v727, 7
      %v730 = vshll.u32 %v610, 16
      %v732 = vor.u32 %v729, %v730
      %v733 = vsel %vm632, %v725, %v732
      %v734 = vrot.slane %v729, 4
      %v736 = vshrl.u32 %v611, 16
      %v738 = vrot.slane %v736, 7
      %v739 = vshll.u32 %v611, 16
      %v741 = vor.u32 %v738, %v739
      %v742 = vrot.slane %v738, 4
      %v744 = vshrl.u32 %v612, 16
      %v746 = vrot.slane %v744, 7
      %v747 = vshll.u32 %v612, 16
      %v749 = vor.u32 %v746, %v747
      %v750 = vsel %vm632, %v742, %v749
      %v751 = vrot.slane %v746, 4
      %v753 = vshrl.u32 %v613, 16
      %v755 = vrot.slane %v753, 7
      %v756 = vshll.u32 %v613, 16
      %v758 = vor.u32 %v755, %v756
      %v759 = vrot.slane %v755, 4
      %v761 = vshrl.u32 %v614, 16
      %v763 = vrot.slane %v761, 7
      %v764 = vshll.u32 %v614, 16
      %v766 = vor.u32 %v763, %v764
      %v767 = vsel %vm632, %v759, %v766
      %v768 = vrot.slane %v763, 4
      %v770 = vshrl.u32 %v615, 16
      %v772 = vrot.slane %v770, 7
      %v773 = vshll.u32 %v615, 16
      %v775 = vor.u32 %v772, %v773
      %v776 = vrot.slane %v772, 4
      %v778 = vshrl.u32 %v616, 16
      %v780 = vrot.slane %v778, 7
      %v781 = vshll.u32 %v616, 16
      %v783 = vor.u32 %v780, %v781
      %v784 = vsel %vm632, %v776, %v783
      %v785 = vrot.slane %v780, 4
      %v787 = vshrl.u32 %v617, 16
      %v789 = vrot.slane %v787, 7
      %v790 = vshll.u32 %v617, 16
      %v792 = vor.u32 %v789, %v790
      %v793 = vrot.slane %v789, 4
      %v795 = vshrl.u32 %v618, 16
      %v797 = vrot.slane %v795, 7
      %v798 = vshll.u32 %v618, 16
      %v800 = vor.u32 %v797, %v798
      %v801 = vsel %vm632, %v793, %v800
      %v802 = vrot.slane %v797, 4
      %v804 = vshrl.u32 %v619, 16
      %v806 = vrot.slane %v804, 7
      %v807 = vshll.u32 %v619, 16
      %v809 = vor.u32 %v806, %v807
      %v810 = vrot.slane %v806, 4
      %v812 = vshrl.u32 %v620, 16
      %v814 = vrot.slane %v812, 7
      %v815 = vshll.u32 %v620, 16
      %v817 = vor.u32 %v814, %v815
      %v818 = vsel %vm632, %v810, %v817
      %v819 = vrot.slane %v814, 4
      %v821 = vshrl.u32 %v621, 16
      %v823 = vrot.slane %v821, 7
      %v824 = vshll.u32 %v621, 16
      %v826 = vor.u32 %v823, %v824
      %v827 = vrot.slane %v823, 4
      %v829 = vshrl.u32 %v622, 16
      %v831 = vrot.slane %v829, 7
      %v832 = vshll.u32 %v622, 16
      %v834 = vor.u32 %v831, %v832
      %v835 = vsel %vm632, %v827, %v834
      %v836 = vrot.slane %v831, 4
      %v838 = vshrl.u32 %v623, 16
      %v840 = vrot.slane %v838, 7
      %v841 = vshll.u32 %v623, 16
      %v843 = vor.u32 %v840, %v841
      %v844 = vrot.slane %v840, 4
      %v846 = vshrl.u32 %v624, 16
      %v848 = vrot.slane %v846, 7
      %v849 = vshll.u32 %v624, 16
      %v851 = vor.u32 %v848, %v849
      %v852 = vsel %vm632, %v844, %v851
      %v853 = vrot.slane %v848, 4
      %v855 = vshrl.u32 %v625, 16
      %v857 = vrot.slane %v855, 7
      %v858 = vshll.u32 %v625, 16
      %v860 = vor.u32 %v857, %v858
      %v861 = vrot.slane %v857, 4
      %v863 = vshrl.u32 %v626, 16
      %v865 = vrot.slane %v863, 7
      %v866 = vshll.u32 %v626, 16
      %v868 = vor.u32 %v865, %v866
      %v869 = vsel %vm632, %v861, %v868
      %v870 = vrot.slane %v865, 4
      %v872 = vshrl.u32 %v627, 16
      %v874 = vrot.slane %v872, 7
      %v875 = vshll.u32 %v627, 16
      %v877 = vor.u32 %v874, %v875
      %v878 = vrot.slane %v874, 4
      %v880 = vshrl.u32 %v628, 16
      %v882 = vrot.slane %v880, 7
      %v883 = vshll.u32 %v628, 16
      %v885 = vor.u32 %v882, %v883
      %v886 = vsel %vm632, %v878, %v885
      %v887 = vrot.slane %v882, 4
      %v889 = vshrl.u32 %v629, 16
      %v891 = vrot.slane %v889, 7
      %v892 = vshll.u32 %v629, 16
      %v894 = vor.u32 %v891, %v892
      %v895 = vrot.slane %v891, 4
      %v897 = vshrl.u32 %v630, 16
      %v899 = vrot.slane %v897, 7
      %v900 = vshll.u32 %v630, 16
      %v902 = vor.u32 %v899, %v900
      %v903 = vsel %vm632, %v895, %v902
      %v904 = vrot.slane %v899, 4
      %s953 = scalar_lea.vmem [#allocation2], 12
      %vm954 = vcmask 1043456
      %vm955 = vmand %vm954, %vm479
      %v956 = vld [vmem:[%s953] sm:$0xf]
      %v957 = vsel %vm955, %v639, %v956
      %958 = vst [vmem:[%s953] sm:$0xf] %v957
      %959 = vst [vmem:[%s953 + $0x4] sm:$0xf] %v648
      %v960 = vld [vmem:[%s953 + $0x8] sm:$0x1]
      %v961 = vsel %vm424, %v649, %v960
      %962 = vst [vmem:[%s953 + $0x8] sm:$0x1] %v961
      %v963 = vld [vmem:[%s953 + $0xc] sm:$0xf]
      %v964 = vsel %vm955, %v656, %v963
      %965 = vst [vmem:[%s953 + $0xc] sm:$0xf] %v964
      %966 = vst [vmem:[%s953 + $0x10] sm:$0xf] %v665
      %v967 = vld [vmem:[%s953 + $0x14] sm:$0x1]
      %v968 = vsel %vm424, %v666, %v967
      %969 = vst [vmem:[%s953 + $0x14] sm:$0x1] %v968
      %v970 = vld [vmem:[%s953 + $0x18] sm:$0xf]
      %v971 = vsel %vm955, %v673, %v970
      %972 = vst [vmem:[%s953 + $0x18] sm:$0xf] %v971
      %973 = vst [vmem:[%s953 + $0x1c] sm:$0xf] %v682
      %v974 = vld [vmem:[%s953 + $0x20] sm:$0x1]
      %v975 = vsel %vm424, %v683, %v974
      %976 = vst [vmem:[%s953 + $0x20] sm:$0x1] %v975
      %v977 = vld [vmem:[%s953 + $0x24] sm:$0xf]
      %v978 = vsel %vm955, %v690, %v977
      %979 = vst [vmem:[%s953 + $0x24] sm:$0xf] %v978
      %980 = vst [vmem:[%s953 + $0x28] sm:$0xf] %v699
      %v981 = vld [vmem:[%s953 + $0x2c] sm:$0x1]
      %v982 = vsel %vm424, %v700, %v981
      %983 = vst [vmem:[%s953 + $0x2c] sm:$0x1] %v982
      %v984 = vld [vmem:[%s953 + $0x30] sm:$0xf]
      %v985 = vsel %vm955, %v707, %v984
      %986 = vst [vmem:[%s953 + $0x30] sm:$0xf] %v985
      %987 = vst [vmem:[%s953 + $0x34] sm:$0xf] %v716
      %v988 = vld [vmem:[%s953 + $0x38] sm:$0x1]
      %v989 = vsel %vm424, %v717, %v988
      %990 = vst [vmem:[%s953 + $0x38] sm:$0x1] %v989
      %v991 = vld [vmem:[%s953 + $0x3c] sm:$0xf]
      %v992 = vsel %vm955, %v724, %v991
      %993 = vst [vmem:[%s953 + $0x3c] sm:$0xf] %v992
      %994 = vst [vmem:[%s953 + $0x40] sm:$0xf] %v733
      %v995 = vld [vmem:[%s953 + $0x44] sm:$0x1]
      %v996 = vsel %vm424, %v734, %v995
      %997 = vst [vmem:[%s953 + $0x44] sm:$0x1] %v996
      %v998 = vld [vmem:[%s953 + $0x48] sm:$0xf]
      %v999 = vsel %vm955, %v741, %v998
      %1000 = vst [vmem:[%s953 + $0x48] sm:$0xf] %v999
      %1001 = vst [vmem:[%s953 + $0x4c] sm:$0xf] %v750
      %v1002 = vld [vmem:[%s953 + $0x50] sm:$0x1]
      %v1003 = vsel %vm424, %v751, %v1002
      %1004 = vst [vmem:[%s953 + $0x50] sm:$0x1] %v1003
      %v1005 = vld [vmem:[%s953 + $0x54] sm:$0xf]
      %v1006 = vsel %vm955, %v758, %v1005
      %1007 = vst [vmem:[%s953 + $0x54] sm:$0xf] %v1006
      %1008 = vst [vmem:[%s953 + $0x58] sm:$0xf] %v767
      %v1009 = vld [vmem:[%s953 + $0x5c] sm:$0x1]
      %v1010 = vsel %vm424, %v768, %v1009
      %1011 = vst [vmem:[%s953 + $0x5c] sm:$0x1] %v1010
      %v1012 = vld [vmem:[%s953 + $0x60] sm:$0xf]
      %v1013 = vsel %vm955, %v775, %v1012
      %1014 = vst [vmem:[%s953 + $0x60] sm:$0xf] %v1013
      %1015 = vst [vmem:[%s953 + $0x64] sm:$0xf] %v784
      %v1016 = vld [vmem:[%s953 + $0x68] sm:$0x1]
      %v1017 = vsel %vm424, %v785, %v1016
      %1018 = vst [vmem:[%s953 + $0x68] sm:$0x1] %v1017
      %v1019 = vld [vmem:[%s953 + $0x6c] sm:$0xf]
      %v1020 = vsel %vm955, %v792, %v1019
      %1021 = vst [vmem:[%s953 + $0x6c] sm:$0xf] %v1020
      %1022 = vst [vmem:[%s953 + $0x70] sm:$0xf] %v801
      %v1023 = vld [vmem:[%s953 + $0x74] sm:$0x1]
      %v1024 = vsel %vm424, %v802, %v1023
      %1025 = vst [vmem:[%s953 + $0x74] sm:$0x1] %v1024
      %v1026 = vld [vmem:[%s953 + $0x78] sm:$0xf]
      %v1027 = vsel %vm955, %v809, %v1026
      %1028 = vst [vmem:[%s953 + $0x78] sm:$0xf] %v1027
      %1029 = vst [vmem:[%s953 + $0x7c] sm:$0xf] %v818
      %v1030 = vld [vmem:[%s953 + $0x80] sm:$0x1]
      %v1031 = vsel %vm424, %v819, %v1030
      %1032 = vst [vmem:[%s953 + $0x80] sm:$0x1] %v1031
      %v1033 = vld [vmem:[%s953 + $0x84] sm:$0xf]
      %v1034 = vsel %vm955, %v826, %v1033
      %1035 = vst [vmem:[%s953 + $0x84] sm:$0xf] %v1034
      %1036 = vst [vmem:[%s953 + $0x88] sm:$0xf] %v835
      %v1037 = vld [vmem:[%s953 + $0x8c] sm:$0x1]
      %v1038 = vsel %vm424, %v836, %v1037
      %1039 = vst [vmem:[%s953 + $0x8c] sm:$0x1] %v1038
      %v1040 = vld [vmem:[%s953 + $0x90] sm:$0xf]
      %v1041 = vsel %vm955, %v843, %v1040
      %1042 = vst [vmem:[%s953 + $0x90] sm:$0xf] %v1041
      %1043 = vst [vmem:[%s953 + $0x94] sm:$0xf] %v852
      %v1044 = vld [vmem:[%s953 + $0x98] sm:$0x1]
      %v1045 = vsel %vm424, %v853, %v1044
      %1046 = vst [vmem:[%s953 + $0x98] sm:$0x1] %v1045
      %v1047 = vld [vmem:[%s953 + $0x9c] sm:$0xf]
      %v1048 = vsel %vm955, %v860, %v1047
      %1049 = vst [vmem:[%s953 + $0x9c] sm:$0xf] %v1048
      %1050 = vst [vmem:[%s953 + $0xa0] sm:$0xf] %v869
      %v1051 = vld [vmem:[%s953 + $0xa4] sm:$0x1]
      %v1052 = vsel %vm424, %v870, %v1051
      %1053 = vst [vmem:[%s953 + $0xa4] sm:$0x1] %v1052
      %v1054 = vld [vmem:[%s953 + $0xa8] sm:$0xf]
      %v1055 = vsel %vm955, %v877, %v1054
      %1056 = vst [vmem:[%s953 + $0xa8] sm:$0xf] %v1055
      %1057 = vst [vmem:[%s953 + $0xac] sm:$0xf] %v886
      %v1058 = vld [vmem:[%s953 + $0xb0] sm:$0x1]
      %v1059 = vsel %vm424, %v887, %v1058
      %1060 = vst [vmem:[%s953 + $0xb0] sm:$0x1] %v1059
      %v1061 = vld [vmem:[%s953 + $0xb4] sm:$0xf]
      %v1062 = vsel %vm955, %v894, %v1061
      %1063 = vst [vmem:[%s953 + $0xb4] sm:$0xf] %v1062
      %1064 = vst [vmem:[%s953 + $0xb8] sm:$0xf] %v903
      %v1065 = vld [vmem:[%s953 + $0xbc] sm:$0x1]
      %v1066 = vsel %vm424, %v904, %v1065
      %1067 = vst [vmem:[%s953 + $0xbc] sm:$0x1] %v1066
      %v1068 = vld [vmem:[#allocation2] sm:$0xf]
      %v1069 = vld [vmem:[#allocation2 + $0x4] sm:$0xf]
      %v1070 = vld [vmem:[#allocation2 + $0xc] sm:$0xf]
      %v1071 = vld [vmem:[#allocation2 + $0x10] sm:$0xf]
      %v1072 = vld [vmem:[#allocation2 + $0x18] sm:$0xf]
      %v1073 = vld [vmem:[#allocation2 + $0x1c] sm:$0xf]
      %v1074 = vld [vmem:[#allocation2 + $0x24] sm:$0xf]
      %v1075 = vld [vmem:[#allocation2 + $0x28] sm:$0xf]
      %v1076 = vld [vmem:[#allocation2 + $0x30] sm:$0xf]
      %v1077 = vld [vmem:[#allocation2 + $0x34] sm:$0xf]
      %v1078 = vld [vmem:[#allocation2 + $0x3c] sm:$0xf]
      %v1079 = vld [vmem:[#allocation2 + $0x40] sm:$0xf]
      %v1080 = vld [vmem:[#allocation2 + $0x48] sm:$0xf]
      %v1081 = vld [vmem:[#allocation2 + $0x4c] sm:$0xf]
      %v1082 = vld [vmem:[#allocation2 + $0x54] sm:$0xf]
      %v1083 = vld [vmem:[#allocation2 + $0x58] sm:$0xf]
      %v1084 = vld [vmem:[#allocation2 + $0x60] sm:$0xf]
      %v1085 = vld [vmem:[#allocation2 + $0x64] sm:$0xf]
      %v1086 = vld [vmem:[#allocation2 + $0x6c] sm:$0xf]
      %v1087 = vld [vmem:[#allocation2 + $0x70] sm:$0xf]
      %v1088 = vld [vmem:[#allocation2 + $0x78] sm:$0xf]
      %v1089 = vld [vmem:[#allocation2 + $0x7c] sm:$0xf]
      %v1090 = vld [vmem:[#allocation2 + $0x84] sm:$0xf]
      %v1091 = vld [vmem:[#allocation2 + $0x88] sm:$0xf]
      %v1092 = vld [vmem:[#allocation2 + $0x90] sm:$0xf]
      %v1093 = vld [vmem:[#allocation2 + $0x94] sm:$0xf]
      %v1094 = vld [vmem:[#allocation2 + $0x9c] sm:$0xf]
      %v1095 = vld [vmem:[#allocation2 + $0xa0] sm:$0xf]
      %v1096 = vld [vmem:[#allocation2 + $0xa8] sm:$0xf]
      %v1097 = vld [vmem:[#allocation2 + $0xac] sm:$0xf]
      %v1098 = vld [vmem:[#allocation2 + $0xb4] sm:$0xf]
      %v1099 = vld [vmem:[#allocation2 + $0xb8] sm:$0xf]
      %v1132 = vunpack.c.l.b16 %v1068
      %v1133 = vunpack.c.l.b16 %v1069
      %v1134 = vunpack.c.l.b16 %v1070
      %v1135 = vunpack.c.l.b16 %v1071
      %v1136 = vunpack.c.l.b16 %v1072
      %v1137 = vunpack.c.l.b16 %v1073
      %v1138 = vunpack.c.l.b16 %v1074
      %v1139 = vunpack.c.l.b16 %v1075
      %v1140 = vunpack.c.l.b16 %v1076
      %v1141 = vunpack.c.l.b16 %v1077
      %v1142 = vunpack.c.l.b16 %v1078
      %v1143 = vunpack.c.l.b16 %v1079
      %v1144 = vunpack.c.l.b16 %v1080
      %v1145 = vunpack.c.l.b16 %v1081
      %v1146 = vunpack.c.l.b16 %v1082
      %v1147 = vunpack.c.l.b16 %v1083
      %v1148 = vunpack.c.l.b16 %v1084
      %v1149 = vunpack.c.l.b16 %v1085
      %v1150 = vunpack.c.l.b16 %v1086
      %v1151 = vunpack.c.l.b16 %v1087
      %v1152 = vunpack.c.l.b16 %v1088
      %v1153 = vunpack.c.l.b16 %v1089
      %v1154 = vunpack.c.l.b16 %v1090
      %v1155 = vunpack.c.l.b16 %v1091
      %v1156 = vunpack.c.l.b16 %v1092
      %v1157 = vunpack.c.l.b16 %v1093
      %v1158 = vunpack.c.l.b16 %v1094
      %v1159 = vunpack.c.l.b16 %v1095
      %v1160 = vunpack.c.l.b16 %v1096
      %v1161 = vunpack.c.l.b16 %v1097
      %v1162 = vunpack.c.l.b16 %v1098
      %v1163 = vunpack.c.l.b16 %v1099
      %v1164 = vpack.c.b16 %v1133, %v1132
      %v1165 = vpack.c.b16 %v1135, %v1134
      %v1166 = vpack.c.b16 %v1137, %v1136
      %v1167 = vpack.c.b16 %v1139, %v1138
      %v1168 = vpack.c.b16 %v1141, %v1140
      %v1169 = vpack.c.b16 %v1143, %v1142
      %v1170 = vpack.c.b16 %v1145, %v1144
      %v1171 = vpack.c.b16 %v1147, %v1146
      %v1172 = vpack.c.b16 %v1149, %v1148
      %v1173 = vpack.c.b16 %v1151, %v1150
      %v1174 = vpack.c.b16 %v1153, %v1152
      %v1175 = vpack.c.b16 %v1155, %v1154
      %v1176 = vpack.c.b16 %v1157, %v1156
      %v1177 = vpack.c.b16 %v1159, %v1158
      %v1178 = vpack.c.b16 %v1161, %v1160
      %v1179 = vpack.c.b16 %v1163, %v1162
      %1196 = vst [vmem:[#allocation3] sm:$0xff] %v1164
      %1197 = vst [vmem:[#allocation3 + $0x48] sm:$0xff] %v1165
      %1198 = vst [vmem:[#allocation3 + $0x90] sm:$0xff] %v1166
      %1199 = vst [vmem:[#allocation3 + $0xd8] sm:$0xff] %v1167
      %1200 = vst [vmem:[#allocation3 + $0x120] sm:$0xff] %v1168
      %1201 = vst [vmem:[#allocation3 + $0x168] sm:$0xff] %v1169
      %1202 = vst [vmem:[#allocation3 + $0x1b0] sm:$0xff] %v1170
      %1203 = vst [vmem:[#allocation3 + $0x1f8] sm:$0xff] %v1171
      %1204 = vst [vmem:[#allocation3 + $0x240] sm:$0xff] %v1172
      %1205 = vst [vmem:[#allocation3 + $0x288] sm:$0xff] %v1173
      %1206 = vst [vmem:[#allocation3 + $0x2d0] sm:$0xff] %v1174
      %1207 = vst [vmem:[#allocation3 + $0x318] sm:$0xff] %v1175
      %1208 = vst [vmem:[#allocation3 + $0x360] sm:$0xff] %v1176
      %1209 = vst [vmem:[#allocation3 + $0x3a8] sm:$0xff] %v1177
      %1210 = vst [vmem:[#allocation3 + $0x3f0] sm:$0xff] %v1178
      %1211 = vst [vmem:[#allocation3 + $0x438] sm:$0xff] %v1179
      %v1212 = vld [vmem:[#allocation2] sm:$0xf]
      %v1213 = vld [vmem:[#allocation2 + $0x4] sm:$0xf]
      %v1214 = vld [vmem:[#allocation2 + $0x8] sm:$0x1]
      %v1215 = vld [vmem:[#allocation2 + $0xc] sm:$0xf]
      %v1216 = vld [vmem:[#allocation2 + $0x10] sm:$0xf]
      %v1217 = vld [vmem:[#allocation2 + $0x14] sm:$0x1]
      %v1218 = vld [vmem:[#allocation2 + $0x18] sm:$0xf]
      %v1219 = vld [vmem:[#allocation2 + $0x1c] sm:$0xf]
      %v1220 = vld [vmem:[#allocation2 + $0x20] sm:$0x1]
      %v1221 = vld [vmem:[#allocation2 + $0x24] sm:$0xf]
      %v1222 = vld [vmem:[#allocation2 + $0x28] sm:$0xf]
      %v1223 = vld [vmem:[#allocation2 + $0x2c] sm:$0x1]
      %v1224 = vld [vmem:[#allocation2 + $0x30] sm:$0xf]
      %v1225 = vld [vmem:[#allocation2 + $0x34] sm:$0xf]
      %v1226 = vld [vmem:[#allocation2 + $0x38] sm:$0x1]
      %v1227 = vld [vmem:[#allocation2 + $0x3c] sm:$0xf]
      %v1228 = vld [vmem:[#allocation2 + $0x40] sm:$0xf]
      %v1229 = vld [vmem:[#allocation2 + $0x44] sm:$0x1]
      %v1230 = vld [vmem:[#allocation2 + $0x48] sm:$0xf]
      %v1231 = vld [vmem:[#allocation2 + $0x4c] sm:$0xf]
      %v1232 = vld [vmem:[#allocation2 + $0x50] sm:$0x1]
      %v1233 = vld [vmem:[#allocation2 + $0x54] sm:$0xf]
      %v1234 = vld [vmem:[#allocation2 + $0x58] sm:$0xf]
      %v1235 = vld [vmem:[#allocation2 + $0x5c] sm:$0x1]
      %v1236 = vld [vmem:[#allocation2 + $0x60] sm:$0xf]
      %v1237 = vld [vmem:[#allocation2 + $0x64] sm:$0xf]
      %v1238 = vld [vmem:[#allocation2 + $0x68] sm:$0x1]
      %v1239 = vld [vmem:[#allocation2 + $0x6c] sm:$0xf]
      %v1240 = vld [vmem:[#allocation2 + $0x70] sm:$0xf]
      %v1241 = vld [vmem:[#allocation2 + $0x74] sm:$0x1]
      %v1242 = vld [vmem:[#allocation2 + $0x78] sm:$0xf]
      %v1243 = vld [vmem:[#allocation2 + $0x7c] sm:$0xf]
      %v1244 = vld [vmem:[#allocation2 + $0x80] sm:$0x1]
      %v1245 = vld [vmem:[#allocation2 + $0x84] sm:$0xf]
      %v1246 = vld [vmem:[#allocation2 + $0x88] sm:$0xf]
      %v1247 = vld [vmem:[#allocation2 + $0x8c] sm:$0x1]
      %v1248 = vld [vmem:[#allocation2 + $0x90] sm:$0xf]
      %v1249 = vld [vmem:[#allocation2 + $0x94] sm:$0xf]
      %v1250 = vld [vmem:[#allocation2 + $0x98] sm:$0x1]
      %v1251 = vld [vmem:[#allocation2 + $0x9c] sm:$0xf]
      %v1252 = vld [vmem:[#allocation2 + $0xa0] sm:$0xf]
      %v1253 = vld [vmem:[#allocation2 + $0xa4] sm:$0x1]
      %v1254 = vld [vmem:[#allocation2 + $0xa8] sm:$0xf]
      %v1255 = vld [vmem:[#allocation2 + $0xac] sm:$0xf]
      %v1256 = vld [vmem:[#allocation2 + $0xb0] sm:$0x1]
      %v1257 = vld [vmem:[#allocation2 + $0xb4] sm:$0xf]
      %v1258 = vld [vmem:[#allocation2 + $0xb8] sm:$0xf]
      %v1259 = vld [vmem:[#allocation2 + $0xbc] sm:$0x1]
      %vm1260 = vsmask.f32 3328
      %vm1261 = vsmask.f32 7440
      %vm1262 = vmor %vm1260, %vm1261
      %v1264 = vshrl.u32 %v1212, 16
      %v1266 = vrot.slane %v1264, 4
      %v1267 = vshll.u32 %v1212, 16
      %v1269 = vrot.slane %v1267, 5
      %v1270 = vor.u32 %v1266, %v1269
      %v1271 = vrot.slane %v1270, 4
      %v1273 = vshll.u32 %v1213, 16
      %v1275 = vrot.slane %v1273, 5
      %v1276 = vsel %vm1262, %v1271, %v1275
      %v1277 = vshrl.u32 %v1213, 16
      %v1279 = vrot.slane %v1277, 4
      %v1280 = vor.u32 %v1279, %v1275
      %v1281 = vrot.slane %v1280, 4
      %v1283 = vshll.u32 %v1214, 16
      %v1285 = vrot.slane %v1283, 5
      %v1286 = vsel %vm1262, %v1281, %v1285
      %v1288 = vshrl.u32 %v1215, 16
      %v1290 = vrot.slane %v1288, 4
      %v1291 = vshll.u32 %v1215, 16
      %v1293 = vrot.slane %v1291, 5
      %v1294 = vor.u32 %v1290, %v1293
      %v1295 = vrot.slane %v1294, 4
      %v1297 = vshll.u32 %v1216, 16
      %v1299 = vrot.slane %v1297, 5
      %v1300 = vsel %vm1262, %v1295, %v1299
      %v1301 = vshrl.u32 %v1216, 16
      %v1303 = vrot.slane %v1301, 4
      %v1304 = vor.u32 %v1303, %v1299
      %v1305 = vrot.slane %v1304, 4
      %v1307 = vshll.u32 %v1217, 16
      %v1309 = vrot.slane %v1307, 5
      %v1310 = vsel %vm1262, %v1305, %v1309
      %v1312 = vshrl.u32 %v1218, 16
      %v1314 = vrot.slane %v1312, 4
      %v1315 = vshll.u32 %v1218, 16
      %v1317 = vrot.slane %v1315, 5
      %v1318 = vor.u32 %v1314, %v1317
      %v1319 = vrot.slane %v1318, 4
      %v1321 = vshll.u32 %v1219, 16
      %v1323 = vrot.slane %v1321, 5
      %v1324 = vsel %vm1262, %v1319, %v1323
      %v1325 = vshrl.u32 %v1219, 16
      %v1327 = vrot.slane %v1325, 4
      %v1328 = vor.u32 %v1327, %v1323
      %v1329 = vrot.slane %v1328, 4
      %v1331 = vshll.u32 %v1220, 16
      %v1333 = vrot.slane %v1331, 5
      %v1334 = vsel %vm1262, %v1329, %v1333
      %v1336 = vshrl.u32 %v1221, 16
      %v1338 = vrot.slane %v1336, 4
      %v1339 = vshll.u32 %v1221, 16
      %v1341 = vrot.slane %v1339, 5
      %v1342 = vor.u32 %v1338, %v1341
      %v1343 = vrot.slane %v1342, 4
      %v1345 = vshll.u32 %v1222, 16
      %v1347 = vrot.slane %v1345, 5
      %v1348 = vsel %vm1262, %v1343, %v1347
      %v1349 = vshrl.u32 %v1222, 16
      %v1351 = vrot.slane %v1349, 4
      %v1352 = vor.u32 %v1351, %v1347
      %v1353 = vrot.slane %v1352, 4
      %v1355 = vshll.u32 %v1223, 16
      %v1357 = vrot.slane %v1355, 5
      %v1358 = vsel %vm1262, %v1353, %v1357
      %v1360 = vshrl.u32 %v1224, 16
      %v1362 = vrot.slane %v1360, 4
      %v1363 = vshll.u32 %v1224, 16
      %v1365 = vrot.slane %v1363, 5
      %v1366 = vor.u32 %v1362, %v1365
      %v1367 = vrot.slane %v1366, 4
      %v1369 = vshll.u32 %v1225, 16
      %v1371 = vrot.slane %v1369, 5
      %v1372 = vsel %vm1262, %v1367, %v1371
      %v1373 = vshrl.u32 %v1225, 16
      %v1375 = vrot.slane %v1373, 4
      %v1376 = vor.u32 %v1375, %v1371
      %v1377 = vrot.slane %v1376, 4
      %v1379 = vshll.u32 %v1226, 16
      %v1381 = vrot.slane %v1379, 5
      %v1382 = vsel %vm1262, %v1377, %v1381
      %v1384 = vshrl.u32 %v1227, 16
      %v1386 = vrot.slane %v1384, 4
      %v1387 = vshll.u32 %v1227, 16
      %v1389 = vrot.slane %v1387, 5
      %v1390 = vor.u32 %v1386, %v1389
      %v1391 = vrot.slane %v1390, 4
      %v1393 = vshll.u32 %v1228, 16
      %v1395 = vrot.slane %v1393, 5
      %v1396 = vsel %vm1262, %v1391, %v1395
      %v1397 = vshrl.u32 %v1228, 16
      %v1399 = vrot.slane %v1397, 4
      %v1400 = vor.u32 %v1399, %v1395
      %v1401 = vrot.slane %v1400, 4
      %v1403 = vshll.u32 %v1229, 16
      %v1405 = vrot.slane %v1403, 5
      %v1406 = vsel %vm1262, %v1401, %v1405
      %v1408 = vshrl.u32 %v1230, 16
      %v1410 = vrot.slane %v1408, 4
      %v1411 = vshll.u32 %v1230, 16
      %v1413 = vrot.slane %v1411, 5
      %v1414 = vor.u32 %v1410, %v1413
      %v1415 = vrot.slane %v1414, 4
      %v1417 = vshll.u32 %v1231, 16
      %v1419 = vrot.slane %v1417, 5
      %v1420 = vsel %vm1262, %v1415, %v1419
      %v1421 = vshrl.u32 %v1231, 16
      %v1423 = vrot.slane %v1421, 4
      %v1424 = vor.u32 %v1423, %v1419
      %v1425 = vrot.slane %v1424, 4
      %v1427 = vshll.u32 %v1232, 16
      %v1429 = vrot.slane %v1427, 5
      %v1430 = vsel %vm1262, %v1425, %v1429
      %v1432 = vshrl.u32 %v1233, 16
      %v1434 = vrot.slane %v1432, 4
      %v1435 = vshll.u32 %v1233, 16
      %v1437 = vrot.slane %v1435, 5
      %v1438 = vor.u32 %v1434, %v1437
      %v1439 = vrot.slane %v1438, 4
      %v1441 = vshll.u32 %v1234, 16
      %v1443 = vrot.slane %v1441, 5
      %v1444 = vsel %vm1262, %v1439, %v1443
      %v1445 = vshrl.u32 %v1234, 16
      %v1447 = vrot.slane %v1445, 4
      %v1448 = vor.u32 %v1447, %v1443
      %v1449 = vrot.slane %v1448, 4
      %v1451 = vshll.u32 %v1235, 16
      %v1453 = vrot.slane %v1451, 5
      %v1454 = vsel %vm1262, %v1449, %v1453
      %v1456 = vshrl.u32 %v1236, 16
      %v1458 = vrot.slane %v1456, 4
      %v1459 = vshll.u32 %v1236, 16
      %v1461 = vrot.slane %v1459, 5
      %v1462 = vor.u32 %v1458, %v1461
      %v1463 = vrot.slane %v1462, 4
      %v1465 = vshll.u32 %v1237, 16
      %v1467 = vrot.slane %v1465, 5
      %v1468 = vsel %vm1262, %v1463, %v1467
      %v1469 = vshrl.u32 %v1237, 16
      %v1471 = vrot.slane %v1469, 4
      %v1472 = vor.u32 %v1471, %v1467
      %v1473 = vrot.slane %v1472, 4
      %v1475 = vshll.u32 %v1238, 16
      %v1477 = vrot.slane %v1475, 5
      %v1478 = vsel %vm1262, %v1473, %v1477
      %v1480 = vshrl.u32 %v1239, 16
      %v1482 = vrot.slane %v1480, 4
      %v1483 = vshll.u32 %v1239, 16
      %v1485 = vrot.slane %v1483, 5
      %v1486 = vor.u32 %v1482, %v1485
      %v1487 = vrot.slane %v1486, 4
      %v1489 = vshll.u32 %v1240, 16
      %v1491 = vrot.slane %v1489, 5
      %v1492 = vsel %vm1262, %v1487, %v1491
      %v1493 = vshrl.u32 %v1240, 16
      %v1495 = vrot.slane %v1493, 4
      %v1496 = vor.u32 %v1495, %v1491
      %v1497 = vrot.slane %v1496, 4
      %v1499 = vshll.u32 %v1241, 16
      %v1501 = vrot.slane %v1499, 5
      %v1502 = vsel %vm1262, %v1497, %v1501
      %v1504 = vshrl.u32 %v1242, 16
      %v1506 = vrot.slane %v1504, 4
      %v1507 = vshll.u32 %v1242, 16
      %v1509 = vrot.slane %v1507, 5
      %v1510 = vor.u32 %v1506, %v1509
      %v1511 = vrot.slane %v1510, 4
      %v1513 = vshll.u32 %v1243, 16
      %v1515 = vrot.slane %v1513, 5
      %v1516 = vsel %vm1262, %v1511, %v1515
      %v1517 = vshrl.u32 %v1243, 16
      %v1519 = vrot.slane %v1517, 4
      %v1520 = vor.u32 %v1519, %v1515
      %v1521 = vrot.slane %v1520, 4
      %v1523 = vshll.u32 %v1244, 16
      %v1525 = vrot.slane %v1523, 5
      %v1526 = vsel %vm1262, %v1521, %v1525
      %v1528 = vshrl.u32 %v1245, 16
      %v1530 = vrot.slane %v1528, 4
      %v1531 = vshll.u32 %v1245, 16
      %v1533 = vrot.slane %v1531, 5
      %v1534 = vor.u32 %v1530, %v1533
      %v1535 = vrot.slane %v1534, 4
      %v1537 = vshll.u32 %v1246, 16
      %v1539 = vrot.slane %v1537, 5
      %v1540 = vsel %vm1262, %v1535, %v1539
      %v1541 = vshrl.u32 %v1246, 16
      %v1543 = vrot.slane %v1541, 4
      %v1544 = vor.u32 %v1543, %v1539
      %v1545 = vrot.slane %v1544, 4
      %v1547 = vshll.u32 %v1247, 16
      %v1549 = vrot.slane %v1547, 5
      %v1550 = vsel %vm1262, %v1545, %v1549
      %v1552 = vshrl.u32 %v1248, 16
      %v1554 = vrot.slane %v1552, 4
      %v1555 = vshll.u32 %v1248, 16
      %v1557 = vrot.slane %v1555, 5
      %v1558 = vor.u32 %v1554, %v1557
      %v1559 = vrot.slane %v1558, 4
      %v1561 = vshll.u32 %v1249, 16
      %v1563 = vrot.slane %v1561, 5
      %v1564 = vsel %vm1262, %v1559, %v1563
      %v1565 = vshrl.u32 %v1249, 16
      %v1567 = vrot.slane %v1565, 4
      %v1568 = vor.u32 %v1567, %v1563
      %v1569 = vrot.slane %v1568, 4
      %v1571 = vshll.u32 %v1250, 16
      %v1573 = vrot.slane %v1571, 5
      %v1574 = vsel %vm1262, %v1569, %v1573
      %v1576 = vshrl.u32 %v1251, 16
      %v1578 = vrot.slane %v1576, 4
      %v1579 = vshll.u32 %v1251, 16
      %v1581 = vrot.slane %v1579, 5
      %v1582 = vor.u32 %v1578, %v1581
      %v1583 = vrot.slane %v1582, 4
      %v1585 = vshll.u32 %v1252, 16
      %v1587 = vrot.slane %v1585, 5
      %v1588 = vsel %vm1262, %v1583, %v1587
      %v1589 = vshrl.u32 %v1252, 16
      %v1591 = vrot.slane %v1589, 4
      %v1592 = vor.u32 %v1591, %v1587
      %v1593 = vrot.slane %v1592, 4
      %v1595 = vshll.u32 %v1253, 16
      %v1597 = vrot.slane %v1595, 5
      %v1598 = vsel %vm1262, %v1593, %v1597
      %v1600 = vshrl.u32 %v1254, 16
      %v1602 = vrot.slane %v1600, 4
      %v1603 = vshll.u32 %v1254, 16
      %v1605 = vrot.slane %v1603, 5
      %v1606 = vor.u32 %v1602, %v1605
      %v1607 = vrot.slane %v1606, 4
      %v1609 = vshll.u32 %v1255, 16
      %v1611 = vrot.slane %v1609, 5
      %v1612 = vsel %vm1262, %v1607, %v1611
      %v1613 = vshrl.u32 %v1255, 16
      %v1615 = vrot.slane %v1613, 4
      %v1616 = vor.u32 %v1615, %v1611
      %v1617 = vrot.slane %v1616, 4
      %v1619 = vshll.u32 %v1256, 16
      %v1621 = vrot.slane %v1619, 5
      %v1622 = vsel %vm1262, %v1617, %v1621
      %v1624 = vshrl.u32 %v1257, 16
      %v1626 = vrot.slane %v1624, 4
      %v1627 = vshll.u32 %v1257, 16
      %v1629 = vrot.slane %v1627, 5
      %v1630 = vor.u32 %v1626, %v1629
      %v1631 = vrot.slane %v1630, 4
      %v1633 = vshll.u32 %v1258, 16
      %v1635 = vrot.slane %v1633, 5
      %v1636 = vsel %vm1262, %v1631, %v1635
      %v1637 = vshrl.u32 %v1258, 16
      %v1639 = vrot.slane %v1637, 4
      %v1640 = vor.u32 %v1639, %v1635
      %v1641 = vrot.slane %v1640, 4
      %v1643 = vshll.u32 %v1259, 16
      %v1645 = vrot.slane %v1643, 5
      %v1646 = vsel %vm1262, %v1641, %v1645
      %v1647 = vunpack.c.l.b16 %v1276
      %v1648 = vunpack.c.l.b16 %v1286
      %v1649 = vunpack.c.l.b16 %v1300
      %v1650 = vunpack.c.l.b16 %v1310
      %v1651 = vunpack.c.l.b16 %v1324
      %v1652 = vunpack.c.l.b16 %v1334
      %v1653 = vunpack.c.l.b16 %v1348
      %v1654 = vunpack.c.l.b16 %v1358
      %v1655 = vunpack.c.l.b16 %v1372
      %v1656 = vunpack.c.l.b16 %v1382
      %v1657 = vunpack.c.l.b16 %v1396
      %v1658 = vunpack.c.l.b16 %v1406
      %v1659 = vunpack.c.l.b16 %v1420
      %v1660 = vunpack.c.l.b16 %v1430
      %v1661 = vunpack.c.l.b16 %v1444
      %v1662 = vunpack.c.l.b16 %v1454
      %v1663 = vunpack.c.l.b16 %v1468
      %v1664 = vunpack.c.l.b16 %v1478
      %v1665 = vunpack.c.l.b16 %v1492
      %v1666 = vunpack.c.l.b16 %v1502
      %v1667 = vunpack.c.l.b16 %v1516
      %v1668 = vunpack.c.l.b16 %v1526
      %v1669 = vunpack.c.l.b16 %v1540
      %v1670 = vunpack.c.l.b16 %v1550
      %v1671 = vunpack.c.l.b16 %v1564
      %v1672 = vunpack.c.l.b16 %v1574
      %v1673 = vunpack.c.l.b16 %v1588
      %v1674 = vunpack.c.l.b16 %v1598
      %v1675 = vunpack.c.l.b16 %v1612
      %v1676 = vunpack.c.l.b16 %v1622
      %v1677 = vunpack.c.l.b16 %v1636
      %v1678 = vunpack.c.l.b16 %v1646
      %v1679 = vpack.c.b16 %v1648, %v1647
      %v1680 = vpack.c.b16 %v1650, %v1649
      %v1681 = vpack.c.b16 %v1652, %v1651
      %v1682 = vpack.c.b16 %v1654, %v1653
      %v1683 = vpack.c.b16 %v1656, %v1655
      %v1684 = vpack.c.b16 %v1658, %v1657
      %v1685 = vpack.c.b16 %v1660, %v1659
      %v1686 = vpack.c.b16 %v1662, %v1661
      %v1687 = vpack.c.b16 %v1664, %v1663
      %v1688 = vpack.c.b16 %v1666, %v1665
      %v1689 = vpack.c.b16 %v1668, %v1667
      %v1690 = vpack.c.b16 %v1670, %v1669
      %v1691 = vpack.c.b16 %v1672, %v1671
      %v1692 = vpack.c.b16 %v1674, %v1673
      %v1693 = vpack.c.b16 %v1676, %v1675
      %v1694 = vpack.c.b16 %v1678, %v1677
      %1711 = vst [vmem:[#allocation3 + $0x8] sm:$0xff] %v1679
      %1712 = vst [vmem:[#allocation3 + $0x50] sm:$0xff] %v1680
      %1713 = vst [vmem:[#allocation3 + $0x98] sm:$0xff] %v1681
      %1714 = vst [vmem:[#allocation3 + $0xe0] sm:$0xff] %v1682
      %1715 = vst [vmem:[#allocation3 + $0x128] sm:$0xff] %v1683
      %1716 = vst [vmem:[#allocation3 + $0x170] sm:$0xff] %v1684
      %1717 = vst [vmem:[#allocation3 + $0x1b8] sm:$0xff] %v1685
      %1718 = vst [vmem:[#allocation3 + $0x200] sm:$0xff] %v1686
      %1719 = vst [vmem:[#allocation3 + $0x248] sm:$0xff] %v1687
      %1720 = vst [vmem:[#allocation3 + $0x290] sm:$0xff] %v1688
      %1721 = vst [vmem:[#allocation3 + $0x2d8] sm:$0xff] %v1689
      %1722 = vst [vmem:[#allocation3 + $0x320] sm:$0xff] %v1690
      %1723 = vst [vmem:[#allocation3 + $0x368] sm:$0xff] %v1691
      %1724 = vst [vmem:[#allocation3 + $0x3b0] sm:$0xff] %v1692
      %1725 = vst [vmem:[#allocation3 + $0x3f8] sm:$0xff] %v1693
      %1726 = vst [vmem:[#allocation3 + $0x440] sm:$0xff] %v1694
      %v1727 = vld [vmem:[#allocation2] sm:$0xe]
      %v1728 = vld [vmem:[#allocation2 + $0x4] sm:$0xf]
      %v1729 = vld [vmem:[#allocation2 + $0x8] sm:$0x1]
      %v1730 = vld [vmem:[#allocation2 + $0xc] sm:$0xe]
      %v1731 = vld [vmem:[#allocation2 + $0x10] sm:$0xf]
      %v1732 = vld [vmem:[#allocation2 + $0x14] sm:$0x1]
      %v1733 = vld [vmem:[#allocation2 + $0x18] sm:$0xe]
      %v1734 = vld [vmem:[#allocation2 + $0x1c] sm:$0xf]
      %v1735 = vld [vmem:[#allocation2 + $0x20] sm:$0x1]
      %v1736 = vld [vmem:[#allocation2 + $0x24] sm:$0xe]
      %v1737 = vld [vmem:[#allocation2 + $0x28] sm:$0xf]
      %v1738 = vld [vmem:[#allocation2 + $0x2c] sm:$0x1]
      %v1739 = vld [vmem:[#allocation2 + $0x30] sm:$0xe]
      %v1740 = vld [vmem:[#allocation2 + $0x34] sm:$0xf]
      %v1741 = vld [vmem:[#allocation2 + $0x38] sm:$0x1]
      %v1742 = vld [vmem:[#allocation2 + $0x3c] sm:$0xe]
      %v1743 = vld [vmem:[#allocation2 + $0x40] sm:$0xf]
      %v1744 = vld [vmem:[#allocation2 + $0x44] sm:$0x1]
      %v1745 = vld [vmem:[#allocation2 + $0x48] sm:$0xe]
      %v1746 = vld [vmem:[#allocation2 + $0x4c] sm:$0xf]
      %v1747 = vld [vmem:[#allocation2 + $0x50] sm:$0x1]
      %v1748 = vld [vmem:[#allocation2 + $0x54] sm:$0xe]
      %v1749 = vld [vmem:[#allocation2 + $0x58] sm:$0xf]
      %v1750 = vld [vmem:[#allocation2 + $0x5c] sm:$0x1]
      %v1751 = vld [vmem:[#allocation2 + $0x60] sm:$0xe]
      %v1752 = vld [vmem:[#allocation2 + $0x64] sm:$0xf]
      %v1753 = vld [vmem:[#allocation2 + $0x68] sm:$0x1]
      %v1754 = vld [vmem:[#allocation2 + $0x6c] sm:$0xe]
      %v1755 = vld [vmem:[#allocation2 + $0x70] sm:$0xf]
      %v1756 = vld [vmem:[#allocation2 + $0x74] sm:$0x1]
      %v1757 = vld [vmem:[#allocation2 + $0x78] sm:$0xe]
      %v1758 = vld [vmem:[#allocation2 + $0x7c] sm:$0xf]
      %v1759 = vld [vmem:[#allocation2 + $0x80] sm:$0x1]
      %v1760 = vld [vmem:[#allocation2 + $0x84] sm:$0xe]
      %v1761 = vld [vmem:[#allocation2 + $0x88] sm:$0xf]
      %v1762 = vld [vmem:[#allocation2 + $0x8c] sm:$0x1]
      %v1763 = vld [vmem:[#allocation2 + $0x90] sm:$0xe]
      %v1764 = vld [vmem:[#allocation2 + $0x94] sm:$0xf]
      %v1765 = vld [vmem:[#allocation2 + $0x98] sm:$0x1]
      %v1766 = vld [vmem:[#allocation2 + $0x9c] sm:$0xe]
      %v1767 = vld [vmem:[#allocation2 + $0xa0] sm:$0xf]
      %v1768 = vld [vmem:[#allocation2 + $0xa4] sm:$0x1]
      %v1769 = vld [vmem:[#allocation2 + $0xa8] sm:$0xe]
      %v1770 = vld [vmem:[#allocation2 + $0xac] sm:$0xf]
      %v1771 = vld [vmem:[#allocation2 + $0xb0] sm:$0x1]
      %v1772 = vld [vmem:[#allocation2 + $0xb4] sm:$0xe]
      %v1773 = vld [vmem:[#allocation2 + $0xb8] sm:$0xf]
      %v1774 = vld [vmem:[#allocation2 + $0xbc] sm:$0x1]
      %vm1823 = vcmask 1042432
      %vm1824 = vcmask 1046532
      %vm1825 = vmor %vm1823, %vm1824
      %v1826 = vrot.slane %v1727, 5
      %v1827 = vrot.slane %v1826, 4
      %v1828 = vrot.slane %v1728, 5
      %v1829 = vsel %vm1825, %v1827, %v1828
      %v1830 = vrot.slane %v1828, 4
      %v1831 = vrot.slane %v1729, 5
      %v1832 = vsel %vm1825, %v1830, %v1831
      %v1833 = vrot.slane %v1730, 5
      %v1834 = vrot.slane %v1833, 4
      %v1835 = vrot.slane %v1731, 5
      %v1836 = vsel %vm1825, %v1834, %v1835
      %v1837 = vrot.slane %v1835, 4
      %v1838 = vrot.slane %v1732, 5
      %v1839 = vsel %vm1825, %v1837, %v1838
      %v1840 = vrot.slane %v1733, 5
      %v1841 = vrot.slane %v1840, 4
      %v1842 = vrot.slane %v1734, 5
      %v1843 = vsel %vm1825, %v1841, %v1842
      %v1844 = vrot.slane %v1842, 4
      %v1845 = vrot.slane %v1735, 5
      %v1846 = vsel %vm1825, %v1844, %v1845
      %v1847 = vrot.slane %v1736, 5
      %v1848 = vrot.slane %v1847, 4
      %v1849 = vrot.slane %v1737, 5
      %v1850 = vsel %vm1825, %v1848, %v1849
      %v1851 = vrot.slane %v1849, 4
      %v1852 = vrot.slane %v1738, 5
      %v1853 = vsel %vm1825, %v1851, %v1852
      %v1854 = vrot.slane %v1739, 5
      %v1855 = vrot.slane %v1854, 4
      %v1856 = vrot.slane %v1740, 5
      %v1857 = vsel %vm1825, %v1855, %v1856
      %v1858 = vrot.slane %v1856, 4
      %v1859 = vrot.slane %v1741, 5
      %v1860 = vsel %vm1825, %v1858, %v1859
      %v1861 = vrot.slane %v1742, 5
      %v1862 = vrot.slane %v1861, 4
      %v1863 = vrot.slane %v1743, 5
      %v1864 = vsel %vm1825, %v1862, %v1863
      %v1865 = vrot.slane %v1863, 4
      %v1866 = vrot.slane %v1744, 5
      %v1867 = vsel %vm1825, %v1865, %v1866
      %v1868 = vrot.slane %v1745, 5
      %v1869 = vrot.slane %v1868, 4
      %v1870 = vrot.slane %v1746, 5
      %v1871 = vsel %vm1825, %v1869, %v1870
      %v1872 = vrot.slane %v1870, 4
      %v1873 = vrot.slane %v1747, 5
      %v1874 = vsel %vm1825, %v1872, %v1873
      %v1875 = vrot.slane %v1748, 5
      %v1876 = vrot.slane %v1875, 4
      %v1877 = vrot.slane %v1749, 5
      %v1878 = vsel %vm1825, %v1876, %v1877
      %v1879 = vrot.slane %v1877, 4
      %v1880 = vrot.slane %v1750, 5
      %v1881 = vsel %vm1825, %v1879, %v1880
      %v1882 = vrot.slane %v1751, 5
      %v1883 = vrot.slane %v1882, 4
      %v1884 = vrot.slane %v1752, 5
      %v1885 = vsel %vm1825, %v1883, %v1884
      %v1886 = vrot.slane %v1884, 4
      %v1887 = vrot.slane %v1753, 5
      %v1888 = vsel %vm1825, %v1886, %v1887
      %v1889 = vrot.slane %v1754, 5
      %v1890 = vrot.slane %v1889, 4
      %v1891 = vrot.slane %v1755, 5
      %v1892 = vsel %vm1825, %v1890, %v1891
      %v1893 = vrot.slane %v1891, 4
      %v1894 = vrot.slane %v1756, 5
      %v1895 = vsel %vm1825, %v1893, %v1894
      %v1896 = vrot.slane %v1757, 5
      %v1897 = vrot.slane %v1896, 4
      %v1898 = vrot.slane %v1758, 5
      %v1899 = vsel %vm1825, %v1897, %v1898
      %v1900 = vrot.slane %v1898, 4
      %v1901 = vrot.slane %v1759, 5
      %v1902 = vsel %vm1825, %v1900, %v1901
      %v1903 = vrot.slane %v1760, 5
      %v1904 = vrot.slane %v1903, 4
      %v1905 = vrot.slane %v1761, 5
      %v1906 = vsel %vm1825, %v1904, %v1905
      %v1907 = vrot.slane %v1905, 4
      %v1908 = vrot.slane %v1762, 5
      %v1909 = vsel %vm1825, %v1907, %v1908
      %v1910 = vrot.slane %v1763, 5
      %v1911 = vrot.slane %v1910, 4
      %v1912 = vrot.slane %v1764, 5
      %v1913 = vsel %vm1825, %v1911, %v1912
      %v1914 = vrot.slane %v1912, 4
      %v1915 = vrot.slane %v1765, 5
      %v1916 = vsel %vm1825, %v1914, %v1915
      %v1917 = vrot.slane %v1766, 5
      %v1918 = vrot.slane %v1917, 4
      %v1919 = vrot.slane %v1767, 5
      %v1920 = vsel %vm1825, %v1918, %v1919
      %v1921 = vrot.slane %v1919, 4
      %v1922 = vrot.slane %v1768, 5
      %v1923 = vsel %vm1825, %v1921, %v1922
      %v1924 = vrot.slane %v1769, 5
      %v1925 = vrot.slane %v1924, 4
      %v1926 = vrot.slane %v1770, 5
      %v1927 = vsel %vm1825, %v1925, %v1926
      %v1928 = vrot.slane %v1926, 4
      %v1929 = vrot.slane %v1771, 5
      %v1930 = vsel %vm1825, %v1928, %v1929
      %v1931 = vrot.slane %v1772, 5
      %v1932 = vrot.slane %v1931, 4
      %v1933 = vrot.slane %v1773, 5
      %v1934 = vsel %vm1825, %v1932, %v1933
      %v1935 = vrot.slane %v1933, 4
      %v1936 = vrot.slane %v1774, 5
      %v1937 = vsel %vm1825, %v1935, %v1936
      %v1938 = vunpack.c.l.b16 %v1829
      %v1939 = vunpack.c.l.b16 %v1832
      %v1940 = vunpack.c.l.b16 %v1836
      %v1941 = vunpack.c.l.b16 %v1839
      %v1942 = vunpack.c.l.b16 %v1843
      %v1943 = vunpack.c.l.b16 %v1846
      %v1944 = vunpack.c.l.b16 %v1850
      %v1945 = vunpack.c.l.b16 %v1853
      %v1946 = vunpack.c.l.b16 %v1857
      %v1947 = vunpack.c.l.b16 %v1860
      %v1948 = vunpack.c.l.b16 %v1864
      %v1949 = vunpack.c.l.b16 %v1867
      %v1950 = vunpack.c.l.b16 %v1871
      %v1951 = vunpack.c.l.b16 %v1874
      %v1952 = vunpack.c.l.b16 %v1878
      %v1953 = vunpack.c.l.b16 %v1881
      %v1954 = vunpack.c.l.b16 %v1885
      %v1955 = vunpack.c.l.b16 %v1888
      %v1956 = vunpack.c.l.b16 %v1892
      %v1957 = vunpack.c.l.b16 %v1895
      %v1958 = vunpack.c.l.b16 %v1899
      %v1959 = vunpack.c.l.b16 %v1902
      %v1960 = vunpack.c.l.b16 %v1906
      %v1961 = vunpack.c.l.b16 %v1909
      %v1962 = vunpack.c.l.b16 %v1913
      %v1963 = vunpack.c.l.b16 %v1916
      %v1964 = vunpack.c.l.b16 %v1920
      %v1965 = vunpack.c.l.b16 %v1923
      %v1966 = vunpack.c.l.b16 %v1927
      %v1967 = vunpack.c.l.b16 %v1930
      %v1968 = vunpack.c.l.b16 %v1934
      %v1969 = vunpack.c.l.b16 %v1937
      %v1970 = vpack.c.b16 %v1939, %v1938
      %v1971 = vpack.c.b16 %v1941, %v1940
      %v1972 = vpack.c.b16 %v1943, %v1942
      %v1973 = vpack.c.b16 %v1945, %v1944
      %v1974 = vpack.c.b16 %v1947, %v1946
      %v1975 = vpack.c.b16 %v1949, %v1948
      %v1976 = vpack.c.b16 %v1951, %v1950
      %v1977 = vpack.c.b16 %v1953, %v1952
      %v1978 = vpack.c.b16 %v1955, %v1954
      %v1979 = vpack.c.b16 %v1957, %v1956
      %v1980 = vpack.c.b16 %v1959, %v1958
      %v1981 = vpack.c.b16 %v1961, %v1960
      %v1982 = vpack.c.b16 %v1963, %v1962
      %v1983 = vpack.c.b16 %v1965, %v1964
      %v1984 = vpack.c.b16 %v1967, %v1966
      %v1985 = vpack.c.b16 %v1969, %v1968
      %2002 = vst [vmem:[#allocation3 + $0x10] sm:$0xff] %v1970
      %2003 = vst [vmem:[#allocation3 + $0x58] sm:$0xff] %v1971
      %2004 = vst [vmem:[#allocation3 + $0xa0] sm:$0xff] %v1972
      %2005 = vst [vmem:[#allocation3 + $0xe8] sm:$0xff] %v1973
      %2006 = vst [vmem:[#allocation3 + $0x130] sm:$0xff] %v1974
      %2007 = vst [vmem:[#allocation3 + $0x178] sm:$0xff] %v1975
      %2008 = vst [vmem:[#allocation3 + $0x1c0] sm:$0xff] %v1976
      %2009 = vst [vmem:[#allocation3 + $0x208] sm:$0xff] %v1977
      %2010 = vst [vmem:[#allocation3 + $0x250] sm:$0xff] %v1978
      %2011 = vst [vmem:[#allocation3 + $0x298] sm:$0xff] %v1979
      %2012 = vst [vmem:[#allocation3 + $0x2e0] sm:$0xff] %v1980
      %2013 = vst [vmem:[#allocation3 + $0x328] sm:$0xff] %v1981
      %2014 = vst [vmem:[#allocation3 + $0x370] sm:$0xff] %v1982
      %2015 = vst [vmem:[#allocation3 + $0x3b8] sm:$0xff] %v1983
      %2016 = vst [vmem:[#allocation3 + $0x400] sm:$0xff] %v1984
      %2017 = vst [vmem:[#allocation3 + $0x448] sm:$0xff] %v1985
      %v2018 = vld [vmem:[%s953] sm:$0xf]
      %v2019 = vld [vmem:[%s953 + $0x4] sm:$0xf]
      %v2020 = vld [vmem:[%s953 + $0xc] sm:$0xf]
      %v2021 = vld [vmem:[%s953 + $0x10] sm:$0xf]
      %v2022 = vld [vmem:[%s953 + $0x18] sm:$0xf]
      %v2023 = vld [vmem:[%s953 + $0x1c] sm:$0xf]
      %v2024 = vld [vmem:[%s953 + $0x24] sm:$0xf]
      %v2025 = vld [vmem:[%s953 + $0x28] sm:$0xf]
      %v2026 = vld [vmem:[%s953 + $0x30] sm:$0xf]
      %v2027 = vld [vmem:[%s953 + $0x34] sm:$0xf]
      %v2028 = vld [vmem:[%s953 + $0x3c] sm:$0xf]
      %v2029 = vld [vmem:[%s953 + $0x40] sm:$0xf]
      %v2030 = vld [vmem:[%s953 + $0x48] sm:$0xf]
      %v2031 = vld [vmem:[%s953 + $0x4c] sm:$0xf]
      %v2032 = vld [vmem:[%s953 + $0x54] sm:$0xf]
      %v2033 = vld [vmem:[%s953 + $0x58] sm:$0xf]
      %v2034 = vld [vmem:[%s953 + $0x60] sm:$0xf]
      %v2035 = vld [vmem:[%s953 + $0x64] sm:$0xf]
      %v2036 = vld [vmem:[%s953 + $0x6c] sm:$0xf]
      %v2037 = vld [vmem:[%s953 + $0x70] sm:$0xf]
      %v2038 = vld [vmem:[%s953 + $0x78] sm:$0xf]
      %v2039 = vld [vmem:[%s953 + $0x7c] sm:$0xf]
      %v2040 = vld [vmem:[%s953 + $0x84] sm:$0xf]
      %v2041 = vld [vmem:[%s953 + $0x88] sm:$0xf]
      %v2042 = vld [vmem:[%s953 + $0x90] sm:$0xf]
      %v2043 = vld [vmem:[%s953 + $0x94] sm:$0xf]
      %v2044 = vld [vmem:[%s953 + $0x9c] sm:$0xf]
      %v2045 = vld [vmem:[%s953 + $0xa0] sm:$0xf]
      %v2046 = vld [vmem:[%s953 + $0xa8] sm:$0xf]
      %v2047 = vld [vmem:[%s953 + $0xac] sm:$0xf]
      %v2048 = vld [vmem:[%s953 + $0xb4] sm:$0xf]
      %v2049 = vld [vmem:[%s953 + $0xb8] sm:$0xf]
      %v2082 = vunpack.c.l.b16 %v2018
      %v2083 = vunpack.c.l.b16 %v2019
      %v2084 = vunpack.c.l.b16 %v2020
      %v2085 = vunpack.c.l.b16 %v2021
      %v2086 = vunpack.c.l.b16 %v2022
      %v2087 = vunpack.c.l.b16 %v2023
      %v2088 = vunpack.c.l.b16 %v2024
      %v2089 = vunpack.c.l.b16 %v2025
      %v2090 = vunpack.c.l.b16 %v2026
      %v2091 = vunpack.c.l.b16 %v2027
      %v2092 = vunpack.c.l.b16 %v2028
      %v2093 = vunpack.c.l.b16 %v2029
      %v2094 = vunpack.c.l.b16 %v2030
      %v2095 = vunpack.c.l.b16 %v2031
      %v2096 = vunpack.c.l.b16 %v2032
      %v2097 = vunpack.c.l.b16 %v2033
      %v2098 = vunpack.c.l.b16 %v2034
      %v2099 = vunpack.c.l.b16 %v2035
      %v2100 = vunpack.c.l.b16 %v2036
      %v2101 = vunpack.c.l.b16 %v2037
      %v2102 = vunpack.c.l.b16 %v2038
      %v2103 = vunpack.c.l.b16 %v2039
      %v2104 = vunpack.c.l.b16 %v2040
      %v2105 = vunpack.c.l.b16 %v2041
      %v2106 = vunpack.c.l.b16 %v2042
      %v2107 = vunpack.c.l.b16 %v2043
      %v2108 = vunpack.c.l.b16 %v2044
      %v2109 = vunpack.c.l.b16 %v2045
      %v2110 = vunpack.c.l.b16 %v2046
      %v2111 = vunpack.c.l.b16 %v2047
      %v2112 = vunpack.c.l.b16 %v2048
      %v2113 = vunpack.c.l.b16 %v2049
      %v2114 = vpack.c.b16 %v2083, %v2082
      %v2115 = vpack.c.b16 %v2085, %v2084
      %v2116 = vpack.c.b16 %v2087, %v2086
      %v2117 = vpack.c.b16 %v2089, %v2088
      %v2118 = vpack.c.b16 %v2091, %v2090
      %v2119 = vpack.c.b16 %v2093, %v2092
      %v2120 = vpack.c.b16 %v2095, %v2094
      %v2121 = vpack.c.b16 %v2097, %v2096
      %v2122 = vpack.c.b16 %v2099, %v2098
      %v2123 = vpack.c.b16 %v2101, %v2100
      %v2124 = vpack.c.b16 %v2103, %v2102
      %v2125 = vpack.c.b16 %v2105, %v2104
      %v2126 = vpack.c.b16 %v2107, %v2106
      %v2127 = vpack.c.b16 %v2109, %v2108
      %v2128 = vpack.c.b16 %v2111, %v2110
      %v2129 = vpack.c.b16 %v2113, %v2112
      %2146 = vst [vmem:[#allocation3 + $0x18] sm:$0xff] %v2114
      %2147 = vst [vmem:[#allocation3 + $0x60] sm:$0xff] %v2115
      %2148 = vst [vmem:[#allocation3 + $0xa8] sm:$0xff] %v2116
      %2149 = vst [vmem:[#allocation3 + $0xf0] sm:$0xff] %v2117
      %2150 = vst [vmem:[#allocation3 + $0x138] sm:$0xff] %v2118
      %2151 = vst [vmem:[#allocation3 + $0x180] sm:$0xff] %v2119
      %2152 = vst [vmem:[#allocation3 + $0x1c8] sm:$0xff] %v2120
      %2153 = vst [vmem:[#allocation3 + $0x210] sm:$0xff] %v2121
      %2154 = vst [vmem:[#allocation3 + $0x258] sm:$0xff] %v2122
      %2155 = vst [vmem:[#allocation3 + $0x2a0] sm:$0xff] %v2123
      %2156 = vst [vmem:[#allocation3 + $0x2e8] sm:$0xff] %v2124
      %2157 = vst [vmem:[#allocation3 + $0x330] sm:$0xff] %v2125
      %2158 = vst [vmem:[#allocation3 + $0x378] sm:$0xff] %v2126
      %2159 = vst [vmem:[#allocation3 + $0x3c0] sm:$0xff] %v2127
      %2160 = vst [vmem:[#allocation3 + $0x408] sm:$0xff] %v2128
      %2161 = vst [vmem:[#allocation3 + $0x450] sm:$0xff] %v2129
      %v2162 = vld [vmem:[%s953] sm:$0xf]
      %v2163 = vld [vmem:[%s953 + $0x4] sm:$0xf]
      %v2164 = vld [vmem:[%s953 + $0x8] sm:$0x1]
      %v2165 = vld [vmem:[%s953 + $0xc] sm:$0xf]
      %v2166 = vld [vmem:[%s953 + $0x10] sm:$0xf]
      %v2167 = vld [vmem:[%s953 + $0x14] sm:$0x1]
      %v2168 = vld [vmem:[%s953 + $0x18] sm:$0xf]
      %v2169 = vld [vmem:[%s953 + $0x1c] sm:$0xf]
      %v2170 = vld [vmem:[%s953 + $0x20] sm:$0x1]
      %v2171 = vld [vmem:[%s953 + $0x24] sm:$0xf]
      %v2172 = vld [vmem:[%s953 + $0x28] sm:$0xf]
      %v2173 = vld [vmem:[%s953 + $0x2c] sm:$0x1]
      %v2174 = vld [vmem:[%s953 + $0x30] sm:$0xf]
      %v2175 = vld [vmem:[%s953 + $0x34] sm:$0xf]
      %v2176 = vld [vmem:[%s953 + $0x38] sm:$0x1]
      %v2177 = vld [vmem:[%s953 + $0x3c] sm:$0xf]
      %v2178 = vld [vmem:[%s953 + $0x40] sm:$0xf]
      %v2179 = vld [vmem:[%s953 + $0x44] sm:$0x1]
      %v2180 = vld [vmem:[%s953 + $0x48] sm:$0xf]
      %v2181 = vld [vmem:[%s953 + $0x4c] sm:$0xf]
      %v2182 = vld [vmem:[%s953 + $0x50] sm:$0x1]
      %v2183 = vld [vmem:[%s953 + $0x54] sm:$0xf]
      %v2184 = vld [vmem:[%s953 + $0x58] sm:$0xf]
      %v2185 = vld [vmem:[%s953 + $0x5c] sm:$0x1]
      %v2186 = vld [vmem:[%s953 + $0x60] sm:$0xf]
      %v2187 = vld [vmem:[%s953 + $0x64] sm:$0xf]
      %v2188 = vld [vmem:[%s953 + $0x68] sm:$0x1]
      %v2189 = vld [vmem:[%s953 + $0x6c] sm:$0xf]
      %v2190 = vld [vmem:[%s953 + $0x70] sm:$0xf]
      %v2191 = vld [vmem:[%s953 + $0x74] sm:$0x1]
      %v2192 = vld [vmem:[%s953 + $0x78] sm:$0xf]
      %v2193 = vld [vmem:[%s953 + $0x7c] sm:$0xf]
      %v2194 = vld [vmem:[%s953 + $0x80] sm:$0x1]
      %v2195 = vld [vmem:[%s953 + $0x84] sm:$0xf]
      %v2196 = vld [vmem:[%s953 + $0x88] sm:$0xf]
      %v2197 = vld [vmem:[%s953 + $0x8c] sm:$0x1]
      %v2198 = vld [vmem:[%s953 + $0x90] sm:$0xf]
      %v2199 = vld [vmem:[%s953 + $0x94] sm:$0xf]
      %v2200 = vld [vmem:[%s953 + $0x98] sm:$0x1]
      %v2201 = vld [vmem:[%s953 + $0x9c] sm:$0xf]
      %v2202 = vld [vmem:[%s953 + $0xa0] sm:$0xf]
      %v2203 = vld [vmem:[%s953 + $0xa4] sm:$0x1]
      %v2204 = vld [vmem:[%s953 + $0xa8] sm:$0xf]
      %v2205 = vld [vmem:[%s953 + $0xac] sm:$0xf]
      %v2206 = vld [vmem:[%s953 + $0xb0] sm:$0x1]
      %v2207 = vld [vmem:[%s953 + $0xb4] sm:$0xf]
      %v2208 = vld [vmem:[%s953 + $0xb8] sm:$0xf]
      %v2209 = vld [vmem:[%s953 + $0xbc] sm:$0x1]
      %v2211 = vshrl.u32 %v2162, 16
      %v2213 = vrot.slane %v2211, 4
      %v2214 = vshll.u32 %v2162, 16
      %v2216 = vrot.slane %v2214, 5
      %v2217 = vor.u32 %v2213, %v2216
      %v2218 = vrot.slane %v2217, 4
      %v2220 = vshll.u32 %v2163, 16
      %v2222 = vrot.slane %v2220, 5
      %v2223 = vsel %vm1262, %v2218, %v2222
      %v2224 = vshrl.u32 %v2163, 16
      %v2226 = vrot.slane %v2224, 4
      %v2227 = vor.u32 %v2226, %v2222
      %v2228 = vrot.slane %v2227, 4
      %v2230 = vshll.u32 %v2164, 16
      %v2232 = vrot.slane %v2230, 5
      %v2233 = vsel %vm1262, %v2228, %v2232
      %v2235 = vshrl.u32 %v2165, 16
      %v2237 = vrot.slane %v2235, 4
      %v2238 = vshll.u32 %v2165, 16
      %v2240 = vrot.slane %v2238, 5
      %v2241 = vor.u32 %v2237, %v2240
      %v2242 = vrot.slane %v2241, 4
      %v2244 = vshll.u32 %v2166, 16
      %v2246 = vrot.slane %v2244, 5
      %v2247 = vsel %vm1262, %v2242, %v2246
      %v2248 = vshrl.u32 %v2166, 16
      %v2250 = vrot.slane %v2248, 4
      %v2251 = vor.u32 %v2250, %v2246
      %v2252 = vrot.slane %v2251, 4
      %v2254 = vshll.u32 %v2167, 16
      %v2256 = vrot.slane %v2254, 5
      %v2257 = vsel %vm1262, %v2252, %v2256
      %v2259 = vshrl.u32 %v2168, 16
      %v2261 = vrot.slane %v2259, 4
      %v2262 = vshll.u32 %v2168, 16
      %v2264 = vrot.slane %v2262, 5
      %v2265 = vor.u32 %v2261, %v2264
      %v2266 = vrot.slane %v2265, 4
      %v2268 = vshll.u32 %v2169, 16
      %v2270 = vrot.slane %v2268, 5
      %v2271 = vsel %vm1262, %v2266, %v2270
      %v2272 = vshrl.u32 %v2169, 16
      %v2274 = vrot.slane %v2272, 4
      %v2275 = vor.u32 %v2274, %v2270
      %v2276 = vrot.slane %v2275, 4
      %v2278 = vshll.u32 %v2170, 16
      %v2280 = vrot.slane %v2278, 5
      %v2281 = vsel %vm1262, %v2276, %v2280
      %v2283 = vshrl.u32 %v2171, 16
      %v2285 = vrot.slane %v2283, 4
      %v2286 = vshll.u32 %v2171, 16
      %v2288 = vrot.slane %v2286, 5
      %v2289 = vor.u32 %v2285, %v2288
      %v2290 = vrot.slane %v2289, 4
      %v2292 = vshll.u32 %v2172, 16
      %v2294 = vrot.slane %v2292, 5
      %v2295 = vsel %vm1262, %v2290, %v2294
      %v2296 = vshrl.u32 %v2172, 16
      %v2298 = vrot.slane %v2296, 4
      %v2299 = vor.u32 %v2298, %v2294
      %v2300 = vrot.slane %v2299, 4
      %v2302 = vshll.u32 %v2173, 16
      %v2304 = vrot.slane %v2302, 5
      %v2305 = vsel %vm1262, %v2300, %v2304
      %v2307 = vshrl.u32 %v2174, 16
      %v2309 = vrot.slane %v2307, 4
      %v2310 = vshll.u32 %v2174, 16
      %v2312 = vrot.slane %v2310, 5
      %v2313 = vor.u32 %v2309, %v2312
      %v2314 = vrot.slane %v2313, 4
      %v2316 = vshll.u32 %v2175, 16
      %v2318 = vrot.slane %v2316, 5
      %v2319 = vsel %vm1262, %v2314, %v2318
      %v2320 = vshrl.u32 %v2175, 16
      %v2322 = vrot.slane %v2320, 4
      %v2323 = vor.u32 %v2322, %v2318
      %v2324 = vrot.slane %v2323, 4
      %v2326 = vshll.u32 %v2176, 16
      %v2328 = vrot.slane %v2326, 5
      %v2329 = vsel %vm1262, %v2324, %v2328
      %v2331 = vshrl.u32 %v2177, 16
      %v2333 = vrot.slane %v2331, 4
      %v2334 = vshll.u32 %v2177, 16
      %v2336 = vrot.slane %v2334, 5
      %v2337 = vor.u32 %v2333, %v2336
      %v2338 = vrot.slane %v2337, 4
      %v2340 = vshll.u32 %v2178, 16
      %v2342 = vrot.slane %v2340, 5
      %v2343 = vsel %vm1262, %v2338, %v2342
      %v2344 = vshrl.u32 %v2178, 16
      %v2346 = vrot.slane %v2344, 4
      %v2347 = vor.u32 %v2346, %v2342
      %v2348 = vrot.slane %v2347, 4
      %v2350 = vshll.u32 %v2179, 16
      %v2352 = vrot.slane %v2350, 5
      %v2353 = vsel %vm1262, %v2348, %v2352
      %v2355 = vshrl.u32 %v2180, 16
      %v2357 = vrot.slane %v2355, 4
      %v2358 = vshll.u32 %v2180, 16
      %v2360 = vrot.slane %v2358, 5
      %v2361 = vor.u32 %v2357, %v2360
      %v2362 = vrot.slane %v2361, 4
      %v2364 = vshll.u32 %v2181, 16
      %v2366 = vrot.slane %v2364, 5
      %v2367 = vsel %vm1262, %v2362, %v2366
      %v2368 = vshrl.u32 %v2181, 16
      %v2370 = vrot.slane %v2368, 4
      %v2371 = vor.u32 %v2370, %v2366
      %v2372 = vrot.slane %v2371, 4
      %v2374 = vshll.u32 %v2182, 16
      %v2376 = vrot.slane %v2374, 5
      %v2377 = vsel %vm1262, %v2372, %v2376
      %v2379 = vshrl.u32 %v2183, 16
      %v2381 = vrot.slane %v2379, 4
      %v2382 = vshll.u32 %v2183, 16
      %v2384 = vrot.slane %v2382, 5
      %v2385 = vor.u32 %v2381, %v2384
      %v2386 = vrot.slane %v2385, 4
      %v2388 = vshll.u32 %v2184, 16
      %v2390 = vrot.slane %v2388, 5
      %v2391 = vsel %vm1262, %v2386, %v2390
      %v2392 = vshrl.u32 %v2184, 16
      %v2394 = vrot.slane %v2392, 4
      %v2395 = vor.u32 %v2394, %v2390
      %v2396 = vrot.slane %v2395, 4
      %v2398 = vshll.u32 %v2185, 16
      %v2400 = vrot.slane %v2398, 5
      %v2401 = vsel %vm1262, %v2396, %v2400
      %v2403 = vshrl.u32 %v2186, 16
      %v2405 = vrot.slane %v2403, 4
      %v2406 = vshll.u32 %v2186, 16
      %v2408 = vrot.slane %v2406, 5
      %v2409 = vor.u32 %v2405, %v2408
      %v2410 = vrot.slane %v2409, 4
      %v2412 = vshll.u32 %v2187, 16
      %v2414 = vrot.slane %v2412, 5
      %v2415 = vsel %vm1262, %v2410, %v2414
      %v2416 = vshrl.u32 %v2187, 16
      %v2418 = vrot.slane %v2416, 4
      %v2419 = vor.u32 %v2418, %v2414
      %v2420 = vrot.slane %v2419, 4
      %v2422 = vshll.u32 %v2188, 16
      %v2424 = vrot.slane %v2422, 5
      %v2425 = vsel %vm1262, %v2420, %v2424
      %v2427 = vshrl.u32 %v2189, 16
      %v2429 = vrot.slane %v2427, 4
      %v2430 = vshll.u32 %v2189, 16
      %v2432 = vrot.slane %v2430, 5
      %v2433 = vor.u32 %v2429, %v2432
      %v2434 = vrot.slane %v2433, 4
      %v2436 = vshll.u32 %v2190, 16
      %v2438 = vrot.slane %v2436, 5
      %v2439 = vsel %vm1262, %v2434, %v2438
      %v2440 = vshrl.u32 %v2190, 16
      %v2442 = vrot.slane %v2440, 4
      %v2443 = vor.u32 %v2442, %v2438
      %v2444 = vrot.slane %v2443, 4
      %v2446 = vshll.u32 %v2191, 16
      %v2448 = vrot.slane %v2446, 5
      %v2449 = vsel %vm1262, %v2444, %v2448
      %v2451 = vshrl.u32 %v2192, 16
      %v2453 = vrot.slane %v2451, 4
      %v2454 = vshll.u32 %v2192, 16
      %v2456 = vrot.slane %v2454, 5
      %v2457 = vor.u32 %v2453, %v2456
      %v2458 = vrot.slane %v2457, 4
      %v2460 = vshll.u32 %v2193, 16
      %v2462 = vrot.slane %v2460, 5
      %v2463 = vsel %vm1262, %v2458, %v2462
      %v2464 = vshrl.u32 %v2193, 16
      %v2466 = vrot.slane %v2464, 4
      %v2467 = vor.u32 %v2466, %v2462
      %v2468 = vrot.slane %v2467, 4
      %v2470 = vshll.u32 %v2194, 16
      %v2472 = vrot.slane %v2470, 5
      %v2473 = vsel %vm1262, %v2468, %v2472
      %v2475 = vshrl.u32 %v2195, 16
      %v2477 = vrot.slane %v2475, 4
      %v2478 = vshll.u32 %v2195, 16
      %v2480 = vrot.slane %v2478, 5
      %v2481 = vor.u32 %v2477, %v2480
      %v2482 = vrot.slane %v2481, 4
      %v2484 = vshll.u32 %v2196, 16
      %v2486 = vrot.slane %v2484, 5
      %v2487 = vsel %vm1262, %v2482, %v2486
      %v2488 = vshrl.u32 %v2196, 16
      %v2490 = vrot.slane %v2488, 4
      %v2491 = vor.u32 %v2490, %v2486
      %v2492 = vrot.slane %v2491, 4
      %v2494 = vshll.u32 %v2197, 16
      %v2496 = vrot.slane %v2494, 5
      %v2497 = vsel %vm1262, %v2492, %v2496
      %v2499 = vshrl.u32 %v2198, 16
      %v2501 = vrot.slane %v2499, 4
      %v2502 = vshll.u32 %v2198, 16
      %v2504 = vrot.slane %v2502, 5
      %v2505 = vor.u32 %v2501, %v2504
      %v2506 = vrot.slane %v2505, 4
      %v2508 = vshll.u32 %v2199, 16
      %v2510 = vrot.slane %v2508, 5
      %v2511 = vsel %vm1262, %v2506, %v2510
      %v2512 = vshrl.u32 %v2199, 16
      %v2514 = vrot.slane %v2512, 4
      %v2515 = vor.u32 %v2514, %v2510
      %v2516 = vrot.slane %v2515, 4
      %v2518 = vshll.u32 %v2200, 16
      %v2520 = vrot.slane %v2518, 5
      %v2521 = vsel %vm1262, %v2516, %v2520
      %v2523 = vshrl.u32 %v2201, 16
      %v2525 = vrot.slane %v2523, 4
      %v2526 = vshll.u32 %v2201, 16
      %v2528 = vrot.slane %v2526, 5
      %v2529 = vor.u32 %v2525, %v2528
      %v2530 = vrot.slane %v2529, 4
      %v2532 = vshll.u32 %v2202, 16
      %v2534 = vrot.slane %v2532, 5
      %v2535 = vsel %vm1262, %v2530, %v2534
      %v2536 = vshrl.u32 %v2202, 16
      %v2538 = vrot.slane %v2536, 4
      %v2539 = vor.u32 %v2538, %v2534
      %v2540 = vrot.slane %v2539, 4
      %v2542 = vshll.u32 %v2203, 16
      %v2544 = vrot.slane %v2542, 5
      %v2545 = vsel %vm1262, %v2540, %v2544
      %v2547 = vshrl.u32 %v2204, 16
      %v2549 = vrot.slane %v2547, 4
      %v2550 = vshll.u32 %v2204, 16
      %v2552 = vrot.slane %v2550, 5
      %v2553 = vor.u32 %v2549, %v2552
      %v2554 = vrot.slane %v2553, 4
      %v2556 = vshll.u32 %v2205, 16
      %v2558 = vrot.slane %v2556, 5
      %v2559 = vsel %vm1262, %v2554, %v2558
      %v2560 = vshrl.u32 %v2205, 16
      %v2562 = vrot.slane %v2560, 4
      %v2563 = vor.u32 %v2562, %v2558
      %v2564 = vrot.slane %v2563, 4
      %v2566 = vshll.u32 %v2206, 16
      %v2568 = vrot.slane %v2566, 5
      %v2569 = vsel %vm1262, %v2564, %v2568
      %v2571 = vshrl.u32 %v2207, 16
      %v2573 = vrot.slane %v2571, 4
      %v2574 = vshll.u32 %v2207, 16
      %v2576 = vrot.slane %v2574, 5
      %v2577 = vor.u32 %v2573, %v2576
      %v2578 = vrot.slane %v2577, 4
      %v2580 = vshll.u32 %v2208, 16
      %v2582 = vrot.slane %v2580, 5
      %v2583 = vsel %vm1262, %v2578, %v2582
      %v2584 = vshrl.u32 %v2208, 16
      %v2586 = vrot.slane %v2584, 4
      %v2587 = vor.u32 %v2586, %v2582
      %v2588 = vrot.slane %v2587, 4
      %v2590 = vshll.u32 %v2209, 16
      %v2592 = vrot.slane %v2590, 5
      %v2593 = vsel %vm1262, %v2588, %v2592
      %v2594 = vunpack.c.l.b16 %v2223
      %v2595 = vunpack.c.l.b16 %v2233
      %v2596 = vunpack.c.l.b16 %v2247
      %v2597 = vunpack.c.l.b16 %v2257
      %v2598 = vunpack.c.l.b16 %v2271
      %v2599 = vunpack.c.l.b16 %v2281
      %v2600 = vunpack.c.l.b16 %v2295
      %v2601 = vunpack.c.l.b16 %v2305
      %v2602 = vunpack.c.l.b16 %v2319
      %v2603 = vunpack.c.l.b16 %v2329
      %v2604 = vunpack.c.l.b16 %v2343
      %v2605 = vunpack.c.l.b16 %v2353
      %v2606 = vunpack.c.l.b16 %v2367
      %v2607 = vunpack.c.l.b16 %v2377
      %v2608 = vunpack.c.l.b16 %v2391
      %v2609 = vunpack.c.l.b16 %v2401
      %v2610 = vunpack.c.l.b16 %v2415
      %v2611 = vunpack.c.l.b16 %v2425
      %v2612 = vunpack.c.l.b16 %v2439
      %v2613 = vunpack.c.l.b16 %v2449
      %v2614 = vunpack.c.l.b16 %v2463
      %v2615 = vunpack.c.l.b16 %v2473
      %v2616 = vunpack.c.l.b16 %v2487
      %v2617 = vunpack.c.l.b16 %v2497
      %v2618 = vunpack.c.l.b16 %v2511
      %v2619 = vunpack.c.l.b16 %v2521
      %v2620 = vunpack.c.l.b16 %v2535
      %v2621 = vunpack.c.l.b16 %v2545
      %v2622 = vunpack.c.l.b16 %v2559
      %v2623 = vunpack.c.l.b16 %v2569
      %v2624 = vunpack.c.l.b16 %v2583
      %v2625 = vunpack.c.l.b16 %v2593
      %v2626 = vpack.c.b16 %v2595, %v2594
      %v2627 = vpack.c.b16 %v2597, %v2596
      %v2628 = vpack.c.b16 %v2599, %v2598
      %v2629 = vpack.c.b16 %v2601, %v2600
      %v2630 = vpack.c.b16 %v2603, %v2602
      %v2631 = vpack.c.b16 %v2605, %v2604
      %v2632 = vpack.c.b16 %v2607, %v2606
      %v2633 = vpack.c.b16 %v2609, %v2608
      %v2634 = vpack.c.b16 %v2611, %v2610
      %v2635 = vpack.c.b16 %v2613, %v2612
      %v2636 = vpack.c.b16 %v2615, %v2614
      %v2637 = vpack.c.b16 %v2617, %v2616
      %v2638 = vpack.c.b16 %v2619, %v2618
      %v2639 = vpack.c.b16 %v2621, %v2620
      %v2640 = vpack.c.b16 %v2623, %v2622
      %v2641 = vpack.c.b16 %v2625, %v2624
      %2658 = vst [vmem:[#allocation3 + $0x20] sm:$0xff] %v2626
      %2659 = vst [vmem:[#allocation3 + $0x68] sm:$0xff] %v2627
      %2660 = vst [vmem:[#allocation3 + $0xb0] sm:$0xff] %v2628
      %2661 = vst [vmem:[#allocation3 + $0xf8] sm:$0xff] %v2629
      %2662 = vst [vmem:[#allocation3 + $0x140] sm:$0xff] %v2630
      %2663 = vst [vmem:[#allocation3 + $0x188] sm:$0xff] %v2631
      %2664 = vst [vmem:[#allocation3 + $0x1d0] sm:$0xff] %v2632
      %2665 = vst [vmem:[#allocation3 + $0x218] sm:$0xff] %v2633
      %2666 = vst [vmem:[#allocation3 + $0x260] sm:$0xff] %v2634
      %2667 = vst [vmem:[#allocation3 + $0x2a8] sm:$0xff] %v2635
      %2668 = vst [vmem:[#allocation3 + $0x2f0] sm:$0xff] %v2636
      %2669 = vst [vmem:[#allocation3 + $0x338] sm:$0xff] %v2637
      %2670 = vst [vmem:[#allocation3 + $0x380] sm:$0xff] %v2638
      %2671 = vst [vmem:[#allocation3 + $0x3c8] sm:$0xff] %v2639
      %2672 = vst [vmem:[#allocation3 + $0x410] sm:$0xff] %v2640
      %2673 = vst [vmem:[#allocation3 + $0x458] sm:$0xff] %v2641
      %v2674 = vld [vmem:[%s953] sm:$0xe]
      %v2675 = vld [vmem:[%s953 + $0x4] sm:$0xf]
      %v2676 = vld [vmem:[%s953 + $0x8] sm:$0x1]
      %v2677 = vld [vmem:[%s953 + $0xc] sm:$0xe]
      %v2678 = vld [vmem:[%s953 + $0x10] sm:$0xf]
      %v2679 = vld [vmem:[%s953 + $0x14] sm:$0x1]
      %v2680 = vld [vmem:[%s953 + $0x18] sm:$0xe]
      %v2681 = vld [vmem:[%s953 + $0x1c] sm:$0xf]
      %v2682 = vld [vmem:[%s953 + $0x20] sm:$0x1]
      %v2683 = vld [vmem:[%s953 + $0x24] sm:$0xe]
      %v2684 = vld [vmem:[%s953 + $0x28] sm:$0xf]
      %v2685 = vld [vmem:[%s953 + $0x2c] sm:$0x1]
      %v2686 = vld [vmem:[%s953 + $0x30] sm:$0xe]
      %v2687 = vld [vmem:[%s953 + $0x34] sm:$0xf]
      %v2688 = vld [vmem:[%s953 + $0x38] sm:$0x1]
      %v2689 = vld [vmem:[%s953 + $0x3c] sm:$0xe]
      %v2690 = vld [vmem:[%s953 + $0x40] sm:$0xf]
      %v2691 = vld [vmem:[%s953 + $0x44] sm:$0x1]
      %v2692 = vld [vmem:[%s953 + $0x48] sm:$0xe]
      %v2693 = vld [vmem:[%s953 + $0x4c] sm:$0xf]
      %v2694 = vld [vmem:[%s953 + $0x50] sm:$0x1]
      %v2695 = vld [vmem:[%s953 + $0x54] sm:$0xe]
      %v2696 = vld [vmem:[%s953 + $0x58] sm:$0xf]
      %v2697 = vld [vmem:[%s953 + $0x5c] sm:$0x1]
      %v2698 = vld [vmem:[%s953 + $0x60] sm:$0xe]
      %v2699 = vld [vmem:[%s953 + $0x64] sm:$0xf]
      %v2700 = vld [vmem:[%s953 + $0x68] sm:$0x1]
      %v2701 = vld [vmem:[%s953 + $0x6c] sm:$0xe]
      %v2702 = vld [vmem:[%s953 + $0x70] sm:$0xf]
      %v2703 = vld [vmem:[%s953 + $0x74] sm:$0x1]
      %v2704 = vld [vmem:[%s953 + $0x78] sm:$0xe]
      %v2705 = vld [vmem:[%s953 + $0x7c] sm:$0xf]
      %v2706 = vld [vmem:[%s953 + $0x80] sm:$0x1]
      %v2707 = vld [vmem:[%s953 + $0x84] sm:$0xe]
      %v2708 = vld [vmem:[%s953 + $0x88] sm:$0xf]
      %v2709 = vld [vmem:[%s953 + $0x8c] sm:$0x1]
      %v2710 = vld [vmem:[%s953 + $0x90] sm:$0xe]
      %v2711 = vld [vmem:[%s953 + $0x94] sm:$0xf]
      %v2712 = vld [vmem:[%s953 + $0x98] sm:$0x1]
      %v2713 = vld [vmem:[%s953 + $0x9c] sm:$0xe]
      %v2714 = vld [vmem:[%s953 + $0xa0] sm:$0xf]
      %v2715 = vld [vmem:[%s953 + $0xa4] sm:$0x1]
      %v2716 = vld [vmem:[%s953 + $0xa8] sm:$0xe]
      %v2717 = vld [vmem:[%s953 + $0xac] sm:$0xf]
      %v2718 = vld [vmem:[%s953 + $0xb0] sm:$0x1]
      %v2719 = vld [vmem:[%s953 + $0xb4] sm:$0xe]
      %v2720 = vld [vmem:[%s953 + $0xb8] sm:$0xf]
      %v2721 = vld [vmem:[%s953 + $0xbc] sm:$0x1]
      %v2770 = vrot.slane %v2674, 5
      %v2771 = vrot.slane %v2770, 4
      %v2772 = vrot.slane %v2675, 5
      %v2773 = vsel %vm1825, %v2771, %v2772
      %v2774 = vrot.slane %v2772, 4
      %v2775 = vrot.slane %v2676, 5
      %v2776 = vsel %vm1825, %v2774, %v2775
      %v2777 = vrot.slane %v2677, 5
      %v2778 = vrot.slane %v2777, 4
      %v2779 = vrot.slane %v2678, 5
      %v2780 = vsel %vm1825, %v2778, %v2779
      %v2781 = vrot.slane %v2779, 4
      %v2782 = vrot.slane %v2679, 5
      %v2783 = vsel %vm1825, %v2781, %v2782
      %v2784 = vrot.slane %v2680, 5
      %v2785 = vrot.slane %v2784, 4
      %v2786 = vrot.slane %v2681, 5
      %v2787 = vsel %vm1825, %v2785, %v2786
      %v2788 = vrot.slane %v2786, 4
      %v2789 = vrot.slane %v2682, 5
      %v2790 = vsel %vm1825, %v2788, %v2789
      %v2791 = vrot.slane %v2683, 5
      %v2792 = vrot.slane %v2791, 4
      %v2793 = vrot.slane %v2684, 5
      %v2794 = vsel %vm1825, %v2792, %v2793
      %v2795 = vrot.slane %v2793, 4
      %v2796 = vrot.slane %v2685, 5
      %v2797 = vsel %vm1825, %v2795, %v2796
      %v2798 = vrot.slane %v2686, 5
      %v2799 = vrot.slane %v2798, 4
      %v2800 = vrot.slane %v2687, 5
      %v2801 = vsel %vm1825, %v2799, %v2800
      %v2802 = vrot.slane %v2800, 4
      %v2803 = vrot.slane %v2688, 5
      %v2804 = vsel %vm1825, %v2802, %v2803
      %v2805 = vrot.slane %v2689, 5
      %v2806 = vrot.slane %v2805, 4
      %v2807 = vrot.slane %v2690, 5
      %v2808 = vsel %vm1825, %v2806, %v2807
      %v2809 = vrot.slane %v2807, 4
      %v2810 = vrot.slane %v2691, 5
      %v2811 = vsel %vm1825, %v2809, %v2810
      %v2812 = vrot.slane %v2692, 5
      %v2813 = vrot.slane %v2812, 4
      %v2814 = vrot.slane %v2693, 5
      %v2815 = vsel %vm1825, %v2813, %v2814
      %v2816 = vrot.slane %v2814, 4
      %v2817 = vrot.slane %v2694, 5
      %v2818 = vsel %vm1825, %v2816, %v2817
      %v2819 = vrot.slane %v2695, 5
      %v2820 = vrot.slane %v2819, 4
      %v2821 = vrot.slane %v2696, 5
      %v2822 = vsel %vm1825, %v2820, %v2821
      %v2823 = vrot.slane %v2821, 4
      %v2824 = vrot.slane %v2697, 5
      %v2825 = vsel %vm1825, %v2823, %v2824
      %v2826 = vrot.slane %v2698, 5
      %v2827 = vrot.slane %v2826, 4
      %v2828 = vrot.slane %v2699, 5
      %v2829 = vsel %vm1825, %v2827, %v2828
      %v2830 = vrot.slane %v2828, 4
      %v2831 = vrot.slane %v2700, 5
      %v2832 = vsel %vm1825, %v2830, %v2831
      %v2833 = vrot.slane %v2701, 5
      %v2834 = vrot.slane %v2833, 4
      %v2835 = vrot.slane %v2702, 5
      %v2836 = vsel %vm1825, %v2834, %v2835
      %v2837 = vrot.slane %v2835, 4
      %v2838 = vrot.slane %v2703, 5
      %v2839 = vsel %vm1825, %v2837, %v2838
      %v2840 = vrot.slane %v2704, 5
      %v2841 = vrot.slane %v2840, 4
      %v2842 = vrot.slane %v2705, 5
      %v2843 = vsel %vm1825, %v2841, %v2842
      %v2844 = vrot.slane %v2842, 4
      %v2845 = vrot.slane %v2706, 5
      %v2846 = vsel %vm1825, %v2844, %v2845
      %v2847 = vrot.slane %v2707, 5
      %v2848 = vrot.slane %v2847, 4
      %v2849 = vrot.slane %v2708, 5
      %v2850 = vsel %vm1825, %v2848, %v2849
      %v2851 = vrot.slane %v2849, 4
      %v2852 = vrot.slane %v2709, 5
      %v2853 = vsel %vm1825, %v2851, %v2852
      %v2854 = vrot.slane %v2710, 5
      %v2855 = vrot.slane %v2854, 4
      %v2856 = vrot.slane %v2711, 5
      %v2857 = vsel %vm1825, %v2855, %v2856
      %v2858 = vrot.slane %v2856, 4
      %v2859 = vrot.slane %v2712, 5
      %v2860 = vsel %vm1825, %v2858, %v2859
      %v2861 = vrot.slane %v2713, 5
      %v2862 = vrot.slane %v2861, 4
      %v2863 = vrot.slane %v2714, 5
      %v2864 = vsel %vm1825, %v2862, %v2863
      %v2865 = vrot.slane %v2863, 4
      %v2866 = vrot.slane %v2715, 5
      %v2867 = vsel %vm1825, %v2865, %v2866
      %v2868 = vrot.slane %v2716, 5
      %v2869 = vrot.slane %v2868, 4
      %v2870 = vrot.slane %v2717, 5
      %v2871 = vsel %vm1825, %v2869, %v2870
      %v2872 = vrot.slane %v2870, 4
      %v2873 = vrot.slane %v2718, 5
      %v2874 = vsel %vm1825, %v2872, %v2873
      %v2875 = vrot.slane %v2719, 5
      %v2876 = vrot.slane %v2875, 4
      %v2877 = vrot.slane %v2720, 5
      %v2878 = vsel %vm1825, %v2876, %v2877
      %v2879 = vrot.slane %v2877, 4
      %v2880 = vrot.slane %v2721, 5
      %v2881 = vsel %vm1825, %v2879, %v2880
      %v2882 = vunpack.c.l.b16 %v2773
      %v2883 = vunpack.c.l.b16 %v2776
      %v2884 = vunpack.c.l.b16 %v2780
      %v2885 = vunpack.c.l.b16 %v2783
      %v2886 = vunpack.c.l.b16 %v2787
      %v2887 = vunpack.c.l.b16 %v2790
      %v2888 = vunpack.c.l.b16 %v2794
      %v2889 = vunpack.c.l.b16 %v2797
      %v2890 = vunpack.c.l.b16 %v2801
      %v2891 = vunpack.c.l.b16 %v2804
      %v2892 = vunpack.c.l.b16 %v2808
      %v2893 = vunpack.c.l.b16 %v2811
      %v2894 = vunpack.c.l.b16 %v2815
      %v2895 = vunpack.c.l.b16 %v2818
      %v2896 = vunpack.c.l.b16 %v2822
      %v2897 = vunpack.c.l.b16 %v2825
      %v2898 = vunpack.c.l.b16 %v2829
      %v2899 = vunpack.c.l.b16 %v2832
      %v2900 = vunpack.c.l.b16 %v2836
      %v2901 = vunpack.c.l.b16 %v2839
      %v2902 = vunpack.c.l.b16 %v2843
      %v2903 = vunpack.c.l.b16 %v2846
      %v2904 = vunpack.c.l.b16 %v2850
      %v2905 = vunpack.c.l.b16 %v2853
      %v2906 = vunpack.c.l.b16 %v2857
      %v2907 = vunpack.c.l.b16 %v2860
      %v2908 = vunpack.c.l.b16 %v2864
      %v2909 = vunpack.c.l.b16 %v2867
      %v2910 = vunpack.c.l.b16 %v2871
      %v2911 = vunpack.c.l.b16 %v2874
      %v2912 = vunpack.c.l.b16 %v2878
      %v2913 = vunpack.c.l.b16 %v2881
      %v2914 = vpack.c.b16 %v2883, %v2882
      %v2915 = vpack.c.b16 %v2885, %v2884
      %v2916 = vpack.c.b16 %v2887, %v2886
      %v2917 = vpack.c.b16 %v2889, %v2888
      %v2918 = vpack.c.b16 %v2891, %v2890
      %v2919 = vpack.c.b16 %v2893, %v2892
      %v2920 = vpack.c.b16 %v2895, %v2894
      %v2921 = vpack.c.b16 %v2897, %v2896
      %v2922 = vpack.c.b16 %v2899, %v2898
      %v2923 = vpack.c.b16 %v2901, %v2900
      %v2924 = vpack.c.b16 %v2903, %v2902
      %v2925 = vpack.c.b16 %v2905, %v2904
      %v2926 = vpack.c.b16 %v2907, %v2906
      %v2927 = vpack.c.b16 %v2909, %v2908
      %v2928 = vpack.c.b16 %v2911, %v2910
      %v2929 = vpack.c.b16 %v2913, %v2912
      %2946 = vst [vmem:[#allocation3 + $0x28] sm:$0xff] %v2914
      %2947 = vst [vmem:[#allocation3 + $0x70] sm:$0xff] %v2915
      %2948 = vst [vmem:[#allocation3 + $0xb8] sm:$0xff] %v2916
      %2949 = vst [vmem:[#allocation3 + $0x100] sm:$0xff] %v2917
      %2950 = vst [vmem:[#allocation3 + $0x148] sm:$0xff] %v2918
      %2951 = vst [vmem:[#allocation3 + $0x190] sm:$0xff] %v2919
      %2952 = vst [vmem:[#allocation3 + $0x1d8] sm:$0xff] %v2920
      %2953 = vst [vmem:[#allocation3 + $0x220] sm:$0xff] %v2921
      %2954 = vst [vmem:[#allocation3 + $0x268] sm:$0xff] %v2922
      %2955 = vst [vmem:[#allocation3 + $0x2b0] sm:$0xff] %v2923
      %2956 = vst [vmem:[#allocation3 + $0x2f8] sm:$0xff] %v2924
      %2957 = vst [vmem:[#allocation3 + $0x340] sm:$0xff] %v2925
      %2958 = vst [vmem:[#allocation3 + $0x388] sm:$0xff] %v2926
      %2959 = vst [vmem:[#allocation3 + $0x3d0] sm:$0xff] %v2927
      %2960 = vst [vmem:[#allocation3 + $0x418] sm:$0xff] %v2928
      %2961 = vst [vmem:[#allocation3 + $0x460] sm:$0xff] %v2929
      %s2962 = scalar_lea.vmem [#allocation2], 24
      %v2963 = vld [vmem:[%s2962] sm:$0xf]
      %v2964 = vld [vmem:[%s2962 + $0x4] sm:$0xf]
      %v2965 = vld [vmem:[%s2962 + $0xc] sm:$0xf]
      %v2966 = vld [vmem:[%s2962 + $0x10] sm:$0xf]
      %v2967 = vld [vmem:[%s2962 + $0x18] sm:$0xf]
      %v2968 = vld [vmem:[%s2962 + $0x1c] sm:$0xf]
      %v2969 = vld [vmem:[%s2962 + $0x24] sm:$0xf]
      %v2970 = vld [vmem:[%s2962 + $0x28] sm:$0xf]
      %v2971 = vld [vmem:[%s2962 + $0x30] sm:$0xf]
      %v2972 = vld [vmem:[%s2962 + $0x34] sm:$0xf]
      %v2973 = vld [vmem:[%s2962 + $0x3c] sm:$0xf]
      %v2974 = vld [vmem:[%s2962 + $0x40] sm:$0xf]
      %v2975 = vld [vmem:[%s2962 + $0x48] sm:$0xf]
      %v2976 = vld [vmem:[%s2962 + $0x4c] sm:$0xf]
      %v2977 = vld [vmem:[%s2962 + $0x54] sm:$0xf]
      %v2978 = vld [vmem:[%s2962 + $0x58] sm:$0xf]
      %v2979 = vld [vmem:[%s2962 + $0x60] sm:$0xf]
      %v2980 = vld [vmem:[%s2962 + $0x64] sm:$0xf]
      %v2981 = vld [vmem:[%s2962 + $0x6c] sm:$0xf]
      %v2982 = vld [vmem:[%s2962 + $0x70] sm:$0xf]
      %v2983 = vld [vmem:[%s2962 + $0x78] sm:$0xf]
      %v2984 = vld [vmem:[%s2962 + $0x7c] sm:$0xf]
      %v2985 = vld [vmem:[%s2962 + $0x84] sm:$0xf]
      %v2986 = vld [vmem:[%s2962 + $0x88] sm:$0xf]
      %v2987 = vld [vmem:[%s2962 + $0x90] sm:$0xf]
      %v2988 = vld [vmem:[%s2962 + $0x94] sm:$0xf]
      %v2989 = vld [vmem:[%s2962 + $0x9c] sm:$0xf]
      %v2990 = vld [vmem:[%s2962 + $0xa0] sm:$0xf]
      %v2991 = vld [vmem:[%s2962 + $0xa8] sm:$0xf]
      %v2992 = vld [vmem:[%s2962 + $0xac] sm:$0xf]
      %v2993 = vld [vmem:[%s2962 + $0xb4] sm:$0xf]
      %v2994 = vld [vmem:[%s2962 + $0xb8] sm:$0xf]
      %v3027 = vunpack.c.l.b16 %v2963
      %v3028 = vunpack.c.l.b16 %v2964
      %v3029 = vunpack.c.l.b16 %v2965
      %v3030 = vunpack.c.l.b16 %v2966
      %v3031 = vunpack.c.l.b16 %v2967
      %v3032 = vunpack.c.l.b16 %v2968
      %v3033 = vunpack.c.l.b16 %v2969
      %v3034 = vunpack.c.l.b16 %v2970
      %v3035 = vunpack.c.l.b16 %v2971
      %v3036 = vunpack.c.l.b16 %v2972
      %v3037 = vunpack.c.l.b16 %v2973
      %v3038 = vunpack.c.l.b16 %v2974
      %v3039 = vunpack.c.l.b16 %v2975
      %v3040 = vunpack.c.l.b16 %v2976
      %v3041 = vunpack.c.l.b16 %v2977
      %v3042 = vunpack.c.l.b16 %v2978
      %v3043 = vunpack.c.l.b16 %v2979
      %v3044 = vunpack.c.l.b16 %v2980
      %v3045 = vunpack.c.l.b16 %v2981
      %v3046 = vunpack.c.l.b16 %v2982
      %v3047 = vunpack.c.l.b16 %v2983
      %v3048 = vunpack.c.l.b16 %v2984
      %v3049 = vunpack.c.l.b16 %v2985
      %v3050 = vunpack.c.l.b16 %v2986
      %v3051 = vunpack.c.l.b16 %v2987
      %v3052 = vunpack.c.l.b16 %v2988
      %v3053 = vunpack.c.l.b16 %v2989
      %v3054 = vunpack.c.l.b16 %v2990
      %v3055 = vunpack.c.l.b16 %v2991
      %v3056 = vunpack.c.l.b16 %v2992
      %v3057 = vunpack.c.l.b16 %v2993
      %v3058 = vunpack.c.l.b16 %v2994
      %v3059 = vpack.c.b16 %v3028, %v3027
      %v3060 = vpack.c.b16 %v3030, %v3029
      %v3061 = vpack.c.b16 %v3032, %v3031
      %v3062 = vpack.c.b16 %v3034, %v3033
      %v3063 = vpack.c.b16 %v3036, %v3035
      %v3064 = vpack.c.b16 %v3038, %v3037
      %v3065 = vpack.c.b16 %v3040, %v3039
      %v3066 = vpack.c.b16 %v3042, %v3041
      %v3067 = vpack.c.b16 %v3044, %v3043
      %v3068 = vpack.c.b16 %v3046, %v3045
      %v3069 = vpack.c.b16 %v3048, %v3047
      %v3070 = vpack.c.b16 %v3050, %v3049
      %v3071 = vpack.c.b16 %v3052, %v3051
      %v3072 = vpack.c.b16 %v3054, %v3053
      %v3073 = vpack.c.b16 %v3056, %v3055
      %v3074 = vpack.c.b16 %v3058, %v3057
      %3091 = vst [vmem:[#allocation3 + $0x30] sm:$0xff] %v3059
      %3092 = vst [vmem:[#allocation3 + $0x78] sm:$0xff] %v3060
      %3093 = vst [vmem:[#allocation3 + $0xc0] sm:$0xff] %v3061
      %3094 = vst [vmem:[#allocation3 + $0x108] sm:$0xff] %v3062
      %3095 = vst [vmem:[#allocation3 + $0x150] sm:$0xff] %v3063
      %3096 = vst [vmem:[#allocation3 + $0x198] sm:$0xff] %v3064
      %3097 = vst [vmem:[#allocation3 + $0x1e0] sm:$0xff] %v3065
      %3098 = vst [vmem:[#allocation3 + $0x228] sm:$0xff] %v3066
      %3099 = vst [vmem:[#allocation3 + $0x270] sm:$0xff] %v3067
      %3100 = vst [vmem:[#allocation3 + $0x2b8] sm:$0xff] %v3068
      %3101 = vst [vmem:[#allocation3 + $0x300] sm:$0xff] %v3069
      %3102 = vst [vmem:[#allocation3 + $0x348] sm:$0xff] %v3070
      %3103 = vst [vmem:[#allocation3 + $0x390] sm:$0xff] %v3071
      %3104 = vst [vmem:[#allocation3 + $0x3d8] sm:$0xff] %v3072
      %3105 = vst [vmem:[#allocation3 + $0x420] sm:$0xff] %v3073
      %3106 = vst [vmem:[#allocation3 + $0x468] sm:$0xff] %v3074
      %v3107 = vld [vmem:[%s2962] sm:$0xf]
      %v3108 = vld [vmem:[%s2962 + $0x4] sm:$0xf]
      %v3109 = vld [vmem:[%s2962 + $0x8] sm:$0x1]
      %v3110 = vld [vmem:[%s2962 + $0xc] sm:$0xf]
      %v3111 = vld [vmem:[%s2962 + $0x10] sm:$0xf]
      %v3112 = vld [vmem:[%s2962 + $0x14] sm:$0x1]
      %v3113 = vld [vmem:[%s2962 + $0x18] sm:$0xf]
      %v3114 = vld [vmem:[%s2962 + $0x1c] sm:$0xf]
      %v3115 = vld [vmem:[%s2962 + $0x20] sm:$0x1]
      %v3116 = vld [vmem:[%s2962 + $0x24] sm:$0xf]
      %v3117 = vld [vmem:[%s2962 + $0x28] sm:$0xf]
      %v3118 = vld [vmem:[%s2962 + $0x2c] sm:$0x1]
      %v3119 = vld [vmem:[%s2962 + $0x30] sm:$0xf]
      %v3120 = vld [vmem:[%s2962 + $0x34] sm:$0xf]
      %v3121 = vld [vmem:[%s2962 + $0x38] sm:$0x1]
      %v3122 = vld [vmem:[%s2962 + $0x3c] sm:$0xf]
      %v3123 = vld [vmem:[%s2962 + $0x40] sm:$0xf]
      %v3124 = vld [vmem:[%s2962 + $0x44] sm:$0x1]
      %v3125 = vld [vmem:[%s2962 + $0x48] sm:$0xf]
      %v3126 = vld [vmem:[%s2962 + $0x4c] sm:$0xf]
      %v3127 = vld [vmem:[%s2962 + $0x50] sm:$0x1]
      %v3128 = vld [vmem:[%s2962 + $0x54] sm:$0xf]
      %v3129 = vld [vmem:[%s2962 + $0x58] sm:$0xf]
      %v3130 = vld [vmem:[%s2962 + $0x5c] sm:$0x1]
      %v3131 = vld [vmem:[%s2962 + $0x60] sm:$0xf]
      %v3132 = vld [vmem:[%s2962 + $0x64] sm:$0xf]
      %v3133 = vld [vmem:[%s2962 + $0x68] sm:$0x1]
      %v3134 = vld [vmem:[%s2962 + $0x6c] sm:$0xf]
      %v3135 = vld [vmem:[%s2962 + $0x70] sm:$0xf]
      %v3136 = vld [vmem:[%s2962 + $0x74] sm:$0x1]
      %v3137 = vld [vmem:[%s2962 + $0x78] sm:$0xf]
      %v3138 = vld [vmem:[%s2962 + $0x7c] sm:$0xf]
      %v3139 = vld [vmem:[%s2962 + $0x80] sm:$0x1]
      %v3140 = vld [vmem:[%s2962 + $0x84] sm:$0xf]
      %v3141 = vld [vmem:[%s2962 + $0x88] sm:$0xf]
      %v3142 = vld [vmem:[%s2962 + $0x8c] sm:$0x1]
      %v3143 = vld [vmem:[%s2962 + $0x90] sm:$0xf]
      %v3144 = vld [vmem:[%s2962 + $0x94] sm:$0xf]
      %v3145 = vld [vmem:[%s2962 + $0x98] sm:$0x1]
      %v3146 = vld [vmem:[%s2962 + $0x9c] sm:$0xf]
      %v3147 = vld [vmem:[%s2962 + $0xa0] sm:$0xf]
      %v3148 = vld [vmem:[%s2962 + $0xa4] sm:$0x1]
      %v3149 = vld [vmem:[%s2962 + $0xa8] sm:$0xf]
      %v3150 = vld [vmem:[%s2962 + $0xac] sm:$0xf]
      %v3151 = vld [vmem:[%s2962 + $0xb0] sm:$0x1]
      %v3152 = vld [vmem:[%s2962 + $0xb4] sm:$0xf]
      %v3153 = vld [vmem:[%s2962 + $0xb8] sm:$0xf]
      %v3154 = vld [vmem:[%s2962 + $0xbc] sm:$0x1]
      %v3156 = vshrl.u32 %v3107, 16
      %v3158 = vrot.slane %v3156, 4
      %v3159 = vshll.u32 %v3107, 16
      %v3161 = vrot.slane %v3159, 5
      %v3162 = vor.u32 %v3158, %v3161
      %v3163 = vrot.slane %v3162, 4
      %v3165 = vshll.u32 %v3108, 16
      %v3167 = vrot.slane %v3165, 5
      %v3168 = vsel %vm1262, %v3163, %v3167
      %v3169 = vshrl.u32 %v3108, 16
      %v3171 = vrot.slane %v3169, 4
      %v3172 = vor.u32 %v3171, %v3167
      %v3173 = vrot.slane %v3172, 4
      %v3175 = vshll.u32 %v3109, 16
      %v3177 = vrot.slane %v3175, 5
      %v3178 = vsel %vm1262, %v3173, %v3177
      %v3180 = vshrl.u32 %v3110, 16
      %v3182 = vrot.slane %v3180, 4
      %v3183 = vshll.u32 %v3110, 16
      %v3185 = vrot.slane %v3183, 5
      %v3186 = vor.u32 %v3182, %v3185
      %v3187 = vrot.slane %v3186, 4
      %v3189 = vshll.u32 %v3111, 16
      %v3191 = vrot.slane %v3189, 5
      %v3192 = vsel %vm1262, %v3187, %v3191
      %v3193 = vshrl.u32 %v3111, 16
      %v3195 = vrot.slane %v3193, 4
      %v3196 = vor.u32 %v3195, %v3191
      %v3197 = vrot.slane %v3196, 4
      %v3199 = vshll.u32 %v3112, 16
      %v3201 = vrot.slane %v3199, 5
      %v3202 = vsel %vm1262, %v3197, %v3201
      %v3204 = vshrl.u32 %v3113, 16
      %v3206 = vrot.slane %v3204, 4
      %v3207 = vshll.u32 %v3113, 16
      %v3209 = vrot.slane %v3207, 5
      %v3210 = vor.u32 %v3206, %v3209
      %v3211 = vrot.slane %v3210, 4
      %v3213 = vshll.u32 %v3114, 16
      %v3215 = vrot.slane %v3213, 5
      %v3216 = vsel %vm1262, %v3211, %v3215
      %v3217 = vshrl.u32 %v3114, 16
      %v3219 = vrot.slane %v3217, 4
      %v3220 = vor.u32 %v3219, %v3215
      %v3221 = vrot.slane %v3220, 4
      %v3223 = vshll.u32 %v3115, 16
      %v3225 = vrot.slane %v3223, 5
      %v3226 = vsel %vm1262, %v3221, %v3225
      %v3228 = vshrl.u32 %v3116, 16
      %v3230 = vrot.slane %v3228, 4
      %v3231 = vshll.u32 %v3116, 16
      %v3233 = vrot.slane %v3231, 5
      %v3234 = vor.u32 %v3230, %v3233
      %v3235 = vrot.slane %v3234, 4
      %v3237 = vshll.u32 %v3117, 16
      %v3239 = vrot.slane %v3237, 5
      %v3240 = vsel %vm1262, %v3235, %v3239
      %v3241 = vshrl.u32 %v3117, 16
      %v3243 = vrot.slane %v3241, 4
      %v3244 = vor.u32 %v3243, %v3239
      %v3245 = vrot.slane %v3244, 4
      %v3247 = vshll.u32 %v3118, 16
      %v3249 = vrot.slane %v3247, 5
      %v3250 = vsel %vm1262, %v3245, %v3249
      %v3252 = vshrl.u32 %v3119, 16
      %v3254 = vrot.slane %v3252, 4
      %v3255 = vshll.u32 %v3119, 16
      %v3257 = vrot.slane %v3255, 5
      %v3258 = vor.u32 %v3254, %v3257
      %v3259 = vrot.slane %v3258, 4
      %v3261 = vshll.u32 %v3120, 16
      %v3263 = vrot.slane %v3261, 5
      %v3264 = vsel %vm1262, %v3259, %v3263
      %v3265 = vshrl.u32 %v3120, 16
      %v3267 = vrot.slane %v3265, 4
      %v3268 = vor.u32 %v3267, %v3263
      %v3269 = vrot.slane %v3268, 4
      %v3271 = vshll.u32 %v3121, 16
      %v3273 = vrot.slane %v3271, 5
      %v3274 = vsel %vm1262, %v3269, %v3273
      %v3276 = vshrl.u32 %v3122, 16
      %v3278 = vrot.slane %v3276, 4
      %v3279 = vshll.u32 %v3122, 16
      %v3281 = vrot.slane %v3279, 5
      %v3282 = vor.u32 %v3278, %v3281
      %v3283 = vrot.slane %v3282, 4
      %v3285 = vshll.u32 %v3123, 16
      %v3287 = vrot.slane %v3285, 5
      %v3288 = vsel %vm1262, %v3283, %v3287
      %v3289 = vshrl.u32 %v3123, 16
      %v3291 = vrot.slane %v3289, 4
      %v3292 = vor.u32 %v3291, %v3287
      %v3293 = vrot.slane %v3292, 4
      %v3295 = vshll.u32 %v3124, 16
      %v3297 = vrot.slane %v3295, 5
      %v3298 = vsel %vm1262, %v3293, %v3297
      %v3300 = vshrl.u32 %v3125, 16
      %v3302 = vrot.slane %v3300, 4
      %v3303 = vshll.u32 %v3125, 16
      %v3305 = vrot.slane %v3303, 5
      %v3306 = vor.u32 %v3302, %v3305
      %v3307 = vrot.slane %v3306, 4
      %v3309 = vshll.u32 %v3126, 16
      %v3311 = vrot.slane %v3309, 5
      %v3312 = vsel %vm1262, %v3307, %v3311
      %v3313 = vshrl.u32 %v3126, 16
      %v3315 = vrot.slane %v3313, 4
      %v3316 = vor.u32 %v3315, %v3311
      %v3317 = vrot.slane %v3316, 4
      %v3319 = vshll.u32 %v3127, 16
      %v3321 = vrot.slane %v3319, 5
      %v3322 = vsel %vm1262, %v3317, %v3321
      %v3324 = vshrl.u32 %v3128, 16
      %v3326 = vrot.slane %v3324, 4
      %v3327 = vshll.u32 %v3128, 16
      %v3329 = vrot.slane %v3327, 5
      %v3330 = vor.u32 %v3326, %v3329
      %v3331 = vrot.slane %v3330, 4
      %v3333 = vshll.u32 %v3129, 16
      %v3335 = vrot.slane %v3333, 5
      %v3336 = vsel %vm1262, %v3331, %v3335
      %v3337 = vshrl.u32 %v3129, 16
      %v3339 = vrot.slane %v3337, 4
      %v3340 = vor.u32 %v3339, %v3335
      %v3341 = vrot.slane %v3340, 4
      %v3343 = vshll.u32 %v3130, 16
      %v3345 = vrot.slane %v3343, 5
      %v3346 = vsel %vm1262, %v3341, %v3345
      %v3348 = vshrl.u32 %v3131, 16
      %v3350 = vrot.slane %v3348, 4
      %v3351 = vshll.u32 %v3131, 16
      %v3353 = vrot.slane %v3351, 5
      %v3354 = vor.u32 %v3350, %v3353
      %v3355 = vrot.slane %v3354, 4
      %v3357 = vshll.u32 %v3132, 16
      %v3359 = vrot.slane %v3357, 5
      %v3360 = vsel %vm1262, %v3355, %v3359
      %v3361 = vshrl.u32 %v3132, 16
      %v3363 = vrot.slane %v3361, 4
      %v3364 = vor.u32 %v3363, %v3359
      %v3365 = vrot.slane %v3364, 4
      %v3367 = vshll.u32 %v3133, 16
      %v3369 = vrot.slane %v3367, 5
      %v3370 = vsel %vm1262, %v3365, %v3369
      %v3372 = vshrl.u32 %v3134, 16
      %v3374 = vrot.slane %v3372, 4
      %v3375 = vshll.u32 %v3134, 16
      %v3377 = vrot.slane %v3375, 5
      %v3378 = vor.u32 %v3374, %v3377
      %v3379 = vrot.slane %v3378, 4
      %v3381 = vshll.u32 %v3135, 16
      %v3383 = vrot.slane %v3381, 5
      %v3384 = vsel %vm1262, %v3379, %v3383
      %v3385 = vshrl.u32 %v3135, 16
      %v3387 = vrot.slane %v3385, 4
      %v3388 = vor.u32 %v3387, %v3383
      %v3389 = vrot.slane %v3388, 4
      %v3391 = vshll.u32 %v3136, 16
      %v3393 = vrot.slane %v3391, 5
      %v3394 = vsel %vm1262, %v3389, %v3393
      %v3396 = vshrl.u32 %v3137, 16
      %v3398 = vrot.slane %v3396, 4
      %v3399 = vshll.u32 %v3137, 16
      %v3401 = vrot.slane %v3399, 5
      %v3402 = vor.u32 %v3398, %v3401
      %v3403 = vrot.slane %v3402, 4
      %v3405 = vshll.u32 %v3138, 16
      %v3407 = vrot.slane %v3405, 5
      %v3408 = vsel %vm1262, %v3403, %v3407
      %v3409 = vshrl.u32 %v3138, 16
      %v3411 = vrot.slane %v3409, 4
      %v3412 = vor.u32 %v3411, %v3407
      %v3413 = vrot.slane %v3412, 4
      %v3415 = vshll.u32 %v3139, 16
      %v3417 = vrot.slane %v3415, 5
      %v3418 = vsel %vm1262, %v3413, %v3417
      %v3420 = vshrl.u32 %v3140, 16
      %v3422 = vrot.slane %v3420, 4
      %v3423 = vshll.u32 %v3140, 16
      %v3425 = vrot.slane %v3423, 5
      %v3426 = vor.u32 %v3422, %v3425
      %v3427 = vrot.slane %v3426, 4
      %v3429 = vshll.u32 %v3141, 16
      %v3431 = vrot.slane %v3429, 5
      %v3432 = vsel %vm1262, %v3427, %v3431
      %v3433 = vshrl.u32 %v3141, 16
      %v3435 = vrot.slane %v3433, 4
      %v3436 = vor.u32 %v3435, %v3431
      %v3437 = vrot.slane %v3436, 4
      %v3439 = vshll.u32 %v3142, 16
      %v3441 = vrot.slane %v3439, 5
      %v3442 = vsel %vm1262, %v3437, %v3441
      %v3444 = vshrl.u32 %v3143, 16
      %v3446 = vrot.slane %v3444, 4
      %v3447 = vshll.u32 %v3143, 16
      %v3449 = vrot.slane %v3447, 5
      %v3450 = vor.u32 %v3446, %v3449
      %v3451 = vrot.slane %v3450, 4
      %v3453 = vshll.u32 %v3144, 16
      %v3455 = vrot.slane %v3453, 5
      %v3456 = vsel %vm1262, %v3451, %v3455
      %v3457 = vshrl.u32 %v3144, 16
      %v3459 = vrot.slane %v3457, 4
      %v3460 = vor.u32 %v3459, %v3455
      %v3461 = vrot.slane %v3460, 4
      %v3463 = vshll.u32 %v3145, 16
      %v3465 = vrot.slane %v3463, 5
      %v3466 = vsel %vm1262, %v3461, %v3465
      %v3468 = vshrl.u32 %v3146, 16
      %v3470 = vrot.slane %v3468, 4
      %v3471 = vshll.u32 %v3146, 16
      %v3473 = vrot.slane %v3471, 5
      %v3474 = vor.u32 %v3470, %v3473
      %v3475 = vrot.slane %v3474, 4
      %v3477 = vshll.u32 %v3147, 16
      %v3479 = vrot.slane %v3477, 5
      %v3480 = vsel %vm1262, %v3475, %v3479
      %v3481 = vshrl.u32 %v3147, 16
      %v3483 = vrot.slane %v3481, 4
      %v3484 = vor.u32 %v3483, %v3479
      %v3485 = vrot.slane %v3484, 4
      %v3487 = vshll.u32 %v3148, 16
      %v3489 = vrot.slane %v3487, 5
      %v3490 = vsel %vm1262, %v3485, %v3489
      %v3492 = vshrl.u32 %v3149, 16
      %v3494 = vrot.slane %v3492, 4
      %v3495 = vshll.u32 %v3149, 16
      %v3497 = vrot.slane %v3495, 5
      %v3498 = vor.u32 %v3494, %v3497
      %v3499 = vrot.slane %v3498, 4
      %v3501 = vshll.u32 %v3150, 16
      %v3503 = vrot.slane %v3501, 5
      %v3504 = vsel %vm1262, %v3499, %v3503
      %v3505 = vshrl.u32 %v3150, 16
      %v3507 = vrot.slane %v3505, 4
      %v3508 = vor.u32 %v3507, %v3503
      %v3509 = vrot.slane %v3508, 4
      %v3511 = vshll.u32 %v3151, 16
      %v3513 = vrot.slane %v3511, 5
      %v3514 = vsel %vm1262, %v3509, %v3513
      %v3516 = vshrl.u32 %v3152, 16
      %v3518 = vrot.slane %v3516, 4
      %v3519 = vshll.u32 %v3152, 16
      %v3521 = vrot.slane %v3519, 5
      %v3522 = vor.u32 %v3518, %v3521
      %v3523 = vrot.slane %v3522, 4
      %v3525 = vshll.u32 %v3153, 16
      %v3527 = vrot.slane %v3525, 5
      %v3528 = vsel %vm1262, %v3523, %v3527
      %v3529 = vshrl.u32 %v3153, 16
      %v3531 = vrot.slane %v3529, 4
      %v3532 = vor.u32 %v3531, %v3527
      %v3533 = vrot.slane %v3532, 4
      %v3535 = vshll.u32 %v3154, 16
      %v3537 = vrot.slane %v3535, 5
      %v3538 = vsel %vm1262, %v3533, %v3537
      %v3539 = vunpack.c.l.b16 %v3168
      %v3540 = vunpack.c.l.b16 %v3178
      %v3541 = vunpack.c.l.b16 %v3192
      %v3542 = vunpack.c.l.b16 %v3202
      %v3543 = vunpack.c.l.b16 %v3216
      %v3544 = vunpack.c.l.b16 %v3226
      %v3545 = vunpack.c.l.b16 %v3240
      %v3546 = vunpack.c.l.b16 %v3250
      %v3547 = vunpack.c.l.b16 %v3264
      %v3548 = vunpack.c.l.b16 %v3274
      %v3549 = vunpack.c.l.b16 %v3288
      %v3550 = vunpack.c.l.b16 %v3298
      %v3551 = vunpack.c.l.b16 %v3312
      %v3552 = vunpack.c.l.b16 %v3322
      %v3553 = vunpack.c.l.b16 %v3336
      %v3554 = vunpack.c.l.b16 %v3346
      %v3555 = vunpack.c.l.b16 %v3360
      %v3556 = vunpack.c.l.b16 %v3370
      %v3557 = vunpack.c.l.b16 %v3384
      %v3558 = vunpack.c.l.b16 %v3394
      %v3559 = vunpack.c.l.b16 %v3408
      %v3560 = vunpack.c.l.b16 %v3418
      %v3561 = vunpack.c.l.b16 %v3432
      %v3562 = vunpack.c.l.b16 %v3442
      %v3563 = vunpack.c.l.b16 %v3456
      %v3564 = vunpack.c.l.b16 %v3466
      %v3565 = vunpack.c.l.b16 %v3480
      %v3566 = vunpack.c.l.b16 %v3490
      %v3567 = vunpack.c.l.b16 %v3504
      %v3568 = vunpack.c.l.b16 %v3514
      %v3569 = vunpack.c.l.b16 %v3528
      %v3570 = vunpack.c.l.b16 %v3538
      %v3571 = vpack.c.b16 %v3540, %v3539
      %v3572 = vpack.c.b16 %v3542, %v3541
      %v3573 = vpack.c.b16 %v3544, %v3543
      %v3574 = vpack.c.b16 %v3546, %v3545
      %v3575 = vpack.c.b16 %v3548, %v3547
      %v3576 = vpack.c.b16 %v3550, %v3549
      %v3577 = vpack.c.b16 %v3552, %v3551
      %v3578 = vpack.c.b16 %v3554, %v3553
      %v3579 = vpack.c.b16 %v3556, %v3555
      %v3580 = vpack.c.b16 %v3558, %v3557
      %v3581 = vpack.c.b16 %v3560, %v3559
      %v3582 = vpack.c.b16 %v3562, %v3561
      %v3583 = vpack.c.b16 %v3564, %v3563
      %v3584 = vpack.c.b16 %v3566, %v3565
      %v3585 = vpack.c.b16 %v3568, %v3567
      %v3586 = vpack.c.b16 %v3570, %v3569
      %3603 = vst [vmem:[#allocation3 + $0x38] sm:$0xff] %v3571
      %3604 = vst [vmem:[#allocation3 + $0x80] sm:$0xff] %v3572
      %3605 = vst [vmem:[#allocation3 + $0xc8] sm:$0xff] %v3573
      %3606 = vst [vmem:[#allocation3 + $0x110] sm:$0xff] %v3574
      %3607 = vst [vmem:[#allocation3 + $0x158] sm:$0xff] %v3575
      %3608 = vst [vmem:[#allocation3 + $0x1a0] sm:$0xff] %v3576
      %3609 = vst [vmem:[#allocation3 + $0x1e8] sm:$0xff] %v3577
      %3610 = vst [vmem:[#allocation3 + $0x230] sm:$0xff] %v3578
      %3611 = vst [vmem:[#allocation3 + $0x278] sm:$0xff] %v3579
      %3612 = vst [vmem:[#allocation3 + $0x2c0] sm:$0xff] %v3580
      %3613 = vst [vmem:[#allocation3 + $0x308] sm:$0xff] %v3581
      %3614 = vst [vmem:[#allocation3 + $0x350] sm:$0xff] %v3582
      %3615 = vst [vmem:[#allocation3 + $0x398] sm:$0xff] %v3583
      %3616 = vst [vmem:[#allocation3 + $0x3e0] sm:$0xff] %v3584
      %3617 = vst [vmem:[#allocation3 + $0x428] sm:$0xff] %v3585
      %3618 = vst [vmem:[#allocation3 + $0x470] sm:$0xff] %v3586
      %v3619 = vld [vmem:[%s2962] sm:$0xe]
      %v3620 = vld [vmem:[%s2962 + $0x4] sm:$0xf]
      %v3621 = vld [vmem:[%s2962 + $0x8] sm:$0x1]
      %v3622 = vld [vmem:[%s2962 + $0xc] sm:$0xe]
      %v3623 = vld [vmem:[%s2962 + $0x10] sm:$0xf]
      %v3624 = vld [vmem:[%s2962 + $0x14] sm:$0x1]
      %v3625 = vld [vmem:[%s2962 + $0x18] sm:$0xe]
      %v3626 = vld [vmem:[%s2962 + $0x1c] sm:$0xf]
      %v3627 = vld [vmem:[%s2962 + $0x20] sm:$0x1]
      %v3628 = vld [vmem:[%s2962 + $0x24] sm:$0xe]
      %v3629 = vld [vmem:[%s2962 + $0x28] sm:$0xf]
      %v3630 = vld [vmem:[%s2962 + $0x2c] sm:$0x1]
      %v3631 = vld [vmem:[%s2962 + $0x30] sm:$0xe]
      %v3632 = vld [vmem:[%s2962 + $0x34] sm:$0xf]
      %v3633 = vld [vmem:[%s2962 + $0x38] sm:$0x1]
      %v3634 = vld [vmem:[%s2962 + $0x3c] sm:$0xe]
      %v3635 = vld [vmem:[%s2962 + $0x40] sm:$0xf]
      %v3636 = vld [vmem:[%s2962 + $0x44] sm:$0x1]
      %v3637 = vld [vmem:[%s2962 + $0x48] sm:$0xe]
      %v3638 = vld [vmem:[%s2962 + $0x4c] sm:$0xf]
      %v3639 = vld [vmem:[%s2962 + $0x50] sm:$0x1]
      %v3640 = vld [vmem:[%s2962 + $0x54] sm:$0xe]
      %v3641 = vld [vmem:[%s2962 + $0x58] sm:$0xf]
      %v3642 = vld [vmem:[%s2962 + $0x5c] sm:$0x1]
      %v3643 = vld [vmem:[%s2962 + $0x60] sm:$0xe]
      %v3644 = vld [vmem:[%s2962 + $0x64] sm:$0xf]
      %v3645 = vld [vmem:[%s2962 + $0x68] sm:$0x1]
      %v3646 = vld [vmem:[%s2962 + $0x6c] sm:$0xe]
      %v3647 = vld [vmem:[%s2962 + $0x70] sm:$0xf]
      %v3648 = vld [vmem:[%s2962 + $0x74] sm:$0x1]
      %v3649 = vld [vmem:[%s2962 + $0x78] sm:$0xe]
      %v3650 = vld [vmem:[%s2962 + $0x7c] sm:$0xf]
      %v3651 = vld [vmem:[%s2962 + $0x80] sm:$0x1]
      %v3652 = vld [vmem:[%s2962 + $0x84] sm:$0xe]
      %v3653 = vld [vmem:[%s2962 + $0x88] sm:$0xf]
      %v3654 = vld [vmem:[%s2962 + $0x8c] sm:$0x1]
      %v3655 = vld [vmem:[%s2962 + $0x90] sm:$0xe]
      %v3656 = vld [vmem:[%s2962 + $0x94] sm:$0xf]
      %v3657 = vld [vmem:[%s2962 + $0x98] sm:$0x1]
      %v3658 = vld [vmem:[%s2962 + $0x9c] sm:$0xe]
      %v3659 = vld [vmem:[%s2962 + $0xa0] sm:$0xf]
      %v3660 = vld [vmem:[%s2962 + $0xa4] sm:$0x1]
      %v3661 = vld [vmem:[%s2962 + $0xa8] sm:$0xe]
      %v3662 = vld [vmem:[%s2962 + $0xac] sm:$0xf]
      %v3663 = vld [vmem:[%s2962 + $0xb0] sm:$0x1]
      %v3664 = vld [vmem:[%s2962 + $0xb4] sm:$0xe]
      %v3665 = vld [vmem:[%s2962 + $0xb8] sm:$0xf]
      %v3666 = vld [vmem:[%s2962 + $0xbc] sm:$0x1]
      %v3715 = vrot.slane %v3619, 5
      %v3716 = vrot.slane %v3715, 4
      %v3717 = vrot.slane %v3620, 5
      %v3718 = vsel %vm1825, %v3716, %v3717
      %v3719 = vrot.slane %v3717, 4
      %v3720 = vrot.slane %v3621, 5
      %v3721 = vsel %vm1825, %v3719, %v3720
      %v3722 = vrot.slane %v3622, 5
      %v3723 = vrot.slane %v3722, 4
      %v3724 = vrot.slane %v3623, 5
      %v3725 = vsel %vm1825, %v3723, %v3724
      %v3726 = vrot.slane %v3724, 4
      %v3727 = vrot.slane %v3624, 5
      %v3728 = vsel %vm1825, %v3726, %v3727
      %v3729 = vrot.slane %v3625, 5
      %v3730 = vrot.slane %v3729, 4
      %v3731 = vrot.slane %v3626, 5
      %v3732 = vsel %vm1825, %v3730, %v3731
      %v3733 = vrot.slane %v3731, 4
      %v3734 = vrot.slane %v3627, 5
      %v3735 = vsel %vm1825, %v3733, %v3734
      %v3736 = vrot.slane %v3628, 5
      %v3737 = vrot.slane %v3736, 4
      %v3738 = vrot.slane %v3629, 5
      %v3739 = vsel %vm1825, %v3737, %v3738
      %v3740 = vrot.slane %v3738, 4
      %v3741 = vrot.slane %v3630, 5
      %v3742 = vsel %vm1825, %v3740, %v3741
      %v3743 = vrot.slane %v3631, 5
      %v3744 = vrot.slane %v3743, 4
      %v3745 = vrot.slane %v3632, 5
      %v3746 = vsel %vm1825, %v3744, %v3745
      %v3747 = vrot.slane %v3745, 4
      %v3748 = vrot.slane %v3633, 5
      %v3749 = vsel %vm1825, %v3747, %v3748
      %v3750 = vrot.slane %v3634, 5
      %v3751 = vrot.slane %v3750, 4
      %v3752 = vrot.slane %v3635, 5
      %v3753 = vsel %vm1825, %v3751, %v3752
      %v3754 = vrot.slane %v3752, 4
      %v3755 = vrot.slane %v3636, 5
      %v3756 = vsel %vm1825, %v3754, %v3755
      %v3757 = vrot.slane %v3637, 5
      %v3758 = vrot.slane %v3757, 4
      %v3759 = vrot.slane %v3638, 5
      %v3760 = vsel %vm1825, %v3758, %v3759
      %v3761 = vrot.slane %v3759, 4
      %v3762 = vrot.slane %v3639, 5
      %v3763 = vsel %vm1825, %v3761, %v3762
      %v3764 = vrot.slane %v3640, 5
      %v3765 = vrot.slane %v3764, 4
      %v3766 = vrot.slane %v3641, 5
      %v3767 = vsel %vm1825, %v3765, %v3766
      %v3768 = vrot.slane %v3766, 4
      %v3769 = vrot.slane %v3642, 5
      %v3770 = vsel %vm1825, %v3768, %v3769
      %v3771 = vrot.slane %v3643, 5
      %v3772 = vrot.slane %v3771, 4
      %v3773 = vrot.slane %v3644, 5
      %v3774 = vsel %vm1825, %v3772, %v3773
      %v3775 = vrot.slane %v3773, 4
      %v3776 = vrot.slane %v3645, 5
      %v3777 = vsel %vm1825, %v3775, %v3776
      %v3778 = vrot.slane %v3646, 5
      %v3779 = vrot.slane %v3778, 4
      %v3780 = vrot.slane %v3647, 5
      %v3781 = vsel %vm1825, %v3779, %v3780
      %v3782 = vrot.slane %v3780, 4
      %v3783 = vrot.slane %v3648, 5
      %v3784 = vsel %vm1825, %v3782, %v3783
      %v3785 = vrot.slane %v3649, 5
      %v3786 = vrot.slane %v3785, 4
      %v3787 = vrot.slane %v3650, 5
      %v3788 = vsel %vm1825, %v3786, %v3787
      %v3789 = vrot.slane %v3787, 4
      %v3790 = vrot.slane %v3651, 5
      %v3791 = vsel %vm1825, %v3789, %v3790
      %v3792 = vrot.slane %v3652, 5
      %v3793 = vrot.slane %v3792, 4
      %v3794 = vrot.slane %v3653, 5
      %v3795 = vsel %vm1825, %v3793, %v3794
      %v3796 = vrot.slane %v3794, 4
      %v3797 = vrot.slane %v3654, 5
      %v3798 = vsel %vm1825, %v3796, %v3797
      %v3799 = vrot.slane %v3655, 5
      %v3800 = vrot.slane %v3799, 4
      %v3801 = vrot.slane %v3656, 5
      %v3802 = vsel %vm1825, %v3800, %v3801
      %v3803 = vrot.slane %v3801, 4
      %v3804 = vrot.slane %v3657, 5
      %v3805 = vsel %vm1825, %v3803, %v3804
      %v3806 = vrot.slane %v3658, 5
      %v3807 = vrot.slane %v3806, 4
      %v3808 = vrot.slane %v3659, 5
      %v3809 = vsel %vm1825, %v3807, %v3808
      %v3810 = vrot.slane %v3808, 4
      %v3811 = vrot.slane %v3660, 5
      %v3812 = vsel %vm1825, %v3810, %v3811
      %v3813 = vrot.slane %v3661, 5
      %v3814 = vrot.slane %v3813, 4
      %v3815 = vrot.slane %v3662, 5
      %v3816 = vsel %vm1825, %v3814, %v3815
      %v3817 = vrot.slane %v3815, 4
      %v3818 = vrot.slane %v3663, 5
      %v3819 = vsel %vm1825, %v3817, %v3818
      %v3820 = vrot.slane %v3664, 5
      %v3821 = vrot.slane %v3820, 4
      %v3822 = vrot.slane %v3665, 5
      %v3823 = vsel %vm1825, %v3821, %v3822
      %v3824 = vrot.slane %v3822, 4
      %v3825 = vrot.slane %v3666, 5
      %v3826 = vsel %vm1825, %v3824, %v3825
      %v3827 = vunpack.c.l.b16 %v3718
      %v3828 = vunpack.c.l.b16 %v3721
      %v3829 = vunpack.c.l.b16 %v3725
      %v3830 = vunpack.c.l.b16 %v3728
      %v3831 = vunpack.c.l.b16 %v3732
      %v3832 = vunpack.c.l.b16 %v3735
      %v3833 = vunpack.c.l.b16 %v3739
      %v3834 = vunpack.c.l.b16 %v3742
      %v3835 = vunpack.c.l.b16 %v3746
      %v3836 = vunpack.c.l.b16 %v3749
      %v3837 = vunpack.c.l.b16 %v3753
      %v3838 = vunpack.c.l.b16 %v3756
      %v3839 = vunpack.c.l.b16 %v3760
      %v3840 = vunpack.c.l.b16 %v3763
      %v3841 = vunpack.c.l.b16 %v3767
      %v3842 = vunpack.c.l.b16 %v3770
      %v3843 = vunpack.c.l.b16 %v3774
      %v3844 = vunpack.c.l.b16 %v3777
      %v3845 = vunpack.c.l.b16 %v3781
      %v3846 = vunpack.c.l.b16 %v3784
      %v3847 = vunpack.c.l.b16 %v3788
      %v3848 = vunpack.c.l.b16 %v3791
      %v3849 = vunpack.c.l.b16 %v3795
      %v3850 = vunpack.c.l.b16 %v3798
      %v3851 = vunpack.c.l.b16 %v3802
      %v3852 = vunpack.c.l.b16 %v3805
      %v3853 = vunpack.c.l.b16 %v3809
      %v3854 = vunpack.c.l.b16 %v3812
      %v3855 = vunpack.c.l.b16 %v3816
      %v3856 = vunpack.c.l.b16 %v3819
      %v3857 = vunpack.c.l.b16 %v3823
      %v3858 = vunpack.c.l.b16 %v3826
      %v3859 = vpack.c.b16 %v3828, %v3827
      %v3860 = vpack.c.b16 %v3830, %v3829
      %v3861 = vpack.c.b16 %v3832, %v3831
      %v3862 = vpack.c.b16 %v3834, %v3833
      %v3863 = vpack.c.b16 %v3836, %v3835
      %v3864 = vpack.c.b16 %v3838, %v3837
      %v3865 = vpack.c.b16 %v3840, %v3839
      %v3866 = vpack.c.b16 %v3842, %v3841
      %v3867 = vpack.c.b16 %v3844, %v3843
      %v3868 = vpack.c.b16 %v3846, %v3845
      %v3869 = vpack.c.b16 %v3848, %v3847
      %v3870 = vpack.c.b16 %v3850, %v3849
      %v3871 = vpack.c.b16 %v3852, %v3851
      %v3872 = vpack.c.b16 %v3854, %v3853
      %v3873 = vpack.c.b16 %v3856, %v3855
      %v3874 = vpack.c.b16 %v3858, %v3857
      %3891 = vst [vmem:[#allocation3 + $0x40] sm:$0xff] %v3859
      %3892 = vst [vmem:[#allocation3 + $0x88] sm:$0xff] %v3860
      %3893 = vst [vmem:[#allocation3 + $0xd0] sm:$0xff] %v3861
      %3894 = vst [vmem:[#allocation3 + $0x118] sm:$0xff] %v3862
      %3895 = vst [vmem:[#allocation3 + $0x160] sm:$0xff] %v3863
      %3896 = vst [vmem:[#allocation3 + $0x1a8] sm:$0xff] %v3864
      %3897 = vst [vmem:[#allocation3 + $0x1f0] sm:$0xff] %v3865
      %3898 = vst [vmem:[#allocation3 + $0x238] sm:$0xff] %v3866
      %3899 = vst [vmem:[#allocation3 + $0x280] sm:$0xff] %v3867
      %3900 = vst [vmem:[#allocation3 + $0x2c8] sm:$0xff] %v3868
      %3901 = vst [vmem:[#allocation3 + $0x310] sm:$0xff] %v3869
      %3902 = vst [vmem:[#allocation3 + $0x358] sm:$0xff] %v3870
      %3903 = vst [vmem:[#allocation3 + $0x3a0] sm:$0xff] %v3871
      %3904 = vst [vmem:[#allocation3 + $0x3e8] sm:$0xff] %v3872
      %3905 = vst [vmem:[#allocation3 + $0x430] sm:$0xff] %v3873
      %3906 = vst [vmem:[#allocation3 + $0x478] sm:$0xff] %v3874
      %v3907 = vld [vmem:[#allocation3] sm:$0xff]
      %v3908 = vld [vmem:[#allocation3 + $0x8] sm:$0xff]
      %v3909 = vld [vmem:[#allocation3 + $0x10] sm:$0xff]
      %v3910 = vld [vmem:[#allocation3 + $0x18] sm:$0xff]
      %v3911 = vld [vmem:[#allocation3 + $0x20] sm:$0xff]
      %v3912 = vld [vmem:[#allocation3 + $0x28] sm:$0xff]
      %v3913 = vld [vmem:[#allocation3 + $0x30] sm:$0xff]
      %v3914 = vld [vmem:[#allocation3 + $0x38] sm:$0xff]
      %v3915 = vld [vmem:[#allocation3 + $0x40] sm:$0xff]
      %v3916 = vld [vmem:[#allocation3 + $0x48] sm:$0xff]
      %v3917 = vld [vmem:[#allocation3 + $0x50] sm:$0xff]
      %v3918 = vld [vmem:[#allocation3 + $0x58] sm:$0xff]
      %v3919 = vld [vmem:[#allocation3 + $0x60] sm:$0xff]
      %v3920 = vld [vmem:[#allocation3 + $0x68] sm:$0xff]
      %v3921 = vld [vmem:[#allocation3 + $0x70] sm:$0xff]
      %v3922 = vld [vmem:[#allocation3 + $0x78] sm:$0xff]
      %v3923 = vld [vmem:[#allocation3 + $0x80] sm:$0xff]
      %v3924 = vld [vmem:[#allocation3 + $0x88] sm:$0xff]
      %v3925 = vld [vmem:[#allocation3 + $0x90] sm:$0xff]
      %v3926 = vld [vmem:[#allocation3 + $0x98] sm:$0xff]
      %v3927 = vld [vmem:[#allocation3 + $0xa0] sm:$0xff]
      %v3928 = vld [vmem:[#allocation3 + $0xa8] sm:$0xff]
      %v3929 = vld [vmem:[#allocation3 + $0xb0] sm:$0xff]
      %v3930 = vld [vmem:[#allocation3 + $0xb8] sm:$0xff]
      %v3931 = vld [vmem:[#allocation3 + $0xc0] sm:$0xff]
      %v3932 = vld [vmem:[#allocation3 + $0xc8] sm:$0xff]
      %v3933 = vld [vmem:[#allocation3 + $0xd0] sm:$0xff]
      %v3934 = vld [vmem:[#allocation3 + $0xd8] sm:$0xff]
      %v3935 = vld [vmem:[#allocation3 + $0xe0] sm:$0xff]
      %v3936 = vld [vmem:[#allocation3 + $0xe8] sm:$0xff]
      %v3937 = vld [vmem:[#allocation3 + $0xf0] sm:$0xff]
      %v3938 = vld [vmem:[#allocation3 + $0xf8] sm:$0xff]
      %v3939 = vld [vmem:[#allocation3 + $0x100] sm:$0xff]
      %v3940 = vld [vmem:[#allocation3 + $0x108] sm:$0xff]
      %v3941 = vld [vmem:[#allocation3 + $0x110] sm:$0xff]
      %v3942 = vld [vmem:[#allocation3 + $0x118] sm:$0xff]
      %v3943 = vld [vmem:[#allocation3 + $0x120] sm:$0xff]
      %v3944 = vld [vmem:[#allocation3 + $0x128] sm:$0xff]
      %v3945 = vld [vmem:[#allocation3 + $0x130] sm:$0xff]
      %v3946 = vld [vmem:[#allocation3 + $0x138] sm:$0xff]
      %v3947 = vld [vmem:[#allocation3 + $0x140] sm:$0xff]
      %v3948 = vld [vmem:[#allocation3 + $0x148] sm:$0xff]
      %v3949 = vld [vmem:[#allocation3 + $0x150] sm:$0xff]
      %v3950 = vld [vmem:[#allocation3 + $0x158] sm:$0xff]
      %v3951 = vld [vmem:[#allocation3 + $0x160] sm:$0xff]
      %v3952 = vld [vmem:[#allocation3 + $0x168] sm:$0xff]
      %v3953 = vld [vmem:[#allocation3 + $0x170] sm:$0xff]
      %v3954 = vld [vmem:[#allocation3 + $0x178] sm:$0xff]
      %v3955 = vld [vmem:[#allocation3 + $0x180] sm:$0xff]
      %v3956 = vld [vmem:[#allocation3 + $0x188] sm:$0xff]
      %v3957 = vld [vmem:[#allocation3 + $0x190] sm:$0xff]
      %v3958 = vld [vmem:[#allocation3 + $0x198] sm:$0xff]
      %v3959 = vld [vmem:[#allocation3 + $0x1a0] sm:$0xff]
      %v3960 = vld [vmem:[#allocation3 + $0x1a8] sm:$0xff]
      %v3961 = vld [vmem:[#allocation3 + $0x1b0] sm:$0xff]
      %v3962 = vld [vmem:[#allocation3 + $0x1b8] sm:$0xff]
      %v3963 = vld [vmem:[#allocation3 + $0x1c0] sm:$0xff]
      %v3964 = vld [vmem:[#allocation3 + $0x1c8] sm:$0xff]
      %v3965 = vld [vmem:[#allocation3 + $0x1d0] sm:$0xff]
      %v3966 = vld [vmem:[#allocation3 + $0x1d8] sm:$0xff]
      %v3967 = vld [vmem:[#allocation3 + $0x1e0] sm:$0xff]
      %v3968 = vld [vmem:[#allocation3 + $0x1e8] sm:$0xff]
      %v3969 = vld [vmem:[#allocation3 + $0x1f0] sm:$0xff]
      %v3970 = vld [vmem:[#allocation3 + $0x1f8] sm:$0xff]
      %v3971 = vld [vmem:[#allocation3 + $0x200] sm:$0xff]
      %v3972 = vld [vmem:[#allocation3 + $0x208] sm:$0xff]
      %v3973 = vld [vmem:[#allocation3 + $0x210] sm:$0xff]
      %v3974 = vld [vmem:[#allocation3 + $0x218] sm:$0xff]
      %v3975 = vld [vmem:[#allocation3 + $0x220] sm:$0xff]
      %v3976 = vld [vmem:[#allocation3 + $0x228] sm:$0xff]
      %v3977 = vld [vmem:[#allocation3 + $0x230] sm:$0xff]
      %v3978 = vld [vmem:[#allocation3 + $0x238] sm:$0xff]
      %v3979 = vld [vmem:[#allocation3 + $0x240] sm:$0xff]
      %v3980 = vld [vmem:[#allocation3 + $0x248] sm:$0xff]
      %v3981 = vld [vmem:[#allocation3 + $0x250] sm:$0xff]
      %v3982 = vld [vmem:[#allocation3 + $0x258] sm:$0xff]
      %v3983 = vld [vmem:[#allocation3 + $0x260] sm:$0xff]
      %v3984 = vld [vmem:[#allocation3 + $0x268] sm:$0xff]
      %v3985 = vld [vmem:[#allocation3 + $0x270] sm:$0xff]
      %v3986 = vld [vmem:[#allocation3 + $0x278] sm:$0xff]
      %v3987 = vld [vmem:[#allocation3 + $0x280] sm:$0xff]
      %v3988 = vld [vmem:[#allocation3 + $0x288] sm:$0xff]
      %v3989 = vld [vmem:[#allocation3 + $0x290] sm:$0xff]
      %v3990 = vld [vmem:[#allocation3 + $0x298] sm:$0xff]
      %v3991 = vld [vmem:[#allocation3 + $0x2a0] sm:$0xff]
      %v3992 = vld [vmem:[#allocation3 + $0x2a8] sm:$0xff]
      %v3993 = vld [vmem:[#allocation3 + $0x2b0] sm:$0xff]
      %v3994 = vld [vmem:[#allocation3 + $0x2b8] sm:$0xff]
      %v3995 = vld [vmem:[#allocation3 + $0x2c0] sm:$0xff]
      %v3996 = vld [vmem:[#allocation3 + $0x2c8] sm:$0xff]
      %v3997 = vld [vmem:[#allocation3 + $0x2d0] sm:$0xff]
      %v3998 = vld [vmem:[#allocation3 + $0x2d8] sm:$0xff]
      %v3999 = vld [vmem:[#allocation3 + $0x2e0] sm:$0xff]
      %v4000 = vld [vmem:[#allocation3 + $0x2e8] sm:$0xff]
      %v4001 = vld [vmem:[#allocation3 + $0x2f0] sm:$0xff]
      %v4002 = vld [vmem:[#allocation3 + $0x2f8] sm:$0xff]
      %v4003 = vld [vmem:[#allocation3 + $0x300] sm:$0xff]
      %v4004 = vld [vmem:[#allocation3 + $0x308] sm:$0xff]
      %v4005 = vld [vmem:[#allocation3 + $0x310] sm:$0xff]
      %v4006 = vld [vmem:[#allocation3 + $0x318] sm:$0xff]
      %v4007 = vld [vmem:[#allocation3 + $0x320] sm:$0xff]
      %v4008 = vld [vmem:[#allocation3 + $0x328] sm:$0xff]
      %v4009 = vld [vmem:[#allocation3 + $0x330] sm:$0xff]
      %v4010 = vld [vmem:[#allocation3 + $0x338] sm:$0xff]
      %v4011 = vld [vmem:[#allocation3 + $0x340] sm:$0xff]
      %v4012 = vld [vmem:[#allocation3 + $0x348] sm:$0xff]
      %v4013 = vld [vmem:[#allocation3 + $0x350] sm:$0xff]
      %v4014 = vld [vmem:[#allocation3 + $0x358] sm:$0xff]
      %v4015 = vld [vmem:[#allocation3 + $0x360] sm:$0xff]
      %v4016 = vld [vmem:[#allocation3 + $0x368] sm:$0xff]
      %v4017 = vld [vmem:[#allocation3 + $0x370] sm:$0xff]
      %v4018 = vld [vmem:[#allocation3 + $0x378] sm:$0xff]
      %v4019 = vld [vmem:[#allocation3 + $0x380] sm:$0xff]
      %v4020 = vld [vmem:[#allocation3 + $0x388] sm:$0xff]
      %v4021 = vld [vmem:[#allocation3 + $0x390] sm:$0xff]
      %v4022 = vld [vmem:[#allocation3 + $0x398] sm:$0xff]
      %v4023 = vld [vmem:[#allocation3 + $0x3a0] sm:$0xff]
      %v4024 = vld [vmem:[#allocation3 + $0x3a8] sm:$0xff]
      %v4025 = vld [vmem:[#allocation3 + $0x3b0] sm:$0xff]
      %v4026 = vld [vmem:[#allocation3 + $0x3b8] sm:$0xff]
      %v4027 = vld [vmem:[#allocation3 + $0x3c0] sm:$0xff]
      %v4028 = vld [vmem:[#allocation3 + $0x3c8] sm:$0xff]
      %v4029 = vld [vmem:[#allocation3 + $0x3d0] sm:$0xff]
      %v4030 = vld [vmem:[#allocation3 + $0x3d8] sm:$0xff]
      %v4031 = vld [vmem:[#allocation3 + $0x3e0] sm:$0xff]
      %v4032 = vld [vmem:[#allocation3 + $0x3e8] sm:$0xff]
      %v4033 = vld [vmem:[#allocation3 + $0x3f0] sm:$0xff]
      %v4034 = vld [vmem:[#allocation3 + $0x3f8] sm:$0xff]
      %v4035 = vld [vmem:[#allocation3 + $0x400] sm:$0xff]
      %v4036 = vld [vmem:[#allocation3 + $0x408] sm:$0xff]
      %v4037 = vld [vmem:[#allocation3 + $0x410] sm:$0xff]
      %v4038 = vld [vmem:[#allocation3 + $0x418] sm:$0xff]
      %v4039 = vld [vmem:[#allocation3 + $0x420] sm:$0xff]
      %v4040 = vld [vmem:[#allocation3 + $0x428] sm:$0xff]
      %v4041 = vld [vmem:[#allocation3 + $0x430] sm:$0xff]
      %v4042 = vld [vmem:[#allocation3 + $0x438] sm:$0xff]
      %v4043 = vld [vmem:[#allocation3 + $0x440] sm:$0xff]
      %v4044 = vld [vmem:[#allocation3 + $0x448] sm:$0xff]
      %v4045 = vld [vmem:[#allocation3 + $0x450] sm:$0xff]
      %v4046 = vld [vmem:[#allocation3 + $0x458] sm:$0xff]
      %v4047 = vld [vmem:[#allocation3 + $0x460] sm:$0xff]
      %v4048 = vld [vmem:[#allocation3 + $0x468] sm:$0xff]
      %v4049 = vld [vmem:[#allocation3 + $0x470] sm:$0xff]
      %v4050 = vld [vmem:[#allocation3 + $0x478] sm:$0xff]
      %v4051 = vld [vmem:[%s3] sm:$0xf]
      %v4052 = vld [vmem:[%s3 + $0x4] sm:$0xf]
      %v4053 = vld [vmem:[%s3 + $0x8] sm:$0xf]
      %v4054 = vld [vmem:[%s3 + $0xc] sm:$0xf]
      %v4055 = vld [vmem:[%s3 + $0x10] sm:$0xf]
      %v4056 = vld [vmem:[%s3 + $0x14] sm:$0xf]
      %v4057 = vld [vmem:[%s3 + $0x18] sm:$0xf]
      %v4058 = vld [vmem:[%s3 + $0x1c] sm:$0xf]
      %v4059 = vld [vmem:[%s3 + $0x20] sm:$0xf]
      %v4060 = vld [vmem:[%s3 + $0x24] sm:$0xf]
      %v4061 = vld [vmem:[%s3 + $0x28] sm:$0xf]
      %v4062 = vld [vmem:[%s3 + $0x2c] sm:$0xf]
      %v4063 = vld [vmem:[%s3 + $0x30] sm:$0xf]
      %v4064 = vld [vmem:[%s3 + $0x34] sm:$0xf]
      %v4065 = vld [vmem:[%s3 + $0x38] sm:$0xf]
      %v4066 = vld [vmem:[%s3 + $0x3c] sm:$0xf]
      %v4067 = vld [vmem:[%s3 + $0x40] sm:$0xf]
      %v4068 = vld [vmem:[%s3 + $0x44] sm:$0xf]
      %v4069 = vld [vmem:[%s3 + $0x48] sm:$0xf]
      %v4070 = vld [vmem:[%s3 + $0x4c] sm:$0xf]
      %v4071 = vld [vmem:[%s3 + $0x50] sm:$0xf]
      %v4072 = vld [vmem:[%s3 + $0x54] sm:$0xf]
      %v4073 = vld [vmem:[%s3 + $0x58] sm:$0xf]
      %v4074 = vld [vmem:[%s3 + $0x5c] sm:$0xf]
      %v4075 = vld [vmem:[%s3 + $0x60] sm:$0xf]
      %v4076 = vld [vmem:[%s3 + $0x64] sm:$0xf]
      %v4077 = vld [vmem:[%s3 + $0x68] sm:$0xf]
      %v4078 = vld [vmem:[%s3 + $0x6c] sm:$0xf]
      %v4079 = vld [vmem:[%s3 + $0x70] sm:$0xf]
      %v4080 = vld [vmem:[%s3 + $0x74] sm:$0xf]
      %v4081 = vld [vmem:[%s3 + $0x78] sm:$0xf]
      %v4082 = vld [vmem:[%s3 + $0x7c] sm:$0xf]
      %v4083 = vld [vmem:[%s3 + $0x80] sm:$0xf]
      %v4084 = vld [vmem:[%s3 + $0x84] sm:$0xf]
      %v4085 = vld [vmem:[%s3 + $0x88] sm:$0xf]
      %v4086 = vld [vmem:[%s3 + $0x8c] sm:$0xf]
      %v4087 = vld [vmem:[%s3 + $0x90] sm:$0xf]
      %v4088 = vld [vmem:[%s3 + $0x94] sm:$0xf]
      %v4089 = vld [vmem:[%s3 + $0x98] sm:$0xf]
      %v4090 = vld [vmem:[%s3 + $0x9c] sm:$0xf]
      %v4091 = vld [vmem:[%s3 + $0xa0] sm:$0xf]
      %v4092 = vld [vmem:[%s3 + $0xa4] sm:$0xf]
      %v4093 = vld [vmem:[%s3 + $0xa8] sm:$0xf]
      %v4094 = vld [vmem:[%s3 + $0xac] sm:$0xf]
      %v4095 = vld [vmem:[%s3 + $0xb0] sm:$0xf]
      %v4096 = vld [vmem:[%s3 + $0xb4] sm:$0xf]
      %v4097 = vld [vmem:[%s3 + $0xb8] sm:$0xf]
      %v4098 = vld [vmem:[%s3 + $0xbc] sm:$0xf]
      %v4099 = vld [vmem:[%s3 + $0xc0] sm:$0xf]
      %v4100 = vld [vmem:[%s3 + $0xc4] sm:$0xf]
      %v4101 = vld [vmem:[%s3 + $0xc8] sm:$0xf]
      %v4102 = vld [vmem:[%s3 + $0xcc] sm:$0xf]
      %v4103 = vld [vmem:[%s3 + $0xd0] sm:$0xf]
      %v4104 = vld [vmem:[%s3 + $0xd4] sm:$0xf]
      %v4105 = vld [vmem:[%s3 + $0xd8] sm:$0xf]
      %v4106 = vld [vmem:[%s3 + $0xdc] sm:$0xf]
      %v4107 = vld [vmem:[%s3 + $0xe0] sm:$0xf]
      %v4108 = vld [vmem:[%s3 + $0xe4] sm:$0xf]
      %v4109 = vld [vmem:[%s3 + $0xe8] sm:$0xf]
      %v4110 = vld [vmem:[%s3 + $0xec] sm:$0xf]
      %v4111 = vld [vmem:[%s3 + $0xf0] sm:$0xf]
      %v4112 = vld [vmem:[%s3 + $0xf4] sm:$0xf]
      %v4113 = vld [vmem:[%s3 + $0xf8] sm:$0xf]
      %v4114 = vld [vmem:[%s3 + $0xfc] sm:$0xf]
      %v4115 = vld [vmem:[%s3 + $0x100] sm:$0xf]
      %v4116 = vld [vmem:[%s3 + $0x104] sm:$0xf]
      %v4117 = vld [vmem:[%s3 + $0x108] sm:$0xf]
      %v4118 = vld [vmem:[%s3 + $0x10c] sm:$0xf]
      %v4119 = vld [vmem:[%s3 + $0x110] sm:$0xf]
      %v4120 = vld [vmem:[%s3 + $0x114] sm:$0xf]
      %v4121 = vld [vmem:[%s3 + $0x118] sm:$0xf]
      %v4122 = vld [vmem:[%s3 + $0x11c] sm:$0xf]
      %v4123 = vld [vmem:[%s3 + $0x120] sm:$0xf]
      %v4124 = vld [vmem:[%s3 + $0x124] sm:$0xf]
      %v4125 = vld [vmem:[%s3 + $0x128] sm:$0xf]
      %v4126 = vld [vmem:[%s3 + $0x12c] sm:$0xf]
      %v4127 = vld [vmem:[%s3 + $0x130] sm:$0xf]
      %v4128 = vld [vmem:[%s3 + $0x134] sm:$0xf]
      %v4129 = vld [vmem:[%s3 + $0x138] sm:$0xf]
      %v4130 = vld [vmem:[%s3 + $0x13c] sm:$0xf]
      %v4131 = vld [vmem:[%s3 + $0x140] sm:$0xf]
      %v4132 = vld [vmem:[%s3 + $0x144] sm:$0xf]
      %v4133 = vld [vmem:[%s3 + $0x148] sm:$0xf]
      %v4134 = vld [vmem:[%s3 + $0x14c] sm:$0xf]
      %v4135 = vld [vmem:[%s3 + $0x150] sm:$0xf]
      %v4136 = vld [vmem:[%s3 + $0x154] sm:$0xf]
      %v4137 = vld [vmem:[%s3 + $0x158] sm:$0xf]
      %v4138 = vld [vmem:[%s3 + $0x15c] sm:$0xf]
      %v4139 = vld [vmem:[%s3 + $0x160] sm:$0xf]
      %v4140 = vld [vmem:[%s3 + $0x164] sm:$0xf]
      %v4141 = vld [vmem:[%s3 + $0x168] sm:$0xf]
      %v4142 = vld [vmem:[%s3 + $0x16c] sm:$0xf]
      %v4143 = vld [vmem:[%s3 + $0x170] sm:$0xf]
      %v4144 = vld [vmem:[%s3 + $0x174] sm:$0xf]
      %v4145 = vld [vmem:[%s3 + $0x178] sm:$0xf]
      %v4146 = vld [vmem:[%s3 + $0x17c] sm:$0xf]
      %v4147 = vld [vmem:[%s3 + $0x180] sm:$0xf]
      %v4148 = vld [vmem:[%s3 + $0x184] sm:$0xf]
      %v4149 = vld [vmem:[%s3 + $0x188] sm:$0xf]
      %v4150 = vld [vmem:[%s3 + $0x18c] sm:$0xf]
      %v4151 = vld [vmem:[%s3 + $0x190] sm:$0xf]
      %v4152 = vld [vmem:[%s3 + $0x194] sm:$0xf]
      %v4153 = vld [vmem:[%s3 + $0x198] sm:$0xf]
      %v4154 = vld [vmem:[%s3 + $0x19c] sm:$0xf]
      %v4155 = vld [vmem:[%s3 + $0x1a0] sm:$0xf]
      %v4156 = vld [vmem:[%s3 + $0x1a4] sm:$0xf]
      %v4157 = vld [vmem:[%s3 + $0x1a8] sm:$0xf]
      %v4158 = vld [vmem:[%s3 + $0x1ac] sm:$0xf]
      %v4159 = vld [vmem:[%s3 + $0x1b0] sm:$0xf]
      %v4160 = vld [vmem:[%s3 + $0x1b4] sm:$0xf]
      %v4161 = vld [vmem:[%s3 + $0x1b8] sm:$0xf]
      %v4162 = vld [vmem:[%s3 + $0x1bc] sm:$0xf]
      %v4163 = vld [vmem:[%s3 + $0x1c0] sm:$0xf]
      %v4164 = vld [vmem:[%s3 + $0x1c4] sm:$0xf]
      %v4165 = vld [vmem:[%s3 + $0x1c8] sm:$0xf]
      %v4166 = vld [vmem:[%s3 + $0x1cc] sm:$0xf]
      %v4167 = vld [vmem:[%s3 + $0x1d0] sm:$0xf]
      %v4168 = vld [vmem:[%s3 + $0x1d4] sm:$0xf]
      %v4169 = vld [vmem:[%s3 + $0x1d8] sm:$0xf]
      %v4170 = vld [vmem:[%s3 + $0x1dc] sm:$0xf]
      %v4171 = vld [vmem:[%s3 + $0x1e0] sm:$0xf]
      %v4172 = vld [vmem:[%s3 + $0x1e4] sm:$0xf]
      %v4173 = vld [vmem:[%s3 + $0x1e8] sm:$0xf]
      %v4174 = vld [vmem:[%s3 + $0x1ec] sm:$0xf]
      %v4175 = vld [vmem:[%s3 + $0x1f0] sm:$0xf]
      %v4176 = vld [vmem:[%s3 + $0x1f4] sm:$0xf]
      %v4177 = vld [vmem:[%s3 + $0x1f8] sm:$0xf]
      %v4178 = vld [vmem:[%s3 + $0x1fc] sm:$0xf]
      %v4179 = vld [vmem:[%s3 + $0x200] sm:$0xf]
      %v4180 = vld [vmem:[%s3 + $0x204] sm:$0xf]
      %v4181 = vld [vmem:[%s3 + $0x208] sm:$0xf]
      %v4182 = vld [vmem:[%s3 + $0x20c] sm:$0xf]
      %v4183 = vld [vmem:[%s3 + $0x210] sm:$0xf]
      %v4184 = vld [vmem:[%s3 + $0x214] sm:$0xf]
      %v4185 = vld [vmem:[%s3 + $0x218] sm:$0xf]
      %v4186 = vld [vmem:[%s3 + $0x21c] sm:$0xf]
      %v4187 = vld [vmem:[%s3 + $0x220] sm:$0xf]
      %v4188 = vld [vmem:[%s3 + $0x224] sm:$0xf]
      %v4189 = vld [vmem:[%s3 + $0x228] sm:$0xf]
      %v4190 = vld [vmem:[%s3 + $0x22c] sm:$0xf]
      %v4191 = vld [vmem:[%s3 + $0x230] sm:$0xf]
      %v4192 = vld [vmem:[%s3 + $0x234] sm:$0xf]
      %v4193 = vld [vmem:[%s3 + $0x238] sm:$0xf]
      %v4194 = vld [vmem:[%s3 + $0x23c] sm:$0xf]
      %v4195 = vld [vmem:[%s4] sm:$0x1]
      %v4197 = vlaneseq
      %v4198 = vshrl.u32 %v4197, 7
      %v4199 = vsub.s32 0, %v4198
      %v4200 = vrot.slane %v4195, %v4199
      %v4346 = vunpack.c.l.b16 %v4051
      %v4347 = vunpack.c.l.b16 %v4052
      %v4348 = vunpack.c.l.b16 %v4053
      %v4349 = vunpack.c.l.b16 %v4054
      %v4350 = vunpack.c.l.b16 %v4055
      %v4351 = vunpack.c.l.b16 %v4056
      %v4352 = vunpack.c.l.b16 %v4057
      %v4353 = vunpack.c.l.b16 %v4058
      %v4354 = vunpack.c.l.b16 %v4059
      %v4355 = vunpack.c.l.b16 %v4060
      %v4356 = vunpack.c.l.b16 %v4061
      %v4357 = vunpack.c.l.b16 %v4062
      %v4358 = vunpack.c.l.b16 %v4063
      %v4359 = vunpack.c.l.b16 %v4064
      %v4360 = vunpack.c.l.b16 %v4065
      %v4361 = vunpack.c.l.b16 %v4066
      %v4362 = vunpack.c.l.b16 %v4067
      %v4363 = vunpack.c.l.b16 %v4068
      %v4364 = vunpack.c.l.b16 %v4069
      %v4365 = vunpack.c.l.b16 %v4070
      %v4366 = vunpack.c.l.b16 %v4071
      %v4367 = vunpack.c.l.b16 %v4072
      %v4368 = vunpack.c.l.b16 %v4073
      %v4369 = vunpack.c.l.b16 %v4074
      %v4370 = vunpack.c.l.b16 %v4075
      %v4371 = vunpack.c.l.b16 %v4076
      %v4372 = vunpack.c.l.b16 %v4077
      %v4373 = vunpack.c.l.b16 %v4078
      %v4374 = vunpack.c.l.b16 %v4079
      %v4375 = vunpack.c.l.b16 %v4080
      %v4376 = vunpack.c.l.b16 %v4081
      %v4377 = vunpack.c.l.b16 %v4082
      %v4378 = vunpack.c.l.b16 %v4083
      %v4379 = vunpack.c.l.b16 %v4084
      %v4380 = vunpack.c.l.b16 %v4085
      %v4381 = vunpack.c.l.b16 %v4086
      %v4382 = vunpack.c.l.b16 %v4087
      %v4383 = vunpack.c.l.b16 %v4088
      %v4384 = vunpack.c.l.b16 %v4089
      %v4385 = vunpack.c.l.b16 %v4090
      %v4386 = vunpack.c.l.b16 %v4091
      %v4387 = vunpack.c.l.b16 %v4092
      %v4388 = vunpack.c.l.b16 %v4093
      %v4389 = vunpack.c.l.b16 %v4094
      %v4390 = vunpack.c.l.b16 %v4095
      %v4391 = vunpack.c.l.b16 %v4096
      %v4392 = vunpack.c.l.b16 %v4097
      %v4393 = vunpack.c.l.b16 %v4098
      %v4394 = vunpack.c.l.b16 %v4099
      %v4395 = vunpack.c.l.b16 %v4100
      %v4396 = vunpack.c.l.b16 %v4101
      %v4397 = vunpack.c.l.b16 %v4102
      %v4398 = vunpack.c.l.b16 %v4103
      %v4399 = vunpack.c.l.b16 %v4104
      %v4400 = vunpack.c.l.b16 %v4105
      %v4401 = vunpack.c.l.b16 %v4106
      %v4402 = vunpack.c.l.b16 %v4107
      %v4403 = vunpack.c.l.b16 %v4108
      %v4404 = vunpack.c.l.b16 %v4109
      %v4405 = vunpack.c.l.b16 %v4110
      %v4406 = vunpack.c.l.b16 %v4111
      %v4407 = vunpack.c.l.b16 %v4112
      %v4408 = vunpack.c.l.b16 %v4113
      %v4409 = vunpack.c.l.b16 %v4114
      %v4410 = vunpack.c.l.b16 %v4115
      %v4411 = vunpack.c.l.b16 %v4116
      %v4412 = vunpack.c.l.b16 %v4117
      %v4413 = vunpack.c.l.b16 %v4118
      %v4414 = vunpack.c.l.b16 %v4119
      %v4415 = vunpack.c.l.b16 %v4120
      %v4416 = vunpack.c.l.b16 %v4121
      %v4417 = vunpack.c.l.b16 %v4122
      %v4418 = vunpack.c.l.b16 %v4123
      %v4419 = vunpack.c.l.b16 %v4124
      %v4420 = vunpack.c.l.b16 %v4125
      %v4421 = vunpack.c.l.b16 %v4126
      %v4422 = vunpack.c.l.b16 %v4127
      %v4423 = vunpack.c.l.b16 %v4128
      %v4424 = vunpack.c.l.b16 %v4129
      %v4425 = vunpack.c.l.b16 %v4130
      %v4426 = vunpack.c.l.b16 %v4131
      %v4427 = vunpack.c.l.b16 %v4132
      %v4428 = vunpack.c.l.b16 %v4133
      %v4429 = vunpack.c.l.b16 %v4134
      %v4430 = vunpack.c.l.b16 %v4135
      %v4431 = vunpack.c.l.b16 %v4136
      %v4432 = vunpack.c.l.b16 %v4137
      %v4433 = vunpack.c.l.b16 %v4138
      %v4434 = vunpack.c.l.b16 %v4139
      %v4435 = vunpack.c.l.b16 %v4140
      %v4436 = vunpack.c.l.b16 %v4141
      %v4437 = vunpack.c.l.b16 %v4142
      %v4438 = vunpack.c.l.b16 %v4143
      %v4439 = vunpack.c.l.b16 %v4144
      %v4440 = vunpack.c.l.b16 %v4145
      %v4441 = vunpack.c.l.b16 %v4146
      %v4442 = vunpack.c.l.b16 %v4147
      %v4443 = vunpack.c.l.b16 %v4148
      %v4444 = vunpack.c.l.b16 %v4149
      %v4445 = vunpack.c.l.b16 %v4150
      %v4446 = vunpack.c.l.b16 %v4151
      %v4447 = vunpack.c.l.b16 %v4152
      %v4448 = vunpack.c.l.b16 %v4153
      %v4449 = vunpack.c.l.b16 %v4154
      %v4450 = vunpack.c.l.b16 %v4155
      %v4451 = vunpack.c.l.b16 %v4156
      %v4452 = vunpack.c.l.b16 %v4157
      %v4453 = vunpack.c.l.b16 %v4158
      %v4454 = vunpack.c.l.b16 %v4159
      %v4455 = vunpack.c.l.b16 %v4160
      %v4456 = vunpack.c.l.b16 %v4161
      %v4457 = vunpack.c.l.b16 %v4162
      %v4458 = vunpack.c.l.b16 %v4163
      %v4459 = vunpack.c.l.b16 %v4164
      %v4460 = vunpack.c.l.b16 %v4165
      %v4461 = vunpack.c.l.b16 %v4166
      %v4462 = vunpack.c.l.b16 %v4167
      %v4463 = vunpack.c.l.b16 %v4168
      %v4464 = vunpack.c.l.b16 %v4169
      %v4465 = vunpack.c.l.b16 %v4170
      %v4466 = vunpack.c.l.b16 %v4171
      %v4467 = vunpack.c.l.b16 %v4172
      %v4468 = vunpack.c.l.b16 %v4173
      %v4469 = vunpack.c.l.b16 %v4174
      %v4470 = vunpack.c.l.b16 %v4175
      %v4471 = vunpack.c.l.b16 %v4176
      %v4472 = vunpack.c.l.b16 %v4177
      %v4473 = vunpack.c.l.b16 %v4178
      %v4474 = vunpack.c.l.b16 %v4179
      %v4475 = vunpack.c.l.b16 %v4180
      %v4476 = vunpack.c.l.b16 %v4181
      %v4477 = vunpack.c.l.b16 %v4182
      %v4478 = vunpack.c.l.b16 %v4183
      %v4479 = vunpack.c.l.b16 %v4184
      %v4480 = vunpack.c.l.b16 %v4185
      %v4481 = vunpack.c.l.b16 %v4186
      %v4482 = vunpack.c.l.b16 %v4187
      %v4483 = vunpack.c.l.b16 %v4188
      %v4484 = vunpack.c.l.b16 %v4189
      %v4485 = vunpack.c.l.b16 %v4190
      %v4486 = vunpack.c.l.b16 %v4191
      %v4487 = vunpack.c.l.b16 %v4192
      %v4488 = vunpack.c.l.b16 %v4193
      %v4489 = vunpack.c.l.b16 %v4194
      %v4490 = vpack.c.b16 %v4347, %v4346
      %v4491 = vpack.c.b16 %v4349, %v4348
      %v4492 = vpack.c.b16 %v4351, %v4350
      %v4493 = vpack.c.b16 %v4353, %v4352
      %v4494 = vpack.c.b16 %v4355, %v4354
      %v4495 = vpack.c.b16 %v4357, %v4356
      %v4496 = vpack.c.b16 %v4359, %v4358
      %v4497 = vpack.c.b16 %v4361, %v4360
      %v4498 = vpack.c.b16 %v4363, %v4362
      %v4499 = vpack.c.b16 %v4365, %v4364
      %v4500 = vpack.c.b16 %v4367, %v4366
      %v4501 = vpack.c.b16 %v4369, %v4368
      %v4502 = vpack.c.b16 %v4371, %v4370
      %v4503 = vpack.c.b16 %v4373, %v4372
      %v4504 = vpack.c.b16 %v4375, %v4374
      %v4505 = vpack.c.b16 %v4377, %v4376
      %v4506 = vpack.c.b16 %v4379, %v4378
      %v4507 = vpack.c.b16 %v4381, %v4380
      %v4508 = vpack.c.b16 %v4383, %v4382
      %v4509 = vpack.c.b16 %v4385, %v4384
      %v4510 = vpack.c.b16 %v4387, %v4386
      %v4511 = vpack.c.b16 %v4389, %v4388
      %v4512 = vpack.c.b16 %v4391, %v4390
      %v4513 = vpack.c.b16 %v4393, %v4392
      %v4514 = vpack.c.b16 %v4395, %v4394
      %v4515 = vpack.c.b16 %v4397, %v4396
      %v4516 = vpack.c.b16 %v4399, %v4398
      %v4517 = vpack.c.b16 %v4401, %v4400
      %v4518 = vpack.c.b16 %v4403, %v4402
      %v4519 = vpack.c.b16 %v4405, %v4404
      %v4520 = vpack.c.b16 %v4407, %v4406
      %v4521 = vpack.c.b16 %v4409, %v4408
      %v4522 = vpack.c.b16 %v4411, %v4410
      %v4523 = vpack.c.b16 %v4413, %v4412
      %v4524 = vpack.c.b16 %v4415, %v4414
      %v4525 = vpack.c.b16 %v4417, %v4416
      %v4526 = vpack.c.b16 %v4419, %v4418
      %v4527 = vpack.c.b16 %v4421, %v4420
      %v4528 = vpack.c.b16 %v4423, %v4422
      %v4529 = vpack.c.b16 %v4425, %v4424
      %v4530 = vpack.c.b16 %v4427, %v4426
      %v4531 = vpack.c.b16 %v4429, %v4428
      %v4532 = vpack.c.b16 %v4431, %v4430
      %v4533 = vpack.c.b16 %v4433, %v4432
      %v4534 = vpack.c.b16 %v4435, %v4434
      %v4535 = vpack.c.b16 %v4437, %v4436
      %v4536 = vpack.c.b16 %v4439, %v4438
      %v4537 = vpack.c.b16 %v4441, %v4440
      %v4538 = vpack.c.b16 %v4443, %v4442
      %v4539 = vpack.c.b16 %v4445, %v4444
      %v4540 = vpack.c.b16 %v4447, %v4446
      %v4541 = vpack.c.b16 %v4449, %v4448
      %v4542 = vpack.c.b16 %v4451, %v4450
      %v4543 = vpack.c.b16 %v4453, %v4452
      %v4544 = vpack.c.b16 %v4455, %v4454
      %v4545 = vpack.c.b16 %v4457, %v4456
      %v4546 = vpack.c.b16 %v4459, %v4458
      %v4547 = vpack.c.b16 %v4461, %v4460
      %v4548 = vpack.c.b16 %v4463, %v4462
      %v4549 = vpack.c.b16 %v4465, %v4464
      %v4550 = vpack.c.b16 %v4467, %v4466
      %v4551 = vpack.c.b16 %v4469, %v4468
      %v4552 = vpack.c.b16 %v4471, %v4470
      %v4553 = vpack.c.b16 %v4473, %v4472
      %v4554 = vpack.c.b16 %v4475, %v4474
      %v4555 = vpack.c.b16 %v4477, %v4476
      %v4556 = vpack.c.b16 %v4479, %v4478
      %v4557 = vpack.c.b16 %v4481, %v4480
      %v4558 = vpack.c.b16 %v4483, %v4482
      %v4559 = vpack.c.b16 %v4485, %v4484
      %v4560 = vpack.c.b16 %v4487, %v4486
      %v4561 = vpack.c.b16 %v4489, %v4488
      %4634 = vmatprep.subr.bf16.mxu0 0
      %4635 = vmatpush1.bf16.msra.mxu0 %v4490
      %4636 = vmatprep.subr.bf16.mxu0 0
      %4637 = vmatpush1.bf16.msra.mxu0 %v4491
      %4638 = vmatprep.subr.bf16.mxu0 0
      %4639 = vmatpush1.bf16.msra.mxu0 %v4492
      %4640 = vmatprep.subr.bf16.mxu0 0
      %4641 = vmatpush1.bf16.msra.mxu0 %v4493
      %4642 = vmatprep.subr.bf16.mxu0 0
      %4643 = vmatpush1.bf16.msra.mxu0 %v4494
      %4644 = vmatprep.subr.bf16.mxu0 0
      %4645 = vmatpush1.bf16.msra.mxu0 %v4495
      %4646 = vmatprep.subr.bf16.mxu0 0
      %4647 = vmatpush1.bf16.msra.mxu0 %v4496
      %4648 = vmatprep.subr.bf16.mxu0 0
      %4649 = vmatpush1.bf16.msra.mxu0 %v4497
      %4650 = vmatprep.subr.bf16.mxu0 0
      %4651 = vmatpush1.bf16.msra.mxu0 %v4498
      %4652 = vmatprep.subr.bf16.mxu0 0
      %4653 = vmatpush1.bf16.msra.mxu0 %v4499
      %4654 = vmatprep.subr.bf16.mxu0 0
      %4655 = vmatpush1.bf16.msra.mxu0 %v4500
      %4656 = vmatprep.subr.bf16.mxu0 0
      %4657 = vmatpush1.bf16.msra.mxu0 %v4501
      %4658 = vmatprep.subr.bf16.mxu0 0
      %4659 = vmatpush1.bf16.msra.mxu0 %v4502
      %4660 = vmatprep.subr.bf16.mxu0 0
      %4661 = vmatpush1.bf16.msra.mxu0 %v4503
      %4662 = vmatprep.subr.bf16.mxu0 0
      %4663 = vmatpush1.bf16.msra.mxu0 %v4504
      %4664 = vmatprep.subr.bf16.mxu0 0
      %4665 = vmatpush1.bf16.msra.mxu0 %v4505
      %4666 = vmatprep.mubr.bf16.mxu0 %v3908
      %4667 = vmatmul.mubr.bf16.gmra.mrb[0].mxu0 %v3907
      %v4668 = vpop.f32.mrb[0].mxu0
      %v4669 = vadd.f32 %v4200, %v4668
      %v4670 = vpop.f32.mrb[0].mxu0
      %v4671 = vpop.f32.mrb[0].mxu0
      %v4672 = vadd.f32 %v4200, %v4671
      %v4673 = vpop.f32.mrb[0].mxu0
      %4674 = vmatprep.mubr.bf16.mxu0 %v3917
      %4675 = vmatmul.mubr.bf16.gmra.mrb[0].mxu0 %v3916
      %v4676 = vpop.f32.mrb[0].mxu0
      %v4677 = vadd.f32 %v4200, %v4676
      %v4678 = vpop.f32.mrb[0].mxu0
      %v4679 = vpop.f32.mrb[0].mxu0
      %v4680 = vadd.f32 %v4200, %v4679
      %v4681 = vpop.f32.mrb[0].mxu0
      %4682 = vmatprep.mubr.bf16.mxu0 %v3926
      %4683 = vmatmul.mubr.bf16.gmra.mrb[0].mxu0 %v3925
      %v4684 = vpop.f32.mrb[0].mxu0
      %v4685 = vadd.f32 %v4200, %v4684
      %v4686 = vpop.f32.mrb[0].mxu0
      %v4687 = vpop.f32.mrb[0].mxu0
      %v4688 = vadd.f32 %v4200, %v4687
      %v4689 = vpop.f32.mrb[0].mxu0
      %4690 = vmatprep.mubr.bf16.mxu0 %v3935
      %4691 = vmatmul.mubr.bf16.gmra.mrb[0].mxu0 %v3934
      %v4692 = vpop.f32.mrb[0].mxu0
      %v4693 = vadd.f32 %v4200, %v4692
      %v4694 = vpop.f32.mrb[0].mxu0
      %v4695 = vpop.f32.mrb[0].mxu0
      %v4696 = vadd.f32 %v4200, %v4695
      %v4697 = vpop.f32.mrb[0].mxu0
      %4698 = vmatprep.mubr.bf16.mxu0 %v3944
      %4699 = vmatmul.mubr.bf16.gmra.mrb[0].mxu0 %v3943
      %v4700 = vpop.f32.mrb[0].mxu0
      %v4701 = vadd.f32 %v4200, %v4700
      %v4702 = vpop.f32.mrb[0].mxu0
      %v4703 = vpop.f32.mrb[0].mxu0
      %v4704 = vadd.f32 %v4200, %v4703
      %v4705 = vpop.f32.mrb[0].mxu0
      %4706 = vmatprep.mubr.bf16.mxu0 %v3953
      %4707 = vmatmul.mubr.bf16.gmra.mrb[0].mxu0 %v3952
      %v4708 = vpop.f32.mrb[0].mxu0
      %v4709 = vadd.f32 %v4200, %v4708
      %v4710 = vpop.f32.mrb[0].mxu0
      %v4711 = vpop.f32.mrb[0].mxu0
      %v4712 = vadd.f32 %v4200, %v4711
      %v4713 = vpop.f32.mrb[0].mxu0
      %4714 = vmatprep.mubr.bf16.mxu0 %v3962
      %4715 = vmatmul.mubr.bf16.gmra.mrb[0].mxu0 %v3961
      %v4716 = vpop.f32.mrb[0].mxu0
      %v4717 = vadd.f32 %v4200, %v4716
      %v4718 = vpop.f32.mrb[0].mxu0
      %v4719 = vpop.f32.mrb[0].mxu0
      %v4720 = vadd.f32 %v4200, %v4719
      %v4721 = vpop.f32.mrb[0].mxu0
      %4722 = vmatprep.mubr.bf16.mxu0 %v3971
      %4723 = vmatmul.mubr.bf16.gmra.mrb[0].mxu0 %v3970
      %v4724 = vpop.f32.mrb[0].mxu0
      %v4725 = vadd.f32 %v4200, %v4724
      %v4726 = vpop.f32.mrb[0].mxu0
      %v4727 = vpop.f32.mrb[0].mxu0
      %v4728 = vadd.f32 %v4200, %v4727
      %v4729 = vpop.f32.mrb[0].mxu0
      %4730 = vmatprep.mubr.bf16.mxu0 %v3980
      %4731 = vmatmul.mubr.bf16.gmra.mrb[0].mxu0 %v3979
      %v4732 = vpop.f32.mrb[0].mxu0
      %v4733 = vadd.f32 %v4200, %v4732
      %v4734 = vpop.f32.mrb[0].mxu0
      %v4735 = vpop.f32.mrb[0].mxu0
      %v4736 = vadd.f32 %v4200, %v4735
      %v4737 = vpop.f32.mrb[0].mxu0
      %4738 = vmatprep.mubr.bf16.mxu0 %v3989
      %4739 = vmatmul.mubr.bf16.gmra.mrb[0].mxu0 %v3988
      %v4740 = vpop.f32.mrb[0].mxu0
      %v4741 = vadd.f32 %v4200, %v4740
      %v4742 = vpop.f32.mrb[0].mxu0
      %v4743 = vpop.f32.mrb[0].mxu0
      %v4744 = vadd.f32 %v4200, %v4743
      %v4745 = vpop.f32.mrb[0].mxu0
      %4746 = vmatprep.mubr.bf16.mxu0 %v3998
      %4747 = vmatmul.mubr.bf16.gmra.mrb[0].mxu0 %v3997
      %v4748 = vpop.f32.mrb[0].mxu0
      %v4749 = vadd.f32 %v4200, %v4748
      %v4750 = vpop.f32.mrb[0].mxu0
      %v4751 = vpop.f32.mrb[0].mxu0
      %v4752 = vadd.f32 %v4200, %v4751
      %v4753 = vpop.f32.mrb[0].mxu0
      %4754 = vmatprep.mubr.bf16.mxu0 %v4007
      %4755 = vmatmul.mubr.bf16.gmra.mrb[0].mxu0 %v4006
      %v4756 = vpop.f32.mrb[0].mxu0
      %v4757 = vadd.f32 %v4200, %v4756
      %v4758 = vpop.f32.mrb[0].mxu0
      %v4759 = vpop.f32.mrb[0].mxu0
      %v4760 = vadd.f32 %v4200, %v4759
      %v4761 = vpop.f32.mrb[0].mxu0
      %4762 = vmatprep.mubr.bf16.mxu0 %v4016
      %4763 = vmatmul.mubr.bf16.gmra.mrb[0].mxu0 %v4015
      %v4764 = vpop.f32.mrb[0].mxu0
      %v4765 = vadd.f32 %v4200, %v4764
      %v4766 = vpop.f32.mrb[0].mxu0
      %v4767 = vpop.f32.mrb[0].mxu0
      %v4768 = vadd.f32 %v4200, %v4767
      %v4769 = vpop.f32.mrb[0].mxu0
      %4770 = vmatprep.mubr.bf16.mxu0 %v4025
      %4771 = vmatmul.mubr.bf16.gmra.mrb[0].mxu0 %v4024
      %v4772 = vpop.f32.mrb[0].mxu0
      %v4773 = vadd.f32 %v4200, %v4772
      %v4774 = vpop.f32.mrb[0].mxu0
      %v4775 = vpop.f32.mrb[0].mxu0
      %v4776 = vadd.f32 %v4200, %v4775
      %v4777 = vpop.f32.mrb[0].mxu0
      %4778 = vmatprep.mubr.bf16.mxu0 %v4034
      %4779 = vmatmul.mubr.bf16.gmra.mrb[0].mxu0 %v4033
      %v4780 = vpop.f32.mrb[0].mxu0
      %v4781 = vadd.f32 %v4200, %v4780
      %v4782 = vpop.f32.mrb[0].mxu0
      %v4783 = vpop.f32.mrb[0].mxu0
      %v4784 = vadd.f32 %v4200, %v4783
      %v4785 = vpop.f32.mrb[0].mxu0
      %4786 = vmatprep.mubr.bf16.mxu0 %v4043
      %4787 = vmatmul.mubr.bf16.gmra.mrb[0].mxu0 %v4042
      %v4788 = vpop.f32.mrb[0].mxu0
      %v4789 = vadd.f32 %v4200, %v4788
      %v4790 = vpop.f32.mrb[0].mxu0
      %v4791 = vpop.f32.mrb[0].mxu0
      %v4792 = vadd.f32 %v4200, %v4791
      %v4793 = vpop.f32.mrb[0].mxu0
      %4794 = vdwg.mxu0
      %4795 = vmatprep.subr.bf16.mxu0 0
      %4796 = vmatpush1.bf16.msra.mxu0 %v4506
      %4797 = vmatprep.subr.bf16.mxu0 0
      %4798 = vmatpush1.bf16.msra.mxu0 %v4507
      %4799 = vmatprep.subr.bf16.mxu0 0
      %4800 = vmatpush1.bf16.msra.mxu0 %v4508
      %4801 = vmatprep.subr.bf16.mxu0 0
      %4802 = vmatpush1.bf16.msra.mxu0 %v4509
      %4803 = vmatprep.subr.bf16.mxu0 0
      %4804 = vmatpush1.bf16.msra.mxu0 %v4510
      %4805 = vmatprep.subr.bf16.mxu0 0
      %4806 = vmatpush1.bf16.msra.mxu0 %v4511
      %4807 = vmatprep.subr.bf16.mxu0 0
      %4808 = vmatpush1.bf16.msra.mxu0 %v4512
      %4809 = vmatprep.subr.bf16.mxu0 0
      %4810 = vmatpush1.bf16.msra.mxu0 %v4513
      %4811 = vmatprep.subr.bf16.mxu0 0
      %4812 = vmatpush1.bf16.msra.mxu0 %v4514
      %4813 = vmatprep.subr.bf16.mxu0 0
      %4814 = vmatpush1.bf16.msra.mxu0 %v4515
      %4815 = vmatprep.subr.bf16.mxu0 0
      %4816 = vmatpush1.bf16.msra.mxu0 %v4516
      %4817 = vmatprep.subr.bf16.mxu0 0
      %4818 = vmatpush1.bf16.msra.mxu0 %v4517
      %4819 = vmatprep.subr.bf16.mxu0 0
      %4820 = vmatpush1.bf16.msra.mxu0 %v4518
      %4821 = vmatprep.subr.bf16.mxu0 0
      %4822 = vmatpush1.bf16.msra.mxu0 %v4519
      %4823 = vmatprep.subr.bf16.mxu0 0
      %4824 = vmatpush1.bf16.msra.mxu0 %v4520
      %4825 = vmatprep.subr.bf16.mxu0 0
      %4826 = vmatpush1.bf16.msra.mxu0 %v4521
      %4827 = vmatprep.mubr.bf16.mxu0 %v3910
      %4828 = vmatmul.mubr.bf16.gmra.mrb[0].mxu0 %v3909
      %v4829 = vpop.f32.mrb[0].mxu0
      %v4830 = vadd.f32 %v4669, %v4829
      %v4831 = vpop.f32.mrb[0].mxu0
      %v4832 = vpop.f32.mrb[0].mxu0
      %v4833 = vadd.f32 %v4672, %v4832
      %v4834 = vpop.f32.mrb[0].mxu0
      %4835 = vmatprep.mubr.bf16.mxu0 %v3919
      %4836 = vmatmul.mubr.bf16.gmra.mrb[0].mxu0 %v3918
      %v4837 = vpop.f32.mrb[0].mxu0
      %v4838 = vadd.f32 %v4677, %v4837
      %v4839 = vpop.f32.mrb[0].mxu0
      %v4840 = vpop.f32.mrb[0].mxu0
      %v4841 = vadd.f32 %v4680, %v4840
      %v4842 = vpop.f32.mrb[0].mxu0
      %4843 = vmatprep.mubr.bf16.mxu0 %v3928
      %4844 = vmatmul.mubr.bf16.gmra.mrb[0].mxu0 %v3927
      %v4845 = vpop.f32.mrb[0].mxu0
      %v4846 = vadd.f32 %v4685, %v4845
      %v4847 = vpop.f32.mrb[0].mxu0
      %v4848 = vpop.f32.mrb[0].mxu0
      %v4849 = vadd.f32 %v4688, %v4848
      %v4850 = vpop.f32.mrb[0].mxu0
      %4851 = vmatprep.mubr.bf16.mxu0 %v3937
      %4852 = vmatmul.mubr.bf16.gmra.mrb[0].mxu0 %v3936
      %v4853 = vpop.f32.mrb[0].mxu0
      %v4854 = vadd.f32 %v4693, %v4853
      %v4855 = vpop.f32.mrb[0].mxu0
      %v4856 = vpop.f32.mrb[0].mxu0
      %v4857 = vadd.f32 %v4696, %v4856
      %v4858 = vpop.f32.mrb[0].mxu0
      %4859 = vmatprep.mubr.bf16.mxu0 %v3946
      %4860 = vmatmul.mubr.bf16.gmra.mrb[0].mxu0 %v3945
      %v4861 = vpop.f32.mrb[0].mxu0
      %v4862 = vadd.f32 %v4701, %v4861
      %v4863 = vpop.f32.mrb[0].mxu0
      %v4864 = vpop.f32.mrb[0].mxu0
      %v4865 = vadd.f32 %v4704, %v4864
      %v4866 = vpop.f32.mrb[0].mxu0
      %4867 = vmatprep.mubr.bf16.mxu0 %v3955
      %4868 = vmatmul.mubr.bf16.gmra.mrb[0].mxu0 %v3954
      %v4869 = vpop.f32.mrb[0].mxu0
      %v4870 = vadd.f32 %v4709, %v4869
      %v4871 = vpop.f32.mrb[0].mxu0
      %v4872 = vpop.f32.mrb[0].mxu0
      %v4873 = vadd.f32 %v4712, %v4872
      %v4874 = vpop.f32.mrb[0].mxu0
      %4875 = vmatprep.mubr.bf16.mxu0 %v3964
      %4876 = vmatmul.mubr.bf16.gmra.mrb[0].mxu0 %v3963
      %v4877 = vpop.f32.mrb[0].mxu0
      %v4878 = vadd.f32 %v4717, %v4877
      %v4879 = vpop.f32.mrb[0].mxu0
      %v4880 = vpop.f32.mrb[0].mxu0
      %v4881 = vadd.f32 %v4720, %v4880
      %v4882 = vpop.f32.mrb[0].mxu0
      %4883 = vmatprep.mubr.bf16.mxu0 %v3973
      %4884 = vmatmul.mubr.bf16.gmra.mrb[0].mxu0 %v3972
      %v4885 = vpop.f32.mrb[0].mxu0
      %v4886 = vadd.f32 %v4725, %v4885
      %v4887 = vpop.f32.mrb[0].mxu0
      %v4888 = vpop.f32.mrb[0].mxu0
      %v4889 = vadd.f32 %v4728, %v4888
      %v4890 = vpop.f32.mrb[0].mxu0
      %4891 = vmatprep.mubr.bf16.mxu0 %v3982
      %4892 = vmatmul.mubr.bf16.gmra.mrb[0].mxu0 %v3981
      %v4893 = vpop.f32.mrb[0].mxu0
      %v4894 = vadd.f32 %v4733, %v4893
      %v4895 = vpop.f32.mrb[0].mxu0
      %v4896 = vpop.f32.mrb[0].mxu0
      %v4897 = vadd.f32 %v4736, %v4896
      %v4898 = vpop.f32.mrb[0].mxu0
      %4899 = vmatprep.mubr.bf16.mxu0 %v3991
      %4900 = vmatmul.mubr.bf16.gmra.mrb[0].mxu0 %v3990
      %v4901 = vpop.f32.mrb[0].mxu0
      %v4902 = vadd.f32 %v4741, %v4901
      %v4903 = vpop.f32.mrb[0].mxu0
      %v4904 = vpop.f32.mrb[0].mxu0
      %v4905 = vadd.f32 %v4744, %v4904
      %v4906 = vpop.f32.mrb[0].mxu0
      %4907 = vmatprep.mubr.bf16.mxu0 %v4000
      %4908 = vmatmul.mubr.bf16.gmra.mrb[0].mxu0 %v3999
      %v4909 = vpop.f32.mrb[0].mxu0
      %v4910 = vadd.f32 %v4749, %v4909
      %v4911 = vpop.f32.mrb[0].mxu0
      %v4912 = vpop.f32.mrb[0].mxu0
      %v4913 = vadd.f32 %v4752, %v4912
      %v4914 = vpop.f32.mrb[0].mxu0
      %4915 = vmatprep.mubr.bf16.mxu0 %v4009
      %4916 = vmatmul.mubr.bf16.gmra.mrb[0].mxu0 %v4008
      %v4917 = vpop.f32.mrb[0].mxu0
      %v4918 = vadd.f32 %v4757, %v4917
      %v4919 = vpop.f32.mrb[0].mxu0
      %v4920 = vpop.f32.mrb[0].mxu0
      %v4921 = vadd.f32 %v4760, %v4920
      %v4922 = vpop.f32.mrb[0].mxu0
      %4923 = vmatprep.mubr.bf16.mxu0 %v4018
      %4924 = vmatmul.mubr.bf16.gmra.mrb[0].mxu0 %v4017
      %v4925 = vpop.f32.mrb[0].mxu0
      %v4926 = vadd.f32 %v4765, %v4925
      %v4927 = vpop.f32.mrb[0].mxu0
      %v4928 = vpop.f32.mrb[0].mxu0
      %v4929 = vadd.f32 %v4768, %v4928
      %v4930 = vpop.f32.mrb[0].mxu0
      %4931 = vmatprep.mubr.bf16.mxu0 %v4027
      %4932 = vmatmul.mubr.bf16.gmra.mrb[0].mxu0 %v4026
      %v4933 = vpop.f32.mrb[0].mxu0
      %v4934 = vadd.f32 %v4773, %v4933
      %v4935 = vpop.f32.mrb[0].mxu0
      %v4936 = vpop.f32.mrb[0].mxu0
      %v4937 = vadd.f32 %v4776, %v4936
      %v4938 = vpop.f32.mrb[0].mxu0
      %4939 = vmatprep.mubr.bf16.mxu0 %v4036
      %4940 = vmatmul.mubr.bf16.gmra.mrb[0].mxu0 %v4035
      %v4941 = vpop.f32.mrb[0].mxu0
      %v4942 = vadd.f32 %v4781, %v4941
      %v4943 = vpop.f32.mrb[0].mxu0
      %v4944 = vpop.f32.mrb[0].mxu0
      %v4945 = vadd.f32 %v4784, %v4944
      %v4946 = vpop.f32.mrb[0].mxu0
      %4947 = vmatprep.mubr.bf16.mxu0 %v4045
      %4948 = vmatmul.mubr.bf16.gmra.mrb[0].mxu0 %v4044
      %v4949 = vpop.f32.mrb[0].mxu0
      %v4950 = vadd.f32 %v4789, %v4949
      %v4951 = vpop.f32.mrb[0].mxu0
      %v4952 = vpop.f32.mrb[0].mxu0
      %v4953 = vadd.f32 %v4792, %v4952
      %v4954 = vpop.f32.mrb[0].mxu0
      %4955 = vdwg.mxu0
      %4956 = vmatprep.subr.bf16.mxu0 0
      %4957 = vmatpush1.bf16.msra.mxu0 %v4522
      %4958 = vmatprep.subr.bf16.mxu0 0
      %4959 = vmatpush1.bf16.msra.mxu0 %v4523
      %4960 = vmatprep.subr.bf16.mxu0 0
      %4961 = vmatpush1.bf16.msra.mxu0 %v4524
      %4962 = vmatprep.subr.bf16.mxu0 0
      %4963 = vmatpush1.bf16.msra.mxu0 %v4525
      %4964 = vmatprep.subr.bf16.mxu0 0
      %4965 = vmatpush1.bf16.msra.mxu0 %v4526
      %4966 = vmatprep.subr.bf16.mxu0 0
      %4967 = vmatpush1.bf16.msra.mxu0 %v4527
      %4968 = vmatprep.subr.bf16.mxu0 0
      %4969 = vmatpush1.bf16.msra.mxu0 %v4528
      %4970 = vmatprep.subr.bf16.mxu0 0
      %4971 = vmatpush1.bf16.msra.mxu0 %v4529
      %4972 = vmatprep.subr.bf16.mxu0 0
      %4973 = vmatpush1.bf16.msra.mxu0 %v4530
      %4974 = vmatprep.subr.bf16.mxu0 0
      %4975 = vmatpush1.bf16.msra.mxu0 %v4531
      %4976 = vmatprep.subr.bf16.mxu0 0
      %4977 = vmatpush1.bf16.msra.mxu0 %v4532
      %4978 = vmatprep.subr.bf16.mxu0 0
      %4979 = vmatpush1.bf16.msra.mxu0 %v4533
      %4980 = vmatprep.subr.bf16.mxu0 0
      %4981 = vmatpush1.bf16.msra.mxu0 %v4534
      %4982 = vmatprep.subr.bf16.mxu0 0
      %4983 = vmatpush1.bf16.msra.mxu0 %v4535
      %4984 = vmatprep.subr.bf16.mxu0 0
      %4985 = vmatpush1.bf16.msra.mxu0 %v4536
      %4986 = vmatprep.subr.bf16.mxu0 0
      %4987 = vmatpush1.bf16.msra.mxu0 %v4537
      %4988 = vmatprep.mubr.bf16.mxu0 %v3912
      %4989 = vmatmul.mubr.bf16.gmra.mrb[0].mxu0 %v3911
      %v4990 = vpop.f32.mrb[0].mxu0
      %v4991 = vadd.f32 %v4830, %v4990
      %v4992 = vpop.f32.mrb[0].mxu0
      %v4993 = vpop.f32.mrb[0].mxu0
      %v4994 = vadd.f32 %v4833, %v4993
      %v4995 = vpop.f32.mrb[0].mxu0
      %4996 = vmatprep.mubr.bf16.mxu0 %v3921
      %4997 = vmatmul.mubr.bf16.gmra.mrb[0].mxu0 %v3920
      %v4998 = vpop.f32.mrb[0].mxu0
      %v4999 = vadd.f32 %v4838, %v4998
      %v5000 = vpop.f32.mrb[0].mxu0
      %v5001 = vpop.f32.mrb[0].mxu0
      %v5002 = vadd.f32 %v4841, %v5001
      %v5003 = vpop.f32.mrb[0].mxu0
      %5004 = vmatprep.mubr.bf16.mxu0 %v3930
      %5005 = vmatmul.mubr.bf16.gmra.mrb[0].mxu0 %v3929
      %v5006 = vpop.f32.mrb[0].mxu0
      %v5007 = vadd.f32 %v4846, %v5006
      %v5008 = vpop.f32.mrb[0].mxu0
      %v5009 = vpop.f32.mrb[0].mxu0
      %v5010 = vadd.f32 %v4849, %v5009
      %v5011 = vpop.f32.mrb[0].mxu0
      %5012 = vmatprep.mubr.bf16.mxu0 %v3939
      %5013 = vmatmul.mubr.bf16.gmra.mrb[0].mxu0 %v3938
      %v5014 = vpop.f32.mrb[0].mxu0
      %v5015 = vadd.f32 %v4854, %v5014
      %v5016 = vpop.f32.mrb[0].mxu0
      %v5017 = vpop.f32.mrb[0].mxu0
      %v5018 = vadd.f32 %v4857, %v5017
      %v5019 = vpop.f32.mrb[0].mxu0
      %5020 = vmatprep.mubr.bf16.mxu0 %v3948
      %5021 = vmatmul.mubr.bf16.gmra.mrb[0].mxu0 %v3947
      %v5022 = vpop.f32.mrb[0].mxu0
      %v5023 = vadd.f32 %v4862, %v5022
      %v5024 = vpop.f32.mrb[0].mxu0
      %v5025 = vpop.f32.mrb[0].mxu0
      %v5026 = vadd.f32 %v4865, %v5025
      %v5027 = vpop.f32.mrb[0].mxu0
      %5028 = vmatprep.mubr.bf16.mxu0 %v3957
      %5029 = vmatmul.mubr.bf16.gmra.mrb[0].mxu0 %v3956
      %v5030 = vpop.f32.mrb[0].mxu0
      %v5031 = vadd.f32 %v4870, %v5030
      %v5032 = vpop.f32.mrb[0].mxu0
      %v5033 = vpop.f32.mrb[0].mxu0
      %v5034 = vadd.f32 %v4873, %v5033
      %v5035 = vpop.f32.mrb[0].mxu0
      %5036 = vmatprep.mubr.bf16.mxu0 %v3966
      %5037 = vmatmul.mubr.bf16.gmra.mrb[0].mxu0 %v3965
      %v5038 = vpop.f32.mrb[0].mxu0
      %v5039 = vadd.f32 %v4878, %v5038
      %v5040 = vpop.f32.mrb[0].mxu0
      %v5041 = vpop.f32.mrb[0].mxu0
      %v5042 = vadd.f32 %v4881, %v5041
      %v5043 = vpop.f32.mrb[0].mxu0
      %5044 = vmatprep.mubr.bf16.mxu0 %v3975
      %5045 = vmatmul.mubr.bf16.gmra.mrb[0].mxu0 %v3974
      %v5046 = vpop.f32.mrb[0].mxu0
      %v5047 = vadd.f32 %v4886, %v5046
      %v5048 = vpop.f32.mrb[0].mxu0
      %v5049 = vpop.f32.mrb[0].mxu0
      %v5050 = vadd.f32 %v4889, %v5049
      %v5051 = vpop.f32.mrb[0].mxu0
      %5052 = vmatprep.mubr.bf16.mxu0 %v3984
      %5053 = vmatmul.mubr.bf16.gmra.mrb[0].mxu0 %v3983
      %v5054 = vpop.f32.mrb[0].mxu0
      %v5055 = vadd.f32 %v4894, %v5054
      %v5056 = vpop.f32.mrb[0].mxu0
      %v5057 = vpop.f32.mrb[0].mxu0
      %v5058 = vadd.f32 %v4897, %v5057
      %v5059 = vpop.f32.mrb[0].mxu0
      %5060 = vmatprep.mubr.bf16.mxu0 %v3993
      %5061 = vmatmul.mubr.bf16.gmra.mrb[0].mxu0 %v3992
      %v5062 = vpop.f32.mrb[0].mxu0
      %v5063 = vadd.f32 %v4902, %v5062
      %v5064 = vpop.f32.mrb[0].mxu0
      %v5065 = vpop.f32.mrb[0].mxu0
      %v5066 = vadd.f32 %v4905, %v5065
      %v5067 = vpop.f32.mrb[0].mxu0
      %5068 = vmatprep.mubr.bf16.mxu0 %v4002
      %5069 = vmatmul.mubr.bf16.gmra.mrb[0].mxu0 %v4001
      %v5070 = vpop.f32.mrb[0].mxu0
      %v5071 = vadd.f32 %v4910, %v5070
      %v5072 = vpop.f32.mrb[0].mxu0
      %v5073 = vpop.f32.mrb[0].mxu0
      %v5074 = vadd.f32 %v4913, %v5073
      %v5075 = vpop.f32.mrb[0].mxu0
      %5076 = vmatprep.mubr.bf16.mxu0 %v4011
      %5077 = vmatmul.mubr.bf16.gmra.mrb[0].mxu0 %v4010
      %v5078 = vpop.f32.mrb[0].mxu0
      %v5079 = vadd.f32 %v4918, %v5078
      %v5080 = vpop.f32.mrb[0].mxu0
      %v5081 = vpop.f32.mrb[0].mxu0
      %v5082 = vadd.f32 %v4921, %v5081
      %v5083 = vpop.f32.mrb[0].mxu0
      %5084 = vmatprep.mubr.bf16.mxu0 %v4020
      %5085 = vmatmul.mubr.bf16.gmra.mrb[0].mxu0 %v4019
      %v5086 = vpop.f32.mrb[0].mxu0
      %v5087 = vadd.f32 %v4926, %v5086
      %v5088 = vpop.f32.mrb[0].mxu0
      %v5089 = vpop.f32.mrb[0].mxu0
      %v5090 = vadd.f32 %v4929, %v5089
      %v5091 = vpop.f32.mrb[0].mxu0
      %5092 = vmatprep.mubr.bf16.mxu0 %v4029
      %5093 = vmatmul.mubr.bf16.gmra.mrb[0].mxu0 %v4028
      %v5094 = vpop.f32.mrb[0].mxu0
      %v5095 = vadd.f32 %v4934, %v5094
      %v5096 = vpop.f32.mrb[0].mxu0
      %v5097 = vpop.f32.mrb[0].mxu0
      %v5098 = vadd.f32 %v4937, %v5097
      %v5099 = vpop.f32.mrb[0].mxu0
      %5100 = vmatprep.mubr.bf16.mxu0 %v4038
      %5101 = vmatmul.mubr.bf16.gmra.mrb[0].mxu0 %v4037
      %v5102 = vpop.f32.mrb[0].mxu0
      %v5103 = vadd.f32 %v4942, %v5102
      %v5104 = vpop.f32.mrb[0].mxu0
      %v5105 = vpop.f32.mrb[0].mxu0
      %v5106 = vadd.f32 %v4945, %v5105
      %v5107 = vpop.f32.mrb[0].mxu0
      %5108 = vmatprep.mubr.bf16.mxu0 %v4047
      %5109 = vmatmul.mubr.bf16.gmra.mrb[0].mxu0 %v4046
      %v5110 = vpop.f32.mrb[0].mxu0
      %v5111 = vadd.f32 %v4950, %v5110
      %v5112 = vpop.f32.mrb[0].mxu0
      %v5113 = vpop.f32.mrb[0].mxu0
      %v5114 = vadd.f32 %v4953, %v5113
      %v5115 = vpop.f32.mrb[0].mxu0
      %5116 = vdwg.mxu0
      %5117 = vmatprep.subr.bf16.mxu0 0
      %5118 = vmatpush1.bf16.msra.mxu0 %v4538
      %5119 = vmatprep.subr.bf16.mxu0 0
      %5120 = vmatpush1.bf16.msra.mxu0 %v4539
      %5121 = vmatprep.subr.bf16.mxu0 0
      %5122 = vmatpush1.bf16.msra.mxu0 %v4540
      %5123 = vmatprep.subr.bf16.mxu0 0
      %5124 = vmatpush1.bf16.msra.mxu0 %v4541
      %5125 = vmatprep.subr.bf16.mxu0 0
      %5126 = vmatpush1.bf16.msra.mxu0 %v4542
      %5127 = vmatprep.subr.bf16.mxu0 0
      %5128 = vmatpush1.bf16.msra.mxu0 %v4543
      %5129 = vmatprep.subr.bf16.mxu0 0
      %5130 = vmatpush1.bf16.msra.mxu0 %v4544
      %5131 = vmatprep.subr.bf16.mxu0 0
      %5132 = vmatpush1.bf16.msra.mxu0 %v4545
      %5133 = vmatprep.subr.bf16.mxu0 0
      %5134 = vmatpush1.bf16.msra.mxu0 %v4546
      %5135 = vmatprep.subr.bf16.mxu0 0
      %5136 = vmatpush1.bf16.msra.mxu0 %v4547
      %5137 = vmatprep.subr.bf16.mxu0 0
      %5138 = vmatpush1.bf16.msra.mxu0 %v4548
      %5139 = vmatprep.subr.bf16.mxu0 0
      %5140 = vmatpush1.bf16.msra.mxu0 %v4549
      %5141 = vmatprep.subr.bf16.mxu0 0
      %5142 = vmatpush1.bf16.msra.mxu0 %v4550
      %5143 = vmatprep.subr.bf16.mxu0 0
      %5144 = vmatpush1.bf16.msra.mxu0 %v4551
      %5145 = vmatprep.subr.bf16.mxu0 0
      %5146 = vmatpush1.bf16.msra.mxu0 %v4552
      %5147 = vmatprep.subr.bf16.mxu0 0
      %5148 = vmatpush1.bf16.msra.mxu0 %v4553
      %5149 = vmatprep.mubr.bf16.mxu0 %v3914
      %5150 = vmatmul.mubr.bf16.gmra.mrb[0].mxu0 %v3913
      %v5151 = vpop.f32.mrb[0].mxu0
      %v5152 = vadd.f32 %v4991, %v5151
      %v5153 = vpop.f32.mrb[0].mxu0
      %v5154 = vpop.f32.mrb[0].mxu0
      %v5155 = vadd.f32 %v4994, %v5154
      %v5156 = vpop.f32.mrb[0].mxu0
      %5157 = vmatprep.mubr.bf16.mxu0 %v3923
      %5158 = vmatmul.mubr.bf16.gmra.mrb[0].mxu0 %v3922
      %v5159 = vpop.f32.mrb[0].mxu0
      %v5160 = vadd.f32 %v4999, %v5159
      %v5161 = vpop.f32.mrb[0].mxu0
      %v5162 = vpop.f32.mrb[0].mxu0
      %v5163 = vadd.f32 %v5002, %v5162
      %v5164 = vpop.f32.mrb[0].mxu0
      %5165 = vmatprep.mubr.bf16.mxu0 %v3932
      %5166 = vmatmul.mubr.bf16.gmra.mrb[0].mxu0 %v3931
      %v5167 = vpop.f32.mrb[0].mxu0
      %v5168 = vadd.f32 %v5007, %v5167
      %v5169 = vpop.f32.mrb[0].mxu0
      %v5170 = vpop.f32.mrb[0].mxu0
      %v5171 = vadd.f32 %v5010, %v5170
      %v5172 = vpop.f32.mrb[0].mxu0
      %5173 = vmatprep.mubr.bf16.mxu0 %v3941
      %5174 = vmatmul.mubr.bf16.gmra.mrb[0].mxu0 %v3940
      %v5175 = vpop.f32.mrb[0].mxu0
      %v5176 = vadd.f32 %v5015, %v5175
      %v5177 = vpop.f32.mrb[0].mxu0
      %v5178 = vpop.f32.mrb[0].mxu0
      %v5179 = vadd.f32 %v5018, %v5178
      %v5180 = vpop.f32.mrb[0].mxu0
      %5181 = vmatprep.mubr.bf16.mxu0 %v3950
      %5182 = vmatmul.mubr.bf16.gmra.mrb[0].mxu0 %v3949
      %v5183 = vpop.f32.mrb[0].mxu0
      %v5184 = vadd.f32 %v5023, %v5183
      %v5185 = vpop.f32.mrb[0].mxu0
      %v5186 = vpop.f32.mrb[0].mxu0
      %v5187 = vadd.f32 %v5026, %v5186
      %v5188 = vpop.f32.mrb[0].mxu0
      %5189 = vmatprep.mubr.bf16.mxu0 %v3959
      %5190 = vmatmul.mubr.bf16.gmra.mrb[0].mxu0 %v3958
      %v5191 = vpop.f32.mrb[0].mxu0
      %v5192 = vadd.f32 %v5031, %v5191
      %v5193 = vpop.f32.mrb[0].mxu0
      %v5194 = vpop.f32.mrb[0].mxu0
      %v5195 = vadd.f32 %v5034, %v5194
      %v5196 = vpop.f32.mrb[0].mxu0
      %5197 = vmatprep.mubr.bf16.mxu0 %v3968
      %5198 = vmatmul.mubr.bf16.gmra.mrb[0].mxu0 %v3967
      %v5199 = vpop.f32.mrb[0].mxu0
      %v5200 = vadd.f32 %v5039, %v5199
      %v5201 = vpop.f32.mrb[0].mxu0
      %v5202 = vpop.f32.mrb[0].mxu0
      %v5203 = vadd.f32 %v5042, %v5202
      %v5204 = vpop.f32.mrb[0].mxu0
      %5205 = vmatprep.mubr.bf16.mxu0 %v3977
      %5206 = vmatmul.mubr.bf16.gmra.mrb[0].mxu0 %v3976
      %v5207 = vpop.f32.mrb[0].mxu0
      %v5208 = vadd.f32 %v5047, %v5207
      %v5209 = vpop.f32.mrb[0].mxu0
      %v5210 = vpop.f32.mrb[0].mxu0
      %v5211 = vadd.f32 %v5050, %v5210
      %v5212 = vpop.f32.mrb[0].mxu0
      %5213 = vmatprep.mubr.bf16.mxu0 %v3986
      %5214 = vmatmul.mubr.bf16.gmra.mrb[0].mxu0 %v3985
      %v5215 = vpop.f32.mrb[0].mxu0
      %v5216 = vadd.f32 %v5055, %v5215
      %v5217 = vpop.f32.mrb[0].mxu0
      %v5218 = vpop.f32.mrb[0].mxu0
      %v5219 = vadd.f32 %v5058, %v5218
      %v5220 = vpop.f32.mrb[0].mxu0
      %5221 = vmatprep.mubr.bf16.mxu0 %v3995
      %5222 = vmatmul.mubr.bf16.gmra.mrb[0].mxu0 %v3994
      %v5223 = vpop.f32.mrb[0].mxu0
      %v5224 = vadd.f32 %v5063, %v5223
      %v5225 = vpop.f32.mrb[0].mxu0
      %v5226 = vpop.f32.mrb[0].mxu0
      %v5227 = vadd.f32 %v5066, %v5226
      %v5228 = vpop.f32.mrb[0].mxu0
      %5229 = vmatprep.mubr.bf16.mxu0 %v4004
      %5230 = vmatmul.mubr.bf16.gmra.mrb[0].mxu0 %v4003
      %v5231 = vpop.f32.mrb[0].mxu0
      %v5232 = vadd.f32 %v5071, %v5231
      %v5233 = vpop.f32.mrb[0].mxu0
      %v5234 = vpop.f32.mrb[0].mxu0
      %v5235 = vadd.f32 %v5074, %v5234
      %v5236 = vpop.f32.mrb[0].mxu0
      %5237 = vmatprep.mubr.bf16.mxu0 %v4013
      %5238 = vmatmul.mubr.bf16.gmra.mrb[0].mxu0 %v4012
      %v5239 = vpop.f32.mrb[0].mxu0
      %v5240 = vadd.f32 %v5079, %v5239
      %v5241 = vpop.f32.mrb[0].mxu0
      %v5242 = vpop.f32.mrb[0].mxu0
      %v5243 = vadd.f32 %v5082, %v5242
      %v5244 = vpop.f32.mrb[0].mxu0
      %5245 = vmatprep.mubr.bf16.mxu0 %v4022
      %5246 = vmatmul.mubr.bf16.gmra.mrb[0].mxu0 %v4021
      %v5247 = vpop.f32.mrb[0].mxu0
      %v5248 = vadd.f32 %v5087, %v5247
      %v5249 = vpop.f32.mrb[0].mxu0
      %v5250 = vpop.f32.mrb[0].mxu0
      %v5251 = vadd.f32 %v5090, %v5250
      %v5252 = vpop.f32.mrb[0].mxu0
      %5253 = vmatprep.mubr.bf16.mxu0 %v4031
      %5254 = vmatmul.mubr.bf16.gmra.mrb[0].mxu0 %v4030
      %v5255 = vpop.f32.mrb[0].mxu0
      %v5256 = vadd.f32 %v5095, %v5255
      %v5257 = vpop.f32.mrb[0].mxu0
      %v5258 = vpop.f32.mrb[0].mxu0
      %v5259 = vadd.f32 %v5098, %v5258
      %v5260 = vpop.f32.mrb[0].mxu0
      %5261 = vmatprep.mubr.bf16.mxu0 %v4040
      %5262 = vmatmul.mubr.bf16.gmra.mrb[0].mxu0 %v4039
      %v5263 = vpop.f32.mrb[0].mxu0
      %v5264 = vadd.f32 %v5103, %v5263
      %v5265 = vpop.f32.mrb[0].mxu0
      %v5266 = vpop.f32.mrb[0].mxu0
      %v5267 = vadd.f32 %v5106, %v5266
      %v5268 = vpop.f32.mrb[0].mxu0
      %5269 = vmatprep.mubr.bf16.mxu0 %v4049
      %5270 = vmatmul.mubr.bf16.gmra.mrb[0].mxu0 %v4048
      %v5271 = vpop.f32.mrb[0].mxu0
      %v5272 = vadd.f32 %v5111, %v5271
      %v5273 = vpop.f32.mrb[0].mxu0
      %v5274 = vpop.f32.mrb[0].mxu0
      %v5275 = vadd.f32 %v5114, %v5274
      %v5276 = vpop.f32.mrb[0].mxu0
      %5277 = vdwg.mxu0
      %5278 = vmatprep.subr.bf16.mxu0 0
      %5279 = vmatpush1.bf16.msra.mxu0 %v4554
      %5280 = vmatprep.subr.bf16.mxu0 0
      %5281 = vmatpush1.bf16.msra.mxu0 %v4555
      %5282 = vmatprep.subr.bf16.mxu0 0
      %5283 = vmatpush1.bf16.msra.mxu0 %v4556
      %5284 = vmatprep.subr.bf16.mxu0 0
      %5285 = vmatpush1.bf16.msra.mxu0 %v4557
      %5286 = vmatprep.subr.bf16.mxu0 0
      %5287 = vmatpush1.bf16.msra.mxu0 %v4558
      %5288 = vmatprep.subr.bf16.mxu0 0
      %5289 = vmatpush1.bf16.msra.mxu0 %v4559
      %5290 = vmatprep.subr.bf16.mxu0 0
      %5291 = vmatpush1.bf16.msra.mxu0 %v4560
      %5292 = vmatprep.subr.bf16.mxu0 0
      %5293 = vmatpush1.bf16.msra.mxu0 %v4561
      %5294 = vmatprep.subr.bf16.mxu0 0
      %5295 = vmatpush1.bf16.msra.mxu0 0
      %5296 = vmatprep.subr.bf16.mxu0 0
      %5297 = vmatpush1.bf16.msra.mxu0 0
      %5298 = vmatprep.subr.bf16.mxu0 0
      %5299 = vmatpush1.bf16.msra.mxu0 0
      %5300 = vmatprep.subr.bf16.mxu0 0
      %5301 = vmatpush1.bf16.msra.mxu0 0
      %5302 = vmatprep.subr.bf16.mxu0 0
      %5303 = vmatpush1.bf16.msra.mxu0 0
      %5304 = vmatprep.subr.bf16.mxu0 0
      %5305 = vmatpush1.bf16.msra.mxu0 0
      %5306 = vmatprep.subr.bf16.mxu0 0
      %5307 = vmatpush1.bf16.msra.mxu0 0
      %5308 = vmatprep.subr.bf16.mxu0 0
      %5309 = vmatpush1.bf16.msra.mxu0 0
      %5310 = vmatprep.mubr.bf16.mxu0 0
      %5311 = vmatmul.mubr.bf16.gmra.mrb[0].mxu0 %v3915
      %v5312 = vpop.f32.mrb[0].mxu0
      %v5313 = vadd.f32 %v5152, %v5312
      %v5314 = vpop.f32.mrb[0].mxu0
      %v5315 = vpop.f32.mrb[0].mxu0
      %v5316 = vadd.f32 %v5155, %v5315
      %v5317 = vpop.f32.mrb[0].mxu0
      %5318 = vmatprep.mubr.bf16.mxu0 0
      %5319 = vmatmul.mubr.bf16.gmra.mrb[0].mxu0 %v3924
      %v5320 = vpop.f32.mrb[0].mxu0
      %v5321 = vadd.f32 %v5160, %v5320
      %v5322 = vpop.f32.mrb[0].mxu0
      %v5323 = vpop.f32.mrb[0].mxu0
      %v5324 = vadd.f32 %v5163, %v5323
      %v5325 = vpop.f32.mrb[0].mxu0
      %5326 = vmatprep.mubr.bf16.mxu0 0
      %5327 = vmatmul.mubr.bf16.gmra.mrb[0].mxu0 %v3933
      %v5328 = vpop.f32.mrb[0].mxu0
      %v5329 = vadd.f32 %v5168, %v5328
      %v5330 = vpop.f32.mrb[0].mxu0
      %v5331 = vpop.f32.mrb[0].mxu0
      %v5332 = vadd.f32 %v5171, %v5331
      %v5333 = vpop.f32.mrb[0].mxu0
      %5334 = vmatprep.mubr.bf16.mxu0 0
      %5335 = vmatmul.mubr.bf16.gmra.mrb[0].mxu0 %v3942
      %v5336 = vpop.f32.mrb[0].mxu0
      %v5337 = vadd.f32 %v5176, %v5336
      %v5338 = vpop.f32.mrb[0].mxu0
      %v5339 = vpop.f32.mrb[0].mxu0
      %v5340 = vadd.f32 %v5179, %v5339
      %v5341 = vpop.f32.mrb[0].mxu0
      %5342 = vmatprep.mubr.bf16.mxu0 0
      %5343 = vmatmul.mubr.bf16.gmra.mrb[0].mxu0 %v3951
      %v5344 = vpop.f32.mrb[0].mxu0
      %v5345 = vadd.f32 %v5184, %v5344
      %v5346 = vpop.f32.mrb[0].mxu0
      %v5347 = vpop.f32.mrb[0].mxu0
      %v5348 = vadd.f32 %v5187, %v5347
      %v5349 = vpop.f32.mrb[0].mxu0
      %5350 = vmatprep.mubr.bf16.mxu0 0
      %5351 = vmatmul.mubr.bf16.gmra.mrb[0].mxu0 %v3960
      %v5352 = vpop.f32.mrb[0].mxu0
      %v5353 = vadd.f32 %v5192, %v5352
      %v5354 = vpop.f32.mrb[0].mxu0
      %v5355 = vpop.f32.mrb[0].mxu0
      %v5356 = vadd.f32 %v5195, %v5355
      %v5357 = vpop.f32.mrb[0].mxu0
      %5358 = vmatprep.mubr.bf16.mxu0 0
      %5359 = vmatmul.mubr.bf16.gmra.mrb[0].mxu0 %v3969
      %v5360 = vpop.f32.mrb[0].mxu0
      %v5361 = vadd.f32 %v5200, %v5360
      %v5362 = vpop.f32.mrb[0].mxu0
      %v5363 = vpop.f32.mrb[0].mxu0
      %v5364 = vadd.f32 %v5203, %v5363
      %v5365 = vpop.f32.mrb[0].mxu0
      %5366 = vmatprep.mubr.bf16.mxu0 0
      %5367 = vmatmul.mubr.bf16.gmra.mrb[0].mxu0 %v3978
      %v5368 = vpop.f32.mrb[0].mxu0
      %v5369 = vadd.f32 %v5208, %v5368
      %v5370 = vpop.f32.mrb[0].mxu0
      %v5371 = vpop.f32.mrb[0].mxu0
      %v5372 = vadd.f32 %v5211, %v5371
      %v5373 = vpop.f32.mrb[0].mxu0
      %5374 = vmatprep.mubr.bf16.mxu0 0
      %5375 = vmatmul.mubr.bf16.gmra.mrb[0].mxu0 %v3987
      %v5376 = vpop.f32.mrb[0].mxu0
      %v5377 = vadd.f32 %v5216, %v5376
      %v5378 = vpop.f32.mrb[0].mxu0
      %v5379 = vpop.f32.mrb[0].mxu0
      %v5380 = vadd.f32 %v5219, %v5379
      %v5381 = vpop.f32.mrb[0].mxu0
      %5382 = vmatprep.mubr.bf16.mxu0 0
      %5383 = vmatmul.mubr.bf16.gmra.mrb[0].mxu0 %v3996
      %v5384 = vpop.f32.mrb[0].mxu0
      %v5385 = vadd.f32 %v5224, %v5384
      %v5386 = vpop.f32.mrb[0].mxu0
      %v5387 = vpop.f32.mrb[0].mxu0
      %v5388 = vadd.f32 %v5227, %v5387
      %v5389 = vpop.f32.mrb[0].mxu0
      %5390 = vmatprep.mubr.bf16.mxu0 0
      %5391 = vmatmul.mubr.bf16.gmra.mrb[0].mxu0 %v4005
      %v5392 = vpop.f32.mrb[0].mxu0
      %v5393 = vadd.f32 %v5232, %v5392
      %v5394 = vpop.f32.mrb[0].mxu0
      %v5395 = vpop.f32.mrb[0].mxu0
      %v5396 = vadd.f32 %v5235, %v5395
      %v5397 = vpop.f32.mrb[0].mxu0
      %5398 = vmatprep.mubr.bf16.mxu0 0
      %5399 = vmatmul.mubr.bf16.gmra.mrb[0].mxu0 %v4014
      %v5400 = vpop.f32.mrb[0].mxu0
      %v5401 = vadd.f32 %v5240, %v5400
      %v5402 = vpop.f32.mrb[0].mxu0
      %v5403 = vpop.f32.mrb[0].mxu0
      %v5404 = vadd.f32 %v5243, %v5403
      %v5405 = vpop.f32.mrb[0].mxu0
      %5406 = vmatprep.mubr.bf16.mxu0 0
      %5407 = vmatmul.mubr.bf16.gmra.mrb[0].mxu0 %v4023
      %v5408 = vpop.f32.mrb[0].mxu0
      %v5409 = vadd.f32 %v5248, %v5408
      %v5410 = vpop.f32.mrb[0].mxu0
      %v5411 = vpop.f32.mrb[0].mxu0
      %v5412 = vadd.f32 %v5251, %v5411
      %v5413 = vpop.f32.mrb[0].mxu0
      %5414 = vmatprep.mubr.bf16.mxu0 0
      %5415 = vmatmul.mubr.bf16.gmra.mrb[0].mxu0 %v4032
      %v5416 = vpop.f32.mrb[0].mxu0
      %v5417 = vadd.f32 %v5256, %v5416
      %v5418 = vpop.f32.mrb[0].mxu0
      %v5419 = vpop.f32.mrb[0].mxu0
      %v5420 = vadd.f32 %v5259, %v5419
      %v5421 = vpop.f32.mrb[0].mxu0
      %5422 = vmatprep.mubr.bf16.mxu0 0
      %5423 = vmatmul.mubr.bf16.gmra.mrb[0].mxu0 %v4041
      %v5424 = vpop.f32.mrb[0].mxu0
      %v5425 = vadd.f32 %v5264, %v5424
      %v5426 = vpop.f32.mrb[0].mxu0
      %v5427 = vpop.f32.mrb[0].mxu0
      %v5428 = vadd.f32 %v5267, %v5427
      %v5429 = vpop.f32.mrb[0].mxu0
      %5430 = vmatprep.mubr.bf16.mxu0 0
      %5431 = vmatmul.mubr.bf16.gmra.mrb[0].mxu0 %v4050
      %v5432 = vpop.f32.mrb[0].mxu0
      %v5433 = vadd.f32 %v5272, %v5432
      %v5434 = vpop.f32.mrb[0].mxu0
      %v5435 = vpop.f32.mrb[0].mxu0
      %v5436 = vadd.f32 %v5275, %v5435
      %v5437 = vpop.f32.mrb[0].mxu0
      %5438 = vdwg.mxu0
      %v5439 = vld [vmem:[%s266] sm:$0xff]
      %v5440 = vld [vmem:[%s266 + $0x8] sm:$0xff]
      %v5441 = vld [vmem:[%s266 + $0x10] sm:$0xff]
      %v5442 = vld [vmem:[%s266 + $0x18] sm:$0xff]
      %v5443 = vld [vmem:[%s266 + $0x20] sm:$0xff]
      %v5444 = vld [vmem:[%s266 + $0x28] sm:$0xff]
      %v5445 = vld [vmem:[%s266 + $0x30] sm:$0xff]
      %v5446 = vld [vmem:[%s266 + $0x38] sm:$0xff]
      %v5447 = vld [vmem:[%s266 + $0x40] sm:$0xff]
      %v5448 = vld [vmem:[%s266 + $0x48] sm:$0xff]
      %v5449 = vld [vmem:[%s266 + $0x50] sm:$0xff]
      %v5450 = vld [vmem:[%s266 + $0x58] sm:$0xff]
      %v5451 = vld [vmem:[%s266 + $0x60] sm:$0xff]
      %v5452 = vld [vmem:[%s266 + $0x68] sm:$0xff]
      %v5453 = vld [vmem:[%s266 + $0x70] sm:$0xff]
      %v5454 = vld [vmem:[%s266 + $0x78] sm:$0xff]
      %v5455 = vld [vmem:[%s266 + $0x80] sm:$0xff]
      %v5456 = vld [vmem:[%s266 + $0x88] sm:$0xff]
      %v5457 = vld [vmem:[%s266 + $0x90] sm:$0xff]
      %v5458 = vld [vmem:[%s266 + $0x98] sm:$0xff]
      %v5459 = vld [vmem:[%s266 + $0xa0] sm:$0xff]
      %v5460 = vld [vmem:[%s266 + $0xa8] sm:$0xff]
      %v5461 = vld [vmem:[%s266 + $0xb0] sm:$0xff]
      %v5462 = vld [vmem:[%s266 + $0xb8] sm:$0xff]
      %v5463 = vld [vmem:[%s266 + $0xc0] sm:$0xff]
      %v5464 = vld [vmem:[%s266 + $0xc8] sm:$0xff]
      %v5465 = vld [vmem:[%s266 + $0xd0] sm:$0xff]
      %v5466 = vld [vmem:[%s266 + $0xd8] sm:$0xff]
      %v5467 = vld [vmem:[%s266 + $0xe0] sm:$0xff]
      %v5468 = vld [vmem:[%s266 + $0xe8] sm:$0xff]
      %v5469 = vld [vmem:[%s266 + $0xf0] sm:$0xff]
      %v5470 = vld [vmem:[%s266 + $0xf8] sm:$0xff]
      %v5471 = vadd.f32 %v5313, %v5439
      %v5472 = vadd.f32 %v5316, %v5440
      %v5473 = vadd.f32 %v5321, %v5441
      %v5474 = vadd.f32 %v5324, %v5442
      %v5475 = vadd.f32 %v5329, %v5443
      %v5476 = vadd.f32 %v5332, %v5444
      %v5477 = vadd.f32 %v5337, %v5445
      %v5478 = vadd.f32 %v5340, %v5446
      %v5479 = vadd.f32 %v5345, %v5447
      %v5480 = vadd.f32 %v5348, %v5448
      %v5481 = vadd.f32 %v5353, %v5449
      %v5482 = vadd.f32 %v5356, %v5450
      %v5483 = vadd.f32 %v5361, %v5451
      %v5484 = vadd.f32 %v5364, %v5452
      %v5485 = vadd.f32 %v5369, %v5453
      %v5486 = vadd.f32 %v5372, %v5454
      %v5487 = vadd.f32 %v5377, %v5455
      %v5488 = vadd.f32 %v5380, %v5456
      %v5489 = vadd.f32 %v5385, %v5457
      %v5490 = vadd.f32 %v5388, %v5458
      %v5491 = vadd.f32 %v5393, %v5459
      %v5492 = vadd.f32 %v5396, %v5460
      %v5493 = vadd.f32 %v5401, %v5461
      %v5494 = vadd.f32 %v5404, %v5462
      %v5495 = vadd.f32 %v5409, %v5463
      %v5496 = vadd.f32 %v5412, %v5464
      %v5497 = vadd.f32 %v5417, %v5465
      %v5498 = vadd.f32 %v5420, %v5466
      %v5499 = vadd.f32 %v5425, %v5467
      %v5500 = vadd.f32 %v5428, %v5468
      %v5501 = vadd.f32 %v5433, %v5469
      %v5502 = vadd.f32 %v5436, %v5470
      %5503 = vst [vmem:[%s271] sm:$0xff] %v5471
      %5504 = vst [vmem:[%s271 + $0x8] sm:$0xff] %v5472
      %5505 = vst [vmem:[%s271 + $0x10] sm:$0xff] %v5473
      %5506 = vst [vmem:[%s271 + $0x18] sm:$0xff] %v5474
      %5507 = vst [vmem:[%s271 + $0x20] sm:$0xff] %v5475
      %5508 = vst [vmem:[%s271 + $0x28] sm:$0xff] %v5476
      %5509 = vst [vmem:[%s271 + $0x30] sm:$0xff] %v5477
      %5510 = vst [vmem:[%s271 + $0x38] sm:$0xff] %v5478
      %5511 = vst [vmem:[%s271 + $0x40] sm:$0xff] %v5479
      %5512 = vst [vmem:[%s271 + $0x48] sm:$0xff] %v5480
      %5513 = vst [vmem:[%s271 + $0x50] sm:$0xff] %v5481
      %5514 = vst [vmem:[%s271 + $0x58] sm:$0xff] %v5482
      %5515 = vst [vmem:[%s271 + $0x60] sm:$0xff] %v5483
      %5516 = vst [vmem:[%s271 + $0x68] sm:$0xff] %v5484
      %5517 = vst [vmem:[%s271 + $0x70] sm:$0xff] %v5485
      %5518 = vst [vmem:[%s271 + $0x78] sm:$0xff] %v5486
      %5519 = vst [vmem:[%s271 + $0x80] sm:$0xff] %v5487
      %5520 = vst [vmem:[%s271 + $0x88] sm:$0xff] %v5488
      %5521 = vst [vmem:[%s271 + $0x90] sm:$0xff] %v5489
      %5522 = vst [vmem:[%s271 + $0x98] sm:$0xff] %v5490
      %5523 = vst [vmem:[%s271 + $0xa0] sm:$0xff] %v5491
      %5524 = vst [vmem:[%s271 + $0xa8] sm:$0xff] %v5492
      %5525 = vst [vmem:[%s271 + $0xb0] sm:$0xff] %v5493
      %5526 = vst [vmem:[%s271 + $0xb8] sm:$0xff] %v5494
      %5527 = vst [vmem:[%s271 + $0xc0] sm:$0xff] %v5495
      %5528 = vst [vmem:[%s271 + $0xc8] sm:$0xff] %v5496
      %5529 = vst [vmem:[%s271 + $0xd0] sm:$0xff] %v5497
      %5530 = vst [vmem:[%s271 + $0xd8] sm:$0xff] %v5498
      %5531 = vst [vmem:[%s271 + $0xe0] sm:$0xff] %v5499
      %5532 = vst [vmem:[%s271 + $0xe8] sm:$0xff] %v5500
      %5533 = vst [vmem:[%s271 + $0xf0] sm:$0xff] %v5501
      %5534 = vst [vmem:[%s271 + $0xf8] sm:$0xff] %v5502
      %p5535 = scmp.lt.s32.totalorder %s17, 1
      %s5536 = scalar_select %p5535, %s17, 1
      %s5537 = smul.addr %s5536, 32
      %s5538 = smul.addr %s5537, 8
      %s5539 = scalar_lea.vmem %s6, %s5538
      // Predicated region
      $region45: #{resnet_block.3} parent=43 // pred_check
        %p5540 = pneg %p171
      $region46: #{resnet_block.3} parent=43 // pred_check_branch
        %5542 = sbr.rel (%p5540) target = $region48
      $region47: #{resnet_block.3} parent=43 // pred_region
        _
      $region48: #{resnet_block.3} parent=43 // pred_fallthru
        _
    $region44: #{resnet_block.3} parent=5 // pred_fallthru
      _
    %p5543 = scmp.le.s32.totalorder 2, %s12
    // Predicated region
    $region49: #{resnet_block.3} parent=5 // pred_check
      %p5544 = pneg %p5543
    $region50: #{resnet_block.3} parent=5 // pred_check_branch
      %5546 = sbr.rel (%p5544) target = $region52
    $region51: #{resnet_block.3} parent=5 // pred_region
      %s5547 = ssub.s32 %s12, 2
      // Predicated region
      $region53: #{resnet_block.3} parent=51 // pred_check
        %p5548 = pneg %p177
      $region54: #{resnet_block.3} parent=51 // pred_check_branch
        %5550 = sbr.rel (%p5548) target = $region56
      $region55: #{resnet_block.3} parent=51 // pred_region
        %p5551 = scmp.lt.s32.totalorder %s18, 1
        %s5552 = scalar_select %p5551, %s18, 1
        %s5553 = smul.addr %s5552, 32
        %s5554 = smul.addr %s5553, 8
        %s5555 = scalar_lea.vmem %s6, %s5554
      $region56: #{resnet_block.3} parent=51 // pred_fallthru
        _
    $region52: #{resnet_block.3} parent=5 // pred_fallthru
      _
  $region6: #{resnet_block.3} parent=0 // loop_footer
    %s16 = sadd.s32 1, %s12
  $region7: #{resnet_block.3} parent=0 // loop_footer_branch
    %11 = sbr.rel target = $region3
  $region8: #{resnet_block.3} parent=0 // loop_exit
    _

</llo_original>
